<compile_context>
chip_gen: v7x
topology: tpu7x:2x2x1
jax: 0.10.0
libtpu: 0.0.40
codegen_flags: <defaults>
</compile_context>

<pallas_src>
import functools
import math

import jax
import jax.numpy as jnp
from jax import lax
from jax.experimental import pallas as pl
from jax.experimental.pallas import tpu as pltpu


def _round_up(x, m):
    return (x + m - 1) // m * m


def _bn_fold(gamma, beta, mean, var, eps=1e-5):
    scale = gamma / jnp.sqrt(var + eps)
    return scale, beta - mean * scale


# ------------------------------ Pallas kernel -------------------------------

def _bottleneck_kernel(x_ref, mask_ref, w1_ref, b1_ref, w2_ref, b2_ref,
                       w3_ref, b3_ref, o_ref, o1_scr,
                       *, alpha, Hp, Wp, P, TP, center):
    f32 = jnp.float32

    def lrelu(v):
        return jnp.where(v >= 0, v, alpha * v)

    # ---- stage 1: dense 1x1x1 conv (BN1 scale folded into w1) + bias +  ----
    # ---- LeakyReLU, masked so halo / tail rows are exactly zero; one    ----
    # ---- lane-dense store into the (R1, C2p) VMEM slab.                 ----
    y1 = jnp.dot(x_ref[...], w1_ref[...], preferred_element_type=f32)
    o1_scr[...] = (lrelu(y1 + b1_ref[...]) * mask_ref[...]).astype(o1_scr.dtype)

    # Per-tap row offsets in corner coordinates (stride 1), all static.
    offs = [kd * Hp * Wp + kh * Wp + kw
            for kd in range(3) for kh in range(3) for kw in range(3)]

    # ---- stages 2+3, row-tiled.  27-tap accumulation kept in registers  ----
    # ---- per tile (block-diagonal full-width matmuls, init with tap 0), ----
    # ---- then BN2+lrelu, one dense stage-3 matmul, BN3+residual+lrelu,  ----
    # ---- one store per tile.                                            ----
    r0 = 0
    while r0 < P:
        tp = min(TP, P - r0)
        acc = jnp.dot(o1_scr[pl.ds(r0 + offs[0], tp), :], w2_ref[0],
                      preferred_element_type=f32)
        for t in range(1, 27):
            acc = acc + jnp.dot(o1_scr[pl.ds(r0 + offs[t], tp), :], w2_ref[t],
                                preferred_element_type=f32)
        o2 = lrelu(acc + b2_ref[...]).astype(o1_scr.dtype)          # (tp, C2p)
        y3 = jnp.dot(o2, w3_ref[...], preferred_element_type=f32)   # (tp, C4)
        # residual: the center tap of the halo-padded input slab (static offset)
        res = x_ref[pl.ds(r0 + center, tp), :].astype(f32)          # (tp, C4)
        o_ref[pl.ds(r0, tp), :] = lrelu(y3 + b3_ref[...] + res).astype(o_ref.dtype)
        r0 += tp


# ------------------------- Bottleneck forward pass --------------------------

def bottleneck_forward(x_ncdhw, raw, alpha, stride=1, groups=32, eps=1e-5,
                       compute_dtype=jnp.bfloat16, row_tile=256):
    """Fused Bottleneck forward.  `raw` holds PyTorch-layout weights/BN stats."""
    assert stride == 1, "TODO(synk): stride>1 / downsample branch not implemented"
    N, Cin, D, H, W = x_ncdhw.shape
    C2 = raw["w1"].shape[0]
    C4 = raw["w3"].shape[0]
    assert Cin == C4, "identity residual requires inplanes == planes*4"
    G = groups
    assert C2 % G == 0
    Cg = C2 // G

    Dp, Hp, Wp = D + 2, H + 2, W + 2
    P = D * Hp * Wp                          # output rows in corner coordinates
    t_max = 2 * (Hp * Wp + Wp + 1)           # largest 3x3x3 tap offset
    R1 = _round_up(P + t_max, 8)             # rows of the padded stage-1 slab
    C2p = _round_up(C2, 128)                 # lane-dense width for in-kernel slabs
    center = Hp * Wp + Wp + 1                # residual row offset (center tap)

    # NDHWC, zero halo, flatten rows, tail-pad to R1.  Channels NOT padded in
    # HBM (full-dim block), cast to the MXU feed dtype.
    x_ndhwc = jnp.transpose(x_ncdhw, (0, 2, 3, 4, 1)).astype(jnp.float32)
    x_pad = jnp.pad(x_ndhwc, ((0, 0), (1, 1), (1, 1), (1, 1), (0, 0)))
    x_pad = x_pad.reshape(N, Dp * Hp * Wp, Cin)
    x_pad = jnp.pad(x_pad, ((0, 0), (0, R1 - Dp * Hp * Wp), (0, 0)))
    x_pad = x_pad.astype(compute_dtype)

    # Interior-row mask (1 where the padded row is a real voxel, else 0).
    mask = jnp.pad(jnp.ones((D, H, W), jnp.float32), ((1, 1), (1, 1), (1, 1)))
    mask = jnp.pad(mask.reshape(Dp * Hp * Wp), (0, R1 - Dp * Hp * Wp))
    mask = mask.reshape(R1, 1)

    # ---- weights with BN scales folded, lane-dense packing ----
    s1, b1 = _bn_fold(*raw["bn1"], eps)
    s2, b2 = _bn_fold(*raw["bn2"], eps)
    s3, b3 = _bn_fold(*raw["bn3"], eps)

    # w1: (Cin, C2p), BN1 scale folded into output columns.
    w1 = raw["w1"][:, :, 0, 0, 0].T * s1[None, :]
    w1 = jnp.pad(w1, ((0, 0), (0, C2p - C2))).astype(compute_dtype)

    # w2: per-tap block-diagonal (27, C2p, C2p), BN2 scale folded.
    w2r = raw["w2"].reshape(G, Cg, Cg, 3, 3, 3)              # g, co, ci, kd, kh, kw
    w2r = jnp.transpose(w2r, (3, 4, 5, 0, 2, 1)).reshape(27, G, Cg, Cg)
    w2_bd = jnp.einsum("tgij,gh->tgihj", w2r,
                       jnp.eye(G, dtype=w2r.dtype)).reshape(27, C2, C2)
    w2_bd = w2_bd * s2[None, None, :]
    w2_bd = jnp.pad(w2_bd, ((0, 0), (0, C2p - C2), (0, C2p - C2)))
    w2_bd = w2_bd.astype(compute_dtype)

    # w3: (C2p, C4), BN3 scale folded, contraction rows zero-padded.
    w3 = raw["w3"][:, :, 0, 0, 0].T * s3[None, :]
    w3 = jnp.pad(w3, ((0, C2p - C2), (0, 0))).astype(compute_dtype)

    b1p = jnp.pad(b1, (0, C2p - C2)).reshape(1, C2p)
    b2p = jnp.pad(b2, (0, C2p - C2)).reshape(1, C2p)
    b3p = b3.reshape(1, C4)

    TP = min(row_tile, P)

    kernel = functools.partial(_bottleneck_kernel, alpha=alpha, Hp=Hp, Wp=Wp,
                               P=P, TP=TP, center=center)

    # Rough VMEM footprint (double-buffered inputs/outputs + scratch) -> explicit
    # scoped-VMEM limit with headroom, capped conservatively for v7x.
    def vbytes(shape, dt):
        lead = math.prod(shape[:-2]) if len(shape) > 2 else 1
        return (lead * _round_up(shape[-2], 8) * _round_up(shape[-1], 128)
                * jnp.dtype(dt).itemsize)

    itm = jnp.dtype(compute_dtype).itemsize
    foot = 2 * (vbytes((R1, Cin), compute_dtype)
                + vbytes((R1, 1), jnp.float32)
                + vbytes((Cin, C2p), compute_dtype)
                + 2 * vbytes((1, C2p), jnp.float32)
                + vbytes((27, C2p, C2p), compute_dtype)
                + vbytes((C2p, C4), compute_dtype)
                + vbytes((1, C4), jnp.float32)
                + vbytes((P, C4), jnp.float32))
    foot += vbytes((R1, C2p), compute_dtype)
    vmem_limit = int(min(foot + (8 << 20), 48 << 20))

    flops = 2 * N * (R1 * Cin * C2p + 27 * P * C2p * C2p + P * C2p * C4)
    bytes_accessed = (x_pad.size * itm + N * P * C4 * 4
                      + (w1.size + w2_bd.size + w3.size) * itm
                      + (mask.size + b1p.size + b2p.size + b3p.size) * 4)

    out_full = pl.pallas_call(
        kernel,
        out_shape=jax.ShapeDtypeStruct((N, P, C4), jnp.float32),
        grid=(N,),
        in_specs=[
            pl.BlockSpec((None, R1, Cin), lambda n: (n, 0, 0)),   # x (halo padded)
            pl.BlockSpec((R1, 1), lambda n: (0, 0)),              # interior mask
            pl.BlockSpec((Cin, C2p), lambda n: (0, 0)),           # w1 (scale folded)
            pl.BlockSpec((1, C2p), lambda n: (0, 0)),             # b1
            pl.BlockSpec((27, C2p, C2p), lambda n: (0, 0, 0)),    # w2 block-diag taps
            pl.BlockSpec((1, C2p), lambda n: (0, 0)),             # b2
            pl.BlockSpec((C2p, C4), lambda n: (0, 0)),            # w3 (scale folded)
            pl.BlockSpec((1, C4), lambda n: (0, 0)),              # b3
        ],
        out_specs=pl.BlockSpec((None, P, C4), lambda n: (n, 0, 0)),
        scratch_shapes=[pltpu.VMEM((R1, C2p), compute_dtype)],    # stage-1 slab
        compiler_params=pltpu.CompilerParams(
            dimension_semantics=("parallel",),
            vmem_limit_bytes=vmem_limit),
        cost_estimate=pl.CostEstimate(flops=int(flops), transcendentals=0,
                                      bytes_accessed=int(bytes_accessed)),
    )(x_pad, mask, w1, b1p, w2_bd, b2p, w3, b3p)

    out = out_full.reshape(N, D, Hp, Wp, C4)[:, :, :H, :W, :]
    return jnp.transpose(out, (0, 4, 1, 2, 3))                    # NCDHW


# -------------------------------- pure-JAX ref -------------------------------

def reference_forward(x, raw, alpha, stride, groups, eps=1e-5):
    dn = ("NCDHW", "OIDHW", "NCDHW")

    def bn(y, g, b, m, v):
        s = g / jnp.sqrt(v + eps)
        return y * s[None, :, None, None, None] + (b - m * s)[None, :, None, None, None]

    def lrelu(y):
        return jnp.where(y >= 0, y, alpha * y)

    out = lax.conv_general_dilated(x, raw["w1"], (1, 1, 1), "VALID",
                                   dimension_numbers=dn, precision=lax.Precision.HIGHEST)
    out = lrelu(bn(out, *raw["bn1"]))
    out = lax.conv_general_dilated(out, raw["w2"], (stride,) * 3, [(1, 1)] * 3,
                                   dimension_numbers=dn, feature_group_count=groups,
                                   precision=lax.Precision.HIGHEST)
    out = lrelu(bn(out, *raw["bn2"]))
    out = lax.conv_general_dilated(out, raw["w3"], (1, 1, 1), "VALID",
                                   dimension_numbers=dn, precision=lax.Precision.HIGHEST)
    out = bn(out, *raw["bn3"]) + x
    return lrelu(out)


# ------------------------------------ main -----------------------------------

if __name__ == "__main__":
    N, inplanes, planes = 2, 16, 4
    D = H = W = 4
    groups = 4                 # num_group (must divide planes*2)
    alpha = 0.1                # lrelu_alpha
    stride = 1                 # downsample is None -> stride must be 1
    C2, C4 = planes * 2, planes * 4
    assert inplanes == C4      # residual add requires matching channels

    key = jax.random.PRNGKey(0)
    ks = jax.random.split(key, 7)
    x = jax.random.normal(ks[0], (N, inplanes, D, H, W), jnp.float32)

    # deterministic synthetic weights (PyTorch layouts)
    w1 = jax.random.normal(ks[1], (C2, inplanes, 1, 1, 1), jnp.float32) / (inplanes ** 0.5)
    w2 = jax.random.normal(ks[2], (C2, C2 // groups, 3, 3, 3), jnp.float32) * 0.2
    w3 = jax.random.normal(ks[3], (C4, C2, 1, 1, 1), jnp.float32) / (C2 ** 0.5)

    def bn_params(k, C):
        k1, k2, k3, k4 = jax.random.split(k, 4)
        gamma = 1.0 + 0.1 * jax.random.normal(k1, (C,), jnp.float32)
        beta = 0.1 * jax.random.normal(k2, (C,), jnp.float32)
        mean = 0.1 * jax.random.normal(k3, (C,), jnp.float32)
        var = 1.0 + 0.1 * jnp.abs(jax.random.normal(k4, (C,), jnp.float32))
        return gamma, beta, mean, var

    raw = dict(w1=w1, w2=w2, w3=w3,
               bn1=bn_params(ks[4], C2),
               bn2=bn_params(ks[5], C2),
               bn3=bn_params(ks[6], C4))

    ref = reference_forward(x, raw, alpha, stride, groups)

    # f32 compute path: algorithmic-correctness check at tight tolerance.
    out_f32 = bottleneck_forward(x, raw, alpha, stride=stride, groups=groups,
                                 compute_dtype=jnp.float32)
    out_f32 = jax.block_until_ready(out_f32)
    assert out_f32.shape == ref.shape == (N, C4, D, H, W)
    assert jnp.allclose(out_f32, ref, atol=1e-2, rtol=1e-2), \
        float(jnp.max(jnp.abs(out_f32 - ref)))

    # bf16 MXU-input path (the performance configuration), f32 accumulation;
    # compared against the f32 reference with a bf16-appropriate tolerance.
    out_bf16 = bottleneck_forward(x, raw, alpha, stride=stride, groups=groups,
                                  compute_dtype=jnp.bfloat16)
    out_bf16 = jax.block_until_ready(out_bf16)
    assert out_bf16.shape == ref.shape
    assert jnp.allclose(out_bf16, ref, atol=1e-1, rtol=1e-1), \
        float(jnp.max(jnp.abs(out_bf16 - ref)))

    print("KERNEL_OK")
</pallas_src>

<mosaic_0001>
module attributes {stable_mosaic.version = 11 : i64} {
  func.func @_bottleneck_kernel(%arg0: i32, %arg1: memref<1x232x16xf32, #tpu.memory_space<vmem>>, %arg2: memref<232x1xf32, #tpu.memory_space<vmem>>, %arg3: memref<16x128xf32, #tpu.memory_space<vmem>>, %arg4: memref<1x128xf32, #tpu.memory_space<vmem>>, %arg5: memref<27x128x128xf32, #tpu.memory_space<vmem>>, %arg6: memref<1x128xf32, #tpu.memory_space<vmem>>, %arg7: memref<128x16xf32, #tpu.memory_space<vmem>>, %arg8: memref<1x16xf32, #tpu.memory_space<vmem>>, %arg9: memref<1x144x16xf32, #tpu.memory_space<vmem>>, %arg10: memref<232x128xf32, #tpu.memory_space<vmem>>) attributes {dimension_semantics = [#tpu.dimension_semantics<parallel>], iteration_bounds = array<i64: 2>, scalar_prefetch = 0 : i64, scratch_operands = 1 : i64, tpu.core_type = #tpu.core_type<tc>, window_params = [{transform_indices = @transform_0, window_bounds = array<i64: 1, 232, 16>}, {pipeline_mode = #tpu.pipeline_mode<synchronous>, transform_indices = @transform_1, window_bounds = array<i64: 232, 1>}, {pipeline_mode = #tpu.pipeline_mode<synchronous>, transform_indices = @transform_2, window_bounds = array<i64: 16, 128>}, {pipeline_mode = #tpu.pipeline_mode<synchronous>, transform_indices = @transform_3, window_bounds = array<i64: 1, 128>}, {pipeline_mode = #tpu.pipeline_mode<synchronous>, transform_indices = @transform_4, window_bounds = array<i64: 27, 128, 128>}, {pipeline_mode = #tpu.pipeline_mode<synchronous>, transform_indices = @transform_5, window_bounds = array<i64: 1, 128>}, {pipeline_mode = #tpu.pipeline_mode<synchronous>, transform_indices = @transform_6, window_bounds = array<i64: 128, 16>}, {pipeline_mode = #tpu.pipeline_mode<synchronous>, transform_indices = @transform_7, window_bounds = array<i64: 1, 16>}, {transform_indices = @transform_8, window_bounds = array<i64: 1, 144, 16>}]} {
    %c0 = arith.constant 0 : index
    %c0_0 = arith.constant 0 : index
    %c0_1 = arith.constant 0 : index
    %0 = vector.load %arg1[%c0, %c0_0, %c0_1] : memref<1x232x16xf32, #tpu.memory_space<vmem>>, vector<1x232x16xf32>
    %1 = vector.shape_cast %0 : vector<1x232x16xf32> to vector<232x16xf32>
    %c0_2 = arith.constant 0 : index
    %c0_3 = arith.constant 0 : index
    %2 = vector.load %arg3[%c0_2, %c0_3] : memref<16x128xf32, #tpu.memory_space<vmem>>, vector<16x128xf32>
    %cst = arith.constant dense<0.000000e+00> : vector<232x128xf32>
    %3 = tpu.matmul %1, %2, %cst {dimension_numbers = #tpu.dot_dimension_numbers<[1], [0], [0], [1], [0, 0, 1, 1], [], []>} : vector<232x16xf32>, vector<16x128xf32>, vector<232x128xf32> -> vector<232x128xf32>
    %c0_4 = arith.constant 0 : index
    %c0_5 = arith.constant 0 : index
    %4 = vector.load %arg4[%c0_4, %c0_5] : memref<1x128xf32, #tpu.memory_space<vmem>>, vector<1x128xf32>
    %5 = vector.broadcast %4 : vector<1x128xf32> to vector<232x128xf32>
    %6 = arith.addf %3, %5 : vector<232x128xf32>
    %cst_6 = arith.constant 0.000000e+00 : f32
    %7 = vector.broadcast %cst_6 : f32 to vector<232x128xf32>
    %8 = arith.cmpf oge, %6, %7 : vector<232x128xf32>
    %cst_7 = arith.constant 1.000000e-01 : f32
    %9 = vector.broadcast %cst_7 : f32 to vector<232x128xf32>
    %10 = arith.mulf %9, %6 : vector<232x128xf32>
    %11 = arith.select %8, %6, %10 : vector<232x128xi1>, vector<232x128xf32>
    %c0_8 = arith.constant 0 : index
    %c0_9 = arith.constant 0 : index
    %12 = vector.load %arg2[%c0_8, %c0_9] : memref<232x1xf32, #tpu.memory_space<vmem>>, vector<232x1xf32>
    %13 = vector.broadcast %12 : vector<232x1xf32> to vector<232x128xf32>
    %14 = arith.mulf %11, %13 : vector<232x128xf32>
    %c0_10 = arith.constant 0 : index
    %c0_11 = arith.constant 0 : index
    %15 = vector.load %arg10[%c0_10, %c0_11] : memref<232x128xf32, #tpu.memory_space<vmem>>, vector<232x128xf32>
    tpu.vector_store %arg10[%c0_10, %c0_11], %14 {strides = array<i32>} : memref<232x128xf32, #tpu.memory_space<vmem>>, vector<232x128xf32>,
    %c0_12 = arith.constant 0 : index
    %c0_13 = arith.constant 0 : index
    %16 = vector.load %arg10[%c0_12, %c0_13] : memref<232x128xf32, #tpu.memory_space<vmem>>, vector<144x128xf32>
    %c0_14 = arith.constant 0 : index
    %c0_15 = arith.constant 0 : index
    %c0_16 = arith.constant 0 : index
    %17 = vector.load %arg5[%c0_14, %c0_15, %c0_16] : memref<27x128x128xf32, #tpu.memory_space<vmem>>, vector<1x128x128xf32>
    %18 = vector.shape_cast %17 : vector<1x128x128xf32> to vector<128x128xf32>
    %cst_17 = arith.constant dense<0.000000e+00> : vector<144x128xf32>
    %19 = tpu.matmul %16, %18, %cst_17 {dimension_numbers = #tpu.dot_dimension_numbers<[1], [0], [0], [1], [0, 0, 1, 1], [], []>} : vector<144x128xf32>, vector<128x128xf32>, vector<144x128xf32> -> vector<144x128xf32>
    %c1 = arith.constant 1 : index
    %c0_18 = arith.constant 0 : index
    %20 = vector.load %arg10[%c1, %c0_18] : memref<232x128xf32, #tpu.memory_space<vmem>>, vector<144x128xf32>
    %c1_19 = arith.constant 1 : index
    %c0_20 = arith.constant 0 : index
    %c0_21 = arith.constant 0 : index
    %21 = vector.load %arg5[%c1_19, %c0_20, %c0_21] : memref<27x128x128xf32, #tpu.memory_space<vmem>>, vector<1x128x128xf32>
    %22 = vector.shape_cast %21 : vector<1x128x128xf32> to vector<128x128xf32>
    %cst_22 = arith.constant dense<0.000000e+00> : vector<144x128xf32>
    %23 = tpu.matmul %20, %22, %cst_22 {dimension_numbers = #tpu.dot_dimension_numbers<[1], [0], [0], [1], [0, 0, 1, 1], [], []>} : vector<144x128xf32>, vector<128x128xf32>, vector<144x128xf32> -> vector<144x128xf32>
    %24 = arith.addf %19, %23 : vector<144x128xf32>
    %c2 = arith.constant 2 : index
    %c0_23 = arith.constant 0 : index
    %25 = vector.load %arg10[%c2, %c0_23] : memref<232x128xf32, #tpu.memory_space<vmem>>, vector<144x128xf32>
    %c2_24 = arith.constant 2 : index
    %c0_25 = arith.constant 0 : index
    %c0_26 = arith.constant 0 : index
    %26 = vector.load %arg5[%c2_24, %c0_25, %c0_26] : memref<27x128x128xf32, #tpu.memory_space<vmem>>, vector<1x128x128xf32>
    %27 = vector.shape_cast %26 : vector<1x128x128xf32> to vector<128x128xf32>
    %cst_27 = arith.constant dense<0.000000e+00> : vector<144x128xf32>
    %28 = tpu.matmul %25, %27, %cst_27 {dimension_numbers = #tpu.dot_dimension_numbers<[1], [0], [0], [1], [0, 0, 1, 1], [], []>} : vector<144x128xf32>, vector<128x128xf32>, vector<144x128xf32> -> vector<144x128xf32>
    %29 = arith.addf %24, %28 : vector<144x128xf32>
    %c6 = arith.constant 6 : index
    %c0_28 = arith.constant 0 : index
    %30 = vector.load %arg10[%c6, %c0_28] : memref<232x128xf32, #tpu.memory_space<vmem>>, vector<144x128xf32>
    %c3 = arith.constant 3 : index
    %c0_29 = arith.constant 0 : index
    %c0_30 = arith.constant 0 : index
    %31 = vector.load %arg5[%c3, %c0_29, %c0_30] : memref<27x128x128xf32, #tpu.memory_space<vmem>>, vector<1x128x128xf32>
    %32 = vector.shape_cast %31 : vector<1x128x128xf32> to vector<128x128xf32>
    %cst_31 = arith.constant dense<0.000000e+00> : vector<144x128xf32>
    %33 = tpu.matmul %30, %32, %cst_31 {dimension_numbers = #tpu.dot_dimension_numbers<[1], [0], [0], [1], [0, 0, 1, 1], [], []>} : vector<144x128xf32>, vector<128x128xf32>, vector<144x128xf32> -> vector<144x128xf32>
    %34 = arith.addf %29, %33 : vector<144x128xf32>
    %c7 = arith.constant 7 : index
    %c0_32 = arith.constant 0 : index
    %35 = vector.load %arg10[%c7, %c0_32] : memref<232x128xf32, #tpu.memory_space<vmem>>, vector<144x128xf32>
    %c4 = arith.constant 4 : index
    %c0_33 = arith.constant 0 : index
    %c0_34 = arith.constant 0 : index
    %36 = vector.load %arg5[%c4, %c0_33, %c0_34] : memref<27x128x128xf32, #tpu.memory_space<vmem>>, vector<1x128x128xf32>
    %37 = vector.shape_cast %36 : vector<1x128x128xf32> to vector<128x128xf32>
    %cst_35 = arith.constant dense<0.000000e+00> : vector<144x128xf32>
    %38 = tpu.matmul %35, %37, %cst_35 {dimension_numbers = #tpu.dot_dimension_numbers<[1], [0], [0], [1], [0, 0, 1, 1], [], []>} : vector<144x128xf32>, vector<128x128xf32>, vector<144x128xf32> -> vector<144x128xf32>
    %39 = arith.addf %34, %38 : vector<144x128xf32>
    %c8 = arith.constant 8 : index
    %c0_36 = arith.constant 0 : index
    %40 = vector.load %arg10[%c8, %c0_36] : memref<232x128xf32, #tpu.memory_space<vmem>>, vector<144x128xf32>
    %c5 = arith.constant 5 : index
    %c0_37 = arith.constant 0 : index
    %c0_38 = arith.constant 0 : index
    %41 = vector.load %arg5[%c5, %c0_37, %c0_38] : memref<27x128x128xf32, #tpu.memory_space<vmem>>, vector<1x128x128xf32>
    %42 = vector.shape_cast %41 : vector<1x128x128xf32> to vector<128x128xf32>
    %cst_39 = arith.constant dense<0.000000e+00> : vector<144x128xf32>
    %43 = tpu.matmul %40, %42, %cst_39 {dimension_numbers = #tpu.dot_dimension_numbers<[1], [0], [0], [1], [0, 0, 1, 1], [], []>} : vector<144x128xf32>, vector<128x128xf32>, vector<144x128xf32> -> vector<144x128xf32>
    %44 = arith.addf %39, %43 : vector<144x128xf32>
    %c12 = arith.constant 12 : index
    %c0_40 = arith.constant 0 : index
    %45 = vector.load %arg10[%c12, %c0_40] : memref<232x128xf32, #tpu.memory_space<vmem>>, vector<144x128xf32>
    %c6_41 = arith.constant 6 : index
    %c0_42 = arith.constant 0 : index
    %c0_43 = arith.constant 0 : index
    %46 = vector.load %arg5[%c6_41, %c0_42, %c0_43] : memref<27x128x128xf32, #tpu.memory_space<vmem>>, vector<1x128x128xf32>
    %47 = vector.shape_cast %46 : vector<1x128x128xf32> to vector<128x128xf32>
    %cst_44 = arith.constant dense<0.000000e+00> : vector<144x128xf32>
    %48 = tpu.matmul %45, %47, %cst_44 {dimension_numbers = #tpu.dot_dimension_numbers<[1], [0], [0], [1], [0, 0, 1, 1], [], []>} : vector<144x128xf32>, vector<128x128xf32>, vector<144x128xf32> -> vector<144x128xf32>
    %49 = arith.addf %44, %48 : vector<144x128xf32>
    %c13 = arith.constant 13 : index
    %c0_45 = arith.constant 0 : index
    %50 = vector.load %arg10[%c13, %c0_45] : memref<232x128xf32, #tpu.memory_space<vmem>>, vector<144x128xf32>
    %c7_46 = arith.constant 7 : index
    %c0_47 = arith.constant 0 : index
    %c0_48 = arith.constant 0 : index
    %51 = vector.load %arg5[%c7_46, %c0_47, %c0_48] : memref<27x128x128xf32, #tpu.memory_space<vmem>>, vector<1x128x128xf32>
    %52 = vector.shape_cast %51 : vector<1x128x128xf32> to vector<128x128xf32>
    %cst_49 = arith.constant dense<0.000000e+00> : vector<144x128xf32>
    %53 = tpu.matmul %50, %52, %cst_49 {dimension_numbers = #tpu.dot_dimension_numbers<[1], [0], [0], [1], [0, 0, 1, 1], [], []>} : vector<144x128xf32>, vector<128x128xf32>, vector<144x128xf32> -> vector<144x128xf32>
    %54 = arith.addf %49, %53 : vector<144x128xf32>
    %c14 = arith.constant 14 : index
    %c0_50 = arith.constant 0 : index
    %55 = vector.load %arg10[%c14, %c0_50] : memref<232x128xf32, #tpu.memory_space<vmem>>, vector<144x128xf32>
    %c8_51 = arith.constant 8 : index
    %c0_52 = arith.constant 0 : index
    %c0_53 = arith.constant 0 : index
    %56 = vector.load %arg5[%c8_51, %c0_52, %c0_53] : memref<27x128x128xf32, #tpu.memory_space<vmem>>, vector<1x128x128xf32>
    %57 = vector.shape_cast %56 : vector<1x128x128xf32> to vector<128x128xf32>
    %cst_54 = arith.constant dense<0.000000e+00> : vector<144x128xf32>
    %58 = tpu.matmul %55, %57, %cst_54 {dimension_numbers = #tpu.dot_dimension_numbers<[1], [0], [0], [1], [0, 0, 1, 1], [], []>} : vector<144x128xf32>, vector<128x128xf32>, vector<144x128xf32> -> vector<144x128xf32>
    %59 = arith.addf %54, %58 : vector<144x128xf32>
    %c36 = arith.constant 36 : index
    %c0_55 = arith.constant 0 : index
    %60 = vector.load %arg10[%c36, %c0_55] : memref<232x128xf32, #tpu.memory_space<vmem>>, vector<144x128xf32>
    %c9 = arith.constant 9 : index
    %c0_56 = arith.constant 0 : index
    %c0_57 = arith.constant 0 : index
    %61 = vector.load %arg5[%c9, %c0_56, %c0_57] : memref<27x128x128xf32, #tpu.memory_space<vmem>>, vector<1x128x128xf32>
    %62 = vector.shape_cast %61 : vector<1x128x128xf32> to vector<128x128xf32>
    %cst_58 = arith.constant dense<0.000000e+00> : vector<144x128xf32>
    %63 = tpu.matmul %60, %62, %cst_58 {dimension_numbers = #tpu.dot_dimension_numbers<[1], [0], [0], [1], [0, 0, 1, 1], [], []>} : vector<144x128xf32>, vector<128x128xf32>, vector<144x128xf32> -> vector<144x128xf32>
    %64 = arith.addf %59, %63 : vector<144x128xf32>
    %c37 = arith.constant 37 : index
    %c0_59 = arith.constant 0 : index
    %65 = vector.load %arg10[%c37, %c0_59] : memref<232x128xf32, #tpu.memory_space<vmem>>, vector<144x128xf32>
    %c10 = arith.constant 10 : index
    %c0_60 = arith.constant 0 : index
    %c0_61 = arith.constant 0 : index
    %66 = vector.load %arg5[%c10, %c0_60, %c0_61] : memref<27x128x128xf32, #tpu.memory_space<vmem>>, vector<1x128x128xf32>
    %67 = vector.shape_cast %66 : vector<1x128x128xf32> to vector<128x128xf32>
    %cst_62 = arith.constant dense<0.000000e+00> : vector<144x128xf32>
    %68 = tpu.matmul %65, %67, %cst_62 {dimension_numbers = #tpu.dot_dimension_numbers<[1], [0], [0], [1], [0, 0, 1, 1], [], []>} : vector<144x128xf32>, vector<128x128xf32>, vector<144x128xf32> -> vector<144x128xf32>
    %69 = arith.addf %64, %68 : vector<144x128xf32>
    %c38 = arith.constant 38 : index
    %c0_63 = arith.constant 0 : index
    %70 = vector.load %arg10[%c38, %c0_63] : memref<232x128xf32, #tpu.memory_space<vmem>>, vector<144x128xf32>
    %c11 = arith.constant 11 : index
    %c0_64 = arith.constant 0 : index
    %c0_65 = arith.constant 0 : index
    %71 = vector.load %arg5[%c11, %c0_64, %c0_65] : memref<27x128x128xf32, #tpu.memory_space<vmem>>, vector<1x128x128xf32>
    %72 = vector.shape_cast %71 : vector<1x128x128xf32> to vector<128x128xf32>
    %cst_66 = arith.constant dense<0.000000e+00> : vector<144x128xf32>
    %73 = tpu.matmul %70, %72, %cst_66 {dimension_numbers = #tpu.dot_dimension_numbers<[1], [0], [0], [1], [0, 0, 1, 1], [], []>} : vector<144x128xf32>, vector<128x128xf32>, vector<144x128xf32> -> vector<144x128xf32>
    %74 = arith.addf %69, %73 : vector<144x128xf32>
    %c42 = arith.constant 42 : index
    %c0_67 = arith.constant 0 : index
    %75 = vector.load %arg10[%c42, %c0_67] : memref<232x128xf32, #tpu.memory_space<vmem>>, vector<144x128xf32>
    %c12_68 = arith.constant 12 : index
    %c0_69 = arith.constant 0 : index
    %c0_70 = arith.constant 0 : index
    %76 = vector.load %arg5[%c12_68, %c0_69, %c0_70] : memref<27x128x128xf32, #tpu.memory_space<vmem>>, vector<1x128x128xf32>
    %77 = vector.shape_cast %76 : vector<1x128x128xf32> to vector<128x128xf32>
    %cst_71 = arith.constant dense<0.000000e+00> : vector<144x128xf32>
    %78 = tpu.matmul %75, %77, %cst_71 {dimension_numbers = #tpu.dot_dimension_numbers<[1], [0], [0], [1], [0, 0, 1, 1], [], []>} : vector<144x128xf32>, vector<128x128xf32>, vector<144x128xf32> -> vector<144x128xf32>
    %79 = arith.addf %74, %78 : vector<144x128xf32>
    %c43 = arith.constant 43 : index
    %c0_72 = arith.constant 0 : index
    %80 = vector.load %arg10[%c43, %c0_72] : memref<232x128xf32, #tpu.memory_space<vmem>>, vector<144x128xf32>
    %c13_73 = arith.constant 13 : index
    %c0_74 = arith.constant 0 : index
    %c0_75 = arith.constant 0 : index
    %81 = vector.load %arg5[%c13_73, %c0_74, %c0_75] : memref<27x128x128xf32, #tpu.memory_space<vmem>>, vector<1x128x128xf32>
    %82 = vector.shape_cast %81 : vector<1x128x128xf32> to vector<128x128xf32>
    %cst_76 = arith.constant dense<0.000000e+00> : vector<144x128xf32>
    %83 = tpu.matmul %80, %82, %cst_76 {dimension_numbers = #tpu.dot_dimension_numbers<[1], [0], [0], [1], [0, 0, 1, 1], [], []>} : vector<144x128xf32>, vector<128x128xf32>, vector<144x128xf32> -> vector<144x128xf32>
    %84 = arith.addf %79, %83 : vector<144x128xf32>
    %c44 = arith.constant 44 : index
    %c0_77 = arith.constant 0 : index
    %85 = vector.load %arg10[%c44, %c0_77] : memref<232x128xf32, #tpu.memory_space<vmem>>, vector<144x128xf32>
    %c14_78 = arith.constant 14 : index
    %c0_79 = arith.constant 0 : index
    %c0_80 = arith.constant 0 : index
    %86 = vector.load %arg5[%c14_78, %c0_79, %c0_80] : memref<27x128x128xf32, #tpu.memory_space<vmem>>, vector<1x128x128xf32>
    %87 = vector.shape_cast %86 : vector<1x128x128xf32> to vector<128x128xf32>
    %cst_81 = arith.constant dense<0.000000e+00> : vector<144x128xf32>
    %88 = tpu.matmul %85, %87, %cst_81 {dimension_numbers = #tpu.dot_dimension_numbers<[1], [0], [0], [1], [0, 0, 1, 1], [], []>} : vector<144x128xf32>, vector<128x128xf32>, vector<144x128xf32> -> vector<144x128xf32>
    %89 = arith.addf %84, %88 : vector<144x128xf32>
    %c48 = arith.constant 48 : index
    %c0_82 = arith.constant 0 : index
    %90 = vector.load %arg10[%c48, %c0_82] : memref<232x128xf32, #tpu.memory_space<vmem>>, vector<144x128xf32>
    %c15 = arith.constant 15 : index
    %c0_83 = arith.constant 0 : index
    %c0_84 = arith.constant 0 : index
    %91 = vector.load %arg5[%c15, %c0_83, %c0_84] : memref<27x128x128xf32, #tpu.memory_space<vmem>>, vector<1x128x128xf32>
    %92 = vector.shape_cast %91 : vector<1x128x128xf32> to vector<128x128xf32>
    %cst_85 = arith.constant dense<0.000000e+00> : vector<144x128xf32>
    %93 = tpu.matmul %90, %92, %cst_85 {dimension_numbers = #tpu.dot_dimension_numbers<[1], [0], [0], [1], [0, 0, 1, 1], [], []>} : vector<144x128xf32>, vector<128x128xf32>, vector<144x128xf32> -> vector<144x128xf32>
    %94 = arith.addf %89, %93 : vector<144x128xf32>
    %c49 = arith.constant 49 : index
    %c0_86 = arith.constant 0 : index
    %95 = vector.load %arg10[%c49, %c0_86] : memref<232x128xf32, #tpu.memory_space<vmem>>, vector<144x128xf32>
    %c16 = arith.constant 16 : index
    %c0_87 = arith.constant 0 : index
    %c0_88 = arith.constant 0 : index
    %96 = vector.load %arg5[%c16, %c0_87, %c0_88] : memref<27x128x128xf32, #tpu.memory_space<vmem>>, vector<1x128x128xf32>
    %97 = vector.shape_cast %96 : vector<1x128x128xf32> to vector<128x128xf32>
    %cst_89 = arith.constant dense<0.000000e+00> : vector<144x128xf32>
    %98 = tpu.matmul %95, %97, %cst_89 {dimension_numbers = #tpu.dot_dimension_numbers<[1], [0], [0], [1], [0, 0, 1, 1], [], []>} : vector<144x128xf32>, vector<128x128xf32>, vector<144x128xf32> -> vector<144x128xf32>
    %99 = arith.addf %94, %98 : vector<144x128xf32>
    %c50 = arith.constant 50 : index
    %c0_90 = arith.constant 0 : index
    %100 = vector.load %arg10[%c50, %c0_90] : memref<232x128xf32, #tpu.memory_space<vmem>>, vector<144x128xf32>
    %c17 = arith.constant 17 : index
    %c0_91 = arith.constant 0 : index
    %c0_92 = arith.constant 0 : index
    %101 = vector.load %arg5[%c17, %c0_91, %c0_92] : memref<27x128x128xf32, #tpu.memory_space<vmem>>, vector<1x128x128xf32>
    %102 = vector.shape_cast %101 : vector<1x128x128xf32> to vector<128x128xf32>
    %cst_93 = arith.constant dense<0.000000e+00> : vector<144x128xf32>
    %103 = tpu.matmul %100, %102, %cst_93 {dimension_numbers = #tpu.dot_dimension_numbers<[1], [0], [0], [1], [0, 0, 1, 1], [], []>} : vector<144x128xf32>, vector<128x128xf32>, vector<144x128xf32> -> vector<144x128xf32>
    %104 = arith.addf %99, %103 : vector<144x128xf32>
    %c72 = arith.constant 72 : index
    %c0_94 = arith.constant 0 : index
    %105 = vector.load %arg10[%c72, %c0_94] : memref<232x128xf32, #tpu.memory_space<vmem>>, vector<144x128xf32>
    %c18 = arith.constant 18 : index
    %c0_95 = arith.constant 0 : index
    %c0_96 = arith.constant 0 : index
    %106 = vector.load %arg5[%c18, %c0_95, %c0_96] : memref<27x128x128xf32, #tpu.memory_space<vmem>>, vector<1x128x128xf32>
    %107 = vector.shape_cast %106 : vector<1x128x128xf32> to vector<128x128xf32>
    %cst_97 = arith.constant dense<0.000000e+00> : vector<144x128xf32>
    %108 = tpu.matmul %105, %107, %cst_97 {dimension_numbers = #tpu.dot_dimension_numbers<[1], [0], [0], [1], [0, 0, 1, 1], [], []>} : vector<144x128xf32>, vector<128x128xf32>, vector<144x128xf32> -> vector<144x128xf32>
    %109 = arith.addf %104, %108 : vector<144x128xf32>
    %c73 = arith.constant 73 : index
    %c0_98 = arith.constant 0 : index
    %110 = vector.load %arg10[%c73, %c0_98] : memref<232x128xf32, #tpu.memory_space<vmem>>, vector<144x128xf32>
    %c19 = arith.constant 19 : index
    %c0_99 = arith.constant 0 : index
    %c0_100 = arith.constant 0 : index
    %111 = vector.load %arg5[%c19, %c0_99, %c0_100] : memref<27x128x128xf32, #tpu.memory_space<vmem>>, vector<1x128x128xf32>
    %112 = vector.shape_cast %111 : vector<1x128x128xf32> to vector<128x128xf32>
    %cst_101 = arith.constant dense<0.000000e+00> : vector<144x128xf32>
    %113 = tpu.matmul %110, %112, %cst_101 {dimension_numbers = #tpu.dot_dimension_numbers<[1], [0], [0], [1], [0, 0, 1, 1], [], []>} : vector<144x128xf32>, vector<128x128xf32>, vector<144x128xf32> -> vector<144x128xf32>
    %114 = arith.addf %109, %113 : vector<144x128xf32>
    %c74 = arith.constant 74 : index
    %c0_102 = arith.constant 0 : index
    %115 = vector.load %arg10[%c74, %c0_102] : memref<232x128xf32, #tpu.memory_space<vmem>>, vector<144x128xf32>
    %c20 = arith.constant 20 : index
    %c0_103 = arith.constant 0 : index
    %c0_104 = arith.constant 0 : index
    %116 = vector.load %arg5[%c20, %c0_103, %c0_104] : memref<27x128x128xf32, #tpu.memory_space<vmem>>, vector<1x128x128xf32>
    %117 = vector.shape_cast %116 : vector<1x128x128xf32> to vector<128x128xf32>
    %cst_105 = arith.constant dense<0.000000e+00> : vector<144x128xf32>
    %118 = tpu.matmul %115, %117, %cst_105 {dimension_numbers = #tpu.dot_dimension_numbers<[1], [0], [0], [1], [0, 0, 1, 1], [], []>} : vector<144x128xf32>, vector<128x128xf32>, vector<144x128xf32> -> vector<144x128xf32>
    %119 = arith.addf %114, %118 : vector<144x128xf32>
    %c78 = arith.constant 78 : index
    %c0_106 = arith.constant 0 : index
    %120 = vector.load %arg10[%c78, %c0_106] : memref<232x128xf32, #tpu.memory_space<vmem>>, vector<144x128xf32>
    %c21 = arith.constant 21 : index
    %c0_107 = arith.constant 0 : index
    %c0_108 = arith.constant 0 : index
    %121 = vector.load %arg5[%c21, %c0_107, %c0_108] : memref<27x128x128xf32, #tpu.memory_space<vmem>>, vector<1x128x128xf32>
    %122 = vector.shape_cast %121 : vector<1x128x128xf32> to vector<128x128xf32>
    %cst_109 = arith.constant dense<0.000000e+00> : vector<144x128xf32>
    %123 = tpu.matmul %120, %122, %cst_109 {dimension_numbers = #tpu.dot_dimension_numbers<[1], [0], [0], [1], [0, 0, 1, 1], [], []>} : vector<144x128xf32>, vector<128x128xf32>, vector<144x128xf32> -> vector<144x128xf32>
    %124 = arith.addf %119, %123 : vector<144x128xf32>
    %c79 = arith.constant 79 : index
    %c0_110 = arith.constant 0 : index
    %125 = vector.load %arg10[%c79, %c0_110] : memref<232x128xf32, #tpu.memory_space<vmem>>, vector<144x128xf32>
    %c22 = arith.constant 22 : index
    %c0_111 = arith.constant 0 : index
    %c0_112 = arith.constant 0 : index
    %126 = vector.load %arg5[%c22, %c0_111, %c0_112] : memref<27x128x128xf32, #tpu.memory_space<vmem>>, vector<1x128x128xf32>
    %127 = vector.shape_cast %126 : vector<1x128x128xf32> to vector<128x128xf32>
    %cst_113 = arith.constant dense<0.000000e+00> : vector<144x128xf32>
    %128 = tpu.matmul %125, %127, %cst_113 {dimension_numbers = #tpu.dot_dimension_numbers<[1], [0], [0], [1], [0, 0, 1, 1], [], []>} : vector<144x128xf32>, vector<128x128xf32>, vector<144x128xf32> -> vector<144x128xf32>
    %129 = arith.addf %124, %128 : vector<144x128xf32>
    %c80 = arith.constant 80 : index
    %c0_114 = arith.constant 0 : index
    %130 = vector.load %arg10[%c80, %c0_114] : memref<232x128xf32, #tpu.memory_space<vmem>>, vector<144x128xf32>
    %c23 = arith.constant 23 : index
    %c0_115 = arith.constant 0 : index
    %c0_116 = arith.constant 0 : index
    %131 = vector.load %arg5[%c23, %c0_115, %c0_116] : memref<27x128x128xf32, #tpu.memory_space<vmem>>, vector<1x128x128xf32>
    %132 = vector.shape_cast %131 : vector<1x128x128xf32> to vector<128x128xf32>
    %cst_117 = arith.constant dense<0.000000e+00> : vector<144x128xf32>
    %133 = tpu.matmul %130, %132, %cst_117 {dimension_numbers = #tpu.dot_dimension_numbers<[1], [0], [0], [1], [0, 0, 1, 1], [], []>} : vector<144x128xf32>, vector<128x128xf32>, vector<144x128xf32> -> vector<144x128xf32>
    %134 = arith.addf %129, %133 : vector<144x128xf32>
    %c84 = arith.constant 84 : index
    %c0_118 = arith.constant 0 : index
    %135 = vector.load %arg10[%c84, %c0_118] : memref<232x128xf32, #tpu.memory_space<vmem>>, vector<144x128xf32>
    %c24 = arith.constant 24 : index
    %c0_119 = arith.constant 0 : index
    %c0_120 = arith.constant 0 : index
    %136 = vector.load %arg5[%c24, %c0_119, %c0_120] : memref<27x128x128xf32, #tpu.memory_space<vmem>>, vector<1x128x128xf32>
    %137 = vector.shape_cast %136 : vector<1x128x128xf32> to vector<128x128xf32>
    %cst_121 = arith.constant dense<0.000000e+00> : vector<144x128xf32>
    %138 = tpu.matmul %135, %137, %cst_121 {dimension_numbers = #tpu.dot_dimension_numbers<[1], [0], [0], [1], [0, 0, 1, 1], [], []>} : vector<144x128xf32>, vector<128x128xf32>, vector<144x128xf32> -> vector<144x128xf32>
    %139 = arith.addf %134, %138 : vector<144x128xf32>
    %c85 = arith.constant 85 : index
    %c0_122 = arith.constant 0 : index
    %140 = vector.load %arg10[%c85, %c0_122] : memref<232x128xf32, #tpu.memory_space<vmem>>, vector<144x128xf32>
    %c25 = arith.constant 25 : index
    %c0_123 = arith.constant 0 : index
    %c0_124 = arith.constant 0 : index
    %141 = vector.load %arg5[%c25, %c0_123, %c0_124] : memref<27x128x128xf32, #tpu.memory_space<vmem>>, vector<1x128x128xf32>
    %142 = vector.shape_cast %141 : vector<1x128x128xf32> to vector<128x128xf32>
    %cst_125 = arith.constant dense<0.000000e+00> : vector<144x128xf32>
    %143 = tpu.matmul %140, %142, %cst_125 {dimension_numbers = #tpu.dot_dimension_numbers<[1], [0], [0], [1], [0, 0, 1, 1], [], []>} : vector<144x128xf32>, vector<128x128xf32>, vector<144x128xf32> -> vector<144x128xf32>
    %144 = arith.addf %139, %143 : vector<144x128xf32>
    %c86 = arith.constant 86 : index
    %c0_126 = arith.constant 0 : index
    %145 = vector.load %arg10[%c86, %c0_126] : memref<232x128xf32, #tpu.memory_space<vmem>>, vector<144x128xf32>
    %c26 = arith.constant 26 : index
    %c0_127 = arith.constant 0 : index
    %c0_128 = arith.constant 0 : index
    %146 = vector.load %arg5[%c26, %c0_127, %c0_128] : memref<27x128x128xf32, #tpu.memory_space<vmem>>, vector<1x128x128xf32>
    %147 = vector.shape_cast %146 : vector<1x128x128xf32> to vector<128x128xf32>
    %cst_129 = arith.constant dense<0.000000e+00> : vector<144x128xf32>
    %148 = tpu.matmul %145, %147, %cst_129 {dimension_numbers = #tpu.dot_dimension_numbers<[1], [0], [0], [1], [0, 0, 1, 1], [], []>} : vector<144x128xf32>, vector<128x128xf32>, vector<144x128xf32> -> vector<144x128xf32>
    %149 = arith.addf %144, %148 : vector<144x128xf32>
    %c0_130 = arith.constant 0 : index
    %c0_131 = arith.constant 0 : index
    %150 = vector.load %arg6[%c0_130, %c0_131] : memref<1x128xf32, #tpu.memory_space<vmem>>, vector<1x128xf32>
    %151 = vector.broadcast %150 : vector<1x128xf32> to vector<144x128xf32>
    %152 = arith.addf %149, %151 : vector<144x128xf32>
    %cst_132 = arith.constant 0.000000e+00 : f32
    %153 = vector.broadcast %cst_132 : f32 to vector<144x128xf32>
    %154 = arith.cmpf oge, %152, %153 : vector<144x128xf32>
    %cst_133 = arith.constant 1.000000e-01 : f32
    %155 = vector.broadcast %cst_133 : f32 to vector<144x128xf32>
    %156 = arith.mulf %155, %152 : vector<144x128xf32>
    %157 = arith.select %154, %152, %156 : vector<144x128xi1>, vector<144x128xf32>
    %c0_134 = arith.constant 0 : index
    %c0_135 = arith.constant 0 : index
    %158 = vector.load %arg7[%c0_134, %c0_135] : memref<128x16xf32, #tpu.memory_space<vmem>>, vector<128x16xf32>
    %cst_136 = arith.constant dense<0.000000e+00> : vector<144x16xf32>
    %159 = tpu.matmul %157, %158, %cst_136 {dimension_numbers = #tpu.dot_dimension_numbers<[1], [0], [0], [1], [0, 0, 1, 1], [], []>} : vector<144x128xf32>, vector<128x16xf32>, vector<144x16xf32> -> vector<144x16xf32>
    %c0_137 = arith.constant 0 : index
    %c43_138 = arith.constant 43 : index
    %c0_139 = arith.constant 0 : index
    %160 = vector.load %arg1[%c0_137, %c43_138, %c0_139] : memref<1x232x16xf32, #tpu.memory_space<vmem>>, vector<1x144x16xf32>
    %161 = vector.shape_cast %160 : vector<1x144x16xf32> to vector<144x16xf32>
    %c0_140 = arith.constant 0 : index
    %c0_141 = arith.constant 0 : index
    %162 = vector.load %arg8[%c0_140, %c0_141] : memref<1x16xf32, #tpu.memory_space<vmem>>, vector<1x16xf32>
    %163 = vector.broadcast %162 : vector<1x16xf32> to vector<144x16xf32>
    %164 = arith.addf %159, %163 : vector<144x16xf32>
    %165 = arith.addf %164, %161 : vector<144x16xf32>
    %cst_142 = arith.constant 0.000000e+00 : f32
    %166 = vector.broadcast %cst_142 : f32 to vector<144x16xf32>
    %167 = arith.cmpf oge, %165, %166 : vector<144x16xf32>
    %cst_143 = arith.constant 1.000000e-01 : f32
    %168 = vector.broadcast %cst_143 : f32 to vector<144x16xf32>
    %169 = arith.mulf %168, %165 : vector<144x16xf32>
    %170 = arith.select %167, %165, %169 : vector<144x16xi1>, vector<144x16xf32>
    %c0_144 = arith.constant 0 : index
    %c0_145 = arith.constant 0 : index
    %c0_146 = arith.constant 0 : index
    %171 = vector.load %arg9[%c0_144, %c0_145, %c0_146] : memref<1x144x16xf32, #tpu.memory_space<vmem>>, vector<1x144x16xf32>
    %172 = vector.shape_cast %171 : vector<1x144x16xf32> to vector<144x16xf32>
    %173 = vector.shape_cast %170 : vector<144x16xf32> to vector<1x144x16xf32>
    tpu.vector_store %arg9[%c0_144, %c0_145, %c0_146], %173 {strides = array<i32>} : memref<1x144x16xf32, #tpu.memory_space<vmem>>, vector<1x144x16xf32>,
    return
  }
  func.func @transform_0(%arg0: i32) -> (i32, i32, i32) {
    %c0_i32 = arith.constant 0 : i32
    %c0_i32_0 = arith.constant 0 : i32
    %c0_i32_1 = arith.constant 0 : i32
    return %arg0, %c0_i32, %c0_i32_0 : i32, i32, i32
  }
  func.func @transform_1(%arg0: i32) -> (i32, i32) {
    %c0_i32 = arith.constant 0 : i32
    %c0_i32_0 = arith.constant 0 : i32
    %c0_i32_1 = arith.constant 0 : i32
    return %c0_i32, %c0_i32_0 : i32, i32
  }
  func.func @transform_2(%arg0: i32) -> (i32, i32) {
    %c0_i32 = arith.constant 0 : i32
    %c0_i32_0 = arith.constant 0 : i32
    %c0_i32_1 = arith.constant 0 : i32
    return %c0_i32, %c0_i32_0 : i32, i32
  }
  func.func @transform_3(%arg0: i32) -> (i32, i32) {
    %c0_i32 = arith.constant 0 : i32
    %c0_i32_0 = arith.constant 0 : i32
    %c0_i32_1 = arith.constant 0 : i32
    return %c0_i32, %c0_i32_0 : i32, i32
  }
  func.func @transform_4(%arg0: i32) -> (i32, i32, i32) {
    %c0_i32 = arith.constant 0 : i32
    %c0_i32_0 = arith.constant 0 : i32
    %c0_i32_1 = arith.constant 0 : i32
    %c0_i32_2 = arith.constant 0 : i32
    return %c0_i32, %c0_i32_0, %c0_i32_1 : i32, i32, i32
  }
  func.func @transform_5(%arg0: i32) -> (i32, i32) {
    %c0_i32 = arith.constant 0 : i32
    %c0_i32_0 = arith.constant 0 : i32
    %c0_i32_1 = arith.constant 0 : i32
    return %c0_i32, %c0_i32_0 : i32, i32
  }
  func.func @transform_6(%arg0: i32) -> (i32, i32) {
    %c0_i32 = arith.constant 0 : i32
    %c0_i32_0 = arith.constant 0 : i32
    %c0_i32_1 = arith.constant 0 : i32
    return %c0_i32, %c0_i32_0 : i32, i32
  }
  func.func @transform_7(%arg0: i32) -> (i32, i32) {
    %c0_i32 = arith.constant 0 : i32
    %c0_i32_0 = arith.constant 0 : i32
    %c0_i32_1 = arith.constant 0 : i32
    return %c0_i32, %c0_i32_0 : i32, i32
  }
  func.func @transform_8(%arg0: i32) -> (i32, i32, i32) {
    %c0_i32 = arith.constant 0 : i32
    %c0_i32_0 = arith.constant 0 : i32
    %c0_i32_1 = arith.constant 0 : i32
    return %arg0, %c0_i32, %c0_i32_0 : i32, i32, i32
  }
}

</mosaic_0001>

<llo_original>
// kernel: tpu_custom_call.1
$region0: #{tpu_custom_call.1}
  #allocation0 [shape = 'u32[]', space=smem, size = 0x4, offset = 0x4, fixed_abs, tag = 'smem constant byte address 0x4 - core index']
  #allocation1 [shape = 'u32[144,128]{1,0:T(1,128)}', space=vmem, size = 0x12000, scoped, tag = 'internal scratch']
  #allocation2 [shape = 'f32[232,128]{1,0:T(8,128)}', space=vmem, size = 0x1d000, scoped, tag = 'scratch operand']
  %s0 = inlined_call_operand.vmem [shape: f32[2,232,16], index: 0, kind: input, shape index: {}]
  %s1 = inlined_call_operand.vmem [shape: f32[232,1], index: 1, kind: input, shape index: {}]
  %s2 = inlined_call_operand.hbm [shape: f32[16,128], index: 2, kind: input, shape index: {}]
  %s3 = inlined_call_operand.hbm [shape: f32[1,128], index: 3, kind: input, shape index: {}]
  %s4 = inlined_call_operand.hbm [shape: f32[27,128,128], index: 4, kind: input, shape index: {}]
  %s5 = inlined_call_operand.hbm [shape: f32[1,128], index: 5, kind: input, shape index: {}]
  %s6 = inlined_call_operand.vmem [shape: f32[128,16], index: 6, kind: input, shape index: {}]
  %s7 = inlined_call_operand.hbm [shape: f32[1,16], index: 7, kind: input, shape index: {}]
  %s8 = inlined_call_operand.vmem [shape: f32[2,144,16], index: 8, kind: output, shape index: {}]
  %s9 = sld [smem:[#allocation0]]
  $region85: #{tpu_custom_call.1} parent=0
    _
  %s11 = ssub.s32 1, %s9
  %s12 = scalar_select 0, %s11, %s9
  $region1: #{tpu_custom_call.1} parent=0
    #allocation3 [shape = 'u8[8192]{0}', space=vmem, size = 0x2000, scoped, tag = 'input window, operand 2, single buffered']
    #allocation4 [shape = 's32[2]{0}', space=sflag, size = 0x8, scoped, tag = 'scoped memory for tpu_custom_call.1']
    #allocation5 [shape = 'u8[512]{0}', space=vmem, size = 0x400, scoped, tag = 'input window, operand 3, single buffered']
    #allocation6 [shape = 's32[1]{0}', space=sflag, size = 0x4, scoped, tag = 'scoped memory for tpu_custom_call.1']
    #allocation7 [shape = 'u8[1769472]{0}', space=vmem, size = 0x1b0000, scoped, tag = 'input window, operand 4, single buffered']
    #allocation8 [shape = 'u8[512]{0}', space=vmem, size = 0x400, scoped, tag = 'input window, operand 5, single buffered']
    #allocation9 [shape = 's32[1]{0}', space=sflag, size = 0x4, scoped, tag = 'scoped memory for tpu_custom_call.1']
    #allocation10 [shape = 'u8[512]{0}', space=vmem, size = 0x400, scoped, tag = 'input window, operand 7, single buffered']
    %13 = vsyncpa [#allocation4], 0
    %14 = vsyncpa [#allocation6], 0
    %15 = vsyncpa [#allocation9], 0
    loop: start=0, step=1, limit=4
    $region2: #{tpu_custom_call.1} parent=1 // loop_pre_header
      _
    $region3: #{tpu_custom_call.1} parent=1 // loop_header
      %s17 = sphi 0, %s21
      %p18 = scmp.ge.s32.totalorder %s17, 4
      %s27 = sphi 0, %s29
      %s30 = sphi 0, %s27
      %s31 = sphi 0, %s30
      %s47 = sphi 0, %s31
      %s51 = sphi 0, %s51
      %s53 = sphi 0, %s51
      %s54 = sphi 0, %s53
      %s68 = sphi 0, %s54
      %s72 = sphi 0, %s72
      %s74 = sphi 0, %s72
      %s75 = sphi 0, %s74
      %s89 = sphi 0, %s75
      %s93 = sphi 0, %s93
      %s95 = sphi 0, %s93
      %s96 = sphi 0, %s95
      %s110 = sphi 0, %s96
      %s114 = sphi 0, %s114
      %s116 = sphi 0, %s114
      %s117 = sphi 0, %s116
      %s131 = sphi 0, %s117
      %s135 = sphi 0, %s135
      %s137 = sphi 0, %s135
      %s138 = sphi 0, %s137
      %s152 = sphi 0, %s138
      %s156 = sphi 0, %s156
      %s158 = sphi 0, %s156
      %s159 = sphi 0, %s158
      %s173 = sphi 0, %s159
      %s177 = sphi 0, %s177
      %s179 = sphi 0, %s177
      %s180 = sphi 0, %s179
      %s194 = sphi 0, %s180
      %s200 = sphi 0, %s202
      %s203 = sphi 0, %s200
      %s204 = sphi 0, %s203
      %s220 = sphi 0, %s204
    $region4: #{tpu_custom_call.1} parent=1 // loop_header_branch
      %20 = sbr.rel (%p18) target = $region8
    $region5: #{tpu_custom_call.1} parent=1 // loop_body
      %s22 = ssub.s32 %s17, 1
      %s23 = ssub.s32 %s17, 2
      %s24 = sadd.s32 %s17, 1
      %s25 = ssub.s32 %s17, %s24
      %p26 = scmp.eq.s32.totalorder %s25, 0
      %s28 = sadd.s32 %s27, 1
      %s29 = scalar_select %p26, %s27, %s28
      %p32 = pneg %p26
      %p33 = scmp.eq.s32.totalorder %s17, 1
      %p34 = por %p32, %p33
      %p35 = scmp.ne.s32.totalorder %s27, %s30
      %p36 = scmp.eq.s32.totalorder %s17, 0
      %p37 = por %p35, %p36
      %p38 = scmp.ne.s32.totalorder %s27, %s30
      %p39 = scmp.eq.s32.totalorder %s22, 1
      %p40 = por %p38, %p39
      %p41 = scmp.ne.s32.totalorder %s30, %s31
      %p42 = scmp.eq.s32.totalorder %s22, 0
      %p43 = por %p41, %p42
      %p44 = scmp.ne.s32.totalorder %s30, %s31
      %p45 = scmp.eq.s32.totalorder %s23, 1
      %p46 = por %p44, %p45
      %p48 = scmp.ne.s32.totalorder %s31, %s47
      %p49 = scmp.eq.s32.totalorder %s23, 0
      %p50 = por %p48, %p49
      %s52 = sadd.s32 %s51, 1
      %p55 = scmp.eq.s32.totalorder %s17, 1
      %p56 = scmp.ne.s32.totalorder %s51, %s53
      %p57 = scmp.eq.s32.totalorder %s17, 0
      %p58 = por %p56, %p57
      %p59 = scmp.ne.s32.totalorder %s51, %s53
      %p60 = scmp.eq.s32.totalorder %s22, 1
      %p61 = por %p59, %p60
      %p62 = scmp.ne.s32.totalorder %s53, %s54
      %p63 = scmp.eq.s32.totalorder %s22, 0
      %p64 = por %p62, %p63
      %p65 = scmp.ne.s32.totalorder %s53, %s54
      %p66 = scmp.eq.s32.totalorder %s23, 1
      %p67 = por %p65, %p66
      %p69 = scmp.ne.s32.totalorder %s54, %s68
      %p70 = scmp.eq.s32.totalorder %s23, 0
      %p71 = por %p69, %p70
      %s73 = sadd.s32 %s72, 1
      %p76 = scmp.eq.s32.totalorder %s17, 1
      %p77 = scmp.ne.s32.totalorder %s72, %s74
      %p78 = scmp.eq.s32.totalorder %s17, 0
      %p79 = por %p77, %p78
      %p80 = scmp.ne.s32.totalorder %s72, %s74
      %p81 = scmp.eq.s32.totalorder %s22, 1
      %p82 = por %p80, %p81
      %p83 = scmp.ne.s32.totalorder %s74, %s75
      %p84 = scmp.eq.s32.totalorder %s22, 0
      %p85 = por %p83, %p84
      %p86 = scmp.ne.s32.totalorder %s74, %s75
      %p87 = scmp.eq.s32.totalorder %s23, 1
      %p88 = por %p86, %p87
      %p90 = scmp.ne.s32.totalorder %s75, %s89
      %p91 = scmp.eq.s32.totalorder %s23, 0
      %p92 = por %p90, %p91
      %s94 = sadd.s32 %s93, 1
      %p97 = scmp.eq.s32.totalorder %s17, 1
      %p98 = scmp.ne.s32.totalorder %s93, %s95
      %p99 = scmp.eq.s32.totalorder %s17, 0
      %p100 = por %p98, %p99
      %p101 = scmp.ne.s32.totalorder %s93, %s95
      %p102 = scmp.eq.s32.totalorder %s22, 1
      %p103 = por %p101, %p102
      %p104 = scmp.ne.s32.totalorder %s95, %s96
      %p105 = scmp.eq.s32.totalorder %s22, 0
      %p106 = por %p104, %p105
      %p107 = scmp.ne.s32.totalorder %s95, %s96
      %p108 = scmp.eq.s32.totalorder %s23, 1
      %p109 = por %p107, %p108
      %p111 = scmp.ne.s32.totalorder %s96, %s110
      %p112 = scmp.eq.s32.totalorder %s23, 0
      %p113 = por %p111, %p112
      %s115 = sadd.s32 %s114, 1
      %p118 = scmp.eq.s32.totalorder %s17, 1
      %p119 = scmp.ne.s32.totalorder %s114, %s116
      %p120 = scmp.eq.s32.totalorder %s17, 0
      %p121 = por %p119, %p120
      %p122 = scmp.ne.s32.totalorder %s114, %s116
      %p123 = scmp.eq.s32.totalorder %s22, 1
      %p124 = por %p122, %p123
      %p125 = scmp.ne.s32.totalorder %s116, %s117
      %p126 = scmp.eq.s32.totalorder %s22, 0
      %p127 = por %p125, %p126
      %p128 = scmp.ne.s32.totalorder %s116, %s117
      %p129 = scmp.eq.s32.totalorder %s23, 1
      %p130 = por %p128, %p129
      %p132 = scmp.ne.s32.totalorder %s117, %s131
      %p133 = scmp.eq.s32.totalorder %s23, 0
      %p134 = por %p132, %p133
      %s136 = sadd.s32 %s135, 1
      %p139 = scmp.eq.s32.totalorder %s17, 1
      %p140 = scmp.ne.s32.totalorder %s135, %s137
      %p141 = scmp.eq.s32.totalorder %s17, 0
      %p142 = por %p140, %p141
      %p143 = scmp.ne.s32.totalorder %s135, %s137
      %p144 = scmp.eq.s32.totalorder %s22, 1
      %p145 = por %p143, %p144
      %p146 = scmp.ne.s32.totalorder %s137, %s138
      %p147 = scmp.eq.s32.totalorder %s22, 0
      %p148 = por %p146, %p147
      %p149 = scmp.ne.s32.totalorder %s137, %s138
      %p150 = scmp.eq.s32.totalorder %s23, 1
      %p151 = por %p149, %p150
      %p153 = scmp.ne.s32.totalorder %s138, %s152
      %p154 = scmp.eq.s32.totalorder %s23, 0
      %p155 = por %p153, %p154
      %s157 = sadd.s32 %s156, 1
      %p160 = scmp.eq.s32.totalorder %s17, 1
      %p161 = scmp.ne.s32.totalorder %s156, %s158
      %p162 = scmp.eq.s32.totalorder %s17, 0
      %p163 = por %p161, %p162
      %p164 = scmp.ne.s32.totalorder %s156, %s158
      %p165 = scmp.eq.s32.totalorder %s22, 1
      %p166 = por %p164, %p165
      %p167 = scmp.ne.s32.totalorder %s158, %s159
      %p168 = scmp.eq.s32.totalorder %s22, 0
      %p169 = por %p167, %p168
      %p170 = scmp.ne.s32.totalorder %s158, %s159
      %p171 = scmp.eq.s32.totalorder %s23, 1
      %p172 = por %p170, %p171
      %p174 = scmp.ne.s32.totalorder %s159, %s173
      %p175 = scmp.eq.s32.totalorder %s23, 0
      %p176 = por %p174, %p175
      %s178 = sadd.s32 %s177, 1
      %p181 = scmp.eq.s32.totalorder %s17, 1
      %p182 = scmp.ne.s32.totalorder %s177, %s179
      %p183 = scmp.eq.s32.totalorder %s17, 0
      %p184 = por %p182, %p183
      %p185 = scmp.ne.s32.totalorder %s177, %s179
      %p186 = scmp.eq.s32.totalorder %s22, 1
      %p187 = por %p185, %p186
      %p188 = scmp.ne.s32.totalorder %s179, %s180
      %p189 = scmp.eq.s32.totalorder %s22, 0
      %p190 = por %p188, %p189
      %p191 = scmp.ne.s32.totalorder %s179, %s180
      %p192 = scmp.eq.s32.totalorder %s23, 1
      %p193 = por %p191, %p192
      %p195 = scmp.ne.s32.totalorder %s180, %s194
      %p196 = scmp.eq.s32.totalorder %s23, 0
      %p197 = por %p195, %p196
      %s198 = ssub.s32 %s17, %s24
      %p199 = scmp.eq.s32.totalorder %s198, 0
      %s201 = sadd.s32 %s200, 1
      %s202 = scalar_select %p199, %s200, %s201
      %p205 = pneg %p199
      %p206 = scmp.eq.s32.totalorder %s17, 1
      %p207 = por %p205, %p206
      %p208 = scmp.ne.s32.totalorder %s200, %s203
      %p209 = scmp.eq.s32.totalorder %s17, 0
      %p210 = por %p208, %p209
      %p211 = scmp.ne.s32.totalorder %s200, %s203
      %p212 = scmp.eq.s32.totalorder %s22, 1
      %p213 = por %p211, %p212
      %p214 = scmp.ne.s32.totalorder %s203, %s204
      %p215 = scmp.eq.s32.totalorder %s22, 0
      %p216 = por %p214, %p215
      %p217 = scmp.ne.s32.totalorder %s203, %s204
      %p218 = scmp.eq.s32.totalorder %s23, 1
      %p219 = por %p217, %p218
      %p221 = scmp.ne.s32.totalorder %s204, %s220
      %p222 = scmp.eq.s32.totalorder %s23, 0
      %p223 = por %p221, %p222
      %p224 = scmp.le.s32.totalorder 1, %s17
      %p225 = scmp.lt.s32.totalorder %s17, 3
      %p226 = pnand %p224, %p225
      %p227 = pneg %p226
      // Predicated region
      $region9: #{tpu_custom_call.1} parent=5 // pred_check
        _
      $region10: #{tpu_custom_call.1} parent=5 // pred_check_branch
        %229 = sbr.rel (%p226) target = $region12
      $region11: #{tpu_custom_call.1} parent=5 // pred_region
        %s230 = ssub.s32 %s17, 1
        // Predicated region
        $region13: #{tpu_custom_call.1} parent=11 // pred_check
          %p231 = pneg %p64
        $region14: #{tpu_custom_call.1} parent=11 // pred_check_branch
          %233 = sbr.rel (%p231) target = $region16
        $region15: #{tpu_custom_call.1} parent=11 // pred_region
          _
        $region16: #{tpu_custom_call.1} parent=11 // pred_fallthru
          _
        // Predicated region
        $region17: #{tpu_custom_call.1} parent=11 // pred_check
          %p234 = pneg %p85
        $region18: #{tpu_custom_call.1} parent=11 // pred_check_branch
          %236 = sbr.rel (%p234) target = $region20
        $region19: #{tpu_custom_call.1} parent=11 // pred_region
          %s238 = ssub.s32 256, 256
          %239 = vsyncadd [#allocation4], %s238
          %s240 = sshll.u32 [#allocation3], 4
          %s241 = int_to_ptr.vmem [resolvable:$true] %s240
          %246 = dma.hbm_to_vmem [thread:$0]  %s2, 256, %s241, [#allocation4], 128, 128, 8
        $region20: #{tpu_custom_call.1} parent=11 // pred_fallthru
          _
        // Predicated region
        $region21: #{tpu_custom_call.1} parent=11 // pred_check
          %p247 = pneg %p106
        $region22: #{tpu_custom_call.1} parent=11 // pred_check_branch
          %249 = sbr.rel (%p247) target = $region24
        $region23: #{tpu_custom_call.1} parent=11 // pred_region
          %s251 = ssub.s32 16, 16
          %252 = vsyncadd [#allocation6], %s251
          %s254 = sshll.u32 [#allocation5], 4
          %s255 = int_to_ptr.vmem [resolvable:$true] %s254
          %257 = dma.hbm_to_vmem [thread:$0]  %s3, 16, %s255, [#allocation6]
        $region24: #{tpu_custom_call.1} parent=11 // pred_fallthru
          _
        // Predicated region
        $region25: #{tpu_custom_call.1} parent=11 // pred_check
          %p258 = pneg %p127
        $region26: #{tpu_custom_call.1} parent=11 // pred_check_branch
          %260 = sbr.rel (%p258) target = $region28
        $region27: #{tpu_custom_call.1} parent=11 // pred_region
          %s262 = ssub.s32 55296, 55296
          %263 = vsyncadd [#allocation6], %s262
          %s264 = sshll.u32 [#allocation7], 4
          %s265 = int_to_ptr.vmem [resolvable:$true] %s264
          %270 = dma.hbm_to_vmem [thread:$0]  %s4, 55296, %s265, [#allocation6], 128, 128, 8
        $region28: #{tpu_custom_call.1} parent=11 // pred_fallthru
          _
        // Predicated region
        $region29: #{tpu_custom_call.1} parent=11 // pred_check
          %p271 = pneg %p148
        $region30: #{tpu_custom_call.1} parent=11 // pred_check_branch
          %273 = sbr.rel (%p271) target = $region32
        $region31: #{tpu_custom_call.1} parent=11 // pred_region
          %s275 = ssub.s32 16, 16
          %276 = vsyncadd [#allocation9], %s275
          %s278 = sshll.u32 [#allocation8], 4
          %s279 = int_to_ptr.vmem [resolvable:$true] %s278
          %281 = dma.hbm_to_vmem [thread:$0]  %s5, 16, %s279, [#allocation9]
        $region32: #{tpu_custom_call.1} parent=11 // pred_fallthru
          _
        // Predicated region
        $region33: #{tpu_custom_call.1} parent=11 // pred_check
          %p282 = pneg %p169
        $region34: #{tpu_custom_call.1} parent=11 // pred_check_branch
          %284 = sbr.rel (%p282) target = $region36
        $region35: #{tpu_custom_call.1} parent=11 // pred_region
          _
        $region36: #{tpu_custom_call.1} parent=11 // pred_fallthru
          _
        // Predicated region
        $region37: #{tpu_custom_call.1} parent=11 // pred_check
          %p285 = pneg %p190
        $region38: #{tpu_custom_call.1} parent=11 // pred_check_branch
          %287 = sbr.rel (%p285) target = $region40
        $region39: #{tpu_custom_call.1} parent=11 // pred_region
          %s289 = ssub.s32 16, 16
          %290 = vsyncadd [#allocation9], %s289
          %s292 = sshll.u32 [#allocation10], 4
          %s293 = int_to_ptr.vmem [resolvable:$true] %s292
          %295 = dma.hbm_to_vmem [thread:$0]  %s7, 16, %s293, [#allocation9]
        $region40: #{tpu_custom_call.1} parent=11 // pred_fallthru
          _
      $region12: #{tpu_custom_call.1} parent=5 // pred_fallthru
        _
      %p296 = scmp.lt.s32.totalorder %s17, 2
      // Predicated region
      $region41: #{tpu_custom_call.1} parent=5 // pred_check
        %p297 = pneg %p296
      $region42: #{tpu_custom_call.1} parent=5 // pred_check_branch
        %299 = sbr.rel (%p297) target = $region44
      $region43: #{tpu_custom_call.1} parent=5 // pred_region
        // Predicated region
        $region45: #{tpu_custom_call.1} parent=43 // pred_check
          %p300 = pneg %p37
        $region46: #{tpu_custom_call.1} parent=43 // pred_check_branch
          %302 = sbr.rel (%p300) target = $region48
        $region47: #{tpu_custom_call.1} parent=43 // pred_region
          %p303 = scmp.lt.s32.totalorder %s17, 1
          %s304 = scalar_select %p303, %s17, 1
          %s305 = smul.addr %s304, 29
          %s306 = smul.addr %s305, 8
          %s307 = scalar_lea.vmem %s0, %s306
        $region48: #{tpu_custom_call.1} parent=43 // pred_fallthru
          _
      $region44: #{tpu_custom_call.1} parent=5 // pred_fallthru
        _
      %p308 = scmp.le.s32.totalorder 1, %s17
      %p309 = scmp.lt.s32.totalorder %s17, 3
      %p310 = pnand %p308, %p309
      %p311 = pneg %p310
      // Predicated region
      $region49: #{tpu_custom_call.1} parent=5 // pred_check
        _
      $region50: #{tpu_custom_call.1} parent=5 // pred_check_branch
        %313 = sbr.rel (%p310) target = $region52
      $region51: #{tpu_custom_call.1} parent=5 // pred_region
        %s314 = ssub.s32 %s17, 1
        // Predicated region
        $region53: #{tpu_custom_call.1} parent=51 // pred_check
          %p315 = pneg %p85
        $region54: #{tpu_custom_call.1} parent=51 // pred_check_branch
          %317 = sbr.rel (%p315) target = $region56
        $region55: #{tpu_custom_call.1} parent=51 // pred_region
          %318 = dma.done [#allocation4], 256
        $region56: #{tpu_custom_call.1} parent=51 // pred_fallthru
          _
        // Predicated region
        $region57: #{tpu_custom_call.1} parent=51 // pred_check
          %p319 = pneg %p106
        $region58: #{tpu_custom_call.1} parent=51 // pred_check_branch
          %321 = sbr.rel (%p319) target = $region60
        $region59: #{tpu_custom_call.1} parent=51 // pred_region
          %322 = dma.done [#allocation6], 16
        $region60: #{tpu_custom_call.1} parent=51 // pred_fallthru
          _
        // Predicated region
        $region61: #{tpu_custom_call.1} parent=51 // pred_check
          %p323 = pneg %p127
        $region62: #{tpu_custom_call.1} parent=51 // pred_check_branch
          %325 = sbr.rel (%p323) target = $region64
        $region63: #{tpu_custom_call.1} parent=51 // pred_region
          %326 = dma.done [#allocation6], 55296
        $region64: #{tpu_custom_call.1} parent=51 // pred_fallthru
          _
        // Predicated region
        $region65: #{tpu_custom_call.1} parent=51 // pred_check
          %p327 = pneg %p148
        $region66: #{tpu_custom_call.1} parent=51 // pred_check_branch
          %329 = sbr.rel (%p327) target = $region68
        $region67: #{tpu_custom_call.1} parent=51 // pred_region
          %330 = dma.done [#allocation9], 16
        $region68: #{tpu_custom_call.1} parent=51 // pred_fallthru
          _
        // Predicated region
        $region69: #{tpu_custom_call.1} parent=51 // pred_check
          %p331 = pneg %p190
        $region70: #{tpu_custom_call.1} parent=51 // pred_check_branch
          %333 = sbr.rel (%p331) target = $region72
        $region71: #{tpu_custom_call.1} parent=51 // pred_region
          %334 = dma.done [#allocation9], 16
        $region72: #{tpu_custom_call.1} parent=51 // pred_fallthru
          _
        %p335 = scmp.lt.s32.totalorder %s22, 1
        %s336 = scalar_select %p335, %s22, 1
        %s337 = smul.addr %s336, 29
        %s338 = smul.addr %s337, 8
        %s339 = scalar_lea.vmem %s0, %s338
        %p340 = pneg %p43
        %p341 = pneg %p40
        %p342 = pneg %p64
        %p343 = pneg %p61
        %p344 = pneg %p85
        %p345 = pneg %p82
        %p346 = pneg %p106
        %p347 = pneg %p103
        %p348 = pneg %p127
        %p349 = pneg %p124
        %p350 = pneg %p148
        %p351 = pneg %p145
        %p352 = pneg %p169
        %p353 = pneg %p166
        %p354 = pneg %p190
        %p355 = pneg %p187
        %p356 = pneg %p216
        %p357 = pneg %p213
        %p358 = scmp.lt.s32.totalorder %s22, 1
        %s359 = scalar_select %p358, %s22, 1
        %s360 = smul.addr %s359, 18
        %s361 = smul.addr %s360, 8
        %s362 = scalar_lea.vmem %s8, %s361
        %p363 = scmp.lt.s32.totalorder %s22, 1
        %s364 = scalar_select %p363, %s22, 1
        %s365 = smul.addr %s364, 29
        %s366 = smul.addr %s365, 8
        %s367 = scalar_lea.vmem %s0, %s366
        %p368 = scmp.lt.s32.totalorder %s22, 1
        %s369 = scalar_select %p368, %s22, 1
        %s370 = smul.addr %s369, 18
        %s371 = smul.addr %s370, 8
        %s372 = scalar_lea.vmem %s8, %s371
        %v373 = vld [vmem:[%s367] sm:$0xff]
        %v374 = vld [vmem:[%s367 + $0x8] sm:$0xff]
        %v375 = vld [vmem:[%s367 + $0x10] sm:$0xff]
        %v376 = vld [vmem:[%s367 + $0x18] sm:$0xff]
        %v377 = vld [vmem:[%s367 + $0x20] sm:$0xff]
        %v378 = vld [vmem:[%s367 + $0x28] sm:$0xff]
        %v379 = vld [vmem:[%s367 + $0x30] sm:$0xff]
        %v380 = vld [vmem:[%s367 + $0x38] sm:$0xff]
        %v381 = vld [vmem:[%s367 + $0x40] sm:$0xff]
        %v382 = vld [vmem:[%s367 + $0x48] sm:$0xff]
        %v383 = vld [vmem:[%s367 + $0x50] sm:$0xff]
        %v384 = vld [vmem:[%s367 + $0x58] sm:$0xff]
        %v385 = vld [vmem:[%s367 + $0x60] sm:$0xff]
        %v386 = vld [vmem:[%s367 + $0x68] sm:$0xff]
        %v387 = vld [vmem:[%s367 + $0x70] sm:$0xff]
        %v388 = vld [vmem:[%s367 + $0x78] sm:$0xff]
        %v389 = vld [vmem:[%s367 + $0x80] sm:$0xff]
        %v390 = vld [vmem:[%s367 + $0x88] sm:$0xff]
        %v391 = vld [vmem:[%s367 + $0x90] sm:$0xff]
        %v392 = vld [vmem:[%s367 + $0x98] sm:$0xff]
        %v393 = vld [vmem:[%s367 + $0xa0] sm:$0xff]
        %v394 = vld [vmem:[%s367 + $0xa8] sm:$0xff]
        %v395 = vld [vmem:[%s367 + $0xb0] sm:$0xff]
        %v396 = vld [vmem:[%s367 + $0xb8] sm:$0xff]
        %v397 = vld [vmem:[%s367 + $0xc0] sm:$0xff]
        %v398 = vld [vmem:[%s367 + $0xc8] sm:$0xff]
        %v399 = vld [vmem:[%s367 + $0xd0] sm:$0xff]
        %v400 = vld [vmem:[%s367 + $0xd8] sm:$0xff]
        %v401 = vld [vmem:[%s367 + $0xe0] sm:$0xff]
        %v402 = vld [vmem:[#allocation3] sm:$0xff]
        %v403 = vld [vmem:[#allocation3 + $0x8] sm:$0xff]
        %v404 = vld [vmem:[#allocation5] sm:$0x1]
        %v406 = vlaneseq
        %v407 = vshrl.u32 %v406, 7
        %v408 = vsub.s32 0, %v407
        %v409 = vrot.slane %v404, %v408
        %vm411 = vcmask 130048
        %v413 = vsel %vm411, %v373, 0
        %v416 = vsel %vm411, %v374, 0
        %v419 = vsel %vm411, %v375, 0
        %v422 = vsel %vm411, %v376, 0
        %v425 = vsel %vm411, %v377, 0
        %v428 = vsel %vm411, %v378, 0
        %v431 = vsel %vm411, %v379, 0
        %v434 = vsel %vm411, %v380, 0
        %v437 = vsel %vm411, %v381, 0
        %v440 = vsel %vm411, %v382, 0
        %v443 = vsel %vm411, %v383, 0
        %v446 = vsel %vm411, %v384, 0
        %v449 = vsel %vm411, %v385, 0
        %v452 = vsel %vm411, %v386, 0
        %v455 = vsel %vm411, %v387, 0
        %v458 = vsel %vm411, %v388, 0
        %v461 = vsel %vm411, %v389, 0
        %v464 = vsel %vm411, %v390, 0
        %v467 = vsel %vm411, %v391, 0
        %v470 = vsel %vm411, %v392, 0
        %v473 = vsel %vm411, %v393, 0
        %v476 = vsel %vm411, %v394, 0
        %v479 = vsel %vm411, %v395, 0
        %v482 = vsel %vm411, %v396, 0
        %v485 = vsel %vm411, %v397, 0
        %v488 = vsel %vm411, %v398, 0
        %v491 = vsel %vm411, %v399, 0
        %v494 = vsel %vm411, %v400, 0
        %v497 = vsel %vm411, %v401, 0
        %499 = vmatprep.subr.mxu0 0.0
        %500 = vmatpush1.msra.mxu0 %v402
        %501 = vmatprep.subr.mxu0 0.0
        %502 = vmatpush1.msra.mxu0 %v403
        %503 = vmatprep.subr.mxu0 0.0
        %504 = vmatpush1.msra.mxu0 0.0
        %505 = vmatprep.subr.mxu0 0.0
        %506 = vmatpush1.msra.mxu0 0.0
        %507 = vmatprep.subr.mxu0 0.0
        %508 = vmatpush1.msra.mxu0 0.0
        %509 = vmatprep.subr.mxu0 0.0
        %510 = vmatpush1.msra.mxu0 0.0
        %511 = vmatprep.subr.mxu0 0.0
        %512 = vmatpush1.msra.mxu0 0.0
        %513 = vmatprep.subr.mxu0 0.0
        %514 = vmatpush1.msra.mxu0 0.0
        %515 = vmatprep.subr.mxu0 0.0
        %516 = vmatpush1.msra.mxu0 0.0
        %517 = vmatprep.subr.mxu0 0.0
        %518 = vmatpush1.msra.mxu0 0.0
        %519 = vmatprep.subr.mxu0 0.0
        %520 = vmatpush1.msra.mxu0 0.0
        %521 = vmatprep.subr.mxu0 0.0
        %522 = vmatpush1.msra.mxu0 0.0
        %523 = vmatprep.subr.mxu0 0.0
        %524 = vmatpush1.msra.mxu0 0.0
        %525 = vmatprep.subr.mxu0 0.0
        %526 = vmatpush1.msra.mxu0 0.0
        %527 = vmatprep.subr.mxu0 0.0
        %528 = vmatpush1.msra.mxu0 0.0
        %529 = vmatprep.subr.mxu0 0.0
        %530 = vmatpush1.msra.mxu0 0.0
        %531 = vmatprep.subr.mxu0 0.0
        %532 = vmatpush1.msra.mxu0 0.0
        %533 = vmatprep.subr.mxu0 0.0
        %534 = vmatpush1.msra.mxu0 0.0
        %535 = vmatprep.subr.mxu0 0.0
        %536 = vmatpush1.msra.mxu0 0.0
        %537 = vmatprep.subr.mxu0 0.0
        %538 = vmatpush1.msra.mxu0 0.0
        %539 = vmatprep.subr.mxu0 0.0
        %540 = vmatpush1.msra.mxu0 0.0
        %541 = vmatprep.subr.mxu0 0.0
        %542 = vmatpush1.msra.mxu0 0.0
        %543 = vmatprep.subr.mxu0 0.0
        %544 = vmatpush1.msra.mxu0 0.0
        %545 = vmatprep.subr.mxu0 0.0
        %546 = vmatpush1.msra.mxu0 0.0
        %547 = vmatprep.subr.mxu0 0.0
        %548 = vmatpush1.msra.mxu0 0.0
        %549 = vmatprep.subr.mxu0 0.0
        %550 = vmatpush1.msra.mxu0 0.0
        %551 = vmatprep.subr.mxu0 0.0
        %552 = vmatpush1.msra.mxu0 0.0
        %553 = vmatprep.subr.mxu0 0.0
        %554 = vmatpush1.msra.mxu0 0.0
        %555 = vmatprep.subr.mxu0 0.0
        %556 = vmatpush1.msra.mxu0 0.0
        %557 = vmatprep.subr.mxu0 0.0
        %558 = vmatpush1.msra.mxu0 0.0
        %559 = vmatprep.subr.mxu0 0.0
        %560 = vmatpush1.msra.mxu0 0.0
        %561 = vmatprep.subr.mxu0 0.0
        %562 = vmatpush1.msra.mxu0 0.0
        %563 = vmatprep.mubr.f32.mxu0 0.0
        %564 = vmatmul.mubr.f32.gmra.mrb[0].mxu0 %v413
        %v565 = vpop.f32.mrb[0].mxu0
        %v566 = vadd.f32 %v409, %v565
        %v567 = vpop.f32.mrb[0].mxu0
        %568 = vmatprep.mubr.f32.mxu0 0.0
        %569 = vmatmul.mubr.f32.gmra.mrb[0].mxu0 %v416
        %v570 = vpop.f32.mrb[0].mxu0
        %v571 = vadd.f32 %v409, %v570
        %v572 = vpop.f32.mrb[0].mxu0
        %573 = vmatprep.mubr.f32.mxu0 0.0
        %574 = vmatmul.mubr.f32.gmra.mrb[0].mxu0 %v419
        %v575 = vpop.f32.mrb[0].mxu0
        %v576 = vadd.f32 %v409, %v575
        %v577 = vpop.f32.mrb[0].mxu0
        %578 = vmatprep.mubr.f32.mxu0 0.0
        %579 = vmatmul.mubr.f32.gmra.mrb[0].mxu0 %v422
        %v580 = vpop.f32.mrb[0].mxu0
        %v581 = vadd.f32 %v409, %v580
        %v582 = vpop.f32.mrb[0].mxu0
        %583 = vmatprep.mubr.f32.mxu0 0.0
        %584 = vmatmul.mubr.f32.gmra.mrb[0].mxu0 %v425
        %v585 = vpop.f32.mrb[0].mxu0
        %v586 = vadd.f32 %v409, %v585
        %v587 = vpop.f32.mrb[0].mxu0
        %588 = vmatprep.mubr.f32.mxu0 0.0
        %589 = vmatmul.mubr.f32.gmra.mrb[0].mxu0 %v428
        %v590 = vpop.f32.mrb[0].mxu0
        %v591 = vadd.f32 %v409, %v590
        %v592 = vpop.f32.mrb[0].mxu0
        %593 = vmatprep.mubr.f32.mxu0 0.0
        %594 = vmatmul.mubr.f32.gmra.mrb[0].mxu0 %v431
        %v595 = vpop.f32.mrb[0].mxu0
        %v596 = vadd.f32 %v409, %v595
        %v597 = vpop.f32.mrb[0].mxu0
        %598 = vmatprep.mubr.f32.mxu0 0.0
        %599 = vmatmul.mubr.f32.gmra.mrb[0].mxu0 %v434
        %v600 = vpop.f32.mrb[0].mxu0
        %v601 = vadd.f32 %v409, %v600
        %v602 = vpop.f32.mrb[0].mxu0
        %603 = vmatprep.mubr.f32.mxu0 0.0
        %604 = vmatmul.mubr.f32.gmra.mrb[0].mxu0 %v437
        %v605 = vpop.f32.mrb[0].mxu0
        %v606 = vadd.f32 %v409, %v605
        %v607 = vpop.f32.mrb[0].mxu0
        %608 = vmatprep.mubr.f32.mxu0 0.0
        %609 = vmatmul.mubr.f32.gmra.mrb[0].mxu0 %v440
        %v610 = vpop.f32.mrb[0].mxu0
        %v611 = vadd.f32 %v409, %v610
        %v612 = vpop.f32.mrb[0].mxu0
        %613 = vmatprep.mubr.f32.mxu0 0.0
        %614 = vmatmul.mubr.f32.gmra.mrb[0].mxu0 %v443
        %v615 = vpop.f32.mrb[0].mxu0
        %v616 = vadd.f32 %v409, %v615
        %v617 = vpop.f32.mrb[0].mxu0
        %618 = vmatprep.mubr.f32.mxu0 0.0
        %619 = vmatmul.mubr.f32.gmra.mrb[0].mxu0 %v446
        %v620 = vpop.f32.mrb[0].mxu0
        %v621 = vadd.f32 %v409, %v620
        %v622 = vpop.f32.mrb[0].mxu0
        %623 = vmatprep.mubr.f32.mxu0 0.0
        %624 = vmatmul.mubr.f32.gmra.mrb[0].mxu0 %v449
        %v625 = vpop.f32.mrb[0].mxu0
        %v626 = vadd.f32 %v409, %v625
        %v627 = vpop.f32.mrb[0].mxu0
        %628 = vmatprep.mubr.f32.mxu0 0.0
        %629 = vmatmul.mubr.f32.gmra.mrb[0].mxu0 %v452
        %v630 = vpop.f32.mrb[0].mxu0
        %v631 = vadd.f32 %v409, %v630
        %v632 = vpop.f32.mrb[0].mxu0
        %633 = vmatprep.mubr.f32.mxu0 0.0
        %634 = vmatmul.mubr.f32.gmra.mrb[0].mxu0 %v455
        %v635 = vpop.f32.mrb[0].mxu0
        %v636 = vadd.f32 %v409, %v635
        %v637 = vpop.f32.mrb[0].mxu0
        %638 = vmatprep.mubr.f32.mxu0 0.0
        %639 = vmatmul.mubr.f32.gmra.mrb[0].mxu0 %v458
        %v640 = vpop.f32.mrb[0].mxu0
        %v641 = vadd.f32 %v409, %v640
        %v642 = vpop.f32.mrb[0].mxu0
        %643 = vmatprep.mubr.f32.mxu0 0.0
        %644 = vmatmul.mubr.f32.gmra.mrb[0].mxu0 %v461
        %v645 = vpop.f32.mrb[0].mxu0
        %v646 = vadd.f32 %v409, %v645
        %v647 = vpop.f32.mrb[0].mxu0
        %648 = vmatprep.mubr.f32.mxu0 0.0
        %649 = vmatmul.mubr.f32.gmra.mrb[0].mxu0 %v464
        %v650 = vpop.f32.mrb[0].mxu0
        %v651 = vadd.f32 %v409, %v650
        %v652 = vpop.f32.mrb[0].mxu0
        %653 = vmatprep.mubr.f32.mxu0 0.0
        %654 = vmatmul.mubr.f32.gmra.mrb[0].mxu0 %v467
        %v655 = vpop.f32.mrb[0].mxu0
        %v656 = vadd.f32 %v409, %v655
        %v657 = vpop.f32.mrb[0].mxu0
        %658 = vmatprep.mubr.f32.mxu0 0.0
        %659 = vmatmul.mubr.f32.gmra.mrb[0].mxu0 %v470
        %v660 = vpop.f32.mrb[0].mxu0
        %v661 = vadd.f32 %v409, %v660
        %v662 = vpop.f32.mrb[0].mxu0
        %663 = vmatprep.mubr.f32.mxu0 0.0
        %664 = vmatmul.mubr.f32.gmra.mrb[0].mxu0 %v473
        %v665 = vpop.f32.mrb[0].mxu0
        %v666 = vadd.f32 %v409, %v665
        %v667 = vpop.f32.mrb[0].mxu0
        %668 = vmatprep.mubr.f32.mxu0 0.0
        %669 = vmatmul.mubr.f32.gmra.mrb[0].mxu0 %v476
        %v670 = vpop.f32.mrb[0].mxu0
        %v671 = vadd.f32 %v409, %v670
        %v672 = vpop.f32.mrb[0].mxu0
        %673 = vmatprep.mubr.f32.mxu0 0.0
        %674 = vmatmul.mubr.f32.gmra.mrb[0].mxu0 %v479
        %v675 = vpop.f32.mrb[0].mxu0
        %v676 = vadd.f32 %v409, %v675
        %v677 = vpop.f32.mrb[0].mxu0
        %678 = vmatprep.mubr.f32.mxu0 0.0
        %679 = vmatmul.mubr.f32.gmra.mrb[0].mxu0 %v482
        %v680 = vpop.f32.mrb[0].mxu0
        %v681 = vadd.f32 %v409, %v680
        %v682 = vpop.f32.mrb[0].mxu0
        %683 = vmatprep.mubr.f32.mxu0 0.0
        %684 = vmatmul.mubr.f32.gmra.mrb[0].mxu0 %v485
        %v685 = vpop.f32.mrb[0].mxu0
        %v686 = vadd.f32 %v409, %v685
        %v687 = vpop.f32.mrb[0].mxu0
        %688 = vmatprep.mubr.f32.mxu0 0.0
        %689 = vmatmul.mubr.f32.gmra.mrb[0].mxu0 %v488
        %v690 = vpop.f32.mrb[0].mxu0
        %v691 = vadd.f32 %v409, %v690
        %v692 = vpop.f32.mrb[0].mxu0
        %693 = vmatprep.mubr.f32.mxu0 0.0
        %694 = vmatmul.mubr.f32.gmra.mrb[0].mxu0 %v491
        %v695 = vpop.f32.mrb[0].mxu0
        %v696 = vadd.f32 %v409, %v695
        %v697 = vpop.f32.mrb[0].mxu0
        %698 = vmatprep.mubr.f32.mxu0 0.0
        %699 = vmatmul.mubr.f32.gmra.mrb[0].mxu0 %v494
        %v700 = vpop.f32.mrb[0].mxu0
        %v701 = vadd.f32 %v409, %v700
        %v702 = vpop.f32.mrb[0].mxu0
        %703 = vmatprep.mubr.f32.mxu0 0.0
        %704 = vmatmul.mubr.f32.gmra.mrb[0].mxu0 %v497
        %v705 = vpop.f32.mrb[0].mxu0
        %v706 = vadd.f32 %v409, %v705
        %v707 = vpop.f32.mrb[0].mxu0
        %708 = vdwg.mxu0
        %vm709 = vcmp.ge.f32.partialorder %v566, 0.0
        %vm710 = vcmp.ge.f32.partialorder %v571, 0.0
        %vm711 = vcmp.ge.f32.partialorder %v576, 0.0
        %vm712 = vcmp.ge.f32.partialorder %v581, 0.0
        %vm713 = vcmp.ge.f32.partialorder %v586, 0.0
        %vm714 = vcmp.ge.f32.partialorder %v591, 0.0
        %vm715 = vcmp.ge.f32.partialorder %v596, 0.0
        %vm716 = vcmp.ge.f32.partialorder %v601, 0.0
        %vm717 = vcmp.ge.f32.partialorder %v606, 0.0
        %vm718 = vcmp.ge.f32.partialorder %v611, 0.0
        %vm719 = vcmp.ge.f32.partialorder %v616, 0.0
        %vm720 = vcmp.ge.f32.partialorder %v621, 0.0
        %vm721 = vcmp.ge.f32.partialorder %v626, 0.0
        %vm722 = vcmp.ge.f32.partialorder %v631, 0.0
        %vm723 = vcmp.ge.f32.partialorder %v636, 0.0
        %vm724 = vcmp.ge.f32.partialorder %v641, 0.0
        %vm725 = vcmp.ge.f32.partialorder %v646, 0.0
        %vm726 = vcmp.ge.f32.partialorder %v651, 0.0
        %vm727 = vcmp.ge.f32.partialorder %v656, 0.0
        %vm728 = vcmp.ge.f32.partialorder %v661, 0.0
        %vm729 = vcmp.ge.f32.partialorder %v666, 0.0
        %vm730 = vcmp.ge.f32.partialorder %v671, 0.0
        %vm731 = vcmp.ge.f32.partialorder %v676, 0.0
        %vm732 = vcmp.ge.f32.partialorder %v681, 0.0
        %vm733 = vcmp.ge.f32.partialorder %v686, 0.0
        %vm734 = vcmp.ge.f32.partialorder %v691, 0.0
        %vm735 = vcmp.ge.f32.partialorder %v696, 0.0
        %vm736 = vcmp.ge.f32.partialorder %v701, 0.0
        %vm737 = vcmp.ge.f32.partialorder %v706, 0.0
        %v738 = vmul.f32 %v566, 0.1
        %v739 = vmul.f32 %v571, 0.1
        %v740 = vmul.f32 %v576, 0.1
        %v741 = vmul.f32 %v581, 0.1
        %v742 = vmul.f32 %v586, 0.1
        %v743 = vmul.f32 %v591, 0.1
        %v744 = vmul.f32 %v596, 0.1
        %v745 = vmul.f32 %v601, 0.1
        %v746 = vmul.f32 %v606, 0.1
        %v747 = vmul.f32 %v611, 0.1
        %v748 = vmul.f32 %v616, 0.1
        %v749 = vmul.f32 %v621, 0.1
        %v750 = vmul.f32 %v626, 0.1
        %v751 = vmul.f32 %v631, 0.1
        %v752 = vmul.f32 %v636, 0.1
        %v753 = vmul.f32 %v641, 0.1
        %v754 = vmul.f32 %v646, 0.1
        %v755 = vmul.f32 %v651, 0.1
        %v756 = vmul.f32 %v656, 0.1
        %v757 = vmul.f32 %v661, 0.1
        %v758 = vmul.f32 %v666, 0.1
        %v759 = vmul.f32 %v671, 0.1
        %v760 = vmul.f32 %v676, 0.1
        %v761 = vmul.f32 %v681, 0.1
        %v762 = vmul.f32 %v686, 0.1
        %v763 = vmul.f32 %v691, 0.1
        %v764 = vmul.f32 %v696, 0.1
        %v765 = vmul.f32 %v701, 0.1
        %v766 = vmul.f32 %v706, 0.1
        %v767 = vsel %vm709, %v566, %v738
        %v768 = vsel %vm710, %v571, %v739
        %v769 = vsel %vm711, %v576, %v740
        %v770 = vsel %vm712, %v581, %v741
        %v771 = vsel %vm713, %v586, %v742
        %v772 = vsel %vm714, %v591, %v743
        %v773 = vsel %vm715, %v596, %v744
        %v774 = vsel %vm716, %v601, %v745
        %v775 = vsel %vm717, %v606, %v746
        %v776 = vsel %vm718, %v611, %v747
        %v777 = vsel %vm719, %v616, %v748
        %v778 = vsel %vm720, %v621, %v749
        %v779 = vsel %vm721, %v626, %v750
        %v780 = vsel %vm722, %v631, %v751
        %v781 = vsel %vm723, %v636, %v752
        %v782 = vsel %vm724, %v641, %v753
        %v783 = vsel %vm725, %v646, %v754
        %v784 = vsel %vm726, %v651, %v755
        %v785 = vsel %vm727, %v656, %v756
        %v786 = vsel %vm728, %v661, %v757
        %v787 = vsel %vm729, %v666, %v758
        %v788 = vsel %vm730, %v671, %v759
        %v789 = vsel %vm731, %v676, %v760
        %v790 = vsel %vm732, %v681, %v761
        %v791 = vsel %vm733, %v686, %v762
        %v792 = vsel %vm734, %v691, %v763
        %v793 = vsel %vm735, %v696, %v764
        %v794 = vsel %vm736, %v701, %v765
        %v795 = vsel %vm737, %v706, %v766
        %v796 = vld [vmem:[%s1] sm:$0xff]
        %v797 = vld [vmem:[%s1 + $0x8] sm:$0xff]
        %v798 = vld [vmem:[%s1 + $0x10] sm:$0xff]
        %v799 = vld [vmem:[%s1 + $0x18] sm:$0xff]
        %v800 = vld [vmem:[%s1 + $0x20] sm:$0xff]
        %v801 = vld [vmem:[%s1 + $0x28] sm:$0xff]
        %v802 = vld [vmem:[%s1 + $0x30] sm:$0xff]
        %v803 = vld [vmem:[%s1 + $0x38] sm:$0xff]
        %v804 = vld [vmem:[%s1 + $0x40] sm:$0xff]
        %v805 = vld [vmem:[%s1 + $0x48] sm:$0xff]
        %v806 = vld [vmem:[%s1 + $0x50] sm:$0xff]
        %v807 = vld [vmem:[%s1 + $0x58] sm:$0xff]
        %v808 = vld [vmem:[%s1 + $0x60] sm:$0xff]
        %v809 = vld [vmem:[%s1 + $0x68] sm:$0xff]
        %v810 = vld [vmem:[%s1 + $0x70] sm:$0xff]
        %v811 = vld [vmem:[%s1 + $0x78] sm:$0xff]
        %v812 = vld [vmem:[%s1 + $0x80] sm:$0xff]
        %v813 = vld [vmem:[%s1 + $0x88] sm:$0xff]
        %v814 = vld [vmem:[%s1 + $0x90] sm:$0xff]
        %v815 = vld [vmem:[%s1 + $0x98] sm:$0xff]
        %v816 = vld [vmem:[%s1 + $0xa0] sm:$0xff]
        %v817 = vld [vmem:[%s1 + $0xa8] sm:$0xff]
        %v818 = vld [vmem:[%s1 + $0xb0] sm:$0xff]
        %v819 = vld [vmem:[%s1 + $0xb8] sm:$0xff]
        %v820 = vld [vmem:[%s1 + $0xc0] sm:$0xff]
        %v821 = vld [vmem:[%s1 + $0xc8] sm:$0xff]
        %v822 = vld [vmem:[%s1 + $0xd0] sm:$0xff]
        %v823 = vld [vmem:[%s1 + $0xd8] sm:$0xff]
        %v824 = vld [vmem:[%s1 + $0xe0] sm:$0xff]
        %826 = vset.pattern.permute.xlu0 0
        %827 = vperm.xlu0 %826, %v796
        %v828 = vpop.permute.xlu0 %827
        %831 = vset.pattern.permute.xlu0 0
        %832 = vperm.xlu0 %831, %v797
        %v833 = vpop.permute.xlu0 %832
        %836 = vset.pattern.permute.xlu0 0
        %837 = vperm.xlu0 %836, %v798
        %v838 = vpop.permute.xlu0 %837
        %841 = vset.pattern.permute.xlu0 0
        %842 = vperm.xlu0 %841, %v799
        %v843 = vpop.permute.xlu0 %842
        %846 = vset.pattern.permute.xlu0 0
        %847 = vperm.xlu0 %846, %v800
        %v848 = vpop.permute.xlu0 %847
        %851 = vset.pattern.permute.xlu0 0
        %852 = vperm.xlu0 %851, %v801
        %v853 = vpop.permute.xlu0 %852
        %856 = vset.pattern.permute.xlu0 0
        %857 = vperm.xlu0 %856, %v802
        %v858 = vpop.permute.xlu0 %857
        %861 = vset.pattern.permute.xlu0 0
        %862 = vperm.xlu0 %861, %v803
        %v863 = vpop.permute.xlu0 %862
        %866 = vset.pattern.permute.xlu0 0
        %867 = vperm.xlu0 %866, %v804
        %v868 = vpop.permute.xlu0 %867
        %871 = vset.pattern.permute.xlu0 0
        %872 = vperm.xlu0 %871, %v805
        %v873 = vpop.permute.xlu0 %872
        %876 = vset.pattern.permute.xlu0 0
        %877 = vperm.xlu0 %876, %v806
        %v878 = vpop.permute.xlu0 %877
        %881 = vset.pattern.permute.xlu0 0
        %882 = vperm.xlu0 %881, %v807
        %v883 = vpop.permute.xlu0 %882
        %886 = vset.pattern.permute.xlu0 0
        %887 = vperm.xlu0 %886, %v808
        %v888 = vpop.permute.xlu0 %887
        %891 = vset.pattern.permute.xlu0 0
        %892 = vperm.xlu0 %891, %v809
        %v893 = vpop.permute.xlu0 %892
        %896 = vset.pattern.permute.xlu0 0
        %897 = vperm.xlu0 %896, %v810
        %v898 = vpop.permute.xlu0 %897
        %901 = vset.pattern.permute.xlu0 0
        %902 = vperm.xlu0 %901, %v811
        %v903 = vpop.permute.xlu0 %902
        %906 = vset.pattern.permute.xlu0 0
        %907 = vperm.xlu0 %906, %v812
        %v908 = vpop.permute.xlu0 %907
        %911 = vset.pattern.permute.xlu0 0
        %912 = vperm.xlu0 %911, %v813
        %v913 = vpop.permute.xlu0 %912
        %916 = vset.pattern.permute.xlu0 0
        %917 = vperm.xlu0 %916, %v814
        %v918 = vpop.permute.xlu0 %917
        %921 = vset.pattern.permute.xlu0 0
        %922 = vperm.xlu0 %921, %v815
        %v923 = vpop.permute.xlu0 %922
        %926 = vset.pattern.permute.xlu0 0
        %927 = vperm.xlu0 %926, %v816
        %v928 = vpop.permute.xlu0 %927
        %931 = vset.pattern.permute.xlu0 0
        %932 = vperm.xlu0 %931, %v817
        %v933 = vpop.permute.xlu0 %932
        %936 = vset.pattern.permute.xlu0 0
        %937 = vperm.xlu0 %936, %v818
        %v938 = vpop.permute.xlu0 %937
        %941 = vset.pattern.permute.xlu0 0
        %942 = vperm.xlu0 %941, %v819
        %v943 = vpop.permute.xlu0 %942
        %946 = vset.pattern.permute.xlu0 0
        %947 = vperm.xlu0 %946, %v820
        %v948 = vpop.permute.xlu0 %947
        %951 = vset.pattern.permute.xlu0 0
        %952 = vperm.xlu0 %951, %v821
        %v953 = vpop.permute.xlu0 %952
        %956 = vset.pattern.permute.xlu0 0
        %957 = vperm.xlu0 %956, %v822
        %v958 = vpop.permute.xlu0 %957
        %961 = vset.pattern.permute.xlu0 0
        %962 = vperm.xlu0 %961, %v823
        %v963 = vpop.permute.xlu0 %962
        %966 = vset.pattern.permute.xlu0 0
        %967 = vperm.xlu0 %966, %v824
        %v968 = vpop.permute.xlu0 %967
        %v970 = vmul.f32 %v767, %v828
        %v971 = vmul.f32 %v768, %v833
        %v972 = vmul.f32 %v769, %v838
        %v973 = vmul.f32 %v770, %v843
        %v974 = vmul.f32 %v771, %v848
        %v975 = vmul.f32 %v772, %v853
        %v976 = vmul.f32 %v773, %v858
        %v977 = vmul.f32 %v774, %v863
        %v978 = vmul.f32 %v775, %v868
        %v979 = vmul.f32 %v776, %v873
        %v980 = vmul.f32 %v777, %v878
        %v981 = vmul.f32 %v778, %v883
        %v982 = vmul.f32 %v779, %v888
        %v983 = vmul.f32 %v780, %v893
        %v984 = vmul.f32 %v781, %v898
        %v985 = vmul.f32 %v782, %v903
        %v986 = vmul.f32 %v783, %v908
        %v987 = vmul.f32 %v784, %v913
        %v988 = vmul.f32 %v785, %v918
        %v989 = vmul.f32 %v786, %v923
        %v990 = vmul.f32 %v787, %v928
        %v991 = vmul.f32 %v788, %v933
        %v992 = vmul.f32 %v789, %v938
        %v993 = vmul.f32 %v790, %v943
        %v994 = vmul.f32 %v791, %v948
        %v995 = vmul.f32 %v792, %v953
        %v996 = vmul.f32 %v793, %v958
        %v997 = vmul.f32 %v794, %v963
        %v998 = vmul.f32 %v795, %v968
        %999 = vst [vmem:[#allocation2] sm:$0xff] %v970
        %1000 = vst [vmem:[#allocation2 + $0x8] sm:$0xff] %v971
        %1001 = vst [vmem:[#allocation2 + $0x10] sm:$0xff] %v972
        %1002 = vst [vmem:[#allocation2 + $0x18] sm:$0xff] %v973
        %1003 = vst [vmem:[#allocation2 + $0x20] sm:$0xff] %v974
        %1004 = vst [vmem:[#allocation2 + $0x28] sm:$0xff] %v975
        %1005 = vst [vmem:[#allocation2 + $0x30] sm:$0xff] %v976
        %1006 = vst [vmem:[#allocation2 + $0x38] sm:$0xff] %v977
        %1007 = vst [vmem:[#allocation2 + $0x40] sm:$0xff] %v978
        %1008 = vst [vmem:[#allocation2 + $0x48] sm:$0xff] %v979
        %1009 = vst [vmem:[#allocation2 + $0x50] sm:$0xff] %v980
        %1010 = vst [vmem:[#allocation2 + $0x58] sm:$0xff] %v981
        %1011 = vst [vmem:[#allocation2 + $0x60] sm:$0xff] %v982
        %1012 = vst [vmem:[#allocation2 + $0x68] sm:$0xff] %v983
        %1013 = vst [vmem:[#allocation2 + $0x70] sm:$0xff] %v984
        %1014 = vst [vmem:[#allocation2 + $0x78] sm:$0xff] %v985
        %1015 = vst [vmem:[#allocation2 + $0x80] sm:$0xff] %v986
        %1016 = vst [vmem:[#allocation2 + $0x88] sm:$0xff] %v987
        %1017 = vst [vmem:[#allocation2 + $0x90] sm:$0xff] %v988
        %1018 = vst [vmem:[#allocation2 + $0x98] sm:$0xff] %v989
        %1019 = vst [vmem:[#allocation2 + $0xa0] sm:$0xff] %v990
        %1020 = vst [vmem:[#allocation2 + $0xa8] sm:$0xff] %v991
        %1021 = vst [vmem:[#allocation2 + $0xb0] sm:$0xff] %v992
        %1022 = vst [vmem:[#allocation2 + $0xb8] sm:$0xff] %v993
        %1023 = vst [vmem:[#allocation2 + $0xc0] sm:$0xff] %v994
        %1024 = vst [vmem:[#allocation2 + $0xc8] sm:$0xff] %v995
        %1025 = vst [vmem:[#allocation2 + $0xd0] sm:$0xff] %v996
        %1026 = vst [vmem:[#allocation2 + $0xd8] sm:$0xff] %v997
        %1027 = vst [vmem:[#allocation2 + $0xe0] sm:$0xff] %v998
        %v1028 = vld [vmem:[#allocation2] sm:$0xff]
        %v1029 = vld [vmem:[#allocation2 + $0x8] sm:$0xff]
        %v1030 = vld [vmem:[#allocation2 + $0x10] sm:$0xff]
        %v1031 = vld [vmem:[#allocation2 + $0x18] sm:$0xff]
        %v1032 = vld [vmem:[#allocation2 + $0x20] sm:$0xff]
        %v1033 = vld [vmem:[#allocation2 + $0x28] sm:$0xff]
        %v1034 = vld [vmem:[#allocation2 + $0x30] sm:$0xff]
        %v1035 = vld [vmem:[#allocation2 + $0x38] sm:$0xff]
        %v1036 = vld [vmem:[#allocation2 + $0x40] sm:$0xff]
        %v1037 = vld [vmem:[#allocation2 + $0x48] sm:$0xff]
        %v1038 = vld [vmem:[#allocation2 + $0x50] sm:$0xff]
        %v1039 = vld [vmem:[#allocation2 + $0x58] sm:$0xff]
        %v1040 = vld [vmem:[#allocation2 + $0x60] sm:$0xff]
        %v1041 = vld [vmem:[#allocation2 + $0x68] sm:$0xff]
        %v1042 = vld [vmem:[#allocation2 + $0x70] sm:$0xff]
        %v1043 = vld [vmem:[#allocation2 + $0x78] sm:$0xff]
        %v1044 = vld [vmem:[#allocation2 + $0x80] sm:$0xff]
        %v1045 = vld [vmem:[#allocation2 + $0x88] sm:$0xff]
        %v1046 = vld [vmem:[#allocation7] sm:$0xff]
        %v1047 = vld [vmem:[#allocation7 + $0x8] sm:$0xff]
        %v1048 = vld [vmem:[#allocation7 + $0x10] sm:$0xff]
        %v1049 = vld [vmem:[#allocation7 + $0x18] sm:$0xff]
        %v1050 = vld [vmem:[#allocation7 + $0x20] sm:$0xff]
        %v1051 = vld [vmem:[#allocation7 + $0x28] sm:$0xff]
        %v1052 = vld [vmem:[#allocation7 + $0x30] sm:$0xff]
        %v1053 = vld [vmem:[#allocation7 + $0x38] sm:$0xff]
        %v1054 = vld [vmem:[#allocation7 + $0x40] sm:$0xff]
        %v1055 = vld [vmem:[#allocation7 + $0x48] sm:$0xff]
        %v1056 = vld [vmem:[#allocation7 + $0x50] sm:$0xff]
        %v1057 = vld [vmem:[#allocation7 + $0x58] sm:$0xff]
        %v1058 = vld [vmem:[#allocation7 + $0x60] sm:$0xff]
        %v1059 = vld [vmem:[#allocation7 + $0x68] sm:$0xff]
        %v1060 = vld [vmem:[#allocation7 + $0x70] sm:$0xff]
        %v1061 = vld [vmem:[#allocation7 + $0x78] sm:$0xff]
        %v1062 = vld [vmem:[#allocation2 + $0x1] sm:$0xff]
        %v1063 = vld [vmem:[#allocation2 + $0x9] sm:$0xff]
        %v1064 = vld [vmem:[#allocation2 + $0x11] sm:$0xff]
        %v1065 = vld [vmem:[#allocation2 + $0x19] sm:$0xff]
        %v1066 = vld [vmem:[#allocation2 + $0x21] sm:$0xff]
        %v1067 = vld [vmem:[#allocation2 + $0x29] sm:$0xff]
        %v1068 = vld [vmem:[#allocation2 + $0x31] sm:$0xff]
        %v1069 = vld [vmem:[#allocation2 + $0x39] sm:$0xff]
        %v1070 = vld [vmem:[#allocation2 + $0x41] sm:$0xff]
        %v1071 = vld [vmem:[#allocation2 + $0x49] sm:$0xff]
        %v1072 = vld [vmem:[#allocation2 + $0x51] sm:$0xff]
        %v1073 = vld [vmem:[#allocation2 + $0x59] sm:$0xff]
        %v1074 = vld [vmem:[#allocation2 + $0x61] sm:$0xff]
        %v1075 = vld [vmem:[#allocation2 + $0x69] sm:$0xff]
        %v1076 = vld [vmem:[#allocation2 + $0x71] sm:$0xff]
        %v1077 = vld [vmem:[#allocation2 + $0x79] sm:$0xff]
        %v1078 = vld [vmem:[#allocation2 + $0x81] sm:$0xff]
        %v1079 = vld [vmem:[#allocation2 + $0x89] sm:$0xff]
        %s1080 = scalar_lea.vmem [#allocation7], 128
        %v1081 = vld [vmem:[%s1080] sm:$0xff]
        %v1082 = vld [vmem:[%s1080 + $0x8] sm:$0xff]
        %v1083 = vld [vmem:[%s1080 + $0x10] sm:$0xff]
        %v1084 = vld [vmem:[%s1080 + $0x18] sm:$0xff]
        %v1085 = vld [vmem:[%s1080 + $0x20] sm:$0xff]
        %v1086 = vld [vmem:[%s1080 + $0x28] sm:$0xff]
        %v1087 = vld [vmem:[%s1080 + $0x30] sm:$0xff]
        %v1088 = vld [vmem:[%s1080 + $0x38] sm:$0xff]
        %v1089 = vld [vmem:[%s1080 + $0x40] sm:$0xff]
        %v1090 = vld [vmem:[%s1080 + $0x48] sm:$0xff]
        %v1091 = vld [vmem:[%s1080 + $0x50] sm:$0xff]
        %v1092 = vld [vmem:[%s1080 + $0x58] sm:$0xff]
        %v1093 = vld [vmem:[%s1080 + $0x60] sm:$0xff]
        %v1094 = vld [vmem:[%s1080 + $0x68] sm:$0xff]
        %v1095 = vld [vmem:[%s1080 + $0x70] sm:$0xff]
        %v1096 = vld [vmem:[%s1080 + $0x78] sm:$0xff]
        %1097 = vmatprep.subr.mxu0 0.0
        %1098 = vmatpush1.msra.mxu0 %v1081
        %1099 = vmatprep.subr.mxu0 0.0
        %1100 = vmatpush1.msra.mxu0 %v1082
        %1101 = vmatprep.subr.mxu0 0.0
        %1102 = vmatpush1.msra.mxu0 %v1083
        %1103 = vmatprep.subr.mxu0 0.0
        %1104 = vmatpush1.msra.mxu0 %v1084
        %1105 = vmatprep.subr.mxu0 0.0
        %1106 = vmatpush1.msra.mxu0 %v1085
        %1107 = vmatprep.subr.mxu0 0.0
        %1108 = vmatpush1.msra.mxu0 %v1086
        %1109 = vmatprep.subr.mxu0 0.0
        %1110 = vmatpush1.msra.mxu0 %v1087
        %1111 = vmatprep.subr.mxu0 0.0
        %1112 = vmatpush1.msra.mxu0 %v1088
        %1113 = vmatprep.subr.mxu0 0.0
        %1114 = vmatpush1.msra.mxu0 %v1089
        %1115 = vmatprep.subr.mxu0 0.0
        %1116 = vmatpush1.msra.mxu0 %v1090
        %1117 = vmatprep.subr.mxu0 0.0
        %1118 = vmatpush1.msra.mxu0 %v1091
        %1119 = vmatprep.subr.mxu0 0.0
        %1120 = vmatpush1.msra.mxu0 %v1092
        %1121 = vmatprep.subr.mxu0 0.0
        %1122 = vmatpush1.msra.mxu0 %v1093
        %1123 = vmatprep.subr.mxu0 0.0
        %1124 = vmatpush1.msra.mxu0 %v1094
        %1125 = vmatprep.subr.mxu0 0.0
        %1126 = vmatpush1.msra.mxu0 %v1095
        %1127 = vmatprep.subr.mxu0 0.0
        %1128 = vmatpush1.msra.mxu0 %v1096
        %1129 = vmatprep.subr.mxu0 0.0
        %1130 = vmatpush1.msra.mxu0 0.0
        %1131 = vmatprep.subr.mxu0 0.0
        %1132 = vmatpush1.msra.mxu0 0.0
        %1133 = vmatprep.subr.mxu0 0.0
        %1134 = vmatpush1.msra.mxu0 0.0
        %1135 = vmatprep.subr.mxu0 0.0
        %1136 = vmatpush1.msra.mxu0 0.0
        %1137 = vmatprep.subr.mxu0 0.0
        %1138 = vmatpush1.msra.mxu0 0.0
        %1139 = vmatprep.subr.mxu0 0.0
        %1140 = vmatpush1.msra.mxu0 0.0
        %1141 = vmatprep.subr.mxu0 0.0
        %1142 = vmatpush1.msra.mxu0 0.0
        %1143 = vmatprep.subr.mxu0 0.0
        %1144 = vmatpush1.msra.mxu0 0.0
        %1145 = vmatprep.subr.mxu0 0.0
        %1146 = vmatpush1.msra.mxu0 0.0
        %1147 = vmatprep.subr.mxu0 0.0
        %1148 = vmatpush1.msra.mxu0 0.0
        %1149 = vmatprep.subr.mxu0 0.0
        %1150 = vmatpush1.msra.mxu0 0.0
        %1151 = vmatprep.subr.mxu0 0.0
        %1152 = vmatpush1.msra.mxu0 0.0
        %1153 = vmatprep.subr.mxu0 0.0
        %1154 = vmatpush1.msra.mxu0 0.0
        %1155 = vmatprep.subr.mxu0 0.0
        %1156 = vmatpush1.msra.mxu0 0.0
        %1157 = vmatprep.subr.mxu0 0.0
        %1158 = vmatpush1.msra.mxu0 0.0
        %1159 = vmatprep.subr.mxu0 0.0
        %1160 = vmatpush1.msra.mxu0 0.0
        %1161 = vmatprep.mubr.f32.mxu0 0.0
        %1162 = vmatmul.mubr.f32.gmra.mrb[0].mxu0 %v1062
        %v1163 = vpop.f32.mrb[0].mxu0
        %v1164 = vadd.f32 0.0, %v1163
        %v1165 = vpop.f32.mrb[0].mxu0
        %1166 = vmatprep.mubr.f32.mxu0 0.0
        %1167 = vmatmul.mubr.f32.gmra.mrb[0].mxu0 %v1063
        %v1168 = vpop.f32.mrb[0].mxu0
        %v1169 = vadd.f32 0.0, %v1168
        %v1170 = vpop.f32.mrb[0].mxu0
        %1171 = vmatprep.mubr.f32.mxu0 0.0
        %1172 = vmatmul.mubr.f32.gmra.mrb[0].mxu0 %v1064
        %v1173 = vpop.f32.mrb[0].mxu0
        %v1174 = vadd.f32 0.0, %v1173
        %v1175 = vpop.f32.mrb[0].mxu0
        %1176 = vmatprep.mubr.f32.mxu0 0.0
        %1177 = vmatmul.mubr.f32.gmra.mrb[0].mxu0 %v1065
        %v1178 = vpop.f32.mrb[0].mxu0
        %v1179 = vadd.f32 0.0, %v1178
        %v1180 = vpop.f32.mrb[0].mxu0
        %1181 = vmatprep.mubr.f32.mxu0 0.0
        %1182 = vmatmul.mubr.f32.gmra.mrb[0].mxu0 %v1066
        %v1183 = vpop.f32.mrb[0].mxu0
        %v1184 = vadd.f32 0.0, %v1183
        %v1185 = vpop.f32.mrb[0].mxu0
        %1186 = vmatprep.mubr.f32.mxu0 0.0
        %1187 = vmatmul.mubr.f32.gmra.mrb[0].mxu0 %v1067
        %v1188 = vpop.f32.mrb[0].mxu0
        %v1189 = vadd.f32 0.0, %v1188
        %v1190 = vpop.f32.mrb[0].mxu0
        %1191 = vmatprep.mubr.f32.mxu0 0.0
        %1192 = vmatmul.mubr.f32.gmra.mrb[0].mxu0 %v1068
        %v1193 = vpop.f32.mrb[0].mxu0
        %v1194 = vadd.f32 0.0, %v1193
        %v1195 = vpop.f32.mrb[0].mxu0
        %1196 = vmatprep.mubr.f32.mxu0 0.0
        %1197 = vmatmul.mubr.f32.gmra.mrb[0].mxu0 %v1069
        %v1198 = vpop.f32.mrb[0].mxu0
        %v1199 = vadd.f32 0.0, %v1198
        %v1200 = vpop.f32.mrb[0].mxu0
        %1201 = vmatprep.mubr.f32.mxu0 0.0
        %1202 = vmatmul.mubr.f32.gmra.mrb[0].mxu0 %v1070
        %v1203 = vpop.f32.mrb[0].mxu0
        %v1204 = vadd.f32 0.0, %v1203
        %v1205 = vpop.f32.mrb[0].mxu0
        %1206 = vmatprep.mubr.f32.mxu0 0.0
        %1207 = vmatmul.mubr.f32.gmra.mrb[0].mxu0 %v1071
        %v1208 = vpop.f32.mrb[0].mxu0
        %v1209 = vadd.f32 0.0, %v1208
        %v1210 = vpop.f32.mrb[0].mxu0
        %1211 = vmatprep.mubr.f32.mxu0 0.0
        %1212 = vmatmul.mubr.f32.gmra.mrb[0].mxu0 %v1072
        %v1213 = vpop.f32.mrb[0].mxu0
        %v1214 = vadd.f32 0.0, %v1213
        %v1215 = vpop.f32.mrb[0].mxu0
        %1216 = vmatprep.mubr.f32.mxu0 0.0
        %1217 = vmatmul.mubr.f32.gmra.mrb[0].mxu0 %v1073
        %v1218 = vpop.f32.mrb[0].mxu0
        %v1219 = vadd.f32 0.0, %v1218
        %v1220 = vpop.f32.mrb[0].mxu0
        %1221 = vmatprep.mubr.f32.mxu0 0.0
        %1222 = vmatmul.mubr.f32.gmra.mrb[0].mxu0 %v1074
        %v1223 = vpop.f32.mrb[0].mxu0
        %v1224 = vadd.f32 0.0, %v1223
        %v1225 = vpop.f32.mrb[0].mxu0
        %1226 = vmatprep.mubr.f32.mxu0 0.0
        %1227 = vmatmul.mubr.f32.gmra.mrb[0].mxu0 %v1075
        %v1228 = vpop.f32.mrb[0].mxu0
        %v1229 = vadd.f32 0.0, %v1228
        %v1230 = vpop.f32.mrb[0].mxu0
        %1231 = vmatprep.mubr.f32.mxu0 0.0
        %1232 = vmatmul.mubr.f32.gmra.mrb[0].mxu0 %v1076
        %v1233 = vpop.f32.mrb[0].mxu0
        %v1234 = vadd.f32 0.0, %v1233
        %v1235 = vpop.f32.mrb[0].mxu0
        %1236 = vmatprep.mubr.f32.mxu0 0.0
        %1237 = vmatmul.mubr.f32.gmra.mrb[0].mxu0 %v1077
        %v1238 = vpop.f32.mrb[0].mxu0
        %v1239 = vadd.f32 0.0, %v1238
        %v1240 = vpop.f32.mrb[0].mxu0
        %1241 = vmatprep.mubr.f32.mxu0 0.0
        %1242 = vmatmul.mubr.f32.gmra.mrb[0].mxu0 %v1078
        %v1243 = vpop.f32.mrb[0].mxu0
        %v1244 = vadd.f32 0.0, %v1243
        %v1245 = vpop.f32.mrb[0].mxu0
        %1246 = vmatprep.mubr.f32.mxu0 0.0
        %1247 = vmatmul.mubr.f32.gmra.mrb[0].mxu0 %v1079
        %v1248 = vpop.f32.mrb[0].mxu0
        %v1249 = vadd.f32 0.0, %v1248
        %v1250 = vpop.f32.mrb[0].mxu0
        %1251 = vdwg.mxu0
        %1252 = vmatprep.subr.mxu0 0.0
        %1253 = vmatpush1.msra.mxu0 %v1046
        %1254 = vmatprep.subr.mxu0 0.0
        %1255 = vmatpush1.msra.mxu0 %v1047
        %1256 = vmatprep.subr.mxu0 0.0
        %1257 = vmatpush1.msra.mxu0 %v1048
        %1258 = vmatprep.subr.mxu0 0.0
        %1259 = vmatpush1.msra.mxu0 %v1049
        %1260 = vmatprep.subr.mxu0 0.0
        %1261 = vmatpush1.msra.mxu0 %v1050
        %1262 = vmatprep.subr.mxu0 0.0
        %1263 = vmatpush1.msra.mxu0 %v1051
        %1264 = vmatprep.subr.mxu0 0.0
        %1265 = vmatpush1.msra.mxu0 %v1052
        %1266 = vmatprep.subr.mxu0 0.0
        %1267 = vmatpush1.msra.mxu0 %v1053
        %1268 = vmatprep.subr.mxu0 0.0
        %1269 = vmatpush1.msra.mxu0 %v1054
        %1270 = vmatprep.subr.mxu0 0.0
        %1271 = vmatpush1.msra.mxu0 %v1055
        %1272 = vmatprep.subr.mxu0 0.0
        %1273 = vmatpush1.msra.mxu0 %v1056
        %1274 = vmatprep.subr.mxu0 0.0
        %1275 = vmatpush1.msra.mxu0 %v1057
        %1276 = vmatprep.subr.mxu0 0.0
        %1277 = vmatpush1.msra.mxu0 %v1058
        %1278 = vmatprep.subr.mxu0 0.0
        %1279 = vmatpush1.msra.mxu0 %v1059
        %1280 = vmatprep.subr.mxu0 0.0
        %1281 = vmatpush1.msra.mxu0 %v1060
        %1282 = vmatprep.subr.mxu0 0.0
        %1283 = vmatpush1.msra.mxu0 %v1061
        %1284 = vmatprep.subr.mxu0 0.0
        %1285 = vmatpush1.msra.mxu0 0.0
        %1286 = vmatprep.subr.mxu0 0.0
        %1287 = vmatpush1.msra.mxu0 0.0
        %1288 = vmatprep.subr.mxu0 0.0
        %1289 = vmatpush1.msra.mxu0 0.0
        %1290 = vmatprep.subr.mxu0 0.0
        %1291 = vmatpush1.msra.mxu0 0.0
        %1292 = vmatprep.subr.mxu0 0.0
        %1293 = vmatpush1.msra.mxu0 0.0
        %1294 = vmatprep.subr.mxu0 0.0
        %1295 = vmatpush1.msra.mxu0 0.0
        %1296 = vmatprep.subr.mxu0 0.0
        %1297 = vmatpush1.msra.mxu0 0.0
        %1298 = vmatprep.subr.mxu0 0.0
        %1299 = vmatpush1.msra.mxu0 0.0
        %1300 = vmatprep.subr.mxu0 0.0
        %1301 = vmatpush1.msra.mxu0 0.0
        %1302 = vmatprep.subr.mxu0 0.0
        %1303 = vmatpush1.msra.mxu0 0.0
        %1304 = vmatprep.subr.mxu0 0.0
        %1305 = vmatpush1.msra.mxu0 0.0
        %1306 = vmatprep.subr.mxu0 0.0
        %1307 = vmatpush1.msra.mxu0 0.0
        %1308 = vmatprep.subr.mxu0 0.0
        %1309 = vmatpush1.msra.mxu0 0.0
        %1310 = vmatprep.subr.mxu0 0.0
        %1311 = vmatpush1.msra.mxu0 0.0
        %1312 = vmatprep.subr.mxu0 0.0
        %1313 = vmatpush1.msra.mxu0 0.0
        %1314 = vmatprep.subr.mxu0 0.0
        %1315 = vmatpush1.msra.mxu0 0.0
        %1316 = vmatprep.mubr.f32.mxu0 0.0
        %1317 = vmatmul.mubr.f32.gmra.mrb[0].mxu0 %v1028
        %v1318 = vpop.f32.mrb[0].mxu0
        %v1319 = vadd.f32 %v1164, %v1318
        %v1320 = vpop.f32.mrb[0].mxu0
        %1321 = vmatprep.mubr.f32.mxu0 0.0
        %1322 = vmatmul.mubr.f32.gmra.mrb[0].mxu0 %v1029
        %v1323 = vpop.f32.mrb[0].mxu0
        %v1324 = vadd.f32 %v1169, %v1323
        %v1325 = vpop.f32.mrb[0].mxu0
        %1326 = vmatprep.mubr.f32.mxu0 0.0
        %1327 = vmatmul.mubr.f32.gmra.mrb[0].mxu0 %v1030
        %v1328 = vpop.f32.mrb[0].mxu0
        %v1329 = vadd.f32 %v1174, %v1328
        %v1330 = vpop.f32.mrb[0].mxu0
        %1331 = vmatprep.mubr.f32.mxu0 0.0
        %1332 = vmatmul.mubr.f32.gmra.mrb[0].mxu0 %v1031
        %v1333 = vpop.f32.mrb[0].mxu0
        %v1334 = vadd.f32 %v1179, %v1333
        %v1335 = vpop.f32.mrb[0].mxu0
        %1336 = vmatprep.mubr.f32.mxu0 0.0
        %1337 = vmatmul.mubr.f32.gmra.mrb[0].mxu0 %v1032
        %v1338 = vpop.f32.mrb[0].mxu0
        %v1339 = vadd.f32 %v1184, %v1338
        %v1340 = vpop.f32.mrb[0].mxu0
        %1341 = vmatprep.mubr.f32.mxu0 0.0
        %1342 = vmatmul.mubr.f32.gmra.mrb[0].mxu0 %v1033
        %v1343 = vpop.f32.mrb[0].mxu0
        %v1344 = vadd.f32 %v1189, %v1343
        %v1345 = vpop.f32.mrb[0].mxu0
        %1346 = vmatprep.mubr.f32.mxu0 0.0
        %1347 = vmatmul.mubr.f32.gmra.mrb[0].mxu0 %v1034
        %v1348 = vpop.f32.mrb[0].mxu0
        %v1349 = vadd.f32 %v1194, %v1348
        %v1350 = vpop.f32.mrb[0].mxu0
        %1351 = vmatprep.mubr.f32.mxu0 0.0
        %1352 = vmatmul.mubr.f32.gmra.mrb[0].mxu0 %v1035
        %v1353 = vpop.f32.mrb[0].mxu0
        %v1354 = vadd.f32 %v1199, %v1353
        %v1355 = vpop.f32.mrb[0].mxu0
        %1356 = vmatprep.mubr.f32.mxu0 0.0
        %1357 = vmatmul.mubr.f32.gmra.mrb[0].mxu0 %v1036
        %v1358 = vpop.f32.mrb[0].mxu0
        %v1359 = vadd.f32 %v1204, %v1358
        %v1360 = vpop.f32.mrb[0].mxu0
        %1361 = vmatprep.mubr.f32.mxu0 0.0
        %1362 = vmatmul.mubr.f32.gmra.mrb[0].mxu0 %v1037
        %v1363 = vpop.f32.mrb[0].mxu0
        %v1364 = vadd.f32 %v1209, %v1363
        %v1365 = vpop.f32.mrb[0].mxu0
        %1366 = vmatprep.mubr.f32.mxu0 0.0
        %1367 = vmatmul.mubr.f32.gmra.mrb[0].mxu0 %v1038
        %v1368 = vpop.f32.mrb[0].mxu0
        %v1369 = vadd.f32 %v1214, %v1368
        %v1370 = vpop.f32.mrb[0].mxu0
        %1371 = vmatprep.mubr.f32.mxu0 0.0
        %1372 = vmatmul.mubr.f32.gmra.mrb[0].mxu0 %v1039
        %v1373 = vpop.f32.mrb[0].mxu0
        %v1374 = vadd.f32 %v1219, %v1373
        %v1375 = vpop.f32.mrb[0].mxu0
        %1376 = vmatprep.mubr.f32.mxu0 0.0
        %1377 = vmatmul.mubr.f32.gmra.mrb[0].mxu0 %v1040
        %v1378 = vpop.f32.mrb[0].mxu0
        %v1379 = vadd.f32 %v1224, %v1378
        %v1380 = vpop.f32.mrb[0].mxu0
        %1381 = vmatprep.mubr.f32.mxu0 0.0
        %1382 = vmatmul.mubr.f32.gmra.mrb[0].mxu0 %v1041
        %v1383 = vpop.f32.mrb[0].mxu0
        %v1384 = vadd.f32 %v1229, %v1383
        %v1385 = vpop.f32.mrb[0].mxu0
        %1386 = vmatprep.mubr.f32.mxu0 0.0
        %1387 = vmatmul.mubr.f32.gmra.mrb[0].mxu0 %v1042
        %v1388 = vpop.f32.mrb[0].mxu0
        %v1389 = vadd.f32 %v1234, %v1388
        %v1390 = vpop.f32.mrb[0].mxu0
        %1391 = vmatprep.mubr.f32.mxu0 0.0
        %1392 = vmatmul.mubr.f32.gmra.mrb[0].mxu0 %v1043
        %v1393 = vpop.f32.mrb[0].mxu0
        %v1394 = vadd.f32 %v1239, %v1393
        %v1395 = vpop.f32.mrb[0].mxu0
        %1396 = vmatprep.mubr.f32.mxu0 0.0
        %1397 = vmatmul.mubr.f32.gmra.mrb[0].mxu0 %v1044
        %v1398 = vpop.f32.mrb[0].mxu0
        %v1399 = vadd.f32 %v1244, %v1398
        %v1400 = vpop.f32.mrb[0].mxu0
        %1401 = vmatprep.mubr.f32.mxu0 0.0
        %1402 = vmatmul.mubr.f32.gmra.mrb[0].mxu0 %v1045
        %v1403 = vpop.f32.mrb[0].mxu0
        %v1404 = vadd.f32 %v1249, %v1403
        %v1405 = vpop.f32.mrb[0].mxu0
        %1406 = vdwg.mxu0
        %v1407 = vld [vmem:[#allocation2 + $0x2] sm:$0xff]
        %v1408 = vld [vmem:[#allocation2 + $0xa] sm:$0xff]
        %v1409 = vld [vmem:[#allocation2 + $0x12] sm:$0xff]
        %v1410 = vld [vmem:[#allocation2 + $0x1a] sm:$0xff]
        %v1411 = vld [vmem:[#allocation2 + $0x22] sm:$0xff]
        %v1412 = vld [vmem:[#allocation2 + $0x2a] sm:$0xff]
        %v1413 = vld [vmem:[#allocation2 + $0x32] sm:$0xff]
        %v1414 = vld [vmem:[#allocation2 + $0x3a] sm:$0xff]
        %v1415 = vld [vmem:[#allocation2 + $0x42] sm:$0xff]
        %v1416 = vld [vmem:[#allocation2 + $0x4a] sm:$0xff]
        %v1417 = vld [vmem:[#allocation2 + $0x52] sm:$0xff]
        %v1418 = vld [vmem:[#allocation2 + $0x5a] sm:$0xff]
        %v1419 = vld [vmem:[#allocation2 + $0x62] sm:$0xff]
        %v1420 = vld [vmem:[#allocation2 + $0x6a] sm:$0xff]
        %v1421 = vld [vmem:[#allocation2 + $0x72] sm:$0xff]
        %v1422 = vld [vmem:[#allocation2 + $0x7a] sm:$0xff]
        %v1423 = vld [vmem:[#allocation2 + $0x82] sm:$0xff]
        %v1424 = vld [vmem:[#allocation2 + $0x8a] sm:$0xff]
        %s1425 = scalar_lea.vmem [#allocation7], 256
        %v1426 = vld [vmem:[%s1425] sm:$0xff]
        %v1427 = vld [vmem:[%s1425 + $0x8] sm:$0xff]
        %v1428 = vld [vmem:[%s1425 + $0x10] sm:$0xff]
        %v1429 = vld [vmem:[%s1425 + $0x18] sm:$0xff]
        %v1430 = vld [vmem:[%s1425 + $0x20] sm:$0xff]
        %v1431 = vld [vmem:[%s1425 + $0x28] sm:$0xff]
        %v1432 = vld [vmem:[%s1425 + $0x30] sm:$0xff]
        %v1433 = vld [vmem:[%s1425 + $0x38] sm:$0xff]
        %v1434 = vld [vmem:[%s1425 + $0x40] sm:$0xff]
        %v1435 = vld [vmem:[%s1425 + $0x48] sm:$0xff]
        %v1436 = vld [vmem:[%s1425 + $0x50] sm:$0xff]
        %v1437 = vld [vmem:[%s1425 + $0x58] sm:$0xff]
        %v1438 = vld [vmem:[%s1425 + $0x60] sm:$0xff]
        %v1439 = vld [vmem:[%s1425 + $0x68] sm:$0xff]
        %v1440 = vld [vmem:[%s1425 + $0x70] sm:$0xff]
        %v1441 = vld [vmem:[%s1425 + $0x78] sm:$0xff]
        %1442 = vmatprep.subr.mxu0 0.0
        %1443 = vmatpush1.msra.mxu0 %v1426
        %1444 = vmatprep.subr.mxu0 0.0
        %1445 = vmatpush1.msra.mxu0 %v1427
        %1446 = vmatprep.subr.mxu0 0.0
        %1447 = vmatpush1.msra.mxu0 %v1428
        %1448 = vmatprep.subr.mxu0 0.0
        %1449 = vmatpush1.msra.mxu0 %v1429
        %1450 = vmatprep.subr.mxu0 0.0
        %1451 = vmatpush1.msra.mxu0 %v1430
        %1452 = vmatprep.subr.mxu0 0.0
        %1453 = vmatpush1.msra.mxu0 %v1431
        %1454 = vmatprep.subr.mxu0 0.0
        %1455 = vmatpush1.msra.mxu0 %v1432
        %1456 = vmatprep.subr.mxu0 0.0
        %1457 = vmatpush1.msra.mxu0 %v1433
        %1458 = vmatprep.subr.mxu0 0.0
        %1459 = vmatpush1.msra.mxu0 %v1434
        %1460 = vmatprep.subr.mxu0 0.0
        %1461 = vmatpush1.msra.mxu0 %v1435
        %1462 = vmatprep.subr.mxu0 0.0
        %1463 = vmatpush1.msra.mxu0 %v1436
        %1464 = vmatprep.subr.mxu0 0.0
        %1465 = vmatpush1.msra.mxu0 %v1437
        %1466 = vmatprep.subr.mxu0 0.0
        %1467 = vmatpush1.msra.mxu0 %v1438
        %1468 = vmatprep.subr.mxu0 0.0
        %1469 = vmatpush1.msra.mxu0 %v1439
        %1470 = vmatprep.subr.mxu0 0.0
        %1471 = vmatpush1.msra.mxu0 %v1440
        %1472 = vmatprep.subr.mxu0 0.0
        %1473 = vmatpush1.msra.mxu0 %v1441
        %1474 = vmatprep.subr.mxu0 0.0
        %1475 = vmatpush1.msra.mxu0 0.0
        %1476 = vmatprep.subr.mxu0 0.0
        %1477 = vmatpush1.msra.mxu0 0.0
        %1478 = vmatprep.subr.mxu0 0.0
        %1479 = vmatpush1.msra.mxu0 0.0
        %1480 = vmatprep.subr.mxu0 0.0
        %1481 = vmatpush1.msra.mxu0 0.0
        %1482 = vmatprep.subr.mxu0 0.0
        %1483 = vmatpush1.msra.mxu0 0.0
        %1484 = vmatprep.subr.mxu0 0.0
        %1485 = vmatpush1.msra.mxu0 0.0
        %1486 = vmatprep.subr.mxu0 0.0
        %1487 = vmatpush1.msra.mxu0 0.0
        %1488 = vmatprep.subr.mxu0 0.0
        %1489 = vmatpush1.msra.mxu0 0.0
        %1490 = vmatprep.subr.mxu0 0.0
        %1491 = vmatpush1.msra.mxu0 0.0
        %1492 = vmatprep.subr.mxu0 0.0
        %1493 = vmatpush1.msra.mxu0 0.0
        %1494 = vmatprep.subr.mxu0 0.0
        %1495 = vmatpush1.msra.mxu0 0.0
        %1496 = vmatprep.subr.mxu0 0.0
        %1497 = vmatpush1.msra.mxu0 0.0
        %1498 = vmatprep.subr.mxu0 0.0
        %1499 = vmatpush1.msra.mxu0 0.0
        %1500 = vmatprep.subr.mxu0 0.0
        %1501 = vmatpush1.msra.mxu0 0.0
        %1502 = vmatprep.subr.mxu0 0.0
        %1503 = vmatpush1.msra.mxu0 0.0
        %1504 = vmatprep.subr.mxu0 0.0
        %1505 = vmatpush1.msra.mxu0 0.0
        %1506 = vmatprep.mubr.f32.mxu0 0.0
        %1507 = vmatmul.mubr.f32.gmra.mrb[0].mxu0 %v1407
        %v1508 = vpop.f32.mrb[0].mxu0
        %v1509 = vadd.f32 0.0, %v1508
        %v1510 = vpop.f32.mrb[0].mxu0
        %1511 = vmatprep.mubr.f32.mxu0 0.0
        %1512 = vmatmul.mubr.f32.gmra.mrb[0].mxu0 %v1408
        %v1513 = vpop.f32.mrb[0].mxu0
        %v1514 = vadd.f32 0.0, %v1513
        %v1515 = vpop.f32.mrb[0].mxu0
        %1516 = vmatprep.mubr.f32.mxu0 0.0
        %1517 = vmatmul.mubr.f32.gmra.mrb[0].mxu0 %v1409
        %v1518 = vpop.f32.mrb[0].mxu0
        %v1519 = vadd.f32 0.0, %v1518
        %v1520 = vpop.f32.mrb[0].mxu0
        %1521 = vmatprep.mubr.f32.mxu0 0.0
        %1522 = vmatmul.mubr.f32.gmra.mrb[0].mxu0 %v1410
        %v1523 = vpop.f32.mrb[0].mxu0
        %v1524 = vadd.f32 0.0, %v1523
        %v1525 = vpop.f32.mrb[0].mxu0
        %1526 = vmatprep.mubr.f32.mxu0 0.0
        %1527 = vmatmul.mubr.f32.gmra.mrb[0].mxu0 %v1411
        %v1528 = vpop.f32.mrb[0].mxu0
        %v1529 = vadd.f32 0.0, %v1528
        %v1530 = vpop.f32.mrb[0].mxu0
        %1531 = vmatprep.mubr.f32.mxu0 0.0
        %1532 = vmatmul.mubr.f32.gmra.mrb[0].mxu0 %v1412
        %v1533 = vpop.f32.mrb[0].mxu0
        %v1534 = vadd.f32 0.0, %v1533
        %v1535 = vpop.f32.mrb[0].mxu0
        %1536 = vmatprep.mubr.f32.mxu0 0.0
        %1537 = vmatmul.mubr.f32.gmra.mrb[0].mxu0 %v1413
        %v1538 = vpop.f32.mrb[0].mxu0
        %v1539 = vadd.f32 0.0, %v1538
        %v1540 = vpop.f32.mrb[0].mxu0
        %1541 = vmatprep.mubr.f32.mxu0 0.0
        %1542 = vmatmul.mubr.f32.gmra.mrb[0].mxu0 %v1414
        %v1543 = vpop.f32.mrb[0].mxu0
        %v1544 = vadd.f32 0.0, %v1543
        %v1545 = vpop.f32.mrb[0].mxu0
        %1546 = vmatprep.mubr.f32.mxu0 0.0
        %1547 = vmatmul.mubr.f32.gmra.mrb[0].mxu0 %v1415
        %v1548 = vpop.f32.mrb[0].mxu0
        %v1549 = vadd.f32 0.0, %v1548
        %v1550 = vpop.f32.mrb[0].mxu0
        %1551 = vmatprep.mubr.f32.mxu0 0.0
        %1552 = vmatmul.mubr.f32.gmra.mrb[0].mxu0 %v1416
        %v1553 = vpop.f32.mrb[0].mxu0
        %v1554 = vadd.f32 0.0, %v1553
        %v1555 = vpop.f32.mrb[0].mxu0
        %1556 = vmatprep.mubr.f32.mxu0 0.0
        %1557 = vmatmul.mubr.f32.gmra.mrb[0].mxu0 %v1417
        %v1558 = vpop.f32.mrb[0].mxu0
        %v1559 = vadd.f32 0.0, %v1558
        %v1560 = vpop.f32.mrb[0].mxu0
        %1561 = vmatprep.mubr.f32.mxu0 0.0
        %1562 = vmatmul.mubr.f32.gmra.mrb[0].mxu0 %v1418
        %v1563 = vpop.f32.mrb[0].mxu0
        %v1564 = vadd.f32 0.0, %v1563
        %v1565 = vpop.f32.mrb[0].mxu0
        %1566 = vmatprep.mubr.f32.mxu0 0.0
        %1567 = vmatmul.mubr.f32.gmra.mrb[0].mxu0 %v1419
        %v1568 = vpop.f32.mrb[0].mxu0
        %v1569 = vadd.f32 0.0, %v1568
        %v1570 = vpop.f32.mrb[0].mxu0
        %1571 = vmatprep.mubr.f32.mxu0 0.0
        %1572 = vmatmul.mubr.f32.gmra.mrb[0].mxu0 %v1420
        %v1573 = vpop.f32.mrb[0].mxu0
        %v1574 = vadd.f32 0.0, %v1573
        %v1575 = vpop.f32.mrb[0].mxu0
        %1576 = vmatprep.mubr.f32.mxu0 0.0
        %1577 = vmatmul.mubr.f32.gmra.mrb[0].mxu0 %v1421
        %v1578 = vpop.f32.mrb[0].mxu0
        %v1579 = vadd.f32 0.0, %v1578
        %v1580 = vpop.f32.mrb[0].mxu0
        %1581 = vmatprep.mubr.f32.mxu0 0.0
        %1582 = vmatmul.mubr.f32.gmra.mrb[0].mxu0 %v1422
        %v1583 = vpop.f32.mrb[0].mxu0
        %v1584 = vadd.f32 0.0, %v1583
        %v1585 = vpop.f32.mrb[0].mxu0
        %1586 = vmatprep.mubr.f32.mxu0 0.0
        %1587 = vmatmul.mubr.f32.gmra.mrb[0].mxu0 %v1423
        %v1588 = vpop.f32.mrb[0].mxu0
        %v1589 = vadd.f32 0.0, %v1588
        %v1590 = vpop.f32.mrb[0].mxu0
        %1591 = vmatprep.mubr.f32.mxu0 0.0
        %1592 = vmatmul.mubr.f32.gmra.mrb[0].mxu0 %v1424
        %v1593 = vpop.f32.mrb[0].mxu0
        %v1594 = vadd.f32 0.0, %v1593
        %v1595 = vpop.f32.mrb[0].mxu0
        %1596 = vdwg.mxu0
        %v1597 = vadd.f32 %v1319, %v1509
        %v1598 = vadd.f32 %v1324, %v1514
        %v1599 = vadd.f32 %v1329, %v1519
        %v1600 = vadd.f32 %v1334, %v1524
        %v1601 = vadd.f32 %v1339, %v1529
        %v1602 = vadd.f32 %v1344, %v1534
        %v1603 = vadd.f32 %v1349, %v1539
        %v1604 = vadd.f32 %v1354, %v1544
        %v1605 = vadd.f32 %v1359, %v1549
        %v1606 = vadd.f32 %v1364, %v1554
        %v1607 = vadd.f32 %v1369, %v1559
        %v1608 = vadd.f32 %v1374, %v1564
        %v1609 = vadd.f32 %v1379, %v1569
        %v1610 = vadd.f32 %v1384, %v1574
        %v1611 = vadd.f32 %v1389, %v1579
        %v1612 = vadd.f32 %v1394, %v1584
        %v1613 = vadd.f32 %v1399, %v1589
        %v1614 = vadd.f32 %v1404, %v1594
        %v1615 = vld [vmem:[#allocation2 + $0x6] sm:$0xff]
        %v1616 = vld [vmem:[#allocation2 + $0xe] sm:$0xff]
        %v1617 = vld [vmem:[#allocation2 + $0x16] sm:$0xff]
        %v1618 = vld [vmem:[#allocation2 + $0x1e] sm:$0xff]
        %v1619 = vld [vmem:[#allocation2 + $0x26] sm:$0xff]
        %v1620 = vld [vmem:[#allocation2 + $0x2e] sm:$0xff]
        %v1621 = vld [vmem:[#allocation2 + $0x36] sm:$0xff]
        %v1622 = vld [vmem:[#allocation2 + $0x3e] sm:$0xff]
        %v1623 = vld [vmem:[#allocation2 + $0x46] sm:$0xff]
        %v1624 = vld [vmem:[#allocation2 + $0x4e] sm:$0xff]
        %v1625 = vld [vmem:[#allocation2 + $0x56] sm:$0xff]
        %v1626 = vld [vmem:[#allocation2 + $0x5e] sm:$0xff]
        %v1627 = vld [vmem:[#allocation2 + $0x66] sm:$0xff]
        %v1628 = vld [vmem:[#allocation2 + $0x6e] sm:$0xff]
        %v1629 = vld [vmem:[#allocation2 + $0x76] sm:$0xff]
        %v1630 = vld [vmem:[#allocation2 + $0x7e] sm:$0xff]
        %v1631 = vld [vmem:[#allocation2 + $0x86] sm:$0xff]
        %v1632 = vld [vmem:[#allocation2 + $0x8e] sm:$0xff]
        %s1633 = scalar_lea.vmem [#allocation7], 384
        %v1634 = vld [vmem:[%s1633] sm:$0xff]
        %v1635 = vld [vmem:[%s1633 + $0x8] sm:$0xff]
        %v1636 = vld [vmem:[%s1633 + $0x10] sm:$0xff]
        %v1637 = vld [vmem:[%s1633 + $0x18] sm:$0xff]
        %v1638 = vld [vmem:[%s1633 + $0x20] sm:$0xff]
        %v1639 = vld [vmem:[%s1633 + $0x28] sm:$0xff]
        %v1640 = vld [vmem:[%s1633 + $0x30] sm:$0xff]
        %v1641 = vld [vmem:[%s1633 + $0x38] sm:$0xff]
        %v1642 = vld [vmem:[%s1633 + $0x40] sm:$0xff]
        %v1643 = vld [vmem:[%s1633 + $0x48] sm:$0xff]
        %v1644 = vld [vmem:[%s1633 + $0x50] sm:$0xff]
        %v1645 = vld [vmem:[%s1633 + $0x58] sm:$0xff]
        %v1646 = vld [vmem:[%s1633 + $0x60] sm:$0xff]
        %v1647 = vld [vmem:[%s1633 + $0x68] sm:$0xff]
        %v1648 = vld [vmem:[%s1633 + $0x70] sm:$0xff]
        %v1649 = vld [vmem:[%s1633 + $0x78] sm:$0xff]
        %1650 = vmatprep.subr.mxu0 0.0
        %1651 = vmatpush1.msra.mxu0 %v1634
        %1652 = vmatprep.subr.mxu0 0.0
        %1653 = vmatpush1.msra.mxu0 %v1635
        %1654 = vmatprep.subr.mxu0 0.0
        %1655 = vmatpush1.msra.mxu0 %v1636
        %1656 = vmatprep.subr.mxu0 0.0
        %1657 = vmatpush1.msra.mxu0 %v1637
        %1658 = vmatprep.subr.mxu0 0.0
        %1659 = vmatpush1.msra.mxu0 %v1638
        %1660 = vmatprep.subr.mxu0 0.0
        %1661 = vmatpush1.msra.mxu0 %v1639
        %1662 = vmatprep.subr.mxu0 0.0
        %1663 = vmatpush1.msra.mxu0 %v1640
        %1664 = vmatprep.subr.mxu0 0.0
        %1665 = vmatpush1.msra.mxu0 %v1641
        %1666 = vmatprep.subr.mxu0 0.0
        %1667 = vmatpush1.msra.mxu0 %v1642
        %1668 = vmatprep.subr.mxu0 0.0
        %1669 = vmatpush1.msra.mxu0 %v1643
        %1670 = vmatprep.subr.mxu0 0.0
        %1671 = vmatpush1.msra.mxu0 %v1644
        %1672 = vmatprep.subr.mxu0 0.0
        %1673 = vmatpush1.msra.mxu0 %v1645
        %1674 = vmatprep.subr.mxu0 0.0
        %1675 = vmatpush1.msra.mxu0 %v1646
        %1676 = vmatprep.subr.mxu0 0.0
        %1677 = vmatpush1.msra.mxu0 %v1647
        %1678 = vmatprep.subr.mxu0 0.0
        %1679 = vmatpush1.msra.mxu0 %v1648
        %1680 = vmatprep.subr.mxu0 0.0
        %1681 = vmatpush1.msra.mxu0 %v1649
        %1682 = vmatprep.subr.mxu0 0.0
        %1683 = vmatpush1.msra.mxu0 0.0
        %1684 = vmatprep.subr.mxu0 0.0
        %1685 = vmatpush1.msra.mxu0 0.0
        %1686 = vmatprep.subr.mxu0 0.0
        %1687 = vmatpush1.msra.mxu0 0.0
        %1688 = vmatprep.subr.mxu0 0.0
        %1689 = vmatpush1.msra.mxu0 0.0
        %1690 = vmatprep.subr.mxu0 0.0
        %1691 = vmatpush1.msra.mxu0 0.0
        %1692 = vmatprep.subr.mxu0 0.0
        %1693 = vmatpush1.msra.mxu0 0.0
        %1694 = vmatprep.subr.mxu0 0.0
        %1695 = vmatpush1.msra.mxu0 0.0
        %1696 = vmatprep.subr.mxu0 0.0
        %1697 = vmatpush1.msra.mxu0 0.0
        %1698 = vmatprep.subr.mxu0 0.0
        %1699 = vmatpush1.msra.mxu0 0.0
        %1700 = vmatprep.subr.mxu0 0.0
        %1701 = vmatpush1.msra.mxu0 0.0
        %1702 = vmatprep.subr.mxu0 0.0
        %1703 = vmatpush1.msra.mxu0 0.0
        %1704 = vmatprep.subr.mxu0 0.0
        %1705 = vmatpush1.msra.mxu0 0.0
        %1706 = vmatprep.subr.mxu0 0.0
        %1707 = vmatpush1.msra.mxu0 0.0
        %1708 = vmatprep.subr.mxu0 0.0
        %1709 = vmatpush1.msra.mxu0 0.0
        %1710 = vmatprep.subr.mxu0 0.0
        %1711 = vmatpush1.msra.mxu0 0.0
        %1712 = vmatprep.subr.mxu0 0.0
        %1713 = vmatpush1.msra.mxu0 0.0
        %1714 = vmatprep.mubr.f32.mxu0 0.0
        %1715 = vmatmul.mubr.f32.gmra.mrb[0].mxu0 %v1615
        %v1716 = vpop.f32.mrb[0].mxu0
        %v1717 = vadd.f32 0.0, %v1716
        %v1718 = vpop.f32.mrb[0].mxu0
        %1719 = vmatprep.mubr.f32.mxu0 0.0
        %1720 = vmatmul.mubr.f32.gmra.mrb[0].mxu0 %v1616
        %v1721 = vpop.f32.mrb[0].mxu0
        %v1722 = vadd.f32 0.0, %v1721
        %v1723 = vpop.f32.mrb[0].mxu0
        %1724 = vmatprep.mubr.f32.mxu0 0.0
        %1725 = vmatmul.mubr.f32.gmra.mrb[0].mxu0 %v1617
        %v1726 = vpop.f32.mrb[0].mxu0
        %v1727 = vadd.f32 0.0, %v1726
        %v1728 = vpop.f32.mrb[0].mxu0
        %1729 = vmatprep.mubr.f32.mxu0 0.0
        %1730 = vmatmul.mubr.f32.gmra.mrb[0].mxu0 %v1618
        %v1731 = vpop.f32.mrb[0].mxu0
        %v1732 = vadd.f32 0.0, %v1731
        %v1733 = vpop.f32.mrb[0].mxu0
        %1734 = vmatprep.mubr.f32.mxu0 0.0
        %1735 = vmatmul.mubr.f32.gmra.mrb[0].mxu0 %v1619
        %v1736 = vpop.f32.mrb[0].mxu0
        %v1737 = vadd.f32 0.0, %v1736
        %v1738 = vpop.f32.mrb[0].mxu0
        %1739 = vmatprep.mubr.f32.mxu0 0.0
        %1740 = vmatmul.mubr.f32.gmra.mrb[0].mxu0 %v1620
        %v1741 = vpop.f32.mrb[0].mxu0
        %v1742 = vadd.f32 0.0, %v1741
        %v1743 = vpop.f32.mrb[0].mxu0
        %1744 = vmatprep.mubr.f32.mxu0 0.0
        %1745 = vmatmul.mubr.f32.gmra.mrb[0].mxu0 %v1621
        %v1746 = vpop.f32.mrb[0].mxu0
        %v1747 = vadd.f32 0.0, %v1746
        %v1748 = vpop.f32.mrb[0].mxu0
        %1749 = vmatprep.mubr.f32.mxu0 0.0
        %1750 = vmatmul.mubr.f32.gmra.mrb[0].mxu0 %v1622
        %v1751 = vpop.f32.mrb[0].mxu0
        %v1752 = vadd.f32 0.0, %v1751
        %v1753 = vpop.f32.mrb[0].mxu0
        %1754 = vmatprep.mubr.f32.mxu0 0.0
        %1755 = vmatmul.mubr.f32.gmra.mrb[0].mxu0 %v1623
        %v1756 = vpop.f32.mrb[0].mxu0
        %v1757 = vadd.f32 0.0, %v1756
        %v1758 = vpop.f32.mrb[0].mxu0
        %1759 = vmatprep.mubr.f32.mxu0 0.0
        %1760 = vmatmul.mubr.f32.gmra.mrb[0].mxu0 %v1624
        %v1761 = vpop.f32.mrb[0].mxu0
        %v1762 = vadd.f32 0.0, %v1761
        %v1763 = vpop.f32.mrb[0].mxu0
        %1764 = vmatprep.mubr.f32.mxu0 0.0
        %1765 = vmatmul.mubr.f32.gmra.mrb[0].mxu0 %v1625
        %v1766 = vpop.f32.mrb[0].mxu0
        %v1767 = vadd.f32 0.0, %v1766
        %v1768 = vpop.f32.mrb[0].mxu0
        %1769 = vmatprep.mubr.f32.mxu0 0.0
        %1770 = vmatmul.mubr.f32.gmra.mrb[0].mxu0 %v1626
        %v1771 = vpop.f32.mrb[0].mxu0
        %v1772 = vadd.f32 0.0, %v1771
        %v1773 = vpop.f32.mrb[0].mxu0
        %1774 = vmatprep.mubr.f32.mxu0 0.0
        %1775 = vmatmul.mubr.f32.gmra.mrb[0].mxu0 %v1627
        %v1776 = vpop.f32.mrb[0].mxu0
        %v1777 = vadd.f32 0.0, %v1776
        %v1778 = vpop.f32.mrb[0].mxu0
        %1779 = vmatprep.mubr.f32.mxu0 0.0
        %1780 = vmatmul.mubr.f32.gmra.mrb[0].mxu0 %v1628
        %v1781 = vpop.f32.mrb[0].mxu0
        %v1782 = vadd.f32 0.0, %v1781
        %v1783 = vpop.f32.mrb[0].mxu0
        %1784 = vmatprep.mubr.f32.mxu0 0.0
        %1785 = vmatmul.mubr.f32.gmra.mrb[0].mxu0 %v1629
        %v1786 = vpop.f32.mrb[0].mxu0
        %v1787 = vadd.f32 0.0, %v1786
        %v1788 = vpop.f32.mrb[0].mxu0
        %1789 = vmatprep.mubr.f32.mxu0 0.0
        %1790 = vmatmul.mubr.f32.gmra.mrb[0].mxu0 %v1630
        %v1791 = vpop.f32.mrb[0].mxu0
        %v1792 = vadd.f32 0.0, %v1791
        %v1793 = vpop.f32.mrb[0].mxu0
        %1794 = vmatprep.mubr.f32.mxu0 0.0
        %1795 = vmatmul.mubr.f32.gmra.mrb[0].mxu0 %v1631
        %v1796 = vpop.f32.mrb[0].mxu0
        %v1797 = vadd.f32 0.0, %v1796
        %v1798 = vpop.f32.mrb[0].mxu0
        %1799 = vmatprep.mubr.f32.mxu0 0.0
        %1800 = vmatmul.mubr.f32.gmra.mrb[0].mxu0 %v1632
        %v1801 = vpop.f32.mrb[0].mxu0
        %v1802 = vadd.f32 0.0, %v1801
        %v1803 = vpop.f32.mrb[0].mxu0
        %1804 = vdwg.mxu0
        %v1805 = vadd.f32 %v1597, %v1717
        %v1806 = vadd.f32 %v1598, %v1722
        %v1807 = vadd.f32 %v1599, %v1727
        %v1808 = vadd.f32 %v1600, %v1732
        %v1809 = vadd.f32 %v1601, %v1737
        %v1810 = vadd.f32 %v1602, %v1742
        %v1811 = vadd.f32 %v1603, %v1747
        %v1812 = vadd.f32 %v1604, %v1752
        %v1813 = vadd.f32 %v1605, %v1757
        %v1814 = vadd.f32 %v1606, %v1762
        %v1815 = vadd.f32 %v1607, %v1767
        %v1816 = vadd.f32 %v1608, %v1772
        %v1817 = vadd.f32 %v1609, %v1777
        %v1818 = vadd.f32 %v1610, %v1782
        %v1819 = vadd.f32 %v1611, %v1787
        %v1820 = vadd.f32 %v1612, %v1792
        %v1821 = vadd.f32 %v1613, %v1797
        %v1822 = vadd.f32 %v1614, %v1802
        %v1823 = vld [vmem:[#allocation2 + $0x7] sm:$0xff]
        %v1824 = vld [vmem:[#allocation2 + $0xf] sm:$0xff]
        %v1825 = vld [vmem:[#allocation2 + $0x17] sm:$0xff]
        %v1826 = vld [vmem:[#allocation2 + $0x1f] sm:$0xff]
        %v1827 = vld [vmem:[#allocation2 + $0x27] sm:$0xff]
        %v1828 = vld [vmem:[#allocation2 + $0x2f] sm:$0xff]
        %v1829 = vld [vmem:[#allocation2 + $0x37] sm:$0xff]
        %v1830 = vld [vmem:[#allocation2 + $0x3f] sm:$0xff]
        %v1831 = vld [vmem:[#allocation2 + $0x47] sm:$0xff]
        %v1832 = vld [vmem:[#allocation2 + $0x4f] sm:$0xff]
        %v1833 = vld [vmem:[#allocation2 + $0x57] sm:$0xff]
        %v1834 = vld [vmem:[#allocation2 + $0x5f] sm:$0xff]
        %v1835 = vld [vmem:[#allocation2 + $0x67] sm:$0xff]
        %v1836 = vld [vmem:[#allocation2 + $0x6f] sm:$0xff]
        %v1837 = vld [vmem:[#allocation2 + $0x77] sm:$0xff]
        %v1838 = vld [vmem:[#allocation2 + $0x7f] sm:$0xff]
        %v1839 = vld [vmem:[#allocation2 + $0x87] sm:$0xff]
        %v1840 = vld [vmem:[#allocation2 + $0x8f] sm:$0xff]
        %s1841 = scalar_lea.vmem [#allocation7], 512
        %v1842 = vld [vmem:[%s1841] sm:$0xff]
        %v1843 = vld [vmem:[%s1841 + $0x8] sm:$0xff]
        %v1844 = vld [vmem:[%s1841 + $0x10] sm:$0xff]
        %v1845 = vld [vmem:[%s1841 + $0x18] sm:$0xff]
        %v1846 = vld [vmem:[%s1841 + $0x20] sm:$0xff]
        %v1847 = vld [vmem:[%s1841 + $0x28] sm:$0xff]
        %v1848 = vld [vmem:[%s1841 + $0x30] sm:$0xff]
        %v1849 = vld [vmem:[%s1841 + $0x38] sm:$0xff]
        %v1850 = vld [vmem:[%s1841 + $0x40] sm:$0xff]
        %v1851 = vld [vmem:[%s1841 + $0x48] sm:$0xff]
        %v1852 = vld [vmem:[%s1841 + $0x50] sm:$0xff]
        %v1853 = vld [vmem:[%s1841 + $0x58] sm:$0xff]
        %v1854 = vld [vmem:[%s1841 + $0x60] sm:$0xff]
        %v1855 = vld [vmem:[%s1841 + $0x68] sm:$0xff]
        %v1856 = vld [vmem:[%s1841 + $0x70] sm:$0xff]
        %v1857 = vld [vmem:[%s1841 + $0x78] sm:$0xff]
        %1858 = vmatprep.subr.mxu0 0.0
        %1859 = vmatpush1.msra.mxu0 %v1842
        %1860 = vmatprep.subr.mxu0 0.0
        %1861 = vmatpush1.msra.mxu0 %v1843
        %1862 = vmatprep.subr.mxu0 0.0
        %1863 = vmatpush1.msra.mxu0 %v1844
        %1864 = vmatprep.subr.mxu0 0.0
        %1865 = vmatpush1.msra.mxu0 %v1845
        %1866 = vmatprep.subr.mxu0 0.0
        %1867 = vmatpush1.msra.mxu0 %v1846
        %1868 = vmatprep.subr.mxu0 0.0
        %1869 = vmatpush1.msra.mxu0 %v1847
        %1870 = vmatprep.subr.mxu0 0.0
        %1871 = vmatpush1.msra.mxu0 %v1848
        %1872 = vmatprep.subr.mxu0 0.0
        %1873 = vmatpush1.msra.mxu0 %v1849
        %1874 = vmatprep.subr.mxu0 0.0
        %1875 = vmatpush1.msra.mxu0 %v1850
        %1876 = vmatprep.subr.mxu0 0.0
        %1877 = vmatpush1.msra.mxu0 %v1851
        %1878 = vmatprep.subr.mxu0 0.0
        %1879 = vmatpush1.msra.mxu0 %v1852
        %1880 = vmatprep.subr.mxu0 0.0
        %1881 = vmatpush1.msra.mxu0 %v1853
        %1882 = vmatprep.subr.mxu0 0.0
        %1883 = vmatpush1.msra.mxu0 %v1854
        %1884 = vmatprep.subr.mxu0 0.0
        %1885 = vmatpush1.msra.mxu0 %v1855
        %1886 = vmatprep.subr.mxu0 0.0
        %1887 = vmatpush1.msra.mxu0 %v1856
        %1888 = vmatprep.subr.mxu0 0.0
        %1889 = vmatpush1.msra.mxu0 %v1857
        %1890 = vmatprep.subr.mxu0 0.0
        %1891 = vmatpush1.msra.mxu0 0.0
        %1892 = vmatprep.subr.mxu0 0.0
        %1893 = vmatpush1.msra.mxu0 0.0
        %1894 = vmatprep.subr.mxu0 0.0
        %1895 = vmatpush1.msra.mxu0 0.0
        %1896 = vmatprep.subr.mxu0 0.0
        %1897 = vmatpush1.msra.mxu0 0.0
        %1898 = vmatprep.subr.mxu0 0.0
        %1899 = vmatpush1.msra.mxu0 0.0
        %1900 = vmatprep.subr.mxu0 0.0
        %1901 = vmatpush1.msra.mxu0 0.0
        %1902 = vmatprep.subr.mxu0 0.0
        %1903 = vmatpush1.msra.mxu0 0.0
        %1904 = vmatprep.subr.mxu0 0.0
        %1905 = vmatpush1.msra.mxu0 0.0
        %1906 = vmatprep.subr.mxu0 0.0
        %1907 = vmatpush1.msra.mxu0 0.0
        %1908 = vmatprep.subr.mxu0 0.0
        %1909 = vmatpush1.msra.mxu0 0.0
        %1910 = vmatprep.subr.mxu0 0.0
        %1911 = vmatpush1.msra.mxu0 0.0
        %1912 = vmatprep.subr.mxu0 0.0
        %1913 = vmatpush1.msra.mxu0 0.0
        %1914 = vmatprep.subr.mxu0 0.0
        %1915 = vmatpush1.msra.mxu0 0.0
        %1916 = vmatprep.subr.mxu0 0.0
        %1917 = vmatpush1.msra.mxu0 0.0
        %1918 = vmatprep.subr.mxu0 0.0
        %1919 = vmatpush1.msra.mxu0 0.0
        %1920 = vmatprep.subr.mxu0 0.0
        %1921 = vmatpush1.msra.mxu0 0.0
        %1922 = vmatprep.mubr.f32.mxu0 0.0
        %1923 = vmatmul.mubr.f32.gmra.mrb[0].mxu0 %v1823
        %v1924 = vpop.f32.mrb[0].mxu0
        %v1925 = vadd.f32 0.0, %v1924
        %v1926 = vpop.f32.mrb[0].mxu0
        %1927 = vmatprep.mubr.f32.mxu0 0.0
        %1928 = vmatmul.mubr.f32.gmra.mrb[0].mxu0 %v1824
        %v1929 = vpop.f32.mrb[0].mxu0
        %v1930 = vadd.f32 0.0, %v1929
        %v1931 = vpop.f32.mrb[0].mxu0
        %1932 = vmatprep.mubr.f32.mxu0 0.0
        %1933 = vmatmul.mubr.f32.gmra.mrb[0].mxu0 %v1825
        %v1934 = vpop.f32.mrb[0].mxu0
        %v1935 = vadd.f32 0.0, %v1934
        %v1936 = vpop.f32.mrb[0].mxu0
        %1937 = vmatprep.mubr.f32.mxu0 0.0
        %1938 = vmatmul.mubr.f32.gmra.mrb[0].mxu0 %v1826
        %v1939 = vpop.f32.mrb[0].mxu0
        %v1940 = vadd.f32 0.0, %v1939
        %v1941 = vpop.f32.mrb[0].mxu0
        %1942 = vmatprep.mubr.f32.mxu0 0.0
        %1943 = vmatmul.mubr.f32.gmra.mrb[0].mxu0 %v1827
        %v1944 = vpop.f32.mrb[0].mxu0
        %v1945 = vadd.f32 0.0, %v1944
        %v1946 = vpop.f32.mrb[0].mxu0
        %1947 = vmatprep.mubr.f32.mxu0 0.0
        %1948 = vmatmul.mubr.f32.gmra.mrb[0].mxu0 %v1828
        %v1949 = vpop.f32.mrb[0].mxu0
        %v1950 = vadd.f32 0.0, %v1949
        %v1951 = vpop.f32.mrb[0].mxu0
        %1952 = vmatprep.mubr.f32.mxu0 0.0
        %1953 = vmatmul.mubr.f32.gmra.mrb[0].mxu0 %v1829
        %v1954 = vpop.f32.mrb[0].mxu0
        %v1955 = vadd.f32 0.0, %v1954
        %v1956 = vpop.f32.mrb[0].mxu0
        %1957 = vmatprep.mubr.f32.mxu0 0.0
        %1958 = vmatmul.mubr.f32.gmra.mrb[0].mxu0 %v1830
        %v1959 = vpop.f32.mrb[0].mxu0
        %v1960 = vadd.f32 0.0, %v1959
        %v1961 = vpop.f32.mrb[0].mxu0
        %1962 = vmatprep.mubr.f32.mxu0 0.0
        %1963 = vmatmul.mubr.f32.gmra.mrb[0].mxu0 %v1831
        %v1964 = vpop.f32.mrb[0].mxu0
        %v1965 = vadd.f32 0.0, %v1964
        %v1966 = vpop.f32.mrb[0].mxu0
        %1967 = vmatprep.mubr.f32.mxu0 0.0
        %1968 = vmatmul.mubr.f32.gmra.mrb[0].mxu0 %v1832
        %v1969 = vpop.f32.mrb[0].mxu0
        %v1970 = vadd.f32 0.0, %v1969
        %v1971 = vpop.f32.mrb[0].mxu0
        %1972 = vmatprep.mubr.f32.mxu0 0.0
        %1973 = vmatmul.mubr.f32.gmra.mrb[0].mxu0 %v1833
        %v1974 = vpop.f32.mrb[0].mxu0
        %v1975 = vadd.f32 0.0, %v1974
        %v1976 = vpop.f32.mrb[0].mxu0
        %1977 = vmatprep.mubr.f32.mxu0 0.0
        %1978 = vmatmul.mubr.f32.gmra.mrb[0].mxu0 %v1834
        %v1979 = vpop.f32.mrb[0].mxu0
        %v1980 = vadd.f32 0.0, %v1979
        %v1981 = vpop.f32.mrb[0].mxu0
        %1982 = vmatprep.mubr.f32.mxu0 0.0
        %1983 = vmatmul.mubr.f32.gmra.mrb[0].mxu0 %v1835
        %v1984 = vpop.f32.mrb[0].mxu0
        %v1985 = vadd.f32 0.0, %v1984
        %v1986 = vpop.f32.mrb[0].mxu0
        %1987 = vmatprep.mubr.f32.mxu0 0.0
        %1988 = vmatmul.mubr.f32.gmra.mrb[0].mxu0 %v1836
        %v1989 = vpop.f32.mrb[0].mxu0
        %v1990 = vadd.f32 0.0, %v1989
        %v1991 = vpop.f32.mrb[0].mxu0
        %1992 = vmatprep.mubr.f32.mxu0 0.0
        %1993 = vmatmul.mubr.f32.gmra.mrb[0].mxu0 %v1837
        %v1994 = vpop.f32.mrb[0].mxu0
        %v1995 = vadd.f32 0.0, %v1994
        %v1996 = vpop.f32.mrb[0].mxu0
        %1997 = vmatprep.mubr.f32.mxu0 0.0
        %1998 = vmatmul.mubr.f32.gmra.mrb[0].mxu0 %v1838
        %v1999 = vpop.f32.mrb[0].mxu0
        %v2000 = vadd.f32 0.0, %v1999
        %v2001 = vpop.f32.mrb[0].mxu0
        %2002 = vmatprep.mubr.f32.mxu0 0.0
        %2003 = vmatmul.mubr.f32.gmra.mrb[0].mxu0 %v1839
        %v2004 = vpop.f32.mrb[0].mxu0
        %v2005 = vadd.f32 0.0, %v2004
        %v2006 = vpop.f32.mrb[0].mxu0
        %2007 = vmatprep.mubr.f32.mxu0 0.0
        %2008 = vmatmul.mubr.f32.gmra.mrb[0].mxu0 %v1840
        %v2009 = vpop.f32.mrb[0].mxu0
        %v2010 = vadd.f32 0.0, %v2009
        %v2011 = vpop.f32.mrb[0].mxu0
        %2012 = vdwg.mxu0
        %v2013 = vadd.f32 %v1805, %v1925
        %v2014 = vadd.f32 %v1806, %v1930
        %v2015 = vadd.f32 %v1807, %v1935
        %v2016 = vadd.f32 %v1808, %v1940
        %v2017 = vadd.f32 %v1809, %v1945
        %v2018 = vadd.f32 %v1810, %v1950
        %v2019 = vadd.f32 %v1811, %v1955
        %v2020 = vadd.f32 %v1812, %v1960
        %v2021 = vadd.f32 %v1813, %v1965
        %v2022 = vadd.f32 %v1814, %v1970
        %v2023 = vadd.f32 %v1815, %v1975
        %v2024 = vadd.f32 %v1816, %v1980
        %v2025 = vadd.f32 %v1817, %v1985
        %v2026 = vadd.f32 %v1818, %v1990
        %v2027 = vadd.f32 %v1819, %v1995
        %v2028 = vadd.f32 %v1820, %v2000
        %v2029 = vadd.f32 %v1821, %v2005
        %v2030 = vadd.f32 %v1822, %v2010
        %v2031 = vld [vmem:[#allocation2 + $0x8] sm:$0xff]
        %v2032 = vld [vmem:[#allocation2 + $0x10] sm:$0xff]
        %v2033 = vld [vmem:[#allocation2 + $0x18] sm:$0xff]
        %v2034 = vld [vmem:[#allocation2 + $0x20] sm:$0xff]
        %v2035 = vld [vmem:[#allocation2 + $0x28] sm:$0xff]
        %v2036 = vld [vmem:[#allocation2 + $0x30] sm:$0xff]
        %v2037 = vld [vmem:[#allocation2 + $0x38] sm:$0xff]
        %v2038 = vld [vmem:[#allocation2 + $0x40] sm:$0xff]
        %v2039 = vld [vmem:[#allocation2 + $0x48] sm:$0xff]
        %v2040 = vld [vmem:[#allocation2 + $0x50] sm:$0xff]
        %v2041 = vld [vmem:[#allocation2 + $0x58] sm:$0xff]
        %v2042 = vld [vmem:[#allocation2 + $0x60] sm:$0xff]
        %v2043 = vld [vmem:[#allocation2 + $0x68] sm:$0xff]
        %v2044 = vld [vmem:[#allocation2 + $0x70] sm:$0xff]
        %v2045 = vld [vmem:[#allocation2 + $0x78] sm:$0xff]
        %v2046 = vld [vmem:[#allocation2 + $0x80] sm:$0xff]
        %v2047 = vld [vmem:[#allocation2 + $0x88] sm:$0xff]
        %v2048 = vld [vmem:[#allocation2 + $0x90] sm:$0xff]
        %s2049 = scalar_lea.vmem [#allocation7], 640
        %v2050 = vld [vmem:[%s2049] sm:$0xff]
        %v2051 = vld [vmem:[%s2049 + $0x8] sm:$0xff]
        %v2052 = vld [vmem:[%s2049 + $0x10] sm:$0xff]
        %v2053 = vld [vmem:[%s2049 + $0x18] sm:$0xff]
        %v2054 = vld [vmem:[%s2049 + $0x20] sm:$0xff]
        %v2055 = vld [vmem:[%s2049 + $0x28] sm:$0xff]
        %v2056 = vld [vmem:[%s2049 + $0x30] sm:$0xff]
        %v2057 = vld [vmem:[%s2049 + $0x38] sm:$0xff]
        %v2058 = vld [vmem:[%s2049 + $0x40] sm:$0xff]
        %v2059 = vld [vmem:[%s2049 + $0x48] sm:$0xff]
        %v2060 = vld [vmem:[%s2049 + $0x50] sm:$0xff]
        %v2061 = vld [vmem:[%s2049 + $0x58] sm:$0xff]
        %v2062 = vld [vmem:[%s2049 + $0x60] sm:$0xff]
        %v2063 = vld [vmem:[%s2049 + $0x68] sm:$0xff]
        %v2064 = vld [vmem:[%s2049 + $0x70] sm:$0xff]
        %v2065 = vld [vmem:[%s2049 + $0x78] sm:$0xff]
        %2066 = vmatprep.subr.mxu0 0.0
        %2067 = vmatpush1.msra.mxu0 %v2050
        %2068 = vmatprep.subr.mxu0 0.0
        %2069 = vmatpush1.msra.mxu0 %v2051
        %2070 = vmatprep.subr.mxu0 0.0
        %2071 = vmatpush1.msra.mxu0 %v2052
        %2072 = vmatprep.subr.mxu0 0.0
        %2073 = vmatpush1.msra.mxu0 %v2053
        %2074 = vmatprep.subr.mxu0 0.0
        %2075 = vmatpush1.msra.mxu0 %v2054
        %2076 = vmatprep.subr.mxu0 0.0
        %2077 = vmatpush1.msra.mxu0 %v2055
        %2078 = vmatprep.subr.mxu0 0.0
        %2079 = vmatpush1.msra.mxu0 %v2056
        %2080 = vmatprep.subr.mxu0 0.0
        %2081 = vmatpush1.msra.mxu0 %v2057
        %2082 = vmatprep.subr.mxu0 0.0
        %2083 = vmatpush1.msra.mxu0 %v2058
        %2084 = vmatprep.subr.mxu0 0.0
        %2085 = vmatpush1.msra.mxu0 %v2059
        %2086 = vmatprep.subr.mxu0 0.0
        %2087 = vmatpush1.msra.mxu0 %v2060
        %2088 = vmatprep.subr.mxu0 0.0
        %2089 = vmatpush1.msra.mxu0 %v2061
        %2090 = vmatprep.subr.mxu0 0.0
        %2091 = vmatpush1.msra.mxu0 %v2062
        %2092 = vmatprep.subr.mxu0 0.0
        %2093 = vmatpush1.msra.mxu0 %v2063
        %2094 = vmatprep.subr.mxu0 0.0
        %2095 = vmatpush1.msra.mxu0 %v2064
        %2096 = vmatprep.subr.mxu0 0.0
        %2097 = vmatpush1.msra.mxu0 %v2065
        %2098 = vmatprep.subr.mxu0 0.0
        %2099 = vmatpush1.msra.mxu0 0.0
        %2100 = vmatprep.subr.mxu0 0.0
        %2101 = vmatpush1.msra.mxu0 0.0
        %2102 = vmatprep.subr.mxu0 0.0
        %2103 = vmatpush1.msra.mxu0 0.0
        %2104 = vmatprep.subr.mxu0 0.0
        %2105 = vmatpush1.msra.mxu0 0.0
        %2106 = vmatprep.subr.mxu0 0.0
        %2107 = vmatpush1.msra.mxu0 0.0
        %2108 = vmatprep.subr.mxu0 0.0
        %2109 = vmatpush1.msra.mxu0 0.0
        %2110 = vmatprep.subr.mxu0 0.0
        %2111 = vmatpush1.msra.mxu0 0.0
        %2112 = vmatprep.subr.mxu0 0.0
        %2113 = vmatpush1.msra.mxu0 0.0
        %2114 = vmatprep.subr.mxu0 0.0
        %2115 = vmatpush1.msra.mxu0 0.0
        %2116 = vmatprep.subr.mxu0 0.0
        %2117 = vmatpush1.msra.mxu0 0.0
        %2118 = vmatprep.subr.mxu0 0.0
        %2119 = vmatpush1.msra.mxu0 0.0
        %2120 = vmatprep.subr.mxu0 0.0
        %2121 = vmatpush1.msra.mxu0 0.0
        %2122 = vmatprep.subr.mxu0 0.0
        %2123 = vmatpush1.msra.mxu0 0.0
        %2124 = vmatprep.subr.mxu0 0.0
        %2125 = vmatpush1.msra.mxu0 0.0
        %2126 = vmatprep.subr.mxu0 0.0
        %2127 = vmatpush1.msra.mxu0 0.0
        %2128 = vmatprep.subr.mxu0 0.0
        %2129 = vmatpush1.msra.mxu0 0.0
        %2130 = vmatprep.mubr.f32.mxu0 0.0
        %2131 = vmatmul.mubr.f32.gmra.mrb[0].mxu0 %v2031
        %v2132 = vpop.f32.mrb[0].mxu0
        %v2133 = vadd.f32 0.0, %v2132
        %v2134 = vpop.f32.mrb[0].mxu0
        %2135 = vmatprep.mubr.f32.mxu0 0.0
        %2136 = vmatmul.mubr.f32.gmra.mrb[0].mxu0 %v2032
        %v2137 = vpop.f32.mrb[0].mxu0
        %v2138 = vadd.f32 0.0, %v2137
        %v2139 = vpop.f32.mrb[0].mxu0
        %2140 = vmatprep.mubr.f32.mxu0 0.0
        %2141 = vmatmul.mubr.f32.gmra.mrb[0].mxu0 %v2033
        %v2142 = vpop.f32.mrb[0].mxu0
        %v2143 = vadd.f32 0.0, %v2142
        %v2144 = vpop.f32.mrb[0].mxu0
        %2145 = vmatprep.mubr.f32.mxu0 0.0
        %2146 = vmatmul.mubr.f32.gmra.mrb[0].mxu0 %v2034
        %v2147 = vpop.f32.mrb[0].mxu0
        %v2148 = vadd.f32 0.0, %v2147
        %v2149 = vpop.f32.mrb[0].mxu0
        %2150 = vmatprep.mubr.f32.mxu0 0.0
        %2151 = vmatmul.mubr.f32.gmra.mrb[0].mxu0 %v2035
        %v2152 = vpop.f32.mrb[0].mxu0
        %v2153 = vadd.f32 0.0, %v2152
        %v2154 = vpop.f32.mrb[0].mxu0
        %2155 = vmatprep.mubr.f32.mxu0 0.0
        %2156 = vmatmul.mubr.f32.gmra.mrb[0].mxu0 %v2036
        %v2157 = vpop.f32.mrb[0].mxu0
        %v2158 = vadd.f32 0.0, %v2157
        %v2159 = vpop.f32.mrb[0].mxu0
        %2160 = vmatprep.mubr.f32.mxu0 0.0
        %2161 = vmatmul.mubr.f32.gmra.mrb[0].mxu0 %v2037
        %v2162 = vpop.f32.mrb[0].mxu0
        %v2163 = vadd.f32 0.0, %v2162
        %v2164 = vpop.f32.mrb[0].mxu0
        %2165 = vmatprep.mubr.f32.mxu0 0.0
        %2166 = vmatmul.mubr.f32.gmra.mrb[0].mxu0 %v2038
        %v2167 = vpop.f32.mrb[0].mxu0
        %v2168 = vadd.f32 0.0, %v2167
        %v2169 = vpop.f32.mrb[0].mxu0
        %2170 = vmatprep.mubr.f32.mxu0 0.0
        %2171 = vmatmul.mubr.f32.gmra.mrb[0].mxu0 %v2039
        %v2172 = vpop.f32.mrb[0].mxu0
        %v2173 = vadd.f32 0.0, %v2172
        %v2174 = vpop.f32.mrb[0].mxu0
        %2175 = vmatprep.mubr.f32.mxu0 0.0
        %2176 = vmatmul.mubr.f32.gmra.mrb[0].mxu0 %v2040
        %v2177 = vpop.f32.mrb[0].mxu0
        %v2178 = vadd.f32 0.0, %v2177
        %v2179 = vpop.f32.mrb[0].mxu0
        %2180 = vmatprep.mubr.f32.mxu0 0.0
        %2181 = vmatmul.mubr.f32.gmra.mrb[0].mxu0 %v2041
        %v2182 = vpop.f32.mrb[0].mxu0
        %v2183 = vadd.f32 0.0, %v2182
        %v2184 = vpop.f32.mrb[0].mxu0
        %2185 = vmatprep.mubr.f32.mxu0 0.0
        %2186 = vmatmul.mubr.f32.gmra.mrb[0].mxu0 %v2042
        %v2187 = vpop.f32.mrb[0].mxu0
        %v2188 = vadd.f32 0.0, %v2187
        %v2189 = vpop.f32.mrb[0].mxu0
        %2190 = vmatprep.mubr.f32.mxu0 0.0
        %2191 = vmatmul.mubr.f32.gmra.mrb[0].mxu0 %v2043
        %v2192 = vpop.f32.mrb[0].mxu0
        %v2193 = vadd.f32 0.0, %v2192
        %v2194 = vpop.f32.mrb[0].mxu0
        %2195 = vmatprep.mubr.f32.mxu0 0.0
        %2196 = vmatmul.mubr.f32.gmra.mrb[0].mxu0 %v2044
        %v2197 = vpop.f32.mrb[0].mxu0
        %v2198 = vadd.f32 0.0, %v2197
        %v2199 = vpop.f32.mrb[0].mxu0
        %2200 = vmatprep.mubr.f32.mxu0 0.0
        %2201 = vmatmul.mubr.f32.gmra.mrb[0].mxu0 %v2045
        %v2202 = vpop.f32.mrb[0].mxu0
        %v2203 = vadd.f32 0.0, %v2202
        %v2204 = vpop.f32.mrb[0].mxu0
        %2205 = vmatprep.mubr.f32.mxu0 0.0
        %2206 = vmatmul.mubr.f32.gmra.mrb[0].mxu0 %v2046
        %v2207 = vpop.f32.mrb[0].mxu0
        %v2208 = vadd.f32 0.0, %v2207
        %v2209 = vpop.f32.mrb[0].mxu0
        %2210 = vmatprep.mubr.f32.mxu0 0.0
        %2211 = vmatmul.mubr.f32.gmra.mrb[0].mxu0 %v2047
        %v2212 = vpop.f32.mrb[0].mxu0
        %v2213 = vadd.f32 0.0, %v2212
        %v2214 = vpop.f32.mrb[0].mxu0
        %2215 = vmatprep.mubr.f32.mxu0 0.0
        %2216 = vmatmul.mubr.f32.gmra.mrb[0].mxu0 %v2048
        %v2217 = vpop.f32.mrb[0].mxu0
        %v2218 = vadd.f32 0.0, %v2217
        %v2219 = vpop.f32.mrb[0].mxu0
        %2220 = vdwg.mxu0
        %v2221 = vadd.f32 %v2013, %v2133
        %v2222 = vadd.f32 %v2014, %v2138
        %v2223 = vadd.f32 %v2015, %v2143
        %v2224 = vadd.f32 %v2016, %v2148
        %v2225 = vadd.f32 %v2017, %v2153
        %v2226 = vadd.f32 %v2018, %v2158
        %v2227 = vadd.f32 %v2019, %v2163
        %v2228 = vadd.f32 %v2020, %v2168
        %v2229 = vadd.f32 %v2021, %v2173
        %v2230 = vadd.f32 %v2022, %v2178
        %v2231 = vadd.f32 %v2023, %v2183
        %v2232 = vadd.f32 %v2024, %v2188
        %v2233 = vadd.f32 %v2025, %v2193
        %v2234 = vadd.f32 %v2026, %v2198
        %v2235 = vadd.f32 %v2027, %v2203
        %v2236 = vadd.f32 %v2028, %v2208
        %v2237 = vadd.f32 %v2029, %v2213
        %v2238 = vadd.f32 %v2030, %v2218
        %v2239 = vld [vmem:[#allocation2 + $0xc] sm:$0xff]
        %v2240 = vld [vmem:[#allocation2 + $0x14] sm:$0xff]
        %v2241 = vld [vmem:[#allocation2 + $0x1c] sm:$0xff]
        %v2242 = vld [vmem:[#allocation2 + $0x24] sm:$0xff]
        %v2243 = vld [vmem:[#allocation2 + $0x2c] sm:$0xff]
        %v2244 = vld [vmem:[#allocation2 + $0x34] sm:$0xff]
        %v2245 = vld [vmem:[#allocation2 + $0x3c] sm:$0xff]
        %v2246 = vld [vmem:[#allocation2 + $0x44] sm:$0xff]
        %v2247 = vld [vmem:[#allocation2 + $0x4c] sm:$0xff]
        %v2248 = vld [vmem:[#allocation2 + $0x54] sm:$0xff]
        %v2249 = vld [vmem:[#allocation2 + $0x5c] sm:$0xff]
        %v2250 = vld [vmem:[#allocation2 + $0x64] sm:$0xff]
        %v2251 = vld [vmem:[#allocation2 + $0x6c] sm:$0xff]
        %v2252 = vld [vmem:[#allocation2 + $0x74] sm:$0xff]
        %v2253 = vld [vmem:[#allocation2 + $0x7c] sm:$0xff]
        %v2254 = vld [vmem:[#allocation2 + $0x84] sm:$0xff]
        %v2255 = vld [vmem:[#allocation2 + $0x8c] sm:$0xff]
        %v2256 = vld [vmem:[#allocation2 + $0x94] sm:$0xff]
        %s2257 = scalar_lea.vmem [#allocation7], 768
        %v2258 = vld [vmem:[%s2257] sm:$0xff]
        %v2259 = vld [vmem:[%s2257 + $0x8] sm:$0xff]
        %v2260 = vld [vmem:[%s2257 + $0x10] sm:$0xff]
        %v2261 = vld [vmem:[%s2257 + $0x18] sm:$0xff]
        %v2262 = vld [vmem:[%s2257 + $0x20] sm:$0xff]
        %v2263 = vld [vmem:[%s2257 + $0x28] sm:$0xff]
        %v2264 = vld [vmem:[%s2257 + $0x30] sm:$0xff]
        %v2265 = vld [vmem:[%s2257 + $0x38] sm:$0xff]
        %v2266 = vld [vmem:[%s2257 + $0x40] sm:$0xff]
        %v2267 = vld [vmem:[%s2257 + $0x48] sm:$0xff]
        %v2268 = vld [vmem:[%s2257 + $0x50] sm:$0xff]
        %v2269 = vld [vmem:[%s2257 + $0x58] sm:$0xff]
        %v2270 = vld [vmem:[%s2257 + $0x60] sm:$0xff]
        %v2271 = vld [vmem:[%s2257 + $0x68] sm:$0xff]
        %v2272 = vld [vmem:[%s2257 + $0x70] sm:$0xff]
        %v2273 = vld [vmem:[%s2257 + $0x78] sm:$0xff]
        %2274 = vmatprep.subr.mxu0 0.0
        %2275 = vmatpush1.msra.mxu0 %v2258
        %2276 = vmatprep.subr.mxu0 0.0
        %2277 = vmatpush1.msra.mxu0 %v2259
        %2278 = vmatprep.subr.mxu0 0.0
        %2279 = vmatpush1.msra.mxu0 %v2260
        %2280 = vmatprep.subr.mxu0 0.0
        %2281 = vmatpush1.msra.mxu0 %v2261
        %2282 = vmatprep.subr.mxu0 0.0
        %2283 = vmatpush1.msra.mxu0 %v2262
        %2284 = vmatprep.subr.mxu0 0.0
        %2285 = vmatpush1.msra.mxu0 %v2263
        %2286 = vmatprep.subr.mxu0 0.0
        %2287 = vmatpush1.msra.mxu0 %v2264
        %2288 = vmatprep.subr.mxu0 0.0
        %2289 = vmatpush1.msra.mxu0 %v2265
        %2290 = vmatprep.subr.mxu0 0.0
        %2291 = vmatpush1.msra.mxu0 %v2266
        %2292 = vmatprep.subr.mxu0 0.0
        %2293 = vmatpush1.msra.mxu0 %v2267
        %2294 = vmatprep.subr.mxu0 0.0
        %2295 = vmatpush1.msra.mxu0 %v2268
        %2296 = vmatprep.subr.mxu0 0.0
        %2297 = vmatpush1.msra.mxu0 %v2269
        %2298 = vmatprep.subr.mxu0 0.0
        %2299 = vmatpush1.msra.mxu0 %v2270
        %2300 = vmatprep.subr.mxu0 0.0
        %2301 = vmatpush1.msra.mxu0 %v2271
        %2302 = vmatprep.subr.mxu0 0.0
        %2303 = vmatpush1.msra.mxu0 %v2272
        %2304 = vmatprep.subr.mxu0 0.0
        %2305 = vmatpush1.msra.mxu0 %v2273
        %2306 = vmatprep.subr.mxu0 0.0
        %2307 = vmatpush1.msra.mxu0 0.0
        %2308 = vmatprep.subr.mxu0 0.0
        %2309 = vmatpush1.msra.mxu0 0.0
        %2310 = vmatprep.subr.mxu0 0.0
        %2311 = vmatpush1.msra.mxu0 0.0
        %2312 = vmatprep.subr.mxu0 0.0
        %2313 = vmatpush1.msra.mxu0 0.0
        %2314 = vmatprep.subr.mxu0 0.0
        %2315 = vmatpush1.msra.mxu0 0.0
        %2316 = vmatprep.subr.mxu0 0.0
        %2317 = vmatpush1.msra.mxu0 0.0
        %2318 = vmatprep.subr.mxu0 0.0
        %2319 = vmatpush1.msra.mxu0 0.0
        %2320 = vmatprep.subr.mxu0 0.0
        %2321 = vmatpush1.msra.mxu0 0.0
        %2322 = vmatprep.subr.mxu0 0.0
        %2323 = vmatpush1.msra.mxu0 0.0
        %2324 = vmatprep.subr.mxu0 0.0
        %2325 = vmatpush1.msra.mxu0 0.0
        %2326 = vmatprep.subr.mxu0 0.0
        %2327 = vmatpush1.msra.mxu0 0.0
        %2328 = vmatprep.subr.mxu0 0.0
        %2329 = vmatpush1.msra.mxu0 0.0
        %2330 = vmatprep.subr.mxu0 0.0
        %2331 = vmatpush1.msra.mxu0 0.0
        %2332 = vmatprep.subr.mxu0 0.0
        %2333 = vmatpush1.msra.mxu0 0.0
        %2334 = vmatprep.subr.mxu0 0.0
        %2335 = vmatpush1.msra.mxu0 0.0
        %2336 = vmatprep.subr.mxu0 0.0
        %2337 = vmatpush1.msra.mxu0 0.0
        %2338 = vmatprep.mubr.f32.mxu0 0.0
        %2339 = vmatmul.mubr.f32.gmra.mrb[0].mxu0 %v2239
        %v2340 = vpop.f32.mrb[0].mxu0
        %v2341 = vadd.f32 0.0, %v2340
        %v2342 = vpop.f32.mrb[0].mxu0
        %2343 = vmatprep.mubr.f32.mxu0 0.0
        %2344 = vmatmul.mubr.f32.gmra.mrb[0].mxu0 %v2240
        %v2345 = vpop.f32.mrb[0].mxu0
        %v2346 = vadd.f32 0.0, %v2345
        %v2347 = vpop.f32.mrb[0].mxu0
        %2348 = vmatprep.mubr.f32.mxu0 0.0
        %2349 = vmatmul.mubr.f32.gmra.mrb[0].mxu0 %v2241
        %v2350 = vpop.f32.mrb[0].mxu0
        %v2351 = vadd.f32 0.0, %v2350
        %v2352 = vpop.f32.mrb[0].mxu0
        %2353 = vmatprep.mubr.f32.mxu0 0.0
        %2354 = vmatmul.mubr.f32.gmra.mrb[0].mxu0 %v2242
        %v2355 = vpop.f32.mrb[0].mxu0
        %v2356 = vadd.f32 0.0, %v2355
        %v2357 = vpop.f32.mrb[0].mxu0
        %2358 = vmatprep.mubr.f32.mxu0 0.0
        %2359 = vmatmul.mubr.f32.gmra.mrb[0].mxu0 %v2243
        %v2360 = vpop.f32.mrb[0].mxu0
        %v2361 = vadd.f32 0.0, %v2360
        %v2362 = vpop.f32.mrb[0].mxu0
        %2363 = vmatprep.mubr.f32.mxu0 0.0
        %2364 = vmatmul.mubr.f32.gmra.mrb[0].mxu0 %v2244
        %v2365 = vpop.f32.mrb[0].mxu0
        %v2366 = vadd.f32 0.0, %v2365
        %v2367 = vpop.f32.mrb[0].mxu0
        %2368 = vmatprep.mubr.f32.mxu0 0.0
        %2369 = vmatmul.mubr.f32.gmra.mrb[0].mxu0 %v2245
        %v2370 = vpop.f32.mrb[0].mxu0
        %v2371 = vadd.f32 0.0, %v2370
        %v2372 = vpop.f32.mrb[0].mxu0
        %2373 = vmatprep.mubr.f32.mxu0 0.0
        %2374 = vmatmul.mubr.f32.gmra.mrb[0].mxu0 %v2246
        %v2375 = vpop.f32.mrb[0].mxu0
        %v2376 = vadd.f32 0.0, %v2375
        %v2377 = vpop.f32.mrb[0].mxu0
        %2378 = vmatprep.mubr.f32.mxu0 0.0
        %2379 = vmatmul.mubr.f32.gmra.mrb[0].mxu0 %v2247
        %v2380 = vpop.f32.mrb[0].mxu0
        %v2381 = vadd.f32 0.0, %v2380
        %v2382 = vpop.f32.mrb[0].mxu0
        %2383 = vmatprep.mubr.f32.mxu0 0.0
        %2384 = vmatmul.mubr.f32.gmra.mrb[0].mxu0 %v2248
        %v2385 = vpop.f32.mrb[0].mxu0
        %v2386 = vadd.f32 0.0, %v2385
        %v2387 = vpop.f32.mrb[0].mxu0
        %2388 = vmatprep.mubr.f32.mxu0 0.0
        %2389 = vmatmul.mubr.f32.gmra.mrb[0].mxu0 %v2249
        %v2390 = vpop.f32.mrb[0].mxu0
        %v2391 = vadd.f32 0.0, %v2390
        %v2392 = vpop.f32.mrb[0].mxu0
        %2393 = vmatprep.mubr.f32.mxu0 0.0
        %2394 = vmatmul.mubr.f32.gmra.mrb[0].mxu0 %v2250
        %v2395 = vpop.f32.mrb[0].mxu0
        %v2396 = vadd.f32 0.0, %v2395
        %v2397 = vpop.f32.mrb[0].mxu0
        %2398 = vmatprep.mubr.f32.mxu0 0.0
        %2399 = vmatmul.mubr.f32.gmra.mrb[0].mxu0 %v2251
        %v2400 = vpop.f32.mrb[0].mxu0
        %v2401 = vadd.f32 0.0, %v2400
        %v2402 = vpop.f32.mrb[0].mxu0
        %2403 = vmatprep.mubr.f32.mxu0 0.0
        %2404 = vmatmul.mubr.f32.gmra.mrb[0].mxu0 %v2252
        %v2405 = vpop.f32.mrb[0].mxu0
        %v2406 = vadd.f32 0.0, %v2405
        %v2407 = vpop.f32.mrb[0].mxu0
        %2408 = vmatprep.mubr.f32.mxu0 0.0
        %2409 = vmatmul.mubr.f32.gmra.mrb[0].mxu0 %v2253
        %v2410 = vpop.f32.mrb[0].mxu0
        %v2411 = vadd.f32 0.0, %v2410
        %v2412 = vpop.f32.mrb[0].mxu0
        %2413 = vmatprep.mubr.f32.mxu0 0.0
        %2414 = vmatmul.mubr.f32.gmra.mrb[0].mxu0 %v2254
        %v2415 = vpop.f32.mrb[0].mxu0
        %v2416 = vadd.f32 0.0, %v2415
        %v2417 = vpop.f32.mrb[0].mxu0
        %2418 = vmatprep.mubr.f32.mxu0 0.0
        %2419 = vmatmul.mubr.f32.gmra.mrb[0].mxu0 %v2255
        %v2420 = vpop.f32.mrb[0].mxu0
        %v2421 = vadd.f32 0.0, %v2420
        %v2422 = vpop.f32.mrb[0].mxu0
        %2423 = vmatprep.mubr.f32.mxu0 0.0
        %2424 = vmatmul.mubr.f32.gmra.mrb[0].mxu0 %v2256
        %v2425 = vpop.f32.mrb[0].mxu0
        %v2426 = vadd.f32 0.0, %v2425
        %v2427 = vpop.f32.mrb[0].mxu0
        %2428 = vdwg.mxu0
        %v2429 = vadd.f32 %v2221, %v2341
        %v2430 = vadd.f32 %v2222, %v2346
        %v2431 = vadd.f32 %v2223, %v2351
        %v2432 = vadd.f32 %v2224, %v2356
        %v2433 = vadd.f32 %v2225, %v2361
        %v2434 = vadd.f32 %v2226, %v2366
        %v2435 = vadd.f32 %v2227, %v2371
        %v2436 = vadd.f32 %v2228, %v2376
        %v2437 = vadd.f32 %v2229, %v2381
        %v2438 = vadd.f32 %v2230, %v2386
        %v2439 = vadd.f32 %v2231, %v2391
        %v2440 = vadd.f32 %v2232, %v2396
        %v2441 = vadd.f32 %v2233, %v2401
        %v2442 = vadd.f32 %v2234, %v2406
        %v2443 = vadd.f32 %v2235, %v2411
        %v2444 = vadd.f32 %v2236, %v2416
        %v2445 = vadd.f32 %v2237, %v2421
        %v2446 = vadd.f32 %v2238, %v2426
        %v2447 = vld [vmem:[#allocation2 + $0xd] sm:$0xff]
        %v2448 = vld [vmem:[#allocation2 + $0x15] sm:$0xff]
        %v2449 = vld [vmem:[#allocation2 + $0x1d] sm:$0xff]
        %v2450 = vld [vmem:[#allocation2 + $0x25] sm:$0xff]
        %v2451 = vld [vmem:[#allocation2 + $0x2d] sm:$0xff]
        %v2452 = vld [vmem:[#allocation2 + $0x35] sm:$0xff]
        %v2453 = vld [vmem:[#allocation2 + $0x3d] sm:$0xff]
        %v2454 = vld [vmem:[#allocation2 + $0x45] sm:$0xff]
        %v2455 = vld [vmem:[#allocation2 + $0x4d] sm:$0xff]
        %v2456 = vld [vmem:[#allocation2 + $0x55] sm:$0xff]
        %v2457 = vld [vmem:[#allocation2 + $0x5d] sm:$0xff]
        %v2458 = vld [vmem:[#allocation2 + $0x65] sm:$0xff]
        %v2459 = vld [vmem:[#allocation2 + $0x6d] sm:$0xff]
        %v2460 = vld [vmem:[#allocation2 + $0x75] sm:$0xff]
        %v2461 = vld [vmem:[#allocation2 + $0x7d] sm:$0xff]
        %v2462 = vld [vmem:[#allocation2 + $0x85] sm:$0xff]
        %v2463 = vld [vmem:[#allocation2 + $0x8d] sm:$0xff]
        %v2464 = vld [vmem:[#allocation2 + $0x95] sm:$0xff]
        %s2465 = scalar_lea.vmem [#allocation7], 896
        %v2466 = vld [vmem:[%s2465] sm:$0xff]
        %v2467 = vld [vmem:[%s2465 + $0x8] sm:$0xff]
        %v2468 = vld [vmem:[%s2465 + $0x10] sm:$0xff]
        %v2469 = vld [vmem:[%s2465 + $0x18] sm:$0xff]
        %v2470 = vld [vmem:[%s2465 + $0x20] sm:$0xff]
        %v2471 = vld [vmem:[%s2465 + $0x28] sm:$0xff]
        %v2472 = vld [vmem:[%s2465 + $0x30] sm:$0xff]
        %v2473 = vld [vmem:[%s2465 + $0x38] sm:$0xff]
        %v2474 = vld [vmem:[%s2465 + $0x40] sm:$0xff]
        %v2475 = vld [vmem:[%s2465 + $0x48] sm:$0xff]
        %v2476 = vld [vmem:[%s2465 + $0x50] sm:$0xff]
        %v2477 = vld [vmem:[%s2465 + $0x58] sm:$0xff]
        %v2478 = vld [vmem:[%s2465 + $0x60] sm:$0xff]
        %v2479 = vld [vmem:[%s2465 + $0x68] sm:$0xff]
        %v2480 = vld [vmem:[%s2465 + $0x70] sm:$0xff]
        %v2481 = vld [vmem:[%s2465 + $0x78] sm:$0xff]
        %2482 = vmatprep.subr.mxu0 0.0
        %2483 = vmatpush1.msra.mxu0 %v2466
        %2484 = vmatprep.subr.mxu0 0.0
        %2485 = vmatpush1.msra.mxu0 %v2467
        %2486 = vmatprep.subr.mxu0 0.0
        %2487 = vmatpush1.msra.mxu0 %v2468
        %2488 = vmatprep.subr.mxu0 0.0
        %2489 = vmatpush1.msra.mxu0 %v2469
        %2490 = vmatprep.subr.mxu0 0.0
        %2491 = vmatpush1.msra.mxu0 %v2470
        %2492 = vmatprep.subr.mxu0 0.0
        %2493 = vmatpush1.msra.mxu0 %v2471
        %2494 = vmatprep.subr.mxu0 0.0
        %2495 = vmatpush1.msra.mxu0 %v2472
        %2496 = vmatprep.subr.mxu0 0.0
        %2497 = vmatpush1.msra.mxu0 %v2473
        %2498 = vmatprep.subr.mxu0 0.0
        %2499 = vmatpush1.msra.mxu0 %v2474
        %2500 = vmatprep.subr.mxu0 0.0
        %2501 = vmatpush1.msra.mxu0 %v2475
        %2502 = vmatprep.subr.mxu0 0.0
        %2503 = vmatpush1.msra.mxu0 %v2476
        %2504 = vmatprep.subr.mxu0 0.0
        %2505 = vmatpush1.msra.mxu0 %v2477
        %2506 = vmatprep.subr.mxu0 0.0
        %2507 = vmatpush1.msra.mxu0 %v2478
        %2508 = vmatprep.subr.mxu0 0.0
        %2509 = vmatpush1.msra.mxu0 %v2479
        %2510 = vmatprep.subr.mxu0 0.0
        %2511 = vmatpush1.msra.mxu0 %v2480
        %2512 = vmatprep.subr.mxu0 0.0
        %2513 = vmatpush1.msra.mxu0 %v2481
        %2514 = vmatprep.subr.mxu0 0.0
        %2515 = vmatpush1.msra.mxu0 0.0
        %2516 = vmatprep.subr.mxu0 0.0
        %2517 = vmatpush1.msra.mxu0 0.0
        %2518 = vmatprep.subr.mxu0 0.0
        %2519 = vmatpush1.msra.mxu0 0.0
        %2520 = vmatprep.subr.mxu0 0.0
        %2521 = vmatpush1.msra.mxu0 0.0
        %2522 = vmatprep.subr.mxu0 0.0
        %2523 = vmatpush1.msra.mxu0 0.0
        %2524 = vmatprep.subr.mxu0 0.0
        %2525 = vmatpush1.msra.mxu0 0.0
        %2526 = vmatprep.subr.mxu0 0.0
        %2527 = vmatpush1.msra.mxu0 0.0
        %2528 = vmatprep.subr.mxu0 0.0
        %2529 = vmatpush1.msra.mxu0 0.0
        %2530 = vmatprep.subr.mxu0 0.0
        %2531 = vmatpush1.msra.mxu0 0.0
        %2532 = vmatprep.subr.mxu0 0.0
        %2533 = vmatpush1.msra.mxu0 0.0
        %2534 = vmatprep.subr.mxu0 0.0
        %2535 = vmatpush1.msra.mxu0 0.0
        %2536 = vmatprep.subr.mxu0 0.0
        %2537 = vmatpush1.msra.mxu0 0.0
        %2538 = vmatprep.subr.mxu0 0.0
        %2539 = vmatpush1.msra.mxu0 0.0
        %2540 = vmatprep.subr.mxu0 0.0
        %2541 = vmatpush1.msra.mxu0 0.0
        %2542 = vmatprep.subr.mxu0 0.0
        %2543 = vmatpush1.msra.mxu0 0.0
        %2544 = vmatprep.subr.mxu0 0.0
        %2545 = vmatpush1.msra.mxu0 0.0
        %2546 = vmatprep.mubr.f32.mxu0 0.0
        %2547 = vmatmul.mubr.f32.gmra.mrb[0].mxu0 %v2447
        %v2548 = vpop.f32.mrb[0].mxu0
        %v2549 = vadd.f32 0.0, %v2548
        %v2550 = vpop.f32.mrb[0].mxu0
        %2551 = vmatprep.mubr.f32.mxu0 0.0
        %2552 = vmatmul.mubr.f32.gmra.mrb[0].mxu0 %v2448
        %v2553 = vpop.f32.mrb[0].mxu0
        %v2554 = vadd.f32 0.0, %v2553
        %v2555 = vpop.f32.mrb[0].mxu0
        %2556 = vmatprep.mubr.f32.mxu0 0.0
        %2557 = vmatmul.mubr.f32.gmra.mrb[0].mxu0 %v2449
        %v2558 = vpop.f32.mrb[0].mxu0
        %v2559 = vadd.f32 0.0, %v2558
        %v2560 = vpop.f32.mrb[0].mxu0
        %2561 = vmatprep.mubr.f32.mxu0 0.0
        %2562 = vmatmul.mubr.f32.gmra.mrb[0].mxu0 %v2450
        %v2563 = vpop.f32.mrb[0].mxu0
        %v2564 = vadd.f32 0.0, %v2563
        %v2565 = vpop.f32.mrb[0].mxu0
        %2566 = vmatprep.mubr.f32.mxu0 0.0
        %2567 = vmatmul.mubr.f32.gmra.mrb[0].mxu0 %v2451
        %v2568 = vpop.f32.mrb[0].mxu0
        %v2569 = vadd.f32 0.0, %v2568
        %v2570 = vpop.f32.mrb[0].mxu0
        %2571 = vmatprep.mubr.f32.mxu0 0.0
        %2572 = vmatmul.mubr.f32.gmra.mrb[0].mxu0 %v2452
        %v2573 = vpop.f32.mrb[0].mxu0
        %v2574 = vadd.f32 0.0, %v2573
        %v2575 = vpop.f32.mrb[0].mxu0
        %2576 = vmatprep.mubr.f32.mxu0 0.0
        %2577 = vmatmul.mubr.f32.gmra.mrb[0].mxu0 %v2453
        %v2578 = vpop.f32.mrb[0].mxu0
        %v2579 = vadd.f32 0.0, %v2578
        %v2580 = vpop.f32.mrb[0].mxu0
        %2581 = vmatprep.mubr.f32.mxu0 0.0
        %2582 = vmatmul.mubr.f32.gmra.mrb[0].mxu0 %v2454
        %v2583 = vpop.f32.mrb[0].mxu0
        %v2584 = vadd.f32 0.0, %v2583
        %v2585 = vpop.f32.mrb[0].mxu0
        %2586 = vmatprep.mubr.f32.mxu0 0.0
        %2587 = vmatmul.mubr.f32.gmra.mrb[0].mxu0 %v2455
        %v2588 = vpop.f32.mrb[0].mxu0
        %v2589 = vadd.f32 0.0, %v2588
        %v2590 = vpop.f32.mrb[0].mxu0
        %2591 = vmatprep.mubr.f32.mxu0 0.0
        %2592 = vmatmul.mubr.f32.gmra.mrb[0].mxu0 %v2456
        %v2593 = vpop.f32.mrb[0].mxu0
        %v2594 = vadd.f32 0.0, %v2593
        %v2595 = vpop.f32.mrb[0].mxu0
        %2596 = vmatprep.mubr.f32.mxu0 0.0
        %2597 = vmatmul.mubr.f32.gmra.mrb[0].mxu0 %v2457
        %v2598 = vpop.f32.mrb[0].mxu0
        %v2599 = vadd.f32 0.0, %v2598
        %v2600 = vpop.f32.mrb[0].mxu0
        %2601 = vmatprep.mubr.f32.mxu0 0.0
        %2602 = vmatmul.mubr.f32.gmra.mrb[0].mxu0 %v2458
        %v2603 = vpop.f32.mrb[0].mxu0
        %v2604 = vadd.f32 0.0, %v2603
        %v2605 = vpop.f32.mrb[0].mxu0
        %2606 = vmatprep.mubr.f32.mxu0 0.0
        %2607 = vmatmul.mubr.f32.gmra.mrb[0].mxu0 %v2459
        %v2608 = vpop.f32.mrb[0].mxu0
        %v2609 = vadd.f32 0.0, %v2608
        %v2610 = vpop.f32.mrb[0].mxu0
        %2611 = vmatprep.mubr.f32.mxu0 0.0
        %2612 = vmatmul.mubr.f32.gmra.mrb[0].mxu0 %v2460
        %v2613 = vpop.f32.mrb[0].mxu0
        %v2614 = vadd.f32 0.0, %v2613
        %v2615 = vpop.f32.mrb[0].mxu0
        %2616 = vmatprep.mubr.f32.mxu0 0.0
        %2617 = vmatmul.mubr.f32.gmra.mrb[0].mxu0 %v2461
        %v2618 = vpop.f32.mrb[0].mxu0
        %v2619 = vadd.f32 0.0, %v2618
        %v2620 = vpop.f32.mrb[0].mxu0
        %2621 = vmatprep.mubr.f32.mxu0 0.0
        %2622 = vmatmul.mubr.f32.gmra.mrb[0].mxu0 %v2462
        %v2623 = vpop.f32.mrb[0].mxu0
        %v2624 = vadd.f32 0.0, %v2623
        %v2625 = vpop.f32.mrb[0].mxu0
        %2626 = vmatprep.mubr.f32.mxu0 0.0
        %2627 = vmatmul.mubr.f32.gmra.mrb[0].mxu0 %v2463
        %v2628 = vpop.f32.mrb[0].mxu0
        %v2629 = vadd.f32 0.0, %v2628
        %v2630 = vpop.f32.mrb[0].mxu0
        %2631 = vmatprep.mubr.f32.mxu0 0.0
        %2632 = vmatmul.mubr.f32.gmra.mrb[0].mxu0 %v2464
        %v2633 = vpop.f32.mrb[0].mxu0
        %v2634 = vadd.f32 0.0, %v2633
        %v2635 = vpop.f32.mrb[0].mxu0
        %2636 = vdwg.mxu0
        %v2637 = vadd.f32 %v2429, %v2549
        %v2638 = vadd.f32 %v2430, %v2554
        %v2639 = vadd.f32 %v2431, %v2559
        %v2640 = vadd.f32 %v2432, %v2564
        %v2641 = vadd.f32 %v2433, %v2569
        %v2642 = vadd.f32 %v2434, %v2574
        %v2643 = vadd.f32 %v2435, %v2579
        %v2644 = vadd.f32 %v2436, %v2584
        %v2645 = vadd.f32 %v2437, %v2589
        %v2646 = vadd.f32 %v2438, %v2594
        %v2647 = vadd.f32 %v2439, %v2599
        %v2648 = vadd.f32 %v2440, %v2604
        %v2649 = vadd.f32 %v2441, %v2609
        %v2650 = vadd.f32 %v2442, %v2614
        %v2651 = vadd.f32 %v2443, %v2619
        %v2652 = vadd.f32 %v2444, %v2624
        %v2653 = vadd.f32 %v2445, %v2629
        %v2654 = vadd.f32 %v2446, %v2634
        %v2655 = vld [vmem:[#allocation2 + $0xe] sm:$0xff]
        %v2656 = vld [vmem:[#allocation2 + $0x16] sm:$0xff]
        %v2657 = vld [vmem:[#allocation2 + $0x1e] sm:$0xff]
        %v2658 = vld [vmem:[#allocation2 + $0x26] sm:$0xff]
        %v2659 = vld [vmem:[#allocation2 + $0x2e] sm:$0xff]
        %v2660 = vld [vmem:[#allocation2 + $0x36] sm:$0xff]
        %v2661 = vld [vmem:[#allocation2 + $0x3e] sm:$0xff]
        %v2662 = vld [vmem:[#allocation2 + $0x46] sm:$0xff]
        %v2663 = vld [vmem:[#allocation2 + $0x4e] sm:$0xff]
        %v2664 = vld [vmem:[#allocation2 + $0x56] sm:$0xff]
        %v2665 = vld [vmem:[#allocation2 + $0x5e] sm:$0xff]
        %v2666 = vld [vmem:[#allocation2 + $0x66] sm:$0xff]
        %v2667 = vld [vmem:[#allocation2 + $0x6e] sm:$0xff]
        %v2668 = vld [vmem:[#allocation2 + $0x76] sm:$0xff]
        %v2669 = vld [vmem:[#allocation2 + $0x7e] sm:$0xff]
        %v2670 = vld [vmem:[#allocation2 + $0x86] sm:$0xff]
        %v2671 = vld [vmem:[#allocation2 + $0x8e] sm:$0xff]
        %v2672 = vld [vmem:[#allocation2 + $0x96] sm:$0xff]
        %s2673 = scalar_lea.vmem [#allocation7], 1024
        %v2674 = vld [vmem:[%s2673] sm:$0xff]
        %v2675 = vld [vmem:[%s2673 + $0x8] sm:$0xff]
        %v2676 = vld [vmem:[%s2673 + $0x10] sm:$0xff]
        %v2677 = vld [vmem:[%s2673 + $0x18] sm:$0xff]
        %v2678 = vld [vmem:[%s2673 + $0x20] sm:$0xff]
        %v2679 = vld [vmem:[%s2673 + $0x28] sm:$0xff]
        %v2680 = vld [vmem:[%s2673 + $0x30] sm:$0xff]
        %v2681 = vld [vmem:[%s2673 + $0x38] sm:$0xff]
        %v2682 = vld [vmem:[%s2673 + $0x40] sm:$0xff]
        %v2683 = vld [vmem:[%s2673 + $0x48] sm:$0xff]
        %v2684 = vld [vmem:[%s2673 + $0x50] sm:$0xff]
        %v2685 = vld [vmem:[%s2673 + $0x58] sm:$0xff]
        %v2686 = vld [vmem:[%s2673 + $0x60] sm:$0xff]
        %v2687 = vld [vmem:[%s2673 + $0x68] sm:$0xff]
        %v2688 = vld [vmem:[%s2673 + $0x70] sm:$0xff]
        %v2689 = vld [vmem:[%s2673 + $0x78] sm:$0xff]
        %2690 = vmatprep.subr.mxu0 0.0
        %2691 = vmatpush1.msra.mxu0 %v2674
        %2692 = vmatprep.subr.mxu0 0.0
        %2693 = vmatpush1.msra.mxu0 %v2675
        %2694 = vmatprep.subr.mxu0 0.0
        %2695 = vmatpush1.msra.mxu0 %v2676
        %2696 = vmatprep.subr.mxu0 0.0
        %2697 = vmatpush1.msra.mxu0 %v2677
        %2698 = vmatprep.subr.mxu0 0.0
        %2699 = vmatpush1.msra.mxu0 %v2678
        %2700 = vmatprep.subr.mxu0 0.0
        %2701 = vmatpush1.msra.mxu0 %v2679
        %2702 = vmatprep.subr.mxu0 0.0
        %2703 = vmatpush1.msra.mxu0 %v2680
        %2704 = vmatprep.subr.mxu0 0.0
        %2705 = vmatpush1.msra.mxu0 %v2681
        %2706 = vmatprep.subr.mxu0 0.0
        %2707 = vmatpush1.msra.mxu0 %v2682
        %2708 = vmatprep.subr.mxu0 0.0
        %2709 = vmatpush1.msra.mxu0 %v2683
        %2710 = vmatprep.subr.mxu0 0.0
        %2711 = vmatpush1.msra.mxu0 %v2684
        %2712 = vmatprep.subr.mxu0 0.0
        %2713 = vmatpush1.msra.mxu0 %v2685
        %2714 = vmatprep.subr.mxu0 0.0
        %2715 = vmatpush1.msra.mxu0 %v2686
        %2716 = vmatprep.subr.mxu0 0.0
        %2717 = vmatpush1.msra.mxu0 %v2687
        %2718 = vmatprep.subr.mxu0 0.0
        %2719 = vmatpush1.msra.mxu0 %v2688
        %2720 = vmatprep.subr.mxu0 0.0
        %2721 = vmatpush1.msra.mxu0 %v2689
        %2722 = vmatprep.subr.mxu0 0.0
        %2723 = vmatpush1.msra.mxu0 0.0
        %2724 = vmatprep.subr.mxu0 0.0
        %2725 = vmatpush1.msra.mxu0 0.0
        %2726 = vmatprep.subr.mxu0 0.0
        %2727 = vmatpush1.msra.mxu0 0.0
        %2728 = vmatprep.subr.mxu0 0.0
        %2729 = vmatpush1.msra.mxu0 0.0
        %2730 = vmatprep.subr.mxu0 0.0
        %2731 = vmatpush1.msra.mxu0 0.0
        %2732 = vmatprep.subr.mxu0 0.0
        %2733 = vmatpush1.msra.mxu0 0.0
        %2734 = vmatprep.subr.mxu0 0.0
        %2735 = vmatpush1.msra.mxu0 0.0
        %2736 = vmatprep.subr.mxu0 0.0
        %2737 = vmatpush1.msra.mxu0 0.0
        %2738 = vmatprep.subr.mxu0 0.0
        %2739 = vmatpush1.msra.mxu0 0.0
        %2740 = vmatprep.subr.mxu0 0.0
        %2741 = vmatpush1.msra.mxu0 0.0
        %2742 = vmatprep.subr.mxu0 0.0
        %2743 = vmatpush1.msra.mxu0 0.0
        %2744 = vmatprep.subr.mxu0 0.0
        %2745 = vmatpush1.msra.mxu0 0.0
        %2746 = vmatprep.subr.mxu0 0.0
        %2747 = vmatpush1.msra.mxu0 0.0
        %2748 = vmatprep.subr.mxu0 0.0
        %2749 = vmatpush1.msra.mxu0 0.0
        %2750 = vmatprep.subr.mxu0 0.0
        %2751 = vmatpush1.msra.mxu0 0.0
        %2752 = vmatprep.subr.mxu0 0.0
        %2753 = vmatpush1.msra.mxu0 0.0
        %2754 = vmatprep.mubr.f32.mxu0 0.0
        %2755 = vmatmul.mubr.f32.gmra.mrb[0].mxu0 %v2655
        %v2756 = vpop.f32.mrb[0].mxu0
        %v2757 = vadd.f32 0.0, %v2756
        %v2758 = vpop.f32.mrb[0].mxu0
        %2759 = vmatprep.mubr.f32.mxu0 0.0
        %2760 = vmatmul.mubr.f32.gmra.mrb[0].mxu0 %v2656
        %v2761 = vpop.f32.mrb[0].mxu0
        %v2762 = vadd.f32 0.0, %v2761
        %v2763 = vpop.f32.mrb[0].mxu0
        %2764 = vmatprep.mubr.f32.mxu0 0.0
        %2765 = vmatmul.mubr.f32.gmra.mrb[0].mxu0 %v2657
        %v2766 = vpop.f32.mrb[0].mxu0
        %v2767 = vadd.f32 0.0, %v2766
        %v2768 = vpop.f32.mrb[0].mxu0
        %2769 = vmatprep.mubr.f32.mxu0 0.0
        %2770 = vmatmul.mubr.f32.gmra.mrb[0].mxu0 %v2658
        %v2771 = vpop.f32.mrb[0].mxu0
        %v2772 = vadd.f32 0.0, %v2771
        %v2773 = vpop.f32.mrb[0].mxu0
        %2774 = vmatprep.mubr.f32.mxu0 0.0
        %2775 = vmatmul.mubr.f32.gmra.mrb[0].mxu0 %v2659
        %v2776 = vpop.f32.mrb[0].mxu0
        %v2777 = vadd.f32 0.0, %v2776
        %v2778 = vpop.f32.mrb[0].mxu0
        %2779 = vmatprep.mubr.f32.mxu0 0.0
        %2780 = vmatmul.mubr.f32.gmra.mrb[0].mxu0 %v2660
        %v2781 = vpop.f32.mrb[0].mxu0
        %v2782 = vadd.f32 0.0, %v2781
        %v2783 = vpop.f32.mrb[0].mxu0
        %2784 = vmatprep.mubr.f32.mxu0 0.0
        %2785 = vmatmul.mubr.f32.gmra.mrb[0].mxu0 %v2661
        %v2786 = vpop.f32.mrb[0].mxu0
        %v2787 = vadd.f32 0.0, %v2786
        %v2788 = vpop.f32.mrb[0].mxu0
        %2789 = vmatprep.mubr.f32.mxu0 0.0
        %2790 = vmatmul.mubr.f32.gmra.mrb[0].mxu0 %v2662
        %v2791 = vpop.f32.mrb[0].mxu0
        %v2792 = vadd.f32 0.0, %v2791
        %v2793 = vpop.f32.mrb[0].mxu0
        %2794 = vmatprep.mubr.f32.mxu0 0.0
        %2795 = vmatmul.mubr.f32.gmra.mrb[0].mxu0 %v2663
        %v2796 = vpop.f32.mrb[0].mxu0
        %v2797 = vadd.f32 0.0, %v2796
        %v2798 = vpop.f32.mrb[0].mxu0
        %2799 = vmatprep.mubr.f32.mxu0 0.0
        %2800 = vmatmul.mubr.f32.gmra.mrb[0].mxu0 %v2664
        %v2801 = vpop.f32.mrb[0].mxu0
        %v2802 = vadd.f32 0.0, %v2801
        %v2803 = vpop.f32.mrb[0].mxu0
        %2804 = vmatprep.mubr.f32.mxu0 0.0
        %2805 = vmatmul.mubr.f32.gmra.mrb[0].mxu0 %v2665
        %v2806 = vpop.f32.mrb[0].mxu0
        %v2807 = vadd.f32 0.0, %v2806
        %v2808 = vpop.f32.mrb[0].mxu0
        %2809 = vmatprep.mubr.f32.mxu0 0.0
        %2810 = vmatmul.mubr.f32.gmra.mrb[0].mxu0 %v2666
        %v2811 = vpop.f32.mrb[0].mxu0
        %v2812 = vadd.f32 0.0, %v2811
        %v2813 = vpop.f32.mrb[0].mxu0
        %2814 = vmatprep.mubr.f32.mxu0 0.0
        %2815 = vmatmul.mubr.f32.gmra.mrb[0].mxu0 %v2667
        %v2816 = vpop.f32.mrb[0].mxu0
        %v2817 = vadd.f32 0.0, %v2816
        %v2818 = vpop.f32.mrb[0].mxu0
        %2819 = vmatprep.mubr.f32.mxu0 0.0
        %2820 = vmatmul.mubr.f32.gmra.mrb[0].mxu0 %v2668
        %v2821 = vpop.f32.mrb[0].mxu0
        %v2822 = vadd.f32 0.0, %v2821
        %v2823 = vpop.f32.mrb[0].mxu0
        %2824 = vmatprep.mubr.f32.mxu0 0.0
        %2825 = vmatmul.mubr.f32.gmra.mrb[0].mxu0 %v2669
        %v2826 = vpop.f32.mrb[0].mxu0
        %v2827 = vadd.f32 0.0, %v2826
        %v2828 = vpop.f32.mrb[0].mxu0
        %2829 = vmatprep.mubr.f32.mxu0 0.0
        %2830 = vmatmul.mubr.f32.gmra.mrb[0].mxu0 %v2670
        %v2831 = vpop.f32.mrb[0].mxu0
        %v2832 = vadd.f32 0.0, %v2831
        %v2833 = vpop.f32.mrb[0].mxu0
        %2834 = vmatprep.mubr.f32.mxu0 0.0
        %2835 = vmatmul.mubr.f32.gmra.mrb[0].mxu0 %v2671
        %v2836 = vpop.f32.mrb[0].mxu0
        %v2837 = vadd.f32 0.0, %v2836
        %v2838 = vpop.f32.mrb[0].mxu0
        %2839 = vmatprep.mubr.f32.mxu0 0.0
        %2840 = vmatmul.mubr.f32.gmra.mrb[0].mxu0 %v2672
        %v2841 = vpop.f32.mrb[0].mxu0
        %v2842 = vadd.f32 0.0, %v2841
        %v2843 = vpop.f32.mrb[0].mxu0
        %2844 = vdwg.mxu0
        %v2845 = vadd.f32 %v2637, %v2757
        %v2846 = vadd.f32 %v2638, %v2762
        %v2847 = vadd.f32 %v2639, %v2767
        %v2848 = vadd.f32 %v2640, %v2772
        %v2849 = vadd.f32 %v2641, %v2777
        %v2850 = vadd.f32 %v2642, %v2782
        %v2851 = vadd.f32 %v2643, %v2787
        %v2852 = vadd.f32 %v2644, %v2792
        %v2853 = vadd.f32 %v2645, %v2797
        %v2854 = vadd.f32 %v2646, %v2802
        %v2855 = vadd.f32 %v2647, %v2807
        %v2856 = vadd.f32 %v2648, %v2812
        %v2857 = vadd.f32 %v2649, %v2817
        %v2858 = vadd.f32 %v2650, %v2822
        %v2859 = vadd.f32 %v2651, %v2827
        %v2860 = vadd.f32 %v2652, %v2832
        %v2861 = vadd.f32 %v2653, %v2837
        %v2862 = vadd.f32 %v2654, %v2842
        %v2863 = vld [vmem:[#allocation2 + $0x24] sm:$0xff]
        %v2864 = vld [vmem:[#allocation2 + $0x2c] sm:$0xff]
        %v2865 = vld [vmem:[#allocation2 + $0x34] sm:$0xff]
        %v2866 = vld [vmem:[#allocation2 + $0x3c] sm:$0xff]
        %v2867 = vld [vmem:[#allocation2 + $0x44] sm:$0xff]
        %v2868 = vld [vmem:[#allocation2 + $0x4c] sm:$0xff]
        %v2869 = vld [vmem:[#allocation2 + $0x54] sm:$0xff]
        %v2870 = vld [vmem:[#allocation2 + $0x5c] sm:$0xff]
        %v2871 = vld [vmem:[#allocation2 + $0x64] sm:$0xff]
        %v2872 = vld [vmem:[#allocation2 + $0x6c] sm:$0xff]
        %v2873 = vld [vmem:[#allocation2 + $0x74] sm:$0xff]
        %v2874 = vld [vmem:[#allocation2 + $0x7c] sm:$0xff]
        %v2875 = vld [vmem:[#allocation2 + $0x84] sm:$0xff]
        %v2876 = vld [vmem:[#allocation2 + $0x8c] sm:$0xff]
        %v2877 = vld [vmem:[#allocation2 + $0x94] sm:$0xff]
        %v2878 = vld [vmem:[#allocation2 + $0x9c] sm:$0xff]
        %v2879 = vld [vmem:[#allocation2 + $0xa4] sm:$0xff]
        %v2880 = vld [vmem:[#allocation2 + $0xac] sm:$0xff]
        %s2881 = scalar_lea.vmem [#allocation7], 1152
        %v2882 = vld [vmem:[%s2881] sm:$0xff]
        %v2883 = vld [vmem:[%s2881 + $0x8] sm:$0xff]
        %v2884 = vld [vmem:[%s2881 + $0x10] sm:$0xff]
        %v2885 = vld [vmem:[%s2881 + $0x18] sm:$0xff]
        %v2886 = vld [vmem:[%s2881 + $0x20] sm:$0xff]
        %v2887 = vld [vmem:[%s2881 + $0x28] sm:$0xff]
        %v2888 = vld [vmem:[%s2881 + $0x30] sm:$0xff]
        %v2889 = vld [vmem:[%s2881 + $0x38] sm:$0xff]
        %v2890 = vld [vmem:[%s2881 + $0x40] sm:$0xff]
        %v2891 = vld [vmem:[%s2881 + $0x48] sm:$0xff]
        %v2892 = vld [vmem:[%s2881 + $0x50] sm:$0xff]
        %v2893 = vld [vmem:[%s2881 + $0x58] sm:$0xff]
        %v2894 = vld [vmem:[%s2881 + $0x60] sm:$0xff]
        %v2895 = vld [vmem:[%s2881 + $0x68] sm:$0xff]
        %v2896 = vld [vmem:[%s2881 + $0x70] sm:$0xff]
        %v2897 = vld [vmem:[%s2881 + $0x78] sm:$0xff]
        %2898 = vmatprep.subr.mxu0 0.0
        %2899 = vmatpush1.msra.mxu0 %v2882
        %2900 = vmatprep.subr.mxu0 0.0
        %2901 = vmatpush1.msra.mxu0 %v2883
        %2902 = vmatprep.subr.mxu0 0.0
        %2903 = vmatpush1.msra.mxu0 %v2884
        %2904 = vmatprep.subr.mxu0 0.0
        %2905 = vmatpush1.msra.mxu0 %v2885
        %2906 = vmatprep.subr.mxu0 0.0
        %2907 = vmatpush1.msra.mxu0 %v2886
        %2908 = vmatprep.subr.mxu0 0.0
        %2909 = vmatpush1.msra.mxu0 %v2887
        %2910 = vmatprep.subr.mxu0 0.0
        %2911 = vmatpush1.msra.mxu0 %v2888
        %2912 = vmatprep.subr.mxu0 0.0
        %2913 = vmatpush1.msra.mxu0 %v2889
        %2914 = vmatprep.subr.mxu0 0.0
        %2915 = vmatpush1.msra.mxu0 %v2890
        %2916 = vmatprep.subr.mxu0 0.0
        %2917 = vmatpush1.msra.mxu0 %v2891
        %2918 = vmatprep.subr.mxu0 0.0
        %2919 = vmatpush1.msra.mxu0 %v2892
        %2920 = vmatprep.subr.mxu0 0.0
        %2921 = vmatpush1.msra.mxu0 %v2893
        %2922 = vmatprep.subr.mxu0 0.0
        %2923 = vmatpush1.msra.mxu0 %v2894
        %2924 = vmatprep.subr.mxu0 0.0
        %2925 = vmatpush1.msra.mxu0 %v2895
        %2926 = vmatprep.subr.mxu0 0.0
        %2927 = vmatpush1.msra.mxu0 %v2896
        %2928 = vmatprep.subr.mxu0 0.0
        %2929 = vmatpush1.msra.mxu0 %v2897
        %2930 = vmatprep.subr.mxu0 0.0
        %2931 = vmatpush1.msra.mxu0 0.0
        %2932 = vmatprep.subr.mxu0 0.0
        %2933 = vmatpush1.msra.mxu0 0.0
        %2934 = vmatprep.subr.mxu0 0.0
        %2935 = vmatpush1.msra.mxu0 0.0
        %2936 = vmatprep.subr.mxu0 0.0
        %2937 = vmatpush1.msra.mxu0 0.0
        %2938 = vmatprep.subr.mxu0 0.0
        %2939 = vmatpush1.msra.mxu0 0.0
        %2940 = vmatprep.subr.mxu0 0.0
        %2941 = vmatpush1.msra.mxu0 0.0
        %2942 = vmatprep.subr.mxu0 0.0
        %2943 = vmatpush1.msra.mxu0 0.0
        %2944 = vmatprep.subr.mxu0 0.0
        %2945 = vmatpush1.msra.mxu0 0.0
        %2946 = vmatprep.subr.mxu0 0.0
        %2947 = vmatpush1.msra.mxu0 0.0
        %2948 = vmatprep.subr.mxu0 0.0
        %2949 = vmatpush1.msra.mxu0 0.0
        %2950 = vmatprep.subr.mxu0 0.0
        %2951 = vmatpush1.msra.mxu0 0.0
        %2952 = vmatprep.subr.mxu0 0.0
        %2953 = vmatpush1.msra.mxu0 0.0
        %2954 = vmatprep.subr.mxu0 0.0
        %2955 = vmatpush1.msra.mxu0 0.0
        %2956 = vmatprep.subr.mxu0 0.0
        %2957 = vmatpush1.msra.mxu0 0.0
        %2958 = vmatprep.subr.mxu0 0.0
        %2959 = vmatpush1.msra.mxu0 0.0
        %2960 = vmatprep.subr.mxu0 0.0
        %2961 = vmatpush1.msra.mxu0 0.0
        %2962 = vmatprep.mubr.f32.mxu0 0.0
        %2963 = vmatmul.mubr.f32.gmra.mrb[0].mxu0 %v2863
        %v2964 = vpop.f32.mrb[0].mxu0
        %v2965 = vadd.f32 0.0, %v2964
        %v2966 = vpop.f32.mrb[0].mxu0
        %2967 = vmatprep.mubr.f32.mxu0 0.0
        %2968 = vmatmul.mubr.f32.gmra.mrb[0].mxu0 %v2864
        %v2969 = vpop.f32.mrb[0].mxu0
        %v2970 = vadd.f32 0.0, %v2969
        %v2971 = vpop.f32.mrb[0].mxu0
        %2972 = vmatprep.mubr.f32.mxu0 0.0
        %2973 = vmatmul.mubr.f32.gmra.mrb[0].mxu0 %v2865
        %v2974 = vpop.f32.mrb[0].mxu0
        %v2975 = vadd.f32 0.0, %v2974
        %v2976 = vpop.f32.mrb[0].mxu0
        %2977 = vmatprep.mubr.f32.mxu0 0.0
        %2978 = vmatmul.mubr.f32.gmra.mrb[0].mxu0 %v2866
        %v2979 = vpop.f32.mrb[0].mxu0
        %v2980 = vadd.f32 0.0, %v2979
        %v2981 = vpop.f32.mrb[0].mxu0
        %2982 = vmatprep.mubr.f32.mxu0 0.0
        %2983 = vmatmul.mubr.f32.gmra.mrb[0].mxu0 %v2867
        %v2984 = vpop.f32.mrb[0].mxu0
        %v2985 = vadd.f32 0.0, %v2984
        %v2986 = vpop.f32.mrb[0].mxu0
        %2987 = vmatprep.mubr.f32.mxu0 0.0
        %2988 = vmatmul.mubr.f32.gmra.mrb[0].mxu0 %v2868
        %v2989 = vpop.f32.mrb[0].mxu0
        %v2990 = vadd.f32 0.0, %v2989
        %v2991 = vpop.f32.mrb[0].mxu0
        %2992 = vmatprep.mubr.f32.mxu0 0.0
        %2993 = vmatmul.mubr.f32.gmra.mrb[0].mxu0 %v2869
        %v2994 = vpop.f32.mrb[0].mxu0
        %v2995 = vadd.f32 0.0, %v2994
        %v2996 = vpop.f32.mrb[0].mxu0
        %2997 = vmatprep.mubr.f32.mxu0 0.0
        %2998 = vmatmul.mubr.f32.gmra.mrb[0].mxu0 %v2870
        %v2999 = vpop.f32.mrb[0].mxu0
        %v3000 = vadd.f32 0.0, %v2999
        %v3001 = vpop.f32.mrb[0].mxu0
        %3002 = vmatprep.mubr.f32.mxu0 0.0
        %3003 = vmatmul.mubr.f32.gmra.mrb[0].mxu0 %v2871
        %v3004 = vpop.f32.mrb[0].mxu0
        %v3005 = vadd.f32 0.0, %v3004
        %v3006 = vpop.f32.mrb[0].mxu0
        %3007 = vmatprep.mubr.f32.mxu0 0.0
        %3008 = vmatmul.mubr.f32.gmra.mrb[0].mxu0 %v2872
        %v3009 = vpop.f32.mrb[0].mxu0
        %v3010 = vadd.f32 0.0, %v3009
        %v3011 = vpop.f32.mrb[0].mxu0
        %3012 = vmatprep.mubr.f32.mxu0 0.0
        %3013 = vmatmul.mubr.f32.gmra.mrb[0].mxu0 %v2873
        %v3014 = vpop.f32.mrb[0].mxu0
        %v3015 = vadd.f32 0.0, %v3014
        %v3016 = vpop.f32.mrb[0].mxu0
        %3017 = vmatprep.mubr.f32.mxu0 0.0
        %3018 = vmatmul.mubr.f32.gmra.mrb[0].mxu0 %v2874
        %v3019 = vpop.f32.mrb[0].mxu0
        %v3020 = vadd.f32 0.0, %v3019
        %v3021 = vpop.f32.mrb[0].mxu0
        %3022 = vmatprep.mubr.f32.mxu0 0.0
        %3023 = vmatmul.mubr.f32.gmra.mrb[0].mxu0 %v2875
        %v3024 = vpop.f32.mrb[0].mxu0
        %v3025 = vadd.f32 0.0, %v3024
        %v3026 = vpop.f32.mrb[0].mxu0
        %3027 = vmatprep.mubr.f32.mxu0 0.0
        %3028 = vmatmul.mubr.f32.gmra.mrb[0].mxu0 %v2876
        %v3029 = vpop.f32.mrb[0].mxu0
        %v3030 = vadd.f32 0.0, %v3029
        %v3031 = vpop.f32.mrb[0].mxu0
        %3032 = vmatprep.mubr.f32.mxu0 0.0
        %3033 = vmatmul.mubr.f32.gmra.mrb[0].mxu0 %v2877
        %v3034 = vpop.f32.mrb[0].mxu0
        %v3035 = vadd.f32 0.0, %v3034
        %v3036 = vpop.f32.mrb[0].mxu0
        %3037 = vmatprep.mubr.f32.mxu0 0.0
        %3038 = vmatmul.mubr.f32.gmra.mrb[0].mxu0 %v2878
        %v3039 = vpop.f32.mrb[0].mxu0
        %v3040 = vadd.f32 0.0, %v3039
        %v3041 = vpop.f32.mrb[0].mxu0
        %3042 = vmatprep.mubr.f32.mxu0 0.0
        %3043 = vmatmul.mubr.f32.gmra.mrb[0].mxu0 %v2879
        %v3044 = vpop.f32.mrb[0].mxu0
        %v3045 = vadd.f32 0.0, %v3044
        %v3046 = vpop.f32.mrb[0].mxu0
        %3047 = vmatprep.mubr.f32.mxu0 0.0
        %3048 = vmatmul.mubr.f32.gmra.mrb[0].mxu0 %v2880
        %v3049 = vpop.f32.mrb[0].mxu0
        %v3050 = vadd.f32 0.0, %v3049
        %v3051 = vpop.f32.mrb[0].mxu0
        %3052 = vdwg.mxu0
        %v3053 = vadd.f32 %v2845, %v2965
        %v3054 = vadd.f32 %v2846, %v2970
        %v3055 = vadd.f32 %v2847, %v2975
        %v3056 = vadd.f32 %v2848, %v2980
        %v3057 = vadd.f32 %v2849, %v2985
        %v3058 = vadd.f32 %v2850, %v2990
        %v3059 = vadd.f32 %v2851, %v2995
        %v3060 = vadd.f32 %v2852, %v3000
        %v3061 = vadd.f32 %v2853, %v3005
        %v3062 = vadd.f32 %v2854, %v3010
        %v3063 = vadd.f32 %v2855, %v3015
        %v3064 = vadd.f32 %v2856, %v3020
        %v3065 = vadd.f32 %v2857, %v3025
        %v3066 = vadd.f32 %v2858, %v3030
        %v3067 = vadd.f32 %v2859, %v3035
        %v3068 = vadd.f32 %v2860, %v3040
        %v3069 = vadd.f32 %v2861, %v3045
        %v3070 = vadd.f32 %v2862, %v3050
        %v3071 = vld [vmem:[#allocation2 + $0x25] sm:$0xff]
        %v3072 = vld [vmem:[#allocation2 + $0x2d] sm:$0xff]
        %v3073 = vld [vmem:[#allocation2 + $0x35] sm:$0xff]
        %v3074 = vld [vmem:[#allocation2 + $0x3d] sm:$0xff]
        %v3075 = vld [vmem:[#allocation2 + $0x45] sm:$0xff]
        %v3076 = vld [vmem:[#allocation2 + $0x4d] sm:$0xff]
        %v3077 = vld [vmem:[#allocation2 + $0x55] sm:$0xff]
        %v3078 = vld [vmem:[#allocation2 + $0x5d] sm:$0xff]
        %v3079 = vld [vmem:[#allocation2 + $0x65] sm:$0xff]
        %v3080 = vld [vmem:[#allocation2 + $0x6d] sm:$0xff]
        %v3081 = vld [vmem:[#allocation2 + $0x75] sm:$0xff]
        %v3082 = vld [vmem:[#allocation2 + $0x7d] sm:$0xff]
        %v3083 = vld [vmem:[#allocation2 + $0x85] sm:$0xff]
        %v3084 = vld [vmem:[#allocation2 + $0x8d] sm:$0xff]
        %v3085 = vld [vmem:[#allocation2 + $0x95] sm:$0xff]
        %v3086 = vld [vmem:[#allocation2 + $0x9d] sm:$0xff]
        %v3087 = vld [vmem:[#allocation2 + $0xa5] sm:$0xff]
        %v3088 = vld [vmem:[#allocation2 + $0xad] sm:$0xff]
        %s3089 = scalar_lea.vmem [#allocation7], 1280
        %v3090 = vld [vmem:[%s3089] sm:$0xff]
        %v3091 = vld [vmem:[%s3089 + $0x8] sm:$0xff]
        %v3092 = vld [vmem:[%s3089 + $0x10] sm:$0xff]
        %v3093 = vld [vmem:[%s3089 + $0x18] sm:$0xff]
        %v3094 = vld [vmem:[%s3089 + $0x20] sm:$0xff]
        %v3095 = vld [vmem:[%s3089 + $0x28] sm:$0xff]
        %v3096 = vld [vmem:[%s3089 + $0x30] sm:$0xff]
        %v3097 = vld [vmem:[%s3089 + $0x38] sm:$0xff]
        %v3098 = vld [vmem:[%s3089 + $0x40] sm:$0xff]
        %v3099 = vld [vmem:[%s3089 + $0x48] sm:$0xff]
        %v3100 = vld [vmem:[%s3089 + $0x50] sm:$0xff]
        %v3101 = vld [vmem:[%s3089 + $0x58] sm:$0xff]
        %v3102 = vld [vmem:[%s3089 + $0x60] sm:$0xff]
        %v3103 = vld [vmem:[%s3089 + $0x68] sm:$0xff]
        %v3104 = vld [vmem:[%s3089 + $0x70] sm:$0xff]
        %v3105 = vld [vmem:[%s3089 + $0x78] sm:$0xff]
        %3106 = vmatprep.subr.mxu0 0.0
        %3107 = vmatpush1.msra.mxu0 %v3090
        %3108 = vmatprep.subr.mxu0 0.0
        %3109 = vmatpush1.msra.mxu0 %v3091
        %3110 = vmatprep.subr.mxu0 0.0
        %3111 = vmatpush1.msra.mxu0 %v3092
        %3112 = vmatprep.subr.mxu0 0.0
        %3113 = vmatpush1.msra.mxu0 %v3093
        %3114 = vmatprep.subr.mxu0 0.0
        %3115 = vmatpush1.msra.mxu0 %v3094
        %3116 = vmatprep.subr.mxu0 0.0
        %3117 = vmatpush1.msra.mxu0 %v3095
        %3118 = vmatprep.subr.mxu0 0.0
        %3119 = vmatpush1.msra.mxu0 %v3096
        %3120 = vmatprep.subr.mxu0 0.0
        %3121 = vmatpush1.msra.mxu0 %v3097
        %3122 = vmatprep.subr.mxu0 0.0
        %3123 = vmatpush1.msra.mxu0 %v3098
        %3124 = vmatprep.subr.mxu0 0.0
        %3125 = vmatpush1.msra.mxu0 %v3099
        %3126 = vmatprep.subr.mxu0 0.0
        %3127 = vmatpush1.msra.mxu0 %v3100
        %3128 = vmatprep.subr.mxu0 0.0
        %3129 = vmatpush1.msra.mxu0 %v3101
        %3130 = vmatprep.subr.mxu0 0.0
        %3131 = vmatpush1.msra.mxu0 %v3102
        %3132 = vmatprep.subr.mxu0 0.0
        %3133 = vmatpush1.msra.mxu0 %v3103
        %3134 = vmatprep.subr.mxu0 0.0
        %3135 = vmatpush1.msra.mxu0 %v3104
        %3136 = vmatprep.subr.mxu0 0.0
        %3137 = vmatpush1.msra.mxu0 %v3105
        %3138 = vmatprep.subr.mxu0 0.0
        %3139 = vmatpush1.msra.mxu0 0.0
        %3140 = vmatprep.subr.mxu0 0.0
        %3141 = vmatpush1.msra.mxu0 0.0
        %3142 = vmatprep.subr.mxu0 0.0
        %3143 = vmatpush1.msra.mxu0 0.0
        %3144 = vmatprep.subr.mxu0 0.0
        %3145 = vmatpush1.msra.mxu0 0.0
        %3146 = vmatprep.subr.mxu0 0.0
        %3147 = vmatpush1.msra.mxu0 0.0
        %3148 = vmatprep.subr.mxu0 0.0
        %3149 = vmatpush1.msra.mxu0 0.0
        %3150 = vmatprep.subr.mxu0 0.0
        %3151 = vmatpush1.msra.mxu0 0.0
        %3152 = vmatprep.subr.mxu0 0.0
        %3153 = vmatpush1.msra.mxu0 0.0
        %3154 = vmatprep.subr.mxu0 0.0
        %3155 = vmatpush1.msra.mxu0 0.0
        %3156 = vmatprep.subr.mxu0 0.0
        %3157 = vmatpush1.msra.mxu0 0.0
        %3158 = vmatprep.subr.mxu0 0.0
        %3159 = vmatpush1.msra.mxu0 0.0
        %3160 = vmatprep.subr.mxu0 0.0
        %3161 = vmatpush1.msra.mxu0 0.0
        %3162 = vmatprep.subr.mxu0 0.0
        %3163 = vmatpush1.msra.mxu0 0.0
        %3164 = vmatprep.subr.mxu0 0.0
        %3165 = vmatpush1.msra.mxu0 0.0
        %3166 = vmatprep.subr.mxu0 0.0
        %3167 = vmatpush1.msra.mxu0 0.0
        %3168 = vmatprep.subr.mxu0 0.0
        %3169 = vmatpush1.msra.mxu0 0.0
        %3170 = vmatprep.mubr.f32.mxu0 0.0
        %3171 = vmatmul.mubr.f32.gmra.mrb[0].mxu0 %v3071
        %v3172 = vpop.f32.mrb[0].mxu0
        %v3173 = vadd.f32 0.0, %v3172
        %v3174 = vpop.f32.mrb[0].mxu0
        %3175 = vmatprep.mubr.f32.mxu0 0.0
        %3176 = vmatmul.mubr.f32.gmra.mrb[0].mxu0 %v3072
        %v3177 = vpop.f32.mrb[0].mxu0
        %v3178 = vadd.f32 0.0, %v3177
        %v3179 = vpop.f32.mrb[0].mxu0
        %3180 = vmatprep.mubr.f32.mxu0 0.0
        %3181 = vmatmul.mubr.f32.gmra.mrb[0].mxu0 %v3073
        %v3182 = vpop.f32.mrb[0].mxu0
        %v3183 = vadd.f32 0.0, %v3182
        %v3184 = vpop.f32.mrb[0].mxu0
        %3185 = vmatprep.mubr.f32.mxu0 0.0
        %3186 = vmatmul.mubr.f32.gmra.mrb[0].mxu0 %v3074
        %v3187 = vpop.f32.mrb[0].mxu0
        %v3188 = vadd.f32 0.0, %v3187
        %v3189 = vpop.f32.mrb[0].mxu0
        %3190 = vmatprep.mubr.f32.mxu0 0.0
        %3191 = vmatmul.mubr.f32.gmra.mrb[0].mxu0 %v3075
        %v3192 = vpop.f32.mrb[0].mxu0
        %v3193 = vadd.f32 0.0, %v3192
        %v3194 = vpop.f32.mrb[0].mxu0
        %3195 = vmatprep.mubr.f32.mxu0 0.0
        %3196 = vmatmul.mubr.f32.gmra.mrb[0].mxu0 %v3076
        %v3197 = vpop.f32.mrb[0].mxu0
        %v3198 = vadd.f32 0.0, %v3197
        %v3199 = vpop.f32.mrb[0].mxu0
        %3200 = vmatprep.mubr.f32.mxu0 0.0
        %3201 = vmatmul.mubr.f32.gmra.mrb[0].mxu0 %v3077
        %v3202 = vpop.f32.mrb[0].mxu0
        %v3203 = vadd.f32 0.0, %v3202
        %v3204 = vpop.f32.mrb[0].mxu0
        %3205 = vmatprep.mubr.f32.mxu0 0.0
        %3206 = vmatmul.mubr.f32.gmra.mrb[0].mxu0 %v3078
        %v3207 = vpop.f32.mrb[0].mxu0
        %v3208 = vadd.f32 0.0, %v3207
        %v3209 = vpop.f32.mrb[0].mxu0
        %3210 = vmatprep.mubr.f32.mxu0 0.0
        %3211 = vmatmul.mubr.f32.gmra.mrb[0].mxu0 %v3079
        %v3212 = vpop.f32.mrb[0].mxu0
        %v3213 = vadd.f32 0.0, %v3212
        %v3214 = vpop.f32.mrb[0].mxu0
        %3215 = vmatprep.mubr.f32.mxu0 0.0
        %3216 = vmatmul.mubr.f32.gmra.mrb[0].mxu0 %v3080
        %v3217 = vpop.f32.mrb[0].mxu0
        %v3218 = vadd.f32 0.0, %v3217
        %v3219 = vpop.f32.mrb[0].mxu0
        %3220 = vmatprep.mubr.f32.mxu0 0.0
        %3221 = vmatmul.mubr.f32.gmra.mrb[0].mxu0 %v3081
        %v3222 = vpop.f32.mrb[0].mxu0
        %v3223 = vadd.f32 0.0, %v3222
        %v3224 = vpop.f32.mrb[0].mxu0
        %3225 = vmatprep.mubr.f32.mxu0 0.0
        %3226 = vmatmul.mubr.f32.gmra.mrb[0].mxu0 %v3082
        %v3227 = vpop.f32.mrb[0].mxu0
        %v3228 = vadd.f32 0.0, %v3227
        %v3229 = vpop.f32.mrb[0].mxu0
        %3230 = vmatprep.mubr.f32.mxu0 0.0
        %3231 = vmatmul.mubr.f32.gmra.mrb[0].mxu0 %v3083
        %v3232 = vpop.f32.mrb[0].mxu0
        %v3233 = vadd.f32 0.0, %v3232
        %v3234 = vpop.f32.mrb[0].mxu0
        %3235 = vmatprep.mubr.f32.mxu0 0.0
        %3236 = vmatmul.mubr.f32.gmra.mrb[0].mxu0 %v3084
        %v3237 = vpop.f32.mrb[0].mxu0
        %v3238 = vadd.f32 0.0, %v3237
        %v3239 = vpop.f32.mrb[0].mxu0
        %3240 = vmatprep.mubr.f32.mxu0 0.0
        %3241 = vmatmul.mubr.f32.gmra.mrb[0].mxu0 %v3085
        %v3242 = vpop.f32.mrb[0].mxu0
        %v3243 = vadd.f32 0.0, %v3242
        %v3244 = vpop.f32.mrb[0].mxu0
        %3245 = vmatprep.mubr.f32.mxu0 0.0
        %3246 = vmatmul.mubr.f32.gmra.mrb[0].mxu0 %v3086
        %v3247 = vpop.f32.mrb[0].mxu0
        %v3248 = vadd.f32 0.0, %v3247
        %v3249 = vpop.f32.mrb[0].mxu0
        %3250 = vmatprep.mubr.f32.mxu0 0.0
        %3251 = vmatmul.mubr.f32.gmra.mrb[0].mxu0 %v3087
        %v3252 = vpop.f32.mrb[0].mxu0
        %v3253 = vadd.f32 0.0, %v3252
        %v3254 = vpop.f32.mrb[0].mxu0
        %3255 = vmatprep.mubr.f32.mxu0 0.0
        %3256 = vmatmul.mubr.f32.gmra.mrb[0].mxu0 %v3088
        %v3257 = vpop.f32.mrb[0].mxu0
        %v3258 = vadd.f32 0.0, %v3257
        %v3259 = vpop.f32.mrb[0].mxu0
        %3260 = vdwg.mxu0
        %v3261 = vadd.f32 %v3053, %v3173
        %v3262 = vadd.f32 %v3054, %v3178
        %v3263 = vadd.f32 %v3055, %v3183
        %v3264 = vadd.f32 %v3056, %v3188
        %v3265 = vadd.f32 %v3057, %v3193
        %v3266 = vadd.f32 %v3058, %v3198
        %v3267 = vadd.f32 %v3059, %v3203
        %v3268 = vadd.f32 %v3060, %v3208
        %v3269 = vadd.f32 %v3061, %v3213
        %v3270 = vadd.f32 %v3062, %v3218
        %v3271 = vadd.f32 %v3063, %v3223
        %v3272 = vadd.f32 %v3064, %v3228
        %v3273 = vadd.f32 %v3065, %v3233
        %v3274 = vadd.f32 %v3066, %v3238
        %v3275 = vadd.f32 %v3067, %v3243
        %v3276 = vadd.f32 %v3068, %v3248
        %v3277 = vadd.f32 %v3069, %v3253
        %v3278 = vadd.f32 %v3070, %v3258
        %v3279 = vld [vmem:[#allocation2 + $0x26] sm:$0xff]
        %v3280 = vld [vmem:[#allocation2 + $0x2e] sm:$0xff]
        %v3281 = vld [vmem:[#allocation2 + $0x36] sm:$0xff]
        %v3282 = vld [vmem:[#allocation2 + $0x3e] sm:$0xff]
        %v3283 = vld [vmem:[#allocation2 + $0x46] sm:$0xff]
        %v3284 = vld [vmem:[#allocation2 + $0x4e] sm:$0xff]
        %v3285 = vld [vmem:[#allocation2 + $0x56] sm:$0xff]
        %v3286 = vld [vmem:[#allocation2 + $0x5e] sm:$0xff]
        %v3287 = vld [vmem:[#allocation2 + $0x66] sm:$0xff]
        %v3288 = vld [vmem:[#allocation2 + $0x6e] sm:$0xff]
        %v3289 = vld [vmem:[#allocation2 + $0x76] sm:$0xff]
        %v3290 = vld [vmem:[#allocation2 + $0x7e] sm:$0xff]
        %v3291 = vld [vmem:[#allocation2 + $0x86] sm:$0xff]
        %v3292 = vld [vmem:[#allocation2 + $0x8e] sm:$0xff]
        %v3293 = vld [vmem:[#allocation2 + $0x96] sm:$0xff]
        %v3294 = vld [vmem:[#allocation2 + $0x9e] sm:$0xff]
        %v3295 = vld [vmem:[#allocation2 + $0xa6] sm:$0xff]
        %v3296 = vld [vmem:[#allocation2 + $0xae] sm:$0xff]
        %s3297 = scalar_lea.vmem [#allocation7], 1408
        %v3298 = vld [vmem:[%s3297] sm:$0xff]
        %v3299 = vld [vmem:[%s3297 + $0x8] sm:$0xff]
        %v3300 = vld [vmem:[%s3297 + $0x10] sm:$0xff]
        %v3301 = vld [vmem:[%s3297 + $0x18] sm:$0xff]
        %v3302 = vld [vmem:[%s3297 + $0x20] sm:$0xff]
        %v3303 = vld [vmem:[%s3297 + $0x28] sm:$0xff]
        %v3304 = vld [vmem:[%s3297 + $0x30] sm:$0xff]
        %v3305 = vld [vmem:[%s3297 + $0x38] sm:$0xff]
        %v3306 = vld [vmem:[%s3297 + $0x40] sm:$0xff]
        %v3307 = vld [vmem:[%s3297 + $0x48] sm:$0xff]
        %v3308 = vld [vmem:[%s3297 + $0x50] sm:$0xff]
        %v3309 = vld [vmem:[%s3297 + $0x58] sm:$0xff]
        %v3310 = vld [vmem:[%s3297 + $0x60] sm:$0xff]
        %v3311 = vld [vmem:[%s3297 + $0x68] sm:$0xff]
        %v3312 = vld [vmem:[%s3297 + $0x70] sm:$0xff]
        %v3313 = vld [vmem:[%s3297 + $0x78] sm:$0xff]
        %3314 = vmatprep.subr.mxu0 0.0
        %3315 = vmatpush1.msra.mxu0 %v3298
        %3316 = vmatprep.subr.mxu0 0.0
        %3317 = vmatpush1.msra.mxu0 %v3299
        %3318 = vmatprep.subr.mxu0 0.0
        %3319 = vmatpush1.msra.mxu0 %v3300
        %3320 = vmatprep.subr.mxu0 0.0
        %3321 = vmatpush1.msra.mxu0 %v3301
        %3322 = vmatprep.subr.mxu0 0.0
        %3323 = vmatpush1.msra.mxu0 %v3302
        %3324 = vmatprep.subr.mxu0 0.0
        %3325 = vmatpush1.msra.mxu0 %v3303
        %3326 = vmatprep.subr.mxu0 0.0
        %3327 = vmatpush1.msra.mxu0 %v3304
        %3328 = vmatprep.subr.mxu0 0.0
        %3329 = vmatpush1.msra.mxu0 %v3305
        %3330 = vmatprep.subr.mxu0 0.0
        %3331 = vmatpush1.msra.mxu0 %v3306
        %3332 = vmatprep.subr.mxu0 0.0
        %3333 = vmatpush1.msra.mxu0 %v3307
        %3334 = vmatprep.subr.mxu0 0.0
        %3335 = vmatpush1.msra.mxu0 %v3308
        %3336 = vmatprep.subr.mxu0 0.0
        %3337 = vmatpush1.msra.mxu0 %v3309
        %3338 = vmatprep.subr.mxu0 0.0
        %3339 = vmatpush1.msra.mxu0 %v3310
        %3340 = vmatprep.subr.mxu0 0.0
        %3341 = vmatpush1.msra.mxu0 %v3311
        %3342 = vmatprep.subr.mxu0 0.0
        %3343 = vmatpush1.msra.mxu0 %v3312
        %3344 = vmatprep.subr.mxu0 0.0
        %3345 = vmatpush1.msra.mxu0 %v3313
        %3346 = vmatprep.subr.mxu0 0.0
        %3347 = vmatpush1.msra.mxu0 0.0
        %3348 = vmatprep.subr.mxu0 0.0
        %3349 = vmatpush1.msra.mxu0 0.0
        %3350 = vmatprep.subr.mxu0 0.0
        %3351 = vmatpush1.msra.mxu0 0.0
        %3352 = vmatprep.subr.mxu0 0.0
        %3353 = vmatpush1.msra.mxu0 0.0
        %3354 = vmatprep.subr.mxu0 0.0
        %3355 = vmatpush1.msra.mxu0 0.0
        %3356 = vmatprep.subr.mxu0 0.0
        %3357 = vmatpush1.msra.mxu0 0.0
        %3358 = vmatprep.subr.mxu0 0.0
        %3359 = vmatpush1.msra.mxu0 0.0
        %3360 = vmatprep.subr.mxu0 0.0
        %3361 = vmatpush1.msra.mxu0 0.0
        %3362 = vmatprep.subr.mxu0 0.0
        %3363 = vmatpush1.msra.mxu0 0.0
        %3364 = vmatprep.subr.mxu0 0.0
        %3365 = vmatpush1.msra.mxu0 0.0
        %3366 = vmatprep.subr.mxu0 0.0
        %3367 = vmatpush1.msra.mxu0 0.0
        %3368 = vmatprep.subr.mxu0 0.0
        %3369 = vmatpush1.msra.mxu0 0.0
        %3370 = vmatprep.subr.mxu0 0.0
        %3371 = vmatpush1.msra.mxu0 0.0
        %3372 = vmatprep.subr.mxu0 0.0
        %3373 = vmatpush1.msra.mxu0 0.0
        %3374 = vmatprep.subr.mxu0 0.0
        %3375 = vmatpush1.msra.mxu0 0.0
        %3376 = vmatprep.subr.mxu0 0.0
        %3377 = vmatpush1.msra.mxu0 0.0
        %3378 = vmatprep.mubr.f32.mxu0 0.0
        %3379 = vmatmul.mubr.f32.gmra.mrb[0].mxu0 %v3279
        %v3380 = vpop.f32.mrb[0].mxu0
        %v3381 = vadd.f32 0.0, %v3380
        %v3382 = vpop.f32.mrb[0].mxu0
        %3383 = vmatprep.mubr.f32.mxu0 0.0
        %3384 = vmatmul.mubr.f32.gmra.mrb[0].mxu0 %v3280
        %v3385 = vpop.f32.mrb[0].mxu0
        %v3386 = vadd.f32 0.0, %v3385
        %v3387 = vpop.f32.mrb[0].mxu0
        %3388 = vmatprep.mubr.f32.mxu0 0.0
        %3389 = vmatmul.mubr.f32.gmra.mrb[0].mxu0 %v3281
        %v3390 = vpop.f32.mrb[0].mxu0
        %v3391 = vadd.f32 0.0, %v3390
        %v3392 = vpop.f32.mrb[0].mxu0
        %3393 = vmatprep.mubr.f32.mxu0 0.0
        %3394 = vmatmul.mubr.f32.gmra.mrb[0].mxu0 %v3282
        %v3395 = vpop.f32.mrb[0].mxu0
        %v3396 = vadd.f32 0.0, %v3395
        %v3397 = vpop.f32.mrb[0].mxu0
        %3398 = vmatprep.mubr.f32.mxu0 0.0
        %3399 = vmatmul.mubr.f32.gmra.mrb[0].mxu0 %v3283
        %v3400 = vpop.f32.mrb[0].mxu0
        %v3401 = vadd.f32 0.0, %v3400
        %v3402 = vpop.f32.mrb[0].mxu0
        %3403 = vmatprep.mubr.f32.mxu0 0.0
        %3404 = vmatmul.mubr.f32.gmra.mrb[0].mxu0 %v3284
        %v3405 = vpop.f32.mrb[0].mxu0
        %v3406 = vadd.f32 0.0, %v3405
        %v3407 = vpop.f32.mrb[0].mxu0
        %3408 = vmatprep.mubr.f32.mxu0 0.0
        %3409 = vmatmul.mubr.f32.gmra.mrb[0].mxu0 %v3285
        %v3410 = vpop.f32.mrb[0].mxu0
        %v3411 = vadd.f32 0.0, %v3410
        %v3412 = vpop.f32.mrb[0].mxu0
        %3413 = vmatprep.mubr.f32.mxu0 0.0
        %3414 = vmatmul.mubr.f32.gmra.mrb[0].mxu0 %v3286
        %v3415 = vpop.f32.mrb[0].mxu0
        %v3416 = vadd.f32 0.0, %v3415
        %v3417 = vpop.f32.mrb[0].mxu0
        %3418 = vmatprep.mubr.f32.mxu0 0.0
        %3419 = vmatmul.mubr.f32.gmra.mrb[0].mxu0 %v3287
        %v3420 = vpop.f32.mrb[0].mxu0
        %v3421 = vadd.f32 0.0, %v3420
        %v3422 = vpop.f32.mrb[0].mxu0
        %3423 = vmatprep.mubr.f32.mxu0 0.0
        %3424 = vmatmul.mubr.f32.gmra.mrb[0].mxu0 %v3288
        %v3425 = vpop.f32.mrb[0].mxu0
        %v3426 = vadd.f32 0.0, %v3425
        %v3427 = vpop.f32.mrb[0].mxu0
        %3428 = vmatprep.mubr.f32.mxu0 0.0
        %3429 = vmatmul.mubr.f32.gmra.mrb[0].mxu0 %v3289
        %v3430 = vpop.f32.mrb[0].mxu0
        %v3431 = vadd.f32 0.0, %v3430
        %v3432 = vpop.f32.mrb[0].mxu0
        %3433 = vmatprep.mubr.f32.mxu0 0.0
        %3434 = vmatmul.mubr.f32.gmra.mrb[0].mxu0 %v3290
        %v3435 = vpop.f32.mrb[0].mxu0
        %v3436 = vadd.f32 0.0, %v3435
        %v3437 = vpop.f32.mrb[0].mxu0
        %3438 = vmatprep.mubr.f32.mxu0 0.0
        %3439 = vmatmul.mubr.f32.gmra.mrb[0].mxu0 %v3291
        %v3440 = vpop.f32.mrb[0].mxu0
        %v3441 = vadd.f32 0.0, %v3440
        %v3442 = vpop.f32.mrb[0].mxu0
        %3443 = vmatprep.mubr.f32.mxu0 0.0
        %3444 = vmatmul.mubr.f32.gmra.mrb[0].mxu0 %v3292
        %v3445 = vpop.f32.mrb[0].mxu0
        %v3446 = vadd.f32 0.0, %v3445
        %v3447 = vpop.f32.mrb[0].mxu0
        %3448 = vmatprep.mubr.f32.mxu0 0.0
        %3449 = vmatmul.mubr.f32.gmra.mrb[0].mxu0 %v3293
        %v3450 = vpop.f32.mrb[0].mxu0
        %v3451 = vadd.f32 0.0, %v3450
        %v3452 = vpop.f32.mrb[0].mxu0
        %3453 = vmatprep.mubr.f32.mxu0 0.0
        %3454 = vmatmul.mubr.f32.gmra.mrb[0].mxu0 %v3294
        %v3455 = vpop.f32.mrb[0].mxu0
        %v3456 = vadd.f32 0.0, %v3455
        %v3457 = vpop.f32.mrb[0].mxu0
        %3458 = vmatprep.mubr.f32.mxu0 0.0
        %3459 = vmatmul.mubr.f32.gmra.mrb[0].mxu0 %v3295
        %v3460 = vpop.f32.mrb[0].mxu0
        %v3461 = vadd.f32 0.0, %v3460
        %v3462 = vpop.f32.mrb[0].mxu0
        %3463 = vmatprep.mubr.f32.mxu0 0.0
        %3464 = vmatmul.mubr.f32.gmra.mrb[0].mxu0 %v3296
        %v3465 = vpop.f32.mrb[0].mxu0
        %v3466 = vadd.f32 0.0, %v3465
        %v3467 = vpop.f32.mrb[0].mxu0
        %3468 = vdwg.mxu0
        %v3469 = vadd.f32 %v3261, %v3381
        %v3470 = vadd.f32 %v3262, %v3386
        %v3471 = vadd.f32 %v3263, %v3391
        %v3472 = vadd.f32 %v3264, %v3396
        %v3473 = vadd.f32 %v3265, %v3401
        %v3474 = vadd.f32 %v3266, %v3406
        %v3475 = vadd.f32 %v3267, %v3411
        %v3476 = vadd.f32 %v3268, %v3416
        %v3477 = vadd.f32 %v3269, %v3421
        %v3478 = vadd.f32 %v3270, %v3426
        %v3479 = vadd.f32 %v3271, %v3431
        %v3480 = vadd.f32 %v3272, %v3436
        %v3481 = vadd.f32 %v3273, %v3441
        %v3482 = vadd.f32 %v3274, %v3446
        %v3483 = vadd.f32 %v3275, %v3451
        %v3484 = vadd.f32 %v3276, %v3456
        %v3485 = vadd.f32 %v3277, %v3461
        %v3486 = vadd.f32 %v3278, %v3466
        %v3487 = vld [vmem:[#allocation2 + $0x2a] sm:$0xff]
        %v3488 = vld [vmem:[#allocation2 + $0x32] sm:$0xff]
        %v3489 = vld [vmem:[#allocation2 + $0x3a] sm:$0xff]
        %v3490 = vld [vmem:[#allocation2 + $0x42] sm:$0xff]
        %v3491 = vld [vmem:[#allocation2 + $0x4a] sm:$0xff]
        %v3492 = vld [vmem:[#allocation2 + $0x52] sm:$0xff]
        %v3493 = vld [vmem:[#allocation2 + $0x5a] sm:$0xff]
        %v3494 = vld [vmem:[#allocation2 + $0x62] sm:$0xff]
        %v3495 = vld [vmem:[#allocation2 + $0x6a] sm:$0xff]
        %v3496 = vld [vmem:[#allocation2 + $0x72] sm:$0xff]
        %v3497 = vld [vmem:[#allocation2 + $0x7a] sm:$0xff]
        %v3498 = vld [vmem:[#allocation2 + $0x82] sm:$0xff]
        %v3499 = vld [vmem:[#allocation2 + $0x8a] sm:$0xff]
        %v3500 = vld [vmem:[#allocation2 + $0x92] sm:$0xff]
        %v3501 = vld [vmem:[#allocation2 + $0x9a] sm:$0xff]
        %v3502 = vld [vmem:[#allocation2 + $0xa2] sm:$0xff]
        %v3503 = vld [vmem:[#allocation2 + $0xaa] sm:$0xff]
        %v3504 = vld [vmem:[#allocation2 + $0xb2] sm:$0xff]
        %s3505 = scalar_lea.vmem [#allocation7], 1536
        %v3506 = vld [vmem:[%s3505] sm:$0xff]
        %v3507 = vld [vmem:[%s3505 + $0x8] sm:$0xff]
        %v3508 = vld [vmem:[%s3505 + $0x10] sm:$0xff]
        %v3509 = vld [vmem:[%s3505 + $0x18] sm:$0xff]
        %v3510 = vld [vmem:[%s3505 + $0x20] sm:$0xff]
        %v3511 = vld [vmem:[%s3505 + $0x28] sm:$0xff]
        %v3512 = vld [vmem:[%s3505 + $0x30] sm:$0xff]
        %v3513 = vld [vmem:[%s3505 + $0x38] sm:$0xff]
        %v3514 = vld [vmem:[%s3505 + $0x40] sm:$0xff]
        %v3515 = vld [vmem:[%s3505 + $0x48] sm:$0xff]
        %v3516 = vld [vmem:[%s3505 + $0x50] sm:$0xff]
        %v3517 = vld [vmem:[%s3505 + $0x58] sm:$0xff]
        %v3518 = vld [vmem:[%s3505 + $0x60] sm:$0xff]
        %v3519 = vld [vmem:[%s3505 + $0x68] sm:$0xff]
        %v3520 = vld [vmem:[%s3505 + $0x70] sm:$0xff]
        %v3521 = vld [vmem:[%s3505 + $0x78] sm:$0xff]
        %3522 = vmatprep.subr.mxu0 0.0
        %3523 = vmatpush1.msra.mxu0 %v3506
        %3524 = vmatprep.subr.mxu0 0.0
        %3525 = vmatpush1.msra.mxu0 %v3507
        %3526 = vmatprep.subr.mxu0 0.0
        %3527 = vmatpush1.msra.mxu0 %v3508
        %3528 = vmatprep.subr.mxu0 0.0
        %3529 = vmatpush1.msra.mxu0 %v3509
        %3530 = vmatprep.subr.mxu0 0.0
        %3531 = vmatpush1.msra.mxu0 %v3510
        %3532 = vmatprep.subr.mxu0 0.0
        %3533 = vmatpush1.msra.mxu0 %v3511
        %3534 = vmatprep.subr.mxu0 0.0
        %3535 = vmatpush1.msra.mxu0 %v3512
        %3536 = vmatprep.subr.mxu0 0.0
        %3537 = vmatpush1.msra.mxu0 %v3513
        %3538 = vmatprep.subr.mxu0 0.0
        %3539 = vmatpush1.msra.mxu0 %v3514
        %3540 = vmatprep.subr.mxu0 0.0
        %3541 = vmatpush1.msra.mxu0 %v3515
        %3542 = vmatprep.subr.mxu0 0.0
        %3543 = vmatpush1.msra.mxu0 %v3516
        %3544 = vmatprep.subr.mxu0 0.0
        %3545 = vmatpush1.msra.mxu0 %v3517
        %3546 = vmatprep.subr.mxu0 0.0
        %3547 = vmatpush1.msra.mxu0 %v3518
        %3548 = vmatprep.subr.mxu0 0.0
        %3549 = vmatpush1.msra.mxu0 %v3519
        %3550 = vmatprep.subr.mxu0 0.0
        %3551 = vmatpush1.msra.mxu0 %v3520
        %3552 = vmatprep.subr.mxu0 0.0
        %3553 = vmatpush1.msra.mxu0 %v3521
        %3554 = vmatprep.subr.mxu0 0.0
        %3555 = vmatpush1.msra.mxu0 0.0
        %3556 = vmatprep.subr.mxu0 0.0
        %3557 = vmatpush1.msra.mxu0 0.0
        %3558 = vmatprep.subr.mxu0 0.0
        %3559 = vmatpush1.msra.mxu0 0.0
        %3560 = vmatprep.subr.mxu0 0.0
        %3561 = vmatpush1.msra.mxu0 0.0
        %3562 = vmatprep.subr.mxu0 0.0
        %3563 = vmatpush1.msra.mxu0 0.0
        %3564 = vmatprep.subr.mxu0 0.0
        %3565 = vmatpush1.msra.mxu0 0.0
        %3566 = vmatprep.subr.mxu0 0.0
        %3567 = vmatpush1.msra.mxu0 0.0
        %3568 = vmatprep.subr.mxu0 0.0
        %3569 = vmatpush1.msra.mxu0 0.0
        %3570 = vmatprep.subr.mxu0 0.0
        %3571 = vmatpush1.msra.mxu0 0.0
        %3572 = vmatprep.subr.mxu0 0.0
        %3573 = vmatpush1.msra.mxu0 0.0
        %3574 = vmatprep.subr.mxu0 0.0
        %3575 = vmatpush1.msra.mxu0 0.0
        %3576 = vmatprep.subr.mxu0 0.0
        %3577 = vmatpush1.msra.mxu0 0.0
        %3578 = vmatprep.subr.mxu0 0.0
        %3579 = vmatpush1.msra.mxu0 0.0
        %3580 = vmatprep.subr.mxu0 0.0
        %3581 = vmatpush1.msra.mxu0 0.0
        %3582 = vmatprep.subr.mxu0 0.0
        %3583 = vmatpush1.msra.mxu0 0.0
        %3584 = vmatprep.subr.mxu0 0.0
        %3585 = vmatpush1.msra.mxu0 0.0
        %3586 = vmatprep.mubr.f32.mxu0 0.0
        %3587 = vmatmul.mubr.f32.gmra.mrb[0].mxu0 %v3487
        %v3588 = vpop.f32.mrb[0].mxu0
        %v3589 = vadd.f32 0.0, %v3588
        %v3590 = vpop.f32.mrb[0].mxu0
        %3591 = vmatprep.mubr.f32.mxu0 0.0
        %3592 = vmatmul.mubr.f32.gmra.mrb[0].mxu0 %v3488
        %v3593 = vpop.f32.mrb[0].mxu0
        %v3594 = vadd.f32 0.0, %v3593
        %v3595 = vpop.f32.mrb[0].mxu0
        %3596 = vmatprep.mubr.f32.mxu0 0.0
        %3597 = vmatmul.mubr.f32.gmra.mrb[0].mxu0 %v3489
        %v3598 = vpop.f32.mrb[0].mxu0
        %v3599 = vadd.f32 0.0, %v3598
        %v3600 = vpop.f32.mrb[0].mxu0
        %3601 = vmatprep.mubr.f32.mxu0 0.0
        %3602 = vmatmul.mubr.f32.gmra.mrb[0].mxu0 %v3490
        %v3603 = vpop.f32.mrb[0].mxu0
        %v3604 = vadd.f32 0.0, %v3603
        %v3605 = vpop.f32.mrb[0].mxu0
        %3606 = vmatprep.mubr.f32.mxu0 0.0
        %3607 = vmatmul.mubr.f32.gmra.mrb[0].mxu0 %v3491
        %v3608 = vpop.f32.mrb[0].mxu0
        %v3609 = vadd.f32 0.0, %v3608
        %v3610 = vpop.f32.mrb[0].mxu0
        %3611 = vmatprep.mubr.f32.mxu0 0.0
        %3612 = vmatmul.mubr.f32.gmra.mrb[0].mxu0 %v3492
        %v3613 = vpop.f32.mrb[0].mxu0
        %v3614 = vadd.f32 0.0, %v3613
        %v3615 = vpop.f32.mrb[0].mxu0
        %3616 = vmatprep.mubr.f32.mxu0 0.0
        %3617 = vmatmul.mubr.f32.gmra.mrb[0].mxu0 %v3493
        %v3618 = vpop.f32.mrb[0].mxu0
        %v3619 = vadd.f32 0.0, %v3618
        %v3620 = vpop.f32.mrb[0].mxu0
        %3621 = vmatprep.mubr.f32.mxu0 0.0
        %3622 = vmatmul.mubr.f32.gmra.mrb[0].mxu0 %v3494
        %v3623 = vpop.f32.mrb[0].mxu0
        %v3624 = vadd.f32 0.0, %v3623
        %v3625 = vpop.f32.mrb[0].mxu0
        %3626 = vmatprep.mubr.f32.mxu0 0.0
        %3627 = vmatmul.mubr.f32.gmra.mrb[0].mxu0 %v3495
        %v3628 = vpop.f32.mrb[0].mxu0
        %v3629 = vadd.f32 0.0, %v3628
        %v3630 = vpop.f32.mrb[0].mxu0
        %3631 = vmatprep.mubr.f32.mxu0 0.0
        %3632 = vmatmul.mubr.f32.gmra.mrb[0].mxu0 %v3496
        %v3633 = vpop.f32.mrb[0].mxu0
        %v3634 = vadd.f32 0.0, %v3633
        %v3635 = vpop.f32.mrb[0].mxu0
        %3636 = vmatprep.mubr.f32.mxu0 0.0
        %3637 = vmatmul.mubr.f32.gmra.mrb[0].mxu0 %v3497
        %v3638 = vpop.f32.mrb[0].mxu0
        %v3639 = vadd.f32 0.0, %v3638
        %v3640 = vpop.f32.mrb[0].mxu0
        %3641 = vmatprep.mubr.f32.mxu0 0.0
        %3642 = vmatmul.mubr.f32.gmra.mrb[0].mxu0 %v3498
        %v3643 = vpop.f32.mrb[0].mxu0
        %v3644 = vadd.f32 0.0, %v3643
        %v3645 = vpop.f32.mrb[0].mxu0
        %3646 = vmatprep.mubr.f32.mxu0 0.0
        %3647 = vmatmul.mubr.f32.gmra.mrb[0].mxu0 %v3499
        %v3648 = vpop.f32.mrb[0].mxu0
        %v3649 = vadd.f32 0.0, %v3648
        %v3650 = vpop.f32.mrb[0].mxu0
        %3651 = vmatprep.mubr.f32.mxu0 0.0
        %3652 = vmatmul.mubr.f32.gmra.mrb[0].mxu0 %v3500
        %v3653 = vpop.f32.mrb[0].mxu0
        %v3654 = vadd.f32 0.0, %v3653
        %v3655 = vpop.f32.mrb[0].mxu0
        %3656 = vmatprep.mubr.f32.mxu0 0.0
        %3657 = vmatmul.mubr.f32.gmra.mrb[0].mxu0 %v3501
        %v3658 = vpop.f32.mrb[0].mxu0
        %v3659 = vadd.f32 0.0, %v3658
        %v3660 = vpop.f32.mrb[0].mxu0
        %3661 = vmatprep.mubr.f32.mxu0 0.0
        %3662 = vmatmul.mubr.f32.gmra.mrb[0].mxu0 %v3502
        %v3663 = vpop.f32.mrb[0].mxu0
        %v3664 = vadd.f32 0.0, %v3663
        %v3665 = vpop.f32.mrb[0].mxu0
        %3666 = vmatprep.mubr.f32.mxu0 0.0
        %3667 = vmatmul.mubr.f32.gmra.mrb[0].mxu0 %v3503
        %v3668 = vpop.f32.mrb[0].mxu0
        %v3669 = vadd.f32 0.0, %v3668
        %v3670 = vpop.f32.mrb[0].mxu0
        %3671 = vmatprep.mubr.f32.mxu0 0.0
        %3672 = vmatmul.mubr.f32.gmra.mrb[0].mxu0 %v3504
        %v3673 = vpop.f32.mrb[0].mxu0
        %v3674 = vadd.f32 0.0, %v3673
        %v3675 = vpop.f32.mrb[0].mxu0
        %3676 = vdwg.mxu0
        %v3677 = vadd.f32 %v3469, %v3589
        %v3678 = vadd.f32 %v3470, %v3594
        %v3679 = vadd.f32 %v3471, %v3599
        %v3680 = vadd.f32 %v3472, %v3604
        %v3681 = vadd.f32 %v3473, %v3609
        %v3682 = vadd.f32 %v3474, %v3614
        %v3683 = vadd.f32 %v3475, %v3619
        %v3684 = vadd.f32 %v3476, %v3624
        %v3685 = vadd.f32 %v3477, %v3629
        %v3686 = vadd.f32 %v3478, %v3634
        %v3687 = vadd.f32 %v3479, %v3639
        %v3688 = vadd.f32 %v3480, %v3644
        %v3689 = vadd.f32 %v3481, %v3649
        %v3690 = vadd.f32 %v3482, %v3654
        %v3691 = vadd.f32 %v3483, %v3659
        %v3692 = vadd.f32 %v3484, %v3664
        %v3693 = vadd.f32 %v3485, %v3669
        %v3694 = vadd.f32 %v3486, %v3674
        %v3695 = vld [vmem:[#allocation2 + $0x2b] sm:$0xff]
        %v3696 = vld [vmem:[#allocation2 + $0x33] sm:$0xff]
        %v3697 = vld [vmem:[#allocation2 + $0x3b] sm:$0xff]
        %v3698 = vld [vmem:[#allocation2 + $0x43] sm:$0xff]
        %v3699 = vld [vmem:[#allocation2 + $0x4b] sm:$0xff]
        %v3700 = vld [vmem:[#allocation2 + $0x53] sm:$0xff]
        %v3701 = vld [vmem:[#allocation2 + $0x5b] sm:$0xff]
        %v3702 = vld [vmem:[#allocation2 + $0x63] sm:$0xff]
        %v3703 = vld [vmem:[#allocation2 + $0x6b] sm:$0xff]
        %v3704 = vld [vmem:[#allocation2 + $0x73] sm:$0xff]
        %v3705 = vld [vmem:[#allocation2 + $0x7b] sm:$0xff]
        %v3706 = vld [vmem:[#allocation2 + $0x83] sm:$0xff]
        %v3707 = vld [vmem:[#allocation2 + $0x8b] sm:$0xff]
        %v3708 = vld [vmem:[#allocation2 + $0x93] sm:$0xff]
        %v3709 = vld [vmem:[#allocation2 + $0x9b] sm:$0xff]
        %v3710 = vld [vmem:[#allocation2 + $0xa3] sm:$0xff]
        %v3711 = vld [vmem:[#allocation2 + $0xab] sm:$0xff]
        %v3712 = vld [vmem:[#allocation2 + $0xb3] sm:$0xff]
        %s3713 = scalar_lea.vmem [#allocation7], 1664
        %v3714 = vld [vmem:[%s3713] sm:$0xff]
        %v3715 = vld [vmem:[%s3713 + $0x8] sm:$0xff]
        %v3716 = vld [vmem:[%s3713 + $0x10] sm:$0xff]
        %v3717 = vld [vmem:[%s3713 + $0x18] sm:$0xff]
        %v3718 = vld [vmem:[%s3713 + $0x20] sm:$0xff]
        %v3719 = vld [vmem:[%s3713 + $0x28] sm:$0xff]
        %v3720 = vld [vmem:[%s3713 + $0x30] sm:$0xff]
        %v3721 = vld [vmem:[%s3713 + $0x38] sm:$0xff]
        %v3722 = vld [vmem:[%s3713 + $0x40] sm:$0xff]
        %v3723 = vld [vmem:[%s3713 + $0x48] sm:$0xff]
        %v3724 = vld [vmem:[%s3713 + $0x50] sm:$0xff]
        %v3725 = vld [vmem:[%s3713 + $0x58] sm:$0xff]
        %v3726 = vld [vmem:[%s3713 + $0x60] sm:$0xff]
        %v3727 = vld [vmem:[%s3713 + $0x68] sm:$0xff]
        %v3728 = vld [vmem:[%s3713 + $0x70] sm:$0xff]
        %v3729 = vld [vmem:[%s3713 + $0x78] sm:$0xff]
        %3730 = vmatprep.subr.mxu0 0.0
        %3731 = vmatpush1.msra.mxu0 %v3714
        %3732 = vmatprep.subr.mxu0 0.0
        %3733 = vmatpush1.msra.mxu0 %v3715
        %3734 = vmatprep.subr.mxu0 0.0
        %3735 = vmatpush1.msra.mxu0 %v3716
        %3736 = vmatprep.subr.mxu0 0.0
        %3737 = vmatpush1.msra.mxu0 %v3717
        %3738 = vmatprep.subr.mxu0 0.0
        %3739 = vmatpush1.msra.mxu0 %v3718
        %3740 = vmatprep.subr.mxu0 0.0
        %3741 = vmatpush1.msra.mxu0 %v3719
        %3742 = vmatprep.subr.mxu0 0.0
        %3743 = vmatpush1.msra.mxu0 %v3720
        %3744 = vmatprep.subr.mxu0 0.0
        %3745 = vmatpush1.msra.mxu0 %v3721
        %3746 = vmatprep.subr.mxu0 0.0
        %3747 = vmatpush1.msra.mxu0 %v3722
        %3748 = vmatprep.subr.mxu0 0.0
        %3749 = vmatpush1.msra.mxu0 %v3723
        %3750 = vmatprep.subr.mxu0 0.0
        %3751 = vmatpush1.msra.mxu0 %v3724
        %3752 = vmatprep.subr.mxu0 0.0
        %3753 = vmatpush1.msra.mxu0 %v3725
        %3754 = vmatprep.subr.mxu0 0.0
        %3755 = vmatpush1.msra.mxu0 %v3726
        %3756 = vmatprep.subr.mxu0 0.0
        %3757 = vmatpush1.msra.mxu0 %v3727
        %3758 = vmatprep.subr.mxu0 0.0
        %3759 = vmatpush1.msra.mxu0 %v3728
        %3760 = vmatprep.subr.mxu0 0.0
        %3761 = vmatpush1.msra.mxu0 %v3729
        %3762 = vmatprep.subr.mxu0 0.0
        %3763 = vmatpush1.msra.mxu0 0.0
        %3764 = vmatprep.subr.mxu0 0.0
        %3765 = vmatpush1.msra.mxu0 0.0
        %3766 = vmatprep.subr.mxu0 0.0
        %3767 = vmatpush1.msra.mxu0 0.0
        %3768 = vmatprep.subr.mxu0 0.0
        %3769 = vmatpush1.msra.mxu0 0.0
        %3770 = vmatprep.subr.mxu0 0.0
        %3771 = vmatpush1.msra.mxu0 0.0
        %3772 = vmatprep.subr.mxu0 0.0
        %3773 = vmatpush1.msra.mxu0 0.0
        %3774 = vmatprep.subr.mxu0 0.0
        %3775 = vmatpush1.msra.mxu0 0.0
        %3776 = vmatprep.subr.mxu0 0.0
        %3777 = vmatpush1.msra.mxu0 0.0
        %3778 = vmatprep.subr.mxu0 0.0
        %3779 = vmatpush1.msra.mxu0 0.0
        %3780 = vmatprep.subr.mxu0 0.0
        %3781 = vmatpush1.msra.mxu0 0.0
        %3782 = vmatprep.subr.mxu0 0.0
        %3783 = vmatpush1.msra.mxu0 0.0
        %3784 = vmatprep.subr.mxu0 0.0
        %3785 = vmatpush1.msra.mxu0 0.0
        %3786 = vmatprep.subr.mxu0 0.0
        %3787 = vmatpush1.msra.mxu0 0.0
        %3788 = vmatprep.subr.mxu0 0.0
        %3789 = vmatpush1.msra.mxu0 0.0
        %3790 = vmatprep.subr.mxu0 0.0
        %3791 = vmatpush1.msra.mxu0 0.0
        %3792 = vmatprep.subr.mxu0 0.0
        %3793 = vmatpush1.msra.mxu0 0.0
        %3794 = vmatprep.mubr.f32.mxu0 0.0
        %3795 = vmatmul.mubr.f32.gmra.mrb[0].mxu0 %v3695
        %v3796 = vpop.f32.mrb[0].mxu0
        %v3797 = vadd.f32 0.0, %v3796
        %v3798 = vpop.f32.mrb[0].mxu0
        %3799 = vmatprep.mubr.f32.mxu0 0.0
        %3800 = vmatmul.mubr.f32.gmra.mrb[0].mxu0 %v3696
        %v3801 = vpop.f32.mrb[0].mxu0
        %v3802 = vadd.f32 0.0, %v3801
        %v3803 = vpop.f32.mrb[0].mxu0
        %3804 = vmatprep.mubr.f32.mxu0 0.0
        %3805 = vmatmul.mubr.f32.gmra.mrb[0].mxu0 %v3697
        %v3806 = vpop.f32.mrb[0].mxu0
        %v3807 = vadd.f32 0.0, %v3806
        %v3808 = vpop.f32.mrb[0].mxu0
        %3809 = vmatprep.mubr.f32.mxu0 0.0
        %3810 = vmatmul.mubr.f32.gmra.mrb[0].mxu0 %v3698
        %v3811 = vpop.f32.mrb[0].mxu0
        %v3812 = vadd.f32 0.0, %v3811
        %v3813 = vpop.f32.mrb[0].mxu0
        %3814 = vmatprep.mubr.f32.mxu0 0.0
        %3815 = vmatmul.mubr.f32.gmra.mrb[0].mxu0 %v3699
        %v3816 = vpop.f32.mrb[0].mxu0
        %v3817 = vadd.f32 0.0, %v3816
        %v3818 = vpop.f32.mrb[0].mxu0
        %3819 = vmatprep.mubr.f32.mxu0 0.0
        %3820 = vmatmul.mubr.f32.gmra.mrb[0].mxu0 %v3700
        %v3821 = vpop.f32.mrb[0].mxu0
        %v3822 = vadd.f32 0.0, %v3821
        %v3823 = vpop.f32.mrb[0].mxu0
        %3824 = vmatprep.mubr.f32.mxu0 0.0
        %3825 = vmatmul.mubr.f32.gmra.mrb[0].mxu0 %v3701
        %v3826 = vpop.f32.mrb[0].mxu0
        %v3827 = vadd.f32 0.0, %v3826
        %v3828 = vpop.f32.mrb[0].mxu0
        %3829 = vmatprep.mubr.f32.mxu0 0.0
        %3830 = vmatmul.mubr.f32.gmra.mrb[0].mxu0 %v3702
        %v3831 = vpop.f32.mrb[0].mxu0
        %v3832 = vadd.f32 0.0, %v3831
        %v3833 = vpop.f32.mrb[0].mxu0
        %3834 = vmatprep.mubr.f32.mxu0 0.0
        %3835 = vmatmul.mubr.f32.gmra.mrb[0].mxu0 %v3703
        %v3836 = vpop.f32.mrb[0].mxu0
        %v3837 = vadd.f32 0.0, %v3836
        %v3838 = vpop.f32.mrb[0].mxu0
        %3839 = vmatprep.mubr.f32.mxu0 0.0
        %3840 = vmatmul.mubr.f32.gmra.mrb[0].mxu0 %v3704
        %v3841 = vpop.f32.mrb[0].mxu0
        %v3842 = vadd.f32 0.0, %v3841
        %v3843 = vpop.f32.mrb[0].mxu0
        %3844 = vmatprep.mubr.f32.mxu0 0.0
        %3845 = vmatmul.mubr.f32.gmra.mrb[0].mxu0 %v3705
        %v3846 = vpop.f32.mrb[0].mxu0
        %v3847 = vadd.f32 0.0, %v3846
        %v3848 = vpop.f32.mrb[0].mxu0
        %3849 = vmatprep.mubr.f32.mxu0 0.0
        %3850 = vmatmul.mubr.f32.gmra.mrb[0].mxu0 %v3706
        %v3851 = vpop.f32.mrb[0].mxu0
        %v3852 = vadd.f32 0.0, %v3851
        %v3853 = vpop.f32.mrb[0].mxu0
        %3854 = vmatprep.mubr.f32.mxu0 0.0
        %3855 = vmatmul.mubr.f32.gmra.mrb[0].mxu0 %v3707
        %v3856 = vpop.f32.mrb[0].mxu0
        %v3857 = vadd.f32 0.0, %v3856
        %v3858 = vpop.f32.mrb[0].mxu0
        %3859 = vmatprep.mubr.f32.mxu0 0.0
        %3860 = vmatmul.mubr.f32.gmra.mrb[0].mxu0 %v3708
        %v3861 = vpop.f32.mrb[0].mxu0
        %v3862 = vadd.f32 0.0, %v3861
        %v3863 = vpop.f32.mrb[0].mxu0
        %3864 = vmatprep.mubr.f32.mxu0 0.0
        %3865 = vmatmul.mubr.f32.gmra.mrb[0].mxu0 %v3709
        %v3866 = vpop.f32.mrb[0].mxu0
        %v3867 = vadd.f32 0.0, %v3866
        %v3868 = vpop.f32.mrb[0].mxu0
        %3869 = vmatprep.mubr.f32.mxu0 0.0
        %3870 = vmatmul.mubr.f32.gmra.mrb[0].mxu0 %v3710
        %v3871 = vpop.f32.mrb[0].mxu0
        %v3872 = vadd.f32 0.0, %v3871
        %v3873 = vpop.f32.mrb[0].mxu0
        %3874 = vmatprep.mubr.f32.mxu0 0.0
        %3875 = vmatmul.mubr.f32.gmra.mrb[0].mxu0 %v3711
        %v3876 = vpop.f32.mrb[0].mxu0
        %v3877 = vadd.f32 0.0, %v3876
        %v3878 = vpop.f32.mrb[0].mxu0
        %3879 = vmatprep.mubr.f32.mxu0 0.0
        %3880 = vmatmul.mubr.f32.gmra.mrb[0].mxu0 %v3712
        %v3881 = vpop.f32.mrb[0].mxu0
        %v3882 = vadd.f32 0.0, %v3881
        %v3883 = vpop.f32.mrb[0].mxu0
        %3884 = vdwg.mxu0
        %v3885 = vadd.f32 %v3677, %v3797
        %v3886 = vadd.f32 %v3678, %v3802
        %v3887 = vadd.f32 %v3679, %v3807
        %v3888 = vadd.f32 %v3680, %v3812
        %v3889 = vadd.f32 %v3681, %v3817
        %v3890 = vadd.f32 %v3682, %v3822
        %v3891 = vadd.f32 %v3683, %v3827
        %v3892 = vadd.f32 %v3684, %v3832
        %v3893 = vadd.f32 %v3685, %v3837
        %v3894 = vadd.f32 %v3686, %v3842
        %v3895 = vadd.f32 %v3687, %v3847
        %v3896 = vadd.f32 %v3688, %v3852
        %v3897 = vadd.f32 %v3689, %v3857
        %v3898 = vadd.f32 %v3690, %v3862
        %v3899 = vadd.f32 %v3691, %v3867
        %v3900 = vadd.f32 %v3692, %v3872
        %v3901 = vadd.f32 %v3693, %v3877
        %v3902 = vadd.f32 %v3694, %v3882
        %v3903 = vld [vmem:[#allocation2 + $0x2c] sm:$0xff]
        %v3904 = vld [vmem:[#allocation2 + $0x34] sm:$0xff]
        %v3905 = vld [vmem:[#allocation2 + $0x3c] sm:$0xff]
        %v3906 = vld [vmem:[#allocation2 + $0x44] sm:$0xff]
        %v3907 = vld [vmem:[#allocation2 + $0x4c] sm:$0xff]
        %v3908 = vld [vmem:[#allocation2 + $0x54] sm:$0xff]
        %v3909 = vld [vmem:[#allocation2 + $0x5c] sm:$0xff]
        %v3910 = vld [vmem:[#allocation2 + $0x64] sm:$0xff]
        %v3911 = vld [vmem:[#allocation2 + $0x6c] sm:$0xff]
        %v3912 = vld [vmem:[#allocation2 + $0x74] sm:$0xff]
        %v3913 = vld [vmem:[#allocation2 + $0x7c] sm:$0xff]
        %v3914 = vld [vmem:[#allocation2 + $0x84] sm:$0xff]
        %v3915 = vld [vmem:[#allocation2 + $0x8c] sm:$0xff]
        %v3916 = vld [vmem:[#allocation2 + $0x94] sm:$0xff]
        %v3917 = vld [vmem:[#allocation2 + $0x9c] sm:$0xff]
        %v3918 = vld [vmem:[#allocation2 + $0xa4] sm:$0xff]
        %v3919 = vld [vmem:[#allocation2 + $0xac] sm:$0xff]
        %v3920 = vld [vmem:[#allocation2 + $0xb4] sm:$0xff]
        %s3921 = scalar_lea.vmem [#allocation7], 1792
        %v3922 = vld [vmem:[%s3921] sm:$0xff]
        %v3923 = vld [vmem:[%s3921 + $0x8] sm:$0xff]
        %v3924 = vld [vmem:[%s3921 + $0x10] sm:$0xff]
        %v3925 = vld [vmem:[%s3921 + $0x18] sm:$0xff]
        %v3926 = vld [vmem:[%s3921 + $0x20] sm:$0xff]
        %v3927 = vld [vmem:[%s3921 + $0x28] sm:$0xff]
        %v3928 = vld [vmem:[%s3921 + $0x30] sm:$0xff]
        %v3929 = vld [vmem:[%s3921 + $0x38] sm:$0xff]
        %v3930 = vld [vmem:[%s3921 + $0x40] sm:$0xff]
        %v3931 = vld [vmem:[%s3921 + $0x48] sm:$0xff]
        %v3932 = vld [vmem:[%s3921 + $0x50] sm:$0xff]
        %v3933 = vld [vmem:[%s3921 + $0x58] sm:$0xff]
        %v3934 = vld [vmem:[%s3921 + $0x60] sm:$0xff]
        %v3935 = vld [vmem:[%s3921 + $0x68] sm:$0xff]
        %v3936 = vld [vmem:[%s3921 + $0x70] sm:$0xff]
        %v3937 = vld [vmem:[%s3921 + $0x78] sm:$0xff]
        %3938 = vmatprep.subr.mxu0 0.0
        %3939 = vmatpush1.msra.mxu0 %v3922
        %3940 = vmatprep.subr.mxu0 0.0
        %3941 = vmatpush1.msra.mxu0 %v3923
        %3942 = vmatprep.subr.mxu0 0.0
        %3943 = vmatpush1.msra.mxu0 %v3924
        %3944 = vmatprep.subr.mxu0 0.0
        %3945 = vmatpush1.msra.mxu0 %v3925
        %3946 = vmatprep.subr.mxu0 0.0
        %3947 = vmatpush1.msra.mxu0 %v3926
        %3948 = vmatprep.subr.mxu0 0.0
        %3949 = vmatpush1.msra.mxu0 %v3927
        %3950 = vmatprep.subr.mxu0 0.0
        %3951 = vmatpush1.msra.mxu0 %v3928
        %3952 = vmatprep.subr.mxu0 0.0
        %3953 = vmatpush1.msra.mxu0 %v3929
        %3954 = vmatprep.subr.mxu0 0.0
        %3955 = vmatpush1.msra.mxu0 %v3930
        %3956 = vmatprep.subr.mxu0 0.0
        %3957 = vmatpush1.msra.mxu0 %v3931
        %3958 = vmatprep.subr.mxu0 0.0
        %3959 = vmatpush1.msra.mxu0 %v3932
        %3960 = vmatprep.subr.mxu0 0.0
        %3961 = vmatpush1.msra.mxu0 %v3933
        %3962 = vmatprep.subr.mxu0 0.0
        %3963 = vmatpush1.msra.mxu0 %v3934
        %3964 = vmatprep.subr.mxu0 0.0
        %3965 = vmatpush1.msra.mxu0 %v3935
        %3966 = vmatprep.subr.mxu0 0.0
        %3967 = vmatpush1.msra.mxu0 %v3936
        %3968 = vmatprep.subr.mxu0 0.0
        %3969 = vmatpush1.msra.mxu0 %v3937
        %3970 = vmatprep.subr.mxu0 0.0
        %3971 = vmatpush1.msra.mxu0 0.0
        %3972 = vmatprep.subr.mxu0 0.0
        %3973 = vmatpush1.msra.mxu0 0.0
        %3974 = vmatprep.subr.mxu0 0.0
        %3975 = vmatpush1.msra.mxu0 0.0
        %3976 = vmatprep.subr.mxu0 0.0
        %3977 = vmatpush1.msra.mxu0 0.0
        %3978 = vmatprep.subr.mxu0 0.0
        %3979 = vmatpush1.msra.mxu0 0.0
        %3980 = vmatprep.subr.mxu0 0.0
        %3981 = vmatpush1.msra.mxu0 0.0
        %3982 = vmatprep.subr.mxu0 0.0
        %3983 = vmatpush1.msra.mxu0 0.0
        %3984 = vmatprep.subr.mxu0 0.0
        %3985 = vmatpush1.msra.mxu0 0.0
        %3986 = vmatprep.subr.mxu0 0.0
        %3987 = vmatpush1.msra.mxu0 0.0
        %3988 = vmatprep.subr.mxu0 0.0
        %3989 = vmatpush1.msra.mxu0 0.0
        %3990 = vmatprep.subr.mxu0 0.0
        %3991 = vmatpush1.msra.mxu0 0.0
        %3992 = vmatprep.subr.mxu0 0.0
        %3993 = vmatpush1.msra.mxu0 0.0
        %3994 = vmatprep.subr.mxu0 0.0
        %3995 = vmatpush1.msra.mxu0 0.0
        %3996 = vmatprep.subr.mxu0 0.0
        %3997 = vmatpush1.msra.mxu0 0.0
        %3998 = vmatprep.subr.mxu0 0.0
        %3999 = vmatpush1.msra.mxu0 0.0
        %4000 = vmatprep.subr.mxu0 0.0
        %4001 = vmatpush1.msra.mxu0 0.0
        %4002 = vmatprep.mubr.f32.mxu0 0.0
        %4003 = vmatmul.mubr.f32.gmra.mrb[0].mxu0 %v3903
        %v4004 = vpop.f32.mrb[0].mxu0
        %v4005 = vadd.f32 0.0, %v4004
        %v4006 = vpop.f32.mrb[0].mxu0
        %4007 = vmatprep.mubr.f32.mxu0 0.0
        %4008 = vmatmul.mubr.f32.gmra.mrb[0].mxu0 %v3904
        %v4009 = vpop.f32.mrb[0].mxu0
        %v4010 = vadd.f32 0.0, %v4009
        %v4011 = vpop.f32.mrb[0].mxu0
        %4012 = vmatprep.mubr.f32.mxu0 0.0
        %4013 = vmatmul.mubr.f32.gmra.mrb[0].mxu0 %v3905
        %v4014 = vpop.f32.mrb[0].mxu0
        %v4015 = vadd.f32 0.0, %v4014
        %v4016 = vpop.f32.mrb[0].mxu0
        %4017 = vmatprep.mubr.f32.mxu0 0.0
        %4018 = vmatmul.mubr.f32.gmra.mrb[0].mxu0 %v3906
        %v4019 = vpop.f32.mrb[0].mxu0
        %v4020 = vadd.f32 0.0, %v4019
        %v4021 = vpop.f32.mrb[0].mxu0
        %4022 = vmatprep.mubr.f32.mxu0 0.0
        %4023 = vmatmul.mubr.f32.gmra.mrb[0].mxu0 %v3907
        %v4024 = vpop.f32.mrb[0].mxu0
        %v4025 = vadd.f32 0.0, %v4024
        %v4026 = vpop.f32.mrb[0].mxu0
        %4027 = vmatprep.mubr.f32.mxu0 0.0
        %4028 = vmatmul.mubr.f32.gmra.mrb[0].mxu0 %v3908
        %v4029 = vpop.f32.mrb[0].mxu0
        %v4030 = vadd.f32 0.0, %v4029
        %v4031 = vpop.f32.mrb[0].mxu0
        %4032 = vmatprep.mubr.f32.mxu0 0.0
        %4033 = vmatmul.mubr.f32.gmra.mrb[0].mxu0 %v3909
        %v4034 = vpop.f32.mrb[0].mxu0
        %v4035 = vadd.f32 0.0, %v4034
        %v4036 = vpop.f32.mrb[0].mxu0
        %4037 = vmatprep.mubr.f32.mxu0 0.0
        %4038 = vmatmul.mubr.f32.gmra.mrb[0].mxu0 %v3910
        %v4039 = vpop.f32.mrb[0].mxu0
        %v4040 = vadd.f32 0.0, %v4039
        %v4041 = vpop.f32.mrb[0].mxu0
        %4042 = vmatprep.mubr.f32.mxu0 0.0
        %4043 = vmatmul.mubr.f32.gmra.mrb[0].mxu0 %v3911
        %v4044 = vpop.f32.mrb[0].mxu0
        %v4045 = vadd.f32 0.0, %v4044
        %v4046 = vpop.f32.mrb[0].mxu0
        %4047 = vmatprep.mubr.f32.mxu0 0.0
        %4048 = vmatmul.mubr.f32.gmra.mrb[0].mxu0 %v3912
        %v4049 = vpop.f32.mrb[0].mxu0
        %v4050 = vadd.f32 0.0, %v4049
        %v4051 = vpop.f32.mrb[0].mxu0
        %4052 = vmatprep.mubr.f32.mxu0 0.0
        %4053 = vmatmul.mubr.f32.gmra.mrb[0].mxu0 %v3913
        %v4054 = vpop.f32.mrb[0].mxu0
        %v4055 = vadd.f32 0.0, %v4054
        %v4056 = vpop.f32.mrb[0].mxu0
        %4057 = vmatprep.mubr.f32.mxu0 0.0
        %4058 = vmatmul.mubr.f32.gmra.mrb[0].mxu0 %v3914
        %v4059 = vpop.f32.mrb[0].mxu0
        %v4060 = vadd.f32 0.0, %v4059
        %v4061 = vpop.f32.mrb[0].mxu0
        %4062 = vmatprep.mubr.f32.mxu0 0.0
        %4063 = vmatmul.mubr.f32.gmra.mrb[0].mxu0 %v3915
        %v4064 = vpop.f32.mrb[0].mxu0
        %v4065 = vadd.f32 0.0, %v4064
        %v4066 = vpop.f32.mrb[0].mxu0
        %4067 = vmatprep.mubr.f32.mxu0 0.0
        %4068 = vmatmul.mubr.f32.gmra.mrb[0].mxu0 %v3916
        %v4069 = vpop.f32.mrb[0].mxu0
        %v4070 = vadd.f32 0.0, %v4069
        %v4071 = vpop.f32.mrb[0].mxu0
        %4072 = vmatprep.mubr.f32.mxu0 0.0
        %4073 = vmatmul.mubr.f32.gmra.mrb[0].mxu0 %v3917
        %v4074 = vpop.f32.mrb[0].mxu0
        %v4075 = vadd.f32 0.0, %v4074
        %v4076 = vpop.f32.mrb[0].mxu0
        %4077 = vmatprep.mubr.f32.mxu0 0.0
        %4078 = vmatmul.mubr.f32.gmra.mrb[0].mxu0 %v3918
        %v4079 = vpop.f32.mrb[0].mxu0
        %v4080 = vadd.f32 0.0, %v4079
        %v4081 = vpop.f32.mrb[0].mxu0
        %4082 = vmatprep.mubr.f32.mxu0 0.0
        %4083 = vmatmul.mubr.f32.gmra.mrb[0].mxu0 %v3919
        %v4084 = vpop.f32.mrb[0].mxu0
        %v4085 = vadd.f32 0.0, %v4084
        %v4086 = vpop.f32.mrb[0].mxu0
        %4087 = vmatprep.mubr.f32.mxu0 0.0
        %4088 = vmatmul.mubr.f32.gmra.mrb[0].mxu0 %v3920
        %v4089 = vpop.f32.mrb[0].mxu0
        %v4090 = vadd.f32 0.0, %v4089
        %v4091 = vpop.f32.mrb[0].mxu0
        %4092 = vdwg.mxu0
        %v4093 = vadd.f32 %v3885, %v4005
        %v4094 = vadd.f32 %v3886, %v4010
        %v4095 = vadd.f32 %v3887, %v4015
        %v4096 = vadd.f32 %v3888, %v4020
        %v4097 = vadd.f32 %v3889, %v4025
        %v4098 = vadd.f32 %v3890, %v4030
        %v4099 = vadd.f32 %v3891, %v4035
        %v4100 = vadd.f32 %v3892, %v4040
        %v4101 = vadd.f32 %v3893, %v4045
        %v4102 = vadd.f32 %v3894, %v4050
        %v4103 = vadd.f32 %v3895, %v4055
        %v4104 = vadd.f32 %v3896, %v4060
        %v4105 = vadd.f32 %v3897, %v4065
        %v4106 = vadd.f32 %v3898, %v4070
        %v4107 = vadd.f32 %v3899, %v4075
        %v4108 = vadd.f32 %v3900, %v4080
        %v4109 = vadd.f32 %v3901, %v4085
        %v4110 = vadd.f32 %v3902, %v4090
        %v4111 = vld [vmem:[#allocation2 + $0x30] sm:$0xff]
        %v4112 = vld [vmem:[#allocation2 + $0x38] sm:$0xff]
        %v4113 = vld [vmem:[#allocation2 + $0x40] sm:$0xff]
        %v4114 = vld [vmem:[#allocation2 + $0x48] sm:$0xff]
        %v4115 = vld [vmem:[#allocation2 + $0x50] sm:$0xff]
        %v4116 = vld [vmem:[#allocation2 + $0x58] sm:$0xff]
        %v4117 = vld [vmem:[#allocation2 + $0x60] sm:$0xff]
        %v4118 = vld [vmem:[#allocation2 + $0x68] sm:$0xff]
        %v4119 = vld [vmem:[#allocation2 + $0x70] sm:$0xff]
        %v4120 = vld [vmem:[#allocation2 + $0x78] sm:$0xff]
        %v4121 = vld [vmem:[#allocation2 + $0x80] sm:$0xff]
        %v4122 = vld [vmem:[#allocation2 + $0x88] sm:$0xff]
        %v4123 = vld [vmem:[#allocation2 + $0x90] sm:$0xff]
        %v4124 = vld [vmem:[#allocation2 + $0x98] sm:$0xff]
        %v4125 = vld [vmem:[#allocation2 + $0xa0] sm:$0xff]
        %v4126 = vld [vmem:[#allocation2 + $0xa8] sm:$0xff]
        %v4127 = vld [vmem:[#allocation2 + $0xb0] sm:$0xff]
        %v4128 = vld [vmem:[#allocation2 + $0xb8] sm:$0xff]
        %s4129 = scalar_lea.vmem [#allocation7], 1920
        %v4130 = vld [vmem:[%s4129] sm:$0xff]
        %v4131 = vld [vmem:[%s4129 + $0x8] sm:$0xff]
        %v4132 = vld [vmem:[%s4129 + $0x10] sm:$0xff]
        %v4133 = vld [vmem:[%s4129 + $0x18] sm:$0xff]
        %v4134 = vld [vmem:[%s4129 + $0x20] sm:$0xff]
        %v4135 = vld [vmem:[%s4129 + $0x28] sm:$0xff]
        %v4136 = vld [vmem:[%s4129 + $0x30] sm:$0xff]
        %v4137 = vld [vmem:[%s4129 + $0x38] sm:$0xff]
        %v4138 = vld [vmem:[%s4129 + $0x40] sm:$0xff]
        %v4139 = vld [vmem:[%s4129 + $0x48] sm:$0xff]
        %v4140 = vld [vmem:[%s4129 + $0x50] sm:$0xff]
        %v4141 = vld [vmem:[%s4129 + $0x58] sm:$0xff]
        %v4142 = vld [vmem:[%s4129 + $0x60] sm:$0xff]
        %v4143 = vld [vmem:[%s4129 + $0x68] sm:$0xff]
        %v4144 = vld [vmem:[%s4129 + $0x70] sm:$0xff]
        %v4145 = vld [vmem:[%s4129 + $0x78] sm:$0xff]
        %4146 = vmatprep.subr.mxu0 0.0
        %4147 = vmatpush1.msra.mxu0 %v4130
        %4148 = vmatprep.subr.mxu0 0.0
        %4149 = vmatpush1.msra.mxu0 %v4131
        %4150 = vmatprep.subr.mxu0 0.0
        %4151 = vmatpush1.msra.mxu0 %v4132
        %4152 = vmatprep.subr.mxu0 0.0
        %4153 = vmatpush1.msra.mxu0 %v4133
        %4154 = vmatprep.subr.mxu0 0.0
        %4155 = vmatpush1.msra.mxu0 %v4134
        %4156 = vmatprep.subr.mxu0 0.0
        %4157 = vmatpush1.msra.mxu0 %v4135
        %4158 = vmatprep.subr.mxu0 0.0
        %4159 = vmatpush1.msra.mxu0 %v4136
        %4160 = vmatprep.subr.mxu0 0.0
        %4161 = vmatpush1.msra.mxu0 %v4137
        %4162 = vmatprep.subr.mxu0 0.0
        %4163 = vmatpush1.msra.mxu0 %v4138
        %4164 = vmatprep.subr.mxu0 0.0
        %4165 = vmatpush1.msra.mxu0 %v4139
        %4166 = vmatprep.subr.mxu0 0.0
        %4167 = vmatpush1.msra.mxu0 %v4140
        %4168 = vmatprep.subr.mxu0 0.0
        %4169 = vmatpush1.msra.mxu0 %v4141
        %4170 = vmatprep.subr.mxu0 0.0
        %4171 = vmatpush1.msra.mxu0 %v4142
        %4172 = vmatprep.subr.mxu0 0.0
        %4173 = vmatpush1.msra.mxu0 %v4143
        %4174 = vmatprep.subr.mxu0 0.0
        %4175 = vmatpush1.msra.mxu0 %v4144
        %4176 = vmatprep.subr.mxu0 0.0
        %4177 = vmatpush1.msra.mxu0 %v4145
        %4178 = vmatprep.subr.mxu0 0.0
        %4179 = vmatpush1.msra.mxu0 0.0
        %4180 = vmatprep.subr.mxu0 0.0
        %4181 = vmatpush1.msra.mxu0 0.0
        %4182 = vmatprep.subr.mxu0 0.0
        %4183 = vmatpush1.msra.mxu0 0.0
        %4184 = vmatprep.subr.mxu0 0.0
        %4185 = vmatpush1.msra.mxu0 0.0
        %4186 = vmatprep.subr.mxu0 0.0
        %4187 = vmatpush1.msra.mxu0 0.0
        %4188 = vmatprep.subr.mxu0 0.0
        %4189 = vmatpush1.msra.mxu0 0.0
        %4190 = vmatprep.subr.mxu0 0.0
        %4191 = vmatpush1.msra.mxu0 0.0
        %4192 = vmatprep.subr.mxu0 0.0
        %4193 = vmatpush1.msra.mxu0 0.0
        %4194 = vmatprep.subr.mxu0 0.0
        %4195 = vmatpush1.msra.mxu0 0.0
        %4196 = vmatprep.subr.mxu0 0.0
        %4197 = vmatpush1.msra.mxu0 0.0
        %4198 = vmatprep.subr.mxu0 0.0
        %4199 = vmatpush1.msra.mxu0 0.0
        %4200 = vmatprep.subr.mxu0 0.0
        %4201 = vmatpush1.msra.mxu0 0.0
        %4202 = vmatprep.subr.mxu0 0.0
        %4203 = vmatpush1.msra.mxu0 0.0
        %4204 = vmatprep.subr.mxu0 0.0
        %4205 = vmatpush1.msra.mxu0 0.0
        %4206 = vmatprep.subr.mxu0 0.0
        %4207 = vmatpush1.msra.mxu0 0.0
        %4208 = vmatprep.subr.mxu0 0.0
        %4209 = vmatpush1.msra.mxu0 0.0
        %4210 = vmatprep.mubr.f32.mxu0 0.0
        %4211 = vmatmul.mubr.f32.gmra.mrb[0].mxu0 %v4111
        %v4212 = vpop.f32.mrb[0].mxu0
        %v4213 = vadd.f32 0.0, %v4212
        %v4214 = vpop.f32.mrb[0].mxu0
        %4215 = vmatprep.mubr.f32.mxu0 0.0
        %4216 = vmatmul.mubr.f32.gmra.mrb[0].mxu0 %v4112
        %v4217 = vpop.f32.mrb[0].mxu0
        %v4218 = vadd.f32 0.0, %v4217
        %v4219 = vpop.f32.mrb[0].mxu0
        %4220 = vmatprep.mubr.f32.mxu0 0.0
        %4221 = vmatmul.mubr.f32.gmra.mrb[0].mxu0 %v4113
        %v4222 = vpop.f32.mrb[0].mxu0
        %v4223 = vadd.f32 0.0, %v4222
        %v4224 = vpop.f32.mrb[0].mxu0
        %4225 = vmatprep.mubr.f32.mxu0 0.0
        %4226 = vmatmul.mubr.f32.gmra.mrb[0].mxu0 %v4114
        %v4227 = vpop.f32.mrb[0].mxu0
        %v4228 = vadd.f32 0.0, %v4227
        %v4229 = vpop.f32.mrb[0].mxu0
        %4230 = vmatprep.mubr.f32.mxu0 0.0
        %4231 = vmatmul.mubr.f32.gmra.mrb[0].mxu0 %v4115
        %v4232 = vpop.f32.mrb[0].mxu0
        %v4233 = vadd.f32 0.0, %v4232
        %v4234 = vpop.f32.mrb[0].mxu0
        %4235 = vmatprep.mubr.f32.mxu0 0.0
        %4236 = vmatmul.mubr.f32.gmra.mrb[0].mxu0 %v4116
        %v4237 = vpop.f32.mrb[0].mxu0
        %v4238 = vadd.f32 0.0, %v4237
        %v4239 = vpop.f32.mrb[0].mxu0
        %4240 = vmatprep.mubr.f32.mxu0 0.0
        %4241 = vmatmul.mubr.f32.gmra.mrb[0].mxu0 %v4117
        %v4242 = vpop.f32.mrb[0].mxu0
        %v4243 = vadd.f32 0.0, %v4242
        %v4244 = vpop.f32.mrb[0].mxu0
        %4245 = vmatprep.mubr.f32.mxu0 0.0
        %4246 = vmatmul.mubr.f32.gmra.mrb[0].mxu0 %v4118
        %v4247 = vpop.f32.mrb[0].mxu0
        %v4248 = vadd.f32 0.0, %v4247
        %v4249 = vpop.f32.mrb[0].mxu0
        %4250 = vmatprep.mubr.f32.mxu0 0.0
        %4251 = vmatmul.mubr.f32.gmra.mrb[0].mxu0 %v4119
        %v4252 = vpop.f32.mrb[0].mxu0
        %v4253 = vadd.f32 0.0, %v4252
        %v4254 = vpop.f32.mrb[0].mxu0
        %4255 = vmatprep.mubr.f32.mxu0 0.0
        %4256 = vmatmul.mubr.f32.gmra.mrb[0].mxu0 %v4120
        %v4257 = vpop.f32.mrb[0].mxu0
        %v4258 = vadd.f32 0.0, %v4257
        %v4259 = vpop.f32.mrb[0].mxu0
        %4260 = vmatprep.mubr.f32.mxu0 0.0
        %4261 = vmatmul.mubr.f32.gmra.mrb[0].mxu0 %v4121
        %v4262 = vpop.f32.mrb[0].mxu0
        %v4263 = vadd.f32 0.0, %v4262
        %v4264 = vpop.f32.mrb[0].mxu0
        %4265 = vmatprep.mubr.f32.mxu0 0.0
        %4266 = vmatmul.mubr.f32.gmra.mrb[0].mxu0 %v4122
        %v4267 = vpop.f32.mrb[0].mxu0
        %v4268 = vadd.f32 0.0, %v4267
        %v4269 = vpop.f32.mrb[0].mxu0
        %4270 = vmatprep.mubr.f32.mxu0 0.0
        %4271 = vmatmul.mubr.f32.gmra.mrb[0].mxu0 %v4123
        %v4272 = vpop.f32.mrb[0].mxu0
        %v4273 = vadd.f32 0.0, %v4272
        %v4274 = vpop.f32.mrb[0].mxu0
        %4275 = vmatprep.mubr.f32.mxu0 0.0
        %4276 = vmatmul.mubr.f32.gmra.mrb[0].mxu0 %v4124
        %v4277 = vpop.f32.mrb[0].mxu0
        %v4278 = vadd.f32 0.0, %v4277
        %v4279 = vpop.f32.mrb[0].mxu0
        %4280 = vmatprep.mubr.f32.mxu0 0.0
        %4281 = vmatmul.mubr.f32.gmra.mrb[0].mxu0 %v4125
        %v4282 = vpop.f32.mrb[0].mxu0
        %v4283 = vadd.f32 0.0, %v4282
        %v4284 = vpop.f32.mrb[0].mxu0
        %4285 = vmatprep.mubr.f32.mxu0 0.0
        %4286 = vmatmul.mubr.f32.gmra.mrb[0].mxu0 %v4126
        %v4287 = vpop.f32.mrb[0].mxu0
        %v4288 = vadd.f32 0.0, %v4287
        %v4289 = vpop.f32.mrb[0].mxu0
        %4290 = vmatprep.mubr.f32.mxu0 0.0
        %4291 = vmatmul.mubr.f32.gmra.mrb[0].mxu0 %v4127
        %v4292 = vpop.f32.mrb[0].mxu0
        %v4293 = vadd.f32 0.0, %v4292
        %v4294 = vpop.f32.mrb[0].mxu0
        %4295 = vmatprep.mubr.f32.mxu0 0.0
        %4296 = vmatmul.mubr.f32.gmra.mrb[0].mxu0 %v4128
        %v4297 = vpop.f32.mrb[0].mxu0
        %v4298 = vadd.f32 0.0, %v4297
        %v4299 = vpop.f32.mrb[0].mxu0
        %4300 = vdwg.mxu0
        %v4301 = vadd.f32 %v4093, %v4213
        %v4302 = vadd.f32 %v4094, %v4218
        %v4303 = vadd.f32 %v4095, %v4223
        %v4304 = vadd.f32 %v4096, %v4228
        %v4305 = vadd.f32 %v4097, %v4233
        %v4306 = vadd.f32 %v4098, %v4238
        %v4307 = vadd.f32 %v4099, %v4243
        %v4308 = vadd.f32 %v4100, %v4248
        %v4309 = vadd.f32 %v4101, %v4253
        %v4310 = vadd.f32 %v4102, %v4258
        %v4311 = vadd.f32 %v4103, %v4263
        %v4312 = vadd.f32 %v4104, %v4268
        %v4313 = vadd.f32 %v4105, %v4273
        %v4314 = vadd.f32 %v4106, %v4278
        %v4315 = vadd.f32 %v4107, %v4283
        %v4316 = vadd.f32 %v4108, %v4288
        %v4317 = vadd.f32 %v4109, %v4293
        %v4318 = vadd.f32 %v4110, %v4298
        %v4319 = vld [vmem:[#allocation2 + $0x31] sm:$0xff]
        %v4320 = vld [vmem:[#allocation2 + $0x39] sm:$0xff]
        %v4321 = vld [vmem:[#allocation2 + $0x41] sm:$0xff]
        %v4322 = vld [vmem:[#allocation2 + $0x49] sm:$0xff]
        %v4323 = vld [vmem:[#allocation2 + $0x51] sm:$0xff]
        %v4324 = vld [vmem:[#allocation2 + $0x59] sm:$0xff]
        %v4325 = vld [vmem:[#allocation2 + $0x61] sm:$0xff]
        %v4326 = vld [vmem:[#allocation2 + $0x69] sm:$0xff]
        %v4327 = vld [vmem:[#allocation2 + $0x71] sm:$0xff]
        %v4328 = vld [vmem:[#allocation2 + $0x79] sm:$0xff]
        %v4329 = vld [vmem:[#allocation2 + $0x81] sm:$0xff]
        %v4330 = vld [vmem:[#allocation2 + $0x89] sm:$0xff]
        %v4331 = vld [vmem:[#allocation2 + $0x91] sm:$0xff]
        %v4332 = vld [vmem:[#allocation2 + $0x99] sm:$0xff]
        %v4333 = vld [vmem:[#allocation2 + $0xa1] sm:$0xff]
        %v4334 = vld [vmem:[#allocation2 + $0xa9] sm:$0xff]
        %v4335 = vld [vmem:[#allocation2 + $0xb1] sm:$0xff]
        %v4336 = vld [vmem:[#allocation2 + $0xb9] sm:$0xff]
        %s4337 = scalar_lea.vmem [#allocation7], 2048
        %v4338 = vld [vmem:[%s4337] sm:$0xff]
        %v4339 = vld [vmem:[%s4337 + $0x8] sm:$0xff]
        %v4340 = vld [vmem:[%s4337 + $0x10] sm:$0xff]
        %v4341 = vld [vmem:[%s4337 + $0x18] sm:$0xff]
        %v4342 = vld [vmem:[%s4337 + $0x20] sm:$0xff]
        %v4343 = vld [vmem:[%s4337 + $0x28] sm:$0xff]
        %v4344 = vld [vmem:[%s4337 + $0x30] sm:$0xff]
        %v4345 = vld [vmem:[%s4337 + $0x38] sm:$0xff]
        %v4346 = vld [vmem:[%s4337 + $0x40] sm:$0xff]
        %v4347 = vld [vmem:[%s4337 + $0x48] sm:$0xff]
        %v4348 = vld [vmem:[%s4337 + $0x50] sm:$0xff]
        %v4349 = vld [vmem:[%s4337 + $0x58] sm:$0xff]
        %v4350 = vld [vmem:[%s4337 + $0x60] sm:$0xff]
        %v4351 = vld [vmem:[%s4337 + $0x68] sm:$0xff]
        %v4352 = vld [vmem:[%s4337 + $0x70] sm:$0xff]
        %v4353 = vld [vmem:[%s4337 + $0x78] sm:$0xff]
        %4354 = vmatprep.subr.mxu0 0.0
        %4355 = vmatpush1.msra.mxu0 %v4338
        %4356 = vmatprep.subr.mxu0 0.0
        %4357 = vmatpush1.msra.mxu0 %v4339
        %4358 = vmatprep.subr.mxu0 0.0
        %4359 = vmatpush1.msra.mxu0 %v4340
        %4360 = vmatprep.subr.mxu0 0.0
        %4361 = vmatpush1.msra.mxu0 %v4341
        %4362 = vmatprep.subr.mxu0 0.0
        %4363 = vmatpush1.msra.mxu0 %v4342
        %4364 = vmatprep.subr.mxu0 0.0
        %4365 = vmatpush1.msra.mxu0 %v4343
        %4366 = vmatprep.subr.mxu0 0.0
        %4367 = vmatpush1.msra.mxu0 %v4344
        %4368 = vmatprep.subr.mxu0 0.0
        %4369 = vmatpush1.msra.mxu0 %v4345
        %4370 = vmatprep.subr.mxu0 0.0
        %4371 = vmatpush1.msra.mxu0 %v4346
        %4372 = vmatprep.subr.mxu0 0.0
        %4373 = vmatpush1.msra.mxu0 %v4347
        %4374 = vmatprep.subr.mxu0 0.0
        %4375 = vmatpush1.msra.mxu0 %v4348
        %4376 = vmatprep.subr.mxu0 0.0
        %4377 = vmatpush1.msra.mxu0 %v4349
        %4378 = vmatprep.subr.mxu0 0.0
        %4379 = vmatpush1.msra.mxu0 %v4350
        %4380 = vmatprep.subr.mxu0 0.0
        %4381 = vmatpush1.msra.mxu0 %v4351
        %4382 = vmatprep.subr.mxu0 0.0
        %4383 = vmatpush1.msra.mxu0 %v4352
        %4384 = vmatprep.subr.mxu0 0.0
        %4385 = vmatpush1.msra.mxu0 %v4353
        %4386 = vmatprep.subr.mxu0 0.0
        %4387 = vmatpush1.msra.mxu0 0.0
        %4388 = vmatprep.subr.mxu0 0.0
        %4389 = vmatpush1.msra.mxu0 0.0
        %4390 = vmatprep.subr.mxu0 0.0
        %4391 = vmatpush1.msra.mxu0 0.0
        %4392 = vmatprep.subr.mxu0 0.0
        %4393 = vmatpush1.msra.mxu0 0.0
        %4394 = vmatprep.subr.mxu0 0.0
        %4395 = vmatpush1.msra.mxu0 0.0
        %4396 = vmatprep.subr.mxu0 0.0
        %4397 = vmatpush1.msra.mxu0 0.0
        %4398 = vmatprep.subr.mxu0 0.0
        %4399 = vmatpush1.msra.mxu0 0.0
        %4400 = vmatprep.subr.mxu0 0.0
        %4401 = vmatpush1.msra.mxu0 0.0
        %4402 = vmatprep.subr.mxu0 0.0
        %4403 = vmatpush1.msra.mxu0 0.0
        %4404 = vmatprep.subr.mxu0 0.0
        %4405 = vmatpush1.msra.mxu0 0.0
        %4406 = vmatprep.subr.mxu0 0.0
        %4407 = vmatpush1.msra.mxu0 0.0
        %4408 = vmatprep.subr.mxu0 0.0
        %4409 = vmatpush1.msra.mxu0 0.0
        %4410 = vmatprep.subr.mxu0 0.0
        %4411 = vmatpush1.msra.mxu0 0.0
        %4412 = vmatprep.subr.mxu0 0.0
        %4413 = vmatpush1.msra.mxu0 0.0
        %4414 = vmatprep.subr.mxu0 0.0
        %4415 = vmatpush1.msra.mxu0 0.0
        %4416 = vmatprep.subr.mxu0 0.0
        %4417 = vmatpush1.msra.mxu0 0.0
        %4418 = vmatprep.mubr.f32.mxu0 0.0
        %4419 = vmatmul.mubr.f32.gmra.mrb[0].mxu0 %v4319
        %v4420 = vpop.f32.mrb[0].mxu0
        %v4421 = vadd.f32 0.0, %v4420
        %v4422 = vpop.f32.mrb[0].mxu0
        %4423 = vmatprep.mubr.f32.mxu0 0.0
        %4424 = vmatmul.mubr.f32.gmra.mrb[0].mxu0 %v4320
        %v4425 = vpop.f32.mrb[0].mxu0
        %v4426 = vadd.f32 0.0, %v4425
        %v4427 = vpop.f32.mrb[0].mxu0
        %4428 = vmatprep.mubr.f32.mxu0 0.0
        %4429 = vmatmul.mubr.f32.gmra.mrb[0].mxu0 %v4321
        %v4430 = vpop.f32.mrb[0].mxu0
        %v4431 = vadd.f32 0.0, %v4430
        %v4432 = vpop.f32.mrb[0].mxu0
        %4433 = vmatprep.mubr.f32.mxu0 0.0
        %4434 = vmatmul.mubr.f32.gmra.mrb[0].mxu0 %v4322
        %v4435 = vpop.f32.mrb[0].mxu0
        %v4436 = vadd.f32 0.0, %v4435
        %v4437 = vpop.f32.mrb[0].mxu0
        %4438 = vmatprep.mubr.f32.mxu0 0.0
        %4439 = vmatmul.mubr.f32.gmra.mrb[0].mxu0 %v4323
        %v4440 = vpop.f32.mrb[0].mxu0
        %v4441 = vadd.f32 0.0, %v4440
        %v4442 = vpop.f32.mrb[0].mxu0
        %4443 = vmatprep.mubr.f32.mxu0 0.0
        %4444 = vmatmul.mubr.f32.gmra.mrb[0].mxu0 %v4324
        %v4445 = vpop.f32.mrb[0].mxu0
        %v4446 = vadd.f32 0.0, %v4445
        %v4447 = vpop.f32.mrb[0].mxu0
        %4448 = vmatprep.mubr.f32.mxu0 0.0
        %4449 = vmatmul.mubr.f32.gmra.mrb[0].mxu0 %v4325
        %v4450 = vpop.f32.mrb[0].mxu0
        %v4451 = vadd.f32 0.0, %v4450
        %v4452 = vpop.f32.mrb[0].mxu0
        %4453 = vmatprep.mubr.f32.mxu0 0.0
        %4454 = vmatmul.mubr.f32.gmra.mrb[0].mxu0 %v4326
        %v4455 = vpop.f32.mrb[0].mxu0
        %v4456 = vadd.f32 0.0, %v4455
        %v4457 = vpop.f32.mrb[0].mxu0
        %4458 = vmatprep.mubr.f32.mxu0 0.0
        %4459 = vmatmul.mubr.f32.gmra.mrb[0].mxu0 %v4327
        %v4460 = vpop.f32.mrb[0].mxu0
        %v4461 = vadd.f32 0.0, %v4460
        %v4462 = vpop.f32.mrb[0].mxu0
        %4463 = vmatprep.mubr.f32.mxu0 0.0
        %4464 = vmatmul.mubr.f32.gmra.mrb[0].mxu0 %v4328
        %v4465 = vpop.f32.mrb[0].mxu0
        %v4466 = vadd.f32 0.0, %v4465
        %v4467 = vpop.f32.mrb[0].mxu0
        %4468 = vmatprep.mubr.f32.mxu0 0.0
        %4469 = vmatmul.mubr.f32.gmra.mrb[0].mxu0 %v4329
        %v4470 = vpop.f32.mrb[0].mxu0
        %v4471 = vadd.f32 0.0, %v4470
        %v4472 = vpop.f32.mrb[0].mxu0
        %4473 = vmatprep.mubr.f32.mxu0 0.0
        %4474 = vmatmul.mubr.f32.gmra.mrb[0].mxu0 %v4330
        %v4475 = vpop.f32.mrb[0].mxu0
        %v4476 = vadd.f32 0.0, %v4475
        %v4477 = vpop.f32.mrb[0].mxu0
        %4478 = vmatprep.mubr.f32.mxu0 0.0
        %4479 = vmatmul.mubr.f32.gmra.mrb[0].mxu0 %v4331
        %v4480 = vpop.f32.mrb[0].mxu0
        %v4481 = vadd.f32 0.0, %v4480
        %v4482 = vpop.f32.mrb[0].mxu0
        %4483 = vmatprep.mubr.f32.mxu0 0.0
        %4484 = vmatmul.mubr.f32.gmra.mrb[0].mxu0 %v4332
        %v4485 = vpop.f32.mrb[0].mxu0
        %v4486 = vadd.f32 0.0, %v4485
        %v4487 = vpop.f32.mrb[0].mxu0
        %4488 = vmatprep.mubr.f32.mxu0 0.0
        %4489 = vmatmul.mubr.f32.gmra.mrb[0].mxu0 %v4333
        %v4490 = vpop.f32.mrb[0].mxu0
        %v4491 = vadd.f32 0.0, %v4490
        %v4492 = vpop.f32.mrb[0].mxu0
        %4493 = vmatprep.mubr.f32.mxu0 0.0
        %4494 = vmatmul.mubr.f32.gmra.mrb[0].mxu0 %v4334
        %v4495 = vpop.f32.mrb[0].mxu0
        %v4496 = vadd.f32 0.0, %v4495
        %v4497 = vpop.f32.mrb[0].mxu0
        %4498 = vmatprep.mubr.f32.mxu0 0.0
        %4499 = vmatmul.mubr.f32.gmra.mrb[0].mxu0 %v4335
        %v4500 = vpop.f32.mrb[0].mxu0
        %v4501 = vadd.f32 0.0, %v4500
        %v4502 = vpop.f32.mrb[0].mxu0
        %4503 = vmatprep.mubr.f32.mxu0 0.0
        %4504 = vmatmul.mubr.f32.gmra.mrb[0].mxu0 %v4336
        %v4505 = vpop.f32.mrb[0].mxu0
        %v4506 = vadd.f32 0.0, %v4505
        %v4507 = vpop.f32.mrb[0].mxu0
        %4508 = vdwg.mxu0
        %v4509 = vadd.f32 %v4301, %v4421
        %v4510 = vadd.f32 %v4302, %v4426
        %v4511 = vadd.f32 %v4303, %v4431
        %v4512 = vadd.f32 %v4304, %v4436
        %v4513 = vadd.f32 %v4305, %v4441
        %v4514 = vadd.f32 %v4306, %v4446
        %v4515 = vadd.f32 %v4307, %v4451
        %v4516 = vadd.f32 %v4308, %v4456
        %v4517 = vadd.f32 %v4309, %v4461
        %v4518 = vadd.f32 %v4310, %v4466
        %v4519 = vadd.f32 %v4311, %v4471
        %v4520 = vadd.f32 %v4312, %v4476
        %v4521 = vadd.f32 %v4313, %v4481
        %v4522 = vadd.f32 %v4314, %v4486
        %v4523 = vadd.f32 %v4315, %v4491
        %v4524 = vadd.f32 %v4316, %v4496
        %v4525 = vadd.f32 %v4317, %v4501
        %v4526 = vadd.f32 %v4318, %v4506
        %v4527 = vld [vmem:[#allocation2 + $0x32] sm:$0xff]
        %v4528 = vld [vmem:[#allocation2 + $0x3a] sm:$0xff]
        %v4529 = vld [vmem:[#allocation2 + $0x42] sm:$0xff]
        %v4530 = vld [vmem:[#allocation2 + $0x4a] sm:$0xff]
        %v4531 = vld [vmem:[#allocation2 + $0x52] sm:$0xff]
        %v4532 = vld [vmem:[#allocation2 + $0x5a] sm:$0xff]
        %v4533 = vld [vmem:[#allocation2 + $0x62] sm:$0xff]
        %v4534 = vld [vmem:[#allocation2 + $0x6a] sm:$0xff]
        %v4535 = vld [vmem:[#allocation2 + $0x72] sm:$0xff]
        %v4536 = vld [vmem:[#allocation2 + $0x7a] sm:$0xff]
        %v4537 = vld [vmem:[#allocation2 + $0x82] sm:$0xff]
        %v4538 = vld [vmem:[#allocation2 + $0x8a] sm:$0xff]
        %v4539 = vld [vmem:[#allocation2 + $0x92] sm:$0xff]
        %v4540 = vld [vmem:[#allocation2 + $0x9a] sm:$0xff]
        %v4541 = vld [vmem:[#allocation2 + $0xa2] sm:$0xff]
        %v4542 = vld [vmem:[#allocation2 + $0xaa] sm:$0xff]
        %v4543 = vld [vmem:[#allocation2 + $0xb2] sm:$0xff]
        %v4544 = vld [vmem:[#allocation2 + $0xba] sm:$0xff]
        %s4545 = scalar_lea.vmem [#allocation7], 2176
        %v4546 = vld [vmem:[%s4545] sm:$0xff]
        %v4547 = vld [vmem:[%s4545 + $0x8] sm:$0xff]
        %v4548 = vld [vmem:[%s4545 + $0x10] sm:$0xff]
        %v4549 = vld [vmem:[%s4545 + $0x18] sm:$0xff]
        %v4550 = vld [vmem:[%s4545 + $0x20] sm:$0xff]
        %v4551 = vld [vmem:[%s4545 + $0x28] sm:$0xff]
        %v4552 = vld [vmem:[%s4545 + $0x30] sm:$0xff]
        %v4553 = vld [vmem:[%s4545 + $0x38] sm:$0xff]
        %v4554 = vld [vmem:[%s4545 + $0x40] sm:$0xff]
        %v4555 = vld [vmem:[%s4545 + $0x48] sm:$0xff]
        %v4556 = vld [vmem:[%s4545 + $0x50] sm:$0xff]
        %v4557 = vld [vmem:[%s4545 + $0x58] sm:$0xff]
        %v4558 = vld [vmem:[%s4545 + $0x60] sm:$0xff]
        %v4559 = vld [vmem:[%s4545 + $0x68] sm:$0xff]
        %v4560 = vld [vmem:[%s4545 + $0x70] sm:$0xff]
        %v4561 = vld [vmem:[%s4545 + $0x78] sm:$0xff]
        %4562 = vmatprep.subr.mxu0 0.0
        %4563 = vmatpush1.msra.mxu0 %v4546
        %4564 = vmatprep.subr.mxu0 0.0
        %4565 = vmatpush1.msra.mxu0 %v4547
        %4566 = vmatprep.subr.mxu0 0.0
        %4567 = vmatpush1.msra.mxu0 %v4548
        %4568 = vmatprep.subr.mxu0 0.0
        %4569 = vmatpush1.msra.mxu0 %v4549
        %4570 = vmatprep.subr.mxu0 0.0
        %4571 = vmatpush1.msra.mxu0 %v4550
        %4572 = vmatprep.subr.mxu0 0.0
        %4573 = vmatpush1.msra.mxu0 %v4551
        %4574 = vmatprep.subr.mxu0 0.0
        %4575 = vmatpush1.msra.mxu0 %v4552
        %4576 = vmatprep.subr.mxu0 0.0
        %4577 = vmatpush1.msra.mxu0 %v4553
        %4578 = vmatprep.subr.mxu0 0.0
        %4579 = vmatpush1.msra.mxu0 %v4554
        %4580 = vmatprep.subr.mxu0 0.0
        %4581 = vmatpush1.msra.mxu0 %v4555
        %4582 = vmatprep.subr.mxu0 0.0
        %4583 = vmatpush1.msra.mxu0 %v4556
        %4584 = vmatprep.subr.mxu0 0.0
        %4585 = vmatpush1.msra.mxu0 %v4557
        %4586 = vmatprep.subr.mxu0 0.0
        %4587 = vmatpush1.msra.mxu0 %v4558
        %4588 = vmatprep.subr.mxu0 0.0
        %4589 = vmatpush1.msra.mxu0 %v4559
        %4590 = vmatprep.subr.mxu0 0.0
        %4591 = vmatpush1.msra.mxu0 %v4560
        %4592 = vmatprep.subr.mxu0 0.0
        %4593 = vmatpush1.msra.mxu0 %v4561
        %4594 = vmatprep.subr.mxu0 0.0
        %4595 = vmatpush1.msra.mxu0 0.0
        %4596 = vmatprep.subr.mxu0 0.0
        %4597 = vmatpush1.msra.mxu0 0.0
        %4598 = vmatprep.subr.mxu0 0.0
        %4599 = vmatpush1.msra.mxu0 0.0
        %4600 = vmatprep.subr.mxu0 0.0
        %4601 = vmatpush1.msra.mxu0 0.0
        %4602 = vmatprep.subr.mxu0 0.0
        %4603 = vmatpush1.msra.mxu0 0.0
        %4604 = vmatprep.subr.mxu0 0.0
        %4605 = vmatpush1.msra.mxu0 0.0
        %4606 = vmatprep.subr.mxu0 0.0
        %4607 = vmatpush1.msra.mxu0 0.0
        %4608 = vmatprep.subr.mxu0 0.0
        %4609 = vmatpush1.msra.mxu0 0.0
        %4610 = vmatprep.subr.mxu0 0.0
        %4611 = vmatpush1.msra.mxu0 0.0
        %4612 = vmatprep.subr.mxu0 0.0
        %4613 = vmatpush1.msra.mxu0 0.0
        %4614 = vmatprep.subr.mxu0 0.0
        %4615 = vmatpush1.msra.mxu0 0.0
        %4616 = vmatprep.subr.mxu0 0.0
        %4617 = vmatpush1.msra.mxu0 0.0
        %4618 = vmatprep.subr.mxu0 0.0
        %4619 = vmatpush1.msra.mxu0 0.0
        %4620 = vmatprep.subr.mxu0 0.0
        %4621 = vmatpush1.msra.mxu0 0.0
        %4622 = vmatprep.subr.mxu0 0.0
        %4623 = vmatpush1.msra.mxu0 0.0
        %4624 = vmatprep.subr.mxu0 0.0
        %4625 = vmatpush1.msra.mxu0 0.0
        %4626 = vmatprep.mubr.f32.mxu0 0.0
        %4627 = vmatmul.mubr.f32.gmra.mrb[0].mxu0 %v4527
        %v4628 = vpop.f32.mrb[0].mxu0
        %v4629 = vadd.f32 0.0, %v4628
        %v4630 = vpop.f32.mrb[0].mxu0
        %4631 = vmatprep.mubr.f32.mxu0 0.0
        %4632 = vmatmul.mubr.f32.gmra.mrb[0].mxu0 %v4528
        %v4633 = vpop.f32.mrb[0].mxu0
        %v4634 = vadd.f32 0.0, %v4633
        %v4635 = vpop.f32.mrb[0].mxu0
        %4636 = vmatprep.mubr.f32.mxu0 0.0
        %4637 = vmatmul.mubr.f32.gmra.mrb[0].mxu0 %v4529
        %v4638 = vpop.f32.mrb[0].mxu0
        %v4639 = vadd.f32 0.0, %v4638
        %v4640 = vpop.f32.mrb[0].mxu0
        %4641 = vmatprep.mubr.f32.mxu0 0.0
        %4642 = vmatmul.mubr.f32.gmra.mrb[0].mxu0 %v4530
        %v4643 = vpop.f32.mrb[0].mxu0
        %v4644 = vadd.f32 0.0, %v4643
        %v4645 = vpop.f32.mrb[0].mxu0
        %4646 = vmatprep.mubr.f32.mxu0 0.0
        %4647 = vmatmul.mubr.f32.gmra.mrb[0].mxu0 %v4531
        %v4648 = vpop.f32.mrb[0].mxu0
        %v4649 = vadd.f32 0.0, %v4648
        %v4650 = vpop.f32.mrb[0].mxu0
        %4651 = vmatprep.mubr.f32.mxu0 0.0
        %4652 = vmatmul.mubr.f32.gmra.mrb[0].mxu0 %v4532
        %v4653 = vpop.f32.mrb[0].mxu0
        %v4654 = vadd.f32 0.0, %v4653
        %v4655 = vpop.f32.mrb[0].mxu0
        %4656 = vmatprep.mubr.f32.mxu0 0.0
        %4657 = vmatmul.mubr.f32.gmra.mrb[0].mxu0 %v4533
        %v4658 = vpop.f32.mrb[0].mxu0
        %v4659 = vadd.f32 0.0, %v4658
        %v4660 = vpop.f32.mrb[0].mxu0
        %4661 = vmatprep.mubr.f32.mxu0 0.0
        %4662 = vmatmul.mubr.f32.gmra.mrb[0].mxu0 %v4534
        %v4663 = vpop.f32.mrb[0].mxu0
        %v4664 = vadd.f32 0.0, %v4663
        %v4665 = vpop.f32.mrb[0].mxu0
        %4666 = vmatprep.mubr.f32.mxu0 0.0
        %4667 = vmatmul.mubr.f32.gmra.mrb[0].mxu0 %v4535
        %v4668 = vpop.f32.mrb[0].mxu0
        %v4669 = vadd.f32 0.0, %v4668
        %v4670 = vpop.f32.mrb[0].mxu0
        %4671 = vmatprep.mubr.f32.mxu0 0.0
        %4672 = vmatmul.mubr.f32.gmra.mrb[0].mxu0 %v4536
        %v4673 = vpop.f32.mrb[0].mxu0
        %v4674 = vadd.f32 0.0, %v4673
        %v4675 = vpop.f32.mrb[0].mxu0
        %4676 = vmatprep.mubr.f32.mxu0 0.0
        %4677 = vmatmul.mubr.f32.gmra.mrb[0].mxu0 %v4537
        %v4678 = vpop.f32.mrb[0].mxu0
        %v4679 = vadd.f32 0.0, %v4678
        %v4680 = vpop.f32.mrb[0].mxu0
        %4681 = vmatprep.mubr.f32.mxu0 0.0
        %4682 = vmatmul.mubr.f32.gmra.mrb[0].mxu0 %v4538
        %v4683 = vpop.f32.mrb[0].mxu0
        %v4684 = vadd.f32 0.0, %v4683
        %v4685 = vpop.f32.mrb[0].mxu0
        %4686 = vmatprep.mubr.f32.mxu0 0.0
        %4687 = vmatmul.mubr.f32.gmra.mrb[0].mxu0 %v4539
        %v4688 = vpop.f32.mrb[0].mxu0
        %v4689 = vadd.f32 0.0, %v4688
        %v4690 = vpop.f32.mrb[0].mxu0
        %4691 = vmatprep.mubr.f32.mxu0 0.0
        %4692 = vmatmul.mubr.f32.gmra.mrb[0].mxu0 %v4540
        %v4693 = vpop.f32.mrb[0].mxu0
        %v4694 = vadd.f32 0.0, %v4693
        %v4695 = vpop.f32.mrb[0].mxu0
        %4696 = vmatprep.mubr.f32.mxu0 0.0
        %4697 = vmatmul.mubr.f32.gmra.mrb[0].mxu0 %v4541
        %v4698 = vpop.f32.mrb[0].mxu0
        %v4699 = vadd.f32 0.0, %v4698
        %v4700 = vpop.f32.mrb[0].mxu0
        %4701 = vmatprep.mubr.f32.mxu0 0.0
        %4702 = vmatmul.mubr.f32.gmra.mrb[0].mxu0 %v4542
        %v4703 = vpop.f32.mrb[0].mxu0
        %v4704 = vadd.f32 0.0, %v4703
        %v4705 = vpop.f32.mrb[0].mxu0
        %4706 = vmatprep.mubr.f32.mxu0 0.0
        %4707 = vmatmul.mubr.f32.gmra.mrb[0].mxu0 %v4543
        %v4708 = vpop.f32.mrb[0].mxu0
        %v4709 = vadd.f32 0.0, %v4708
        %v4710 = vpop.f32.mrb[0].mxu0
        %4711 = vmatprep.mubr.f32.mxu0 0.0
        %4712 = vmatmul.mubr.f32.gmra.mrb[0].mxu0 %v4544
        %v4713 = vpop.f32.mrb[0].mxu0
        %v4714 = vadd.f32 0.0, %v4713
        %v4715 = vpop.f32.mrb[0].mxu0
        %4716 = vdwg.mxu0
        %v4717 = vadd.f32 %v4509, %v4629
        %v4718 = vadd.f32 %v4510, %v4634
        %v4719 = vadd.f32 %v4511, %v4639
        %v4720 = vadd.f32 %v4512, %v4644
        %v4721 = vadd.f32 %v4513, %v4649
        %v4722 = vadd.f32 %v4514, %v4654
        %v4723 = vadd.f32 %v4515, %v4659
        %v4724 = vadd.f32 %v4516, %v4664
        %v4725 = vadd.f32 %v4517, %v4669
        %v4726 = vadd.f32 %v4518, %v4674
        %v4727 = vadd.f32 %v4519, %v4679
        %v4728 = vadd.f32 %v4520, %v4684
        %v4729 = vadd.f32 %v4521, %v4689
        %v4730 = vadd.f32 %v4522, %v4694
        %v4731 = vadd.f32 %v4523, %v4699
        %v4732 = vadd.f32 %v4524, %v4704
        %v4733 = vadd.f32 %v4525, %v4709
        %v4734 = vadd.f32 %v4526, %v4714
        %v4735 = vld [vmem:[#allocation2 + $0x48] sm:$0xff]
        %v4736 = vld [vmem:[#allocation2 + $0x50] sm:$0xff]
        %v4737 = vld [vmem:[#allocation2 + $0x58] sm:$0xff]
        %v4738 = vld [vmem:[#allocation2 + $0x60] sm:$0xff]
        %v4739 = vld [vmem:[#allocation2 + $0x68] sm:$0xff]
        %v4740 = vld [vmem:[#allocation2 + $0x70] sm:$0xff]
        %v4741 = vld [vmem:[#allocation2 + $0x78] sm:$0xff]
        %v4742 = vld [vmem:[#allocation2 + $0x80] sm:$0xff]
        %v4743 = vld [vmem:[#allocation2 + $0x88] sm:$0xff]
        %v4744 = vld [vmem:[#allocation2 + $0x90] sm:$0xff]
        %v4745 = vld [vmem:[#allocation2 + $0x98] sm:$0xff]
        %v4746 = vld [vmem:[#allocation2 + $0xa0] sm:$0xff]
        %v4747 = vld [vmem:[#allocation2 + $0xa8] sm:$0xff]
        %v4748 = vld [vmem:[#allocation2 + $0xb0] sm:$0xff]
        %v4749 = vld [vmem:[#allocation2 + $0xb8] sm:$0xff]
        %v4750 = vld [vmem:[#allocation2 + $0xc0] sm:$0xff]
        %v4751 = vld [vmem:[#allocation2 + $0xc8] sm:$0xff]
        %v4752 = vld [vmem:[#allocation2 + $0xd0] sm:$0xff]
        %s4753 = scalar_lea.vmem [#allocation7], 2304
        %v4754 = vld [vmem:[%s4753] sm:$0xff]
        %v4755 = vld [vmem:[%s4753 + $0x8] sm:$0xff]
        %v4756 = vld [vmem:[%s4753 + $0x10] sm:$0xff]
        %v4757 = vld [vmem:[%s4753 + $0x18] sm:$0xff]
        %v4758 = vld [vmem:[%s4753 + $0x20] sm:$0xff]
        %v4759 = vld [vmem:[%s4753 + $0x28] sm:$0xff]
        %v4760 = vld [vmem:[%s4753 + $0x30] sm:$0xff]
        %v4761 = vld [vmem:[%s4753 + $0x38] sm:$0xff]
        %v4762 = vld [vmem:[%s4753 + $0x40] sm:$0xff]
        %v4763 = vld [vmem:[%s4753 + $0x48] sm:$0xff]
        %v4764 = vld [vmem:[%s4753 + $0x50] sm:$0xff]
        %v4765 = vld [vmem:[%s4753 + $0x58] sm:$0xff]
        %v4766 = vld [vmem:[%s4753 + $0x60] sm:$0xff]
        %v4767 = vld [vmem:[%s4753 + $0x68] sm:$0xff]
        %v4768 = vld [vmem:[%s4753 + $0x70] sm:$0xff]
        %v4769 = vld [vmem:[%s4753 + $0x78] sm:$0xff]
        %4770 = vmatprep.subr.mxu0 0.0
        %4771 = vmatpush1.msra.mxu0 %v4754
        %4772 = vmatprep.subr.mxu0 0.0
        %4773 = vmatpush1.msra.mxu0 %v4755
        %4774 = vmatprep.subr.mxu0 0.0
        %4775 = vmatpush1.msra.mxu0 %v4756
        %4776 = vmatprep.subr.mxu0 0.0
        %4777 = vmatpush1.msra.mxu0 %v4757
        %4778 = vmatprep.subr.mxu0 0.0
        %4779 = vmatpush1.msra.mxu0 %v4758
        %4780 = vmatprep.subr.mxu0 0.0
        %4781 = vmatpush1.msra.mxu0 %v4759
        %4782 = vmatprep.subr.mxu0 0.0
        %4783 = vmatpush1.msra.mxu0 %v4760
        %4784 = vmatprep.subr.mxu0 0.0
        %4785 = vmatpush1.msra.mxu0 %v4761
        %4786 = vmatprep.subr.mxu0 0.0
        %4787 = vmatpush1.msra.mxu0 %v4762
        %4788 = vmatprep.subr.mxu0 0.0
        %4789 = vmatpush1.msra.mxu0 %v4763
        %4790 = vmatprep.subr.mxu0 0.0
        %4791 = vmatpush1.msra.mxu0 %v4764
        %4792 = vmatprep.subr.mxu0 0.0
        %4793 = vmatpush1.msra.mxu0 %v4765
        %4794 = vmatprep.subr.mxu0 0.0
        %4795 = vmatpush1.msra.mxu0 %v4766
        %4796 = vmatprep.subr.mxu0 0.0
        %4797 = vmatpush1.msra.mxu0 %v4767
        %4798 = vmatprep.subr.mxu0 0.0
        %4799 = vmatpush1.msra.mxu0 %v4768
        %4800 = vmatprep.subr.mxu0 0.0
        %4801 = vmatpush1.msra.mxu0 %v4769
        %4802 = vmatprep.subr.mxu0 0.0
        %4803 = vmatpush1.msra.mxu0 0.0
        %4804 = vmatprep.subr.mxu0 0.0
        %4805 = vmatpush1.msra.mxu0 0.0
        %4806 = vmatprep.subr.mxu0 0.0
        %4807 = vmatpush1.msra.mxu0 0.0
        %4808 = vmatprep.subr.mxu0 0.0
        %4809 = vmatpush1.msra.mxu0 0.0
        %4810 = vmatprep.subr.mxu0 0.0
        %4811 = vmatpush1.msra.mxu0 0.0
        %4812 = vmatprep.subr.mxu0 0.0
        %4813 = vmatpush1.msra.mxu0 0.0
        %4814 = vmatprep.subr.mxu0 0.0
        %4815 = vmatpush1.msra.mxu0 0.0
        %4816 = vmatprep.subr.mxu0 0.0
        %4817 = vmatpush1.msra.mxu0 0.0
        %4818 = vmatprep.subr.mxu0 0.0
        %4819 = vmatpush1.msra.mxu0 0.0
        %4820 = vmatprep.subr.mxu0 0.0
        %4821 = vmatpush1.msra.mxu0 0.0
        %4822 = vmatprep.subr.mxu0 0.0
        %4823 = vmatpush1.msra.mxu0 0.0
        %4824 = vmatprep.subr.mxu0 0.0
        %4825 = vmatpush1.msra.mxu0 0.0
        %4826 = vmatprep.subr.mxu0 0.0
        %4827 = vmatpush1.msra.mxu0 0.0
        %4828 = vmatprep.subr.mxu0 0.0
        %4829 = vmatpush1.msra.mxu0 0.0
        %4830 = vmatprep.subr.mxu0 0.0
        %4831 = vmatpush1.msra.mxu0 0.0
        %4832 = vmatprep.subr.mxu0 0.0
        %4833 = vmatpush1.msra.mxu0 0.0
        %4834 = vmatprep.mubr.f32.mxu0 0.0
        %4835 = vmatmul.mubr.f32.gmra.mrb[0].mxu0 %v4735
        %v4836 = vpop.f32.mrb[0].mxu0
        %v4837 = vadd.f32 0.0, %v4836
        %v4838 = vpop.f32.mrb[0].mxu0
        %4839 = vmatprep.mubr.f32.mxu0 0.0
        %4840 = vmatmul.mubr.f32.gmra.mrb[0].mxu0 %v4736
        %v4841 = vpop.f32.mrb[0].mxu0
        %v4842 = vadd.f32 0.0, %v4841
        %v4843 = vpop.f32.mrb[0].mxu0
        %4844 = vmatprep.mubr.f32.mxu0 0.0
        %4845 = vmatmul.mubr.f32.gmra.mrb[0].mxu0 %v4737
        %v4846 = vpop.f32.mrb[0].mxu0
        %v4847 = vadd.f32 0.0, %v4846
        %v4848 = vpop.f32.mrb[0].mxu0
        %4849 = vmatprep.mubr.f32.mxu0 0.0
        %4850 = vmatmul.mubr.f32.gmra.mrb[0].mxu0 %v4738
        %v4851 = vpop.f32.mrb[0].mxu0
        %v4852 = vadd.f32 0.0, %v4851
        %v4853 = vpop.f32.mrb[0].mxu0
        %4854 = vmatprep.mubr.f32.mxu0 0.0
        %4855 = vmatmul.mubr.f32.gmra.mrb[0].mxu0 %v4739
        %v4856 = vpop.f32.mrb[0].mxu0
        %v4857 = vadd.f32 0.0, %v4856
        %v4858 = vpop.f32.mrb[0].mxu0
        %4859 = vmatprep.mubr.f32.mxu0 0.0
        %4860 = vmatmul.mubr.f32.gmra.mrb[0].mxu0 %v4740
        %v4861 = vpop.f32.mrb[0].mxu0
        %v4862 = vadd.f32 0.0, %v4861
        %v4863 = vpop.f32.mrb[0].mxu0
        %4864 = vmatprep.mubr.f32.mxu0 0.0
        %4865 = vmatmul.mubr.f32.gmra.mrb[0].mxu0 %v4741
        %v4866 = vpop.f32.mrb[0].mxu0
        %v4867 = vadd.f32 0.0, %v4866
        %v4868 = vpop.f32.mrb[0].mxu0
        %4869 = vmatprep.mubr.f32.mxu0 0.0
        %4870 = vmatmul.mubr.f32.gmra.mrb[0].mxu0 %v4742
        %v4871 = vpop.f32.mrb[0].mxu0
        %v4872 = vadd.f32 0.0, %v4871
        %v4873 = vpop.f32.mrb[0].mxu0
        %4874 = vmatprep.mubr.f32.mxu0 0.0
        %4875 = vmatmul.mubr.f32.gmra.mrb[0].mxu0 %v4743
        %v4876 = vpop.f32.mrb[0].mxu0
        %v4877 = vadd.f32 0.0, %v4876
        %v4878 = vpop.f32.mrb[0].mxu0
        %4879 = vmatprep.mubr.f32.mxu0 0.0
        %4880 = vmatmul.mubr.f32.gmra.mrb[0].mxu0 %v4744
        %v4881 = vpop.f32.mrb[0].mxu0
        %v4882 = vadd.f32 0.0, %v4881
        %v4883 = vpop.f32.mrb[0].mxu0
        %4884 = vmatprep.mubr.f32.mxu0 0.0
        %4885 = vmatmul.mubr.f32.gmra.mrb[0].mxu0 %v4745
        %v4886 = vpop.f32.mrb[0].mxu0
        %v4887 = vadd.f32 0.0, %v4886
        %v4888 = vpop.f32.mrb[0].mxu0
        %4889 = vmatprep.mubr.f32.mxu0 0.0
        %4890 = vmatmul.mubr.f32.gmra.mrb[0].mxu0 %v4746
        %v4891 = vpop.f32.mrb[0].mxu0
        %v4892 = vadd.f32 0.0, %v4891
        %v4893 = vpop.f32.mrb[0].mxu0
        %4894 = vmatprep.mubr.f32.mxu0 0.0
        %4895 = vmatmul.mubr.f32.gmra.mrb[0].mxu0 %v4747
        %v4896 = vpop.f32.mrb[0].mxu0
        %v4897 = vadd.f32 0.0, %v4896
        %v4898 = vpop.f32.mrb[0].mxu0
        %4899 = vmatprep.mubr.f32.mxu0 0.0
        %4900 = vmatmul.mubr.f32.gmra.mrb[0].mxu0 %v4748
        %v4901 = vpop.f32.mrb[0].mxu0
        %v4902 = vadd.f32 0.0, %v4901
        %v4903 = vpop.f32.mrb[0].mxu0
        %4904 = vmatprep.mubr.f32.mxu0 0.0
        %4905 = vmatmul.mubr.f32.gmra.mrb[0].mxu0 %v4749
        %v4906 = vpop.f32.mrb[0].mxu0
        %v4907 = vadd.f32 0.0, %v4906
        %v4908 = vpop.f32.mrb[0].mxu0
        %4909 = vmatprep.mubr.f32.mxu0 0.0
        %4910 = vmatmul.mubr.f32.gmra.mrb[0].mxu0 %v4750
        %v4911 = vpop.f32.mrb[0].mxu0
        %v4912 = vadd.f32 0.0, %v4911
        %v4913 = vpop.f32.mrb[0].mxu0
        %4914 = vmatprep.mubr.f32.mxu0 0.0
        %4915 = vmatmul.mubr.f32.gmra.mrb[0].mxu0 %v4751
        %v4916 = vpop.f32.mrb[0].mxu0
        %v4917 = vadd.f32 0.0, %v4916
        %v4918 = vpop.f32.mrb[0].mxu0
        %4919 = vmatprep.mubr.f32.mxu0 0.0
        %4920 = vmatmul.mubr.f32.gmra.mrb[0].mxu0 %v4752
        %v4921 = vpop.f32.mrb[0].mxu0
        %v4922 = vadd.f32 0.0, %v4921
        %v4923 = vpop.f32.mrb[0].mxu0
        %4924 = vdwg.mxu0
        %v4925 = vadd.f32 %v4717, %v4837
        %v4926 = vadd.f32 %v4718, %v4842
        %v4927 = vadd.f32 %v4719, %v4847
        %v4928 = vadd.f32 %v4720, %v4852
        %v4929 = vadd.f32 %v4721, %v4857
        %v4930 = vadd.f32 %v4722, %v4862
        %v4931 = vadd.f32 %v4723, %v4867
        %v4932 = vadd.f32 %v4724, %v4872
        %v4933 = vadd.f32 %v4725, %v4877
        %v4934 = vadd.f32 %v4726, %v4882
        %v4935 = vadd.f32 %v4727, %v4887
        %v4936 = vadd.f32 %v4728, %v4892
        %v4937 = vadd.f32 %v4729, %v4897
        %v4938 = vadd.f32 %v4730, %v4902
        %v4939 = vadd.f32 %v4731, %v4907
        %v4940 = vadd.f32 %v4732, %v4912
        %v4941 = vadd.f32 %v4733, %v4917
        %v4942 = vadd.f32 %v4734, %v4922
        %v4943 = vld [vmem:[#allocation2 + $0x49] sm:$0xff]
        %v4944 = vld [vmem:[#allocation2 + $0x51] sm:$0xff]
        %v4945 = vld [vmem:[#allocation2 + $0x59] sm:$0xff]
        %v4946 = vld [vmem:[#allocation2 + $0x61] sm:$0xff]
        %v4947 = vld [vmem:[#allocation2 + $0x69] sm:$0xff]
        %v4948 = vld [vmem:[#allocation2 + $0x71] sm:$0xff]
        %v4949 = vld [vmem:[#allocation2 + $0x79] sm:$0xff]
        %v4950 = vld [vmem:[#allocation2 + $0x81] sm:$0xff]
        %v4951 = vld [vmem:[#allocation2 + $0x89] sm:$0xff]
        %v4952 = vld [vmem:[#allocation2 + $0x91] sm:$0xff]
        %v4953 = vld [vmem:[#allocation2 + $0x99] sm:$0xff]
        %v4954 = vld [vmem:[#allocation2 + $0xa1] sm:$0xff]
        %v4955 = vld [vmem:[#allocation2 + $0xa9] sm:$0xff]
        %v4956 = vld [vmem:[#allocation2 + $0xb1] sm:$0xff]
        %v4957 = vld [vmem:[#allocation2 + $0xb9] sm:$0xff]
        %v4958 = vld [vmem:[#allocation2 + $0xc1] sm:$0xff]
        %v4959 = vld [vmem:[#allocation2 + $0xc9] sm:$0xff]
        %v4960 = vld [vmem:[#allocation2 + $0xd1] sm:$0xff]
        %s4961 = scalar_lea.vmem [#allocation7], 2432
        %v4962 = vld [vmem:[%s4961] sm:$0xff]
        %v4963 = vld [vmem:[%s4961 + $0x8] sm:$0xff]
        %v4964 = vld [vmem:[%s4961 + $0x10] sm:$0xff]
        %v4965 = vld [vmem:[%s4961 + $0x18] sm:$0xff]
        %v4966 = vld [vmem:[%s4961 + $0x20] sm:$0xff]
        %v4967 = vld [vmem:[%s4961 + $0x28] sm:$0xff]
        %v4968 = vld [vmem:[%s4961 + $0x30] sm:$0xff]
        %v4969 = vld [vmem:[%s4961 + $0x38] sm:$0xff]
        %v4970 = vld [vmem:[%s4961 + $0x40] sm:$0xff]
        %v4971 = vld [vmem:[%s4961 + $0x48] sm:$0xff]
        %v4972 = vld [vmem:[%s4961 + $0x50] sm:$0xff]
        %v4973 = vld [vmem:[%s4961 + $0x58] sm:$0xff]
        %v4974 = vld [vmem:[%s4961 + $0x60] sm:$0xff]
        %v4975 = vld [vmem:[%s4961 + $0x68] sm:$0xff]
        %v4976 = vld [vmem:[%s4961 + $0x70] sm:$0xff]
        %v4977 = vld [vmem:[%s4961 + $0x78] sm:$0xff]
        %4978 = vmatprep.subr.mxu0 0.0
        %4979 = vmatpush1.msra.mxu0 %v4962
        %4980 = vmatprep.subr.mxu0 0.0
        %4981 = vmatpush1.msra.mxu0 %v4963
        %4982 = vmatprep.subr.mxu0 0.0
        %4983 = vmatpush1.msra.mxu0 %v4964
        %4984 = vmatprep.subr.mxu0 0.0
        %4985 = vmatpush1.msra.mxu0 %v4965
        %4986 = vmatprep.subr.mxu0 0.0
        %4987 = vmatpush1.msra.mxu0 %v4966
        %4988 = vmatprep.subr.mxu0 0.0
        %4989 = vmatpush1.msra.mxu0 %v4967
        %4990 = vmatprep.subr.mxu0 0.0
        %4991 = vmatpush1.msra.mxu0 %v4968
        %4992 = vmatprep.subr.mxu0 0.0
        %4993 = vmatpush1.msra.mxu0 %v4969
        %4994 = vmatprep.subr.mxu0 0.0
        %4995 = vmatpush1.msra.mxu0 %v4970
        %4996 = vmatprep.subr.mxu0 0.0
        %4997 = vmatpush1.msra.mxu0 %v4971
        %4998 = vmatprep.subr.mxu0 0.0
        %4999 = vmatpush1.msra.mxu0 %v4972
        %5000 = vmatprep.subr.mxu0 0.0
        %5001 = vmatpush1.msra.mxu0 %v4973
        %5002 = vmatprep.subr.mxu0 0.0
        %5003 = vmatpush1.msra.mxu0 %v4974
        %5004 = vmatprep.subr.mxu0 0.0
        %5005 = vmatpush1.msra.mxu0 %v4975
        %5006 = vmatprep.subr.mxu0 0.0
        %5007 = vmatpush1.msra.mxu0 %v4976
        %5008 = vmatprep.subr.mxu0 0.0
        %5009 = vmatpush1.msra.mxu0 %v4977
        %5010 = vmatprep.subr.mxu0 0.0
        %5011 = vmatpush1.msra.mxu0 0.0
        %5012 = vmatprep.subr.mxu0 0.0
        %5013 = vmatpush1.msra.mxu0 0.0
        %5014 = vmatprep.subr.mxu0 0.0
        %5015 = vmatpush1.msra.mxu0 0.0
        %5016 = vmatprep.subr.mxu0 0.0
        %5017 = vmatpush1.msra.mxu0 0.0
        %5018 = vmatprep.subr.mxu0 0.0
        %5019 = vmatpush1.msra.mxu0 0.0
        %5020 = vmatprep.subr.mxu0 0.0
        %5021 = vmatpush1.msra.mxu0 0.0
        %5022 = vmatprep.subr.mxu0 0.0
        %5023 = vmatpush1.msra.mxu0 0.0
        %5024 = vmatprep.subr.mxu0 0.0
        %5025 = vmatpush1.msra.mxu0 0.0
        %5026 = vmatprep.subr.mxu0 0.0
        %5027 = vmatpush1.msra.mxu0 0.0
        %5028 = vmatprep.subr.mxu0 0.0
        %5029 = vmatpush1.msra.mxu0 0.0
        %5030 = vmatprep.subr.mxu0 0.0
        %5031 = vmatpush1.msra.mxu0 0.0
        %5032 = vmatprep.subr.mxu0 0.0
        %5033 = vmatpush1.msra.mxu0 0.0
        %5034 = vmatprep.subr.mxu0 0.0
        %5035 = vmatpush1.msra.mxu0 0.0
        %5036 = vmatprep.subr.mxu0 0.0
        %5037 = vmatpush1.msra.mxu0 0.0
        %5038 = vmatprep.subr.mxu0 0.0
        %5039 = vmatpush1.msra.mxu0 0.0
        %5040 = vmatprep.subr.mxu0 0.0
        %5041 = vmatpush1.msra.mxu0 0.0
        %5042 = vmatprep.mubr.f32.mxu0 0.0
        %5043 = vmatmul.mubr.f32.gmra.mrb[0].mxu0 %v4943
        %v5044 = vpop.f32.mrb[0].mxu0
        %v5045 = vadd.f32 0.0, %v5044
        %v5046 = vpop.f32.mrb[0].mxu0
        %5047 = vmatprep.mubr.f32.mxu0 0.0
        %5048 = vmatmul.mubr.f32.gmra.mrb[0].mxu0 %v4944
        %v5049 = vpop.f32.mrb[0].mxu0
        %v5050 = vadd.f32 0.0, %v5049
        %v5051 = vpop.f32.mrb[0].mxu0
        %5052 = vmatprep.mubr.f32.mxu0 0.0
        %5053 = vmatmul.mubr.f32.gmra.mrb[0].mxu0 %v4945
        %v5054 = vpop.f32.mrb[0].mxu0
        %v5055 = vadd.f32 0.0, %v5054
        %v5056 = vpop.f32.mrb[0].mxu0
        %5057 = vmatprep.mubr.f32.mxu0 0.0
        %5058 = vmatmul.mubr.f32.gmra.mrb[0].mxu0 %v4946
        %v5059 = vpop.f32.mrb[0].mxu0
        %v5060 = vadd.f32 0.0, %v5059
        %v5061 = vpop.f32.mrb[0].mxu0
        %5062 = vmatprep.mubr.f32.mxu0 0.0
        %5063 = vmatmul.mubr.f32.gmra.mrb[0].mxu0 %v4947
        %v5064 = vpop.f32.mrb[0].mxu0
        %v5065 = vadd.f32 0.0, %v5064
        %v5066 = vpop.f32.mrb[0].mxu0
        %5067 = vmatprep.mubr.f32.mxu0 0.0
        %5068 = vmatmul.mubr.f32.gmra.mrb[0].mxu0 %v4948
        %v5069 = vpop.f32.mrb[0].mxu0
        %v5070 = vadd.f32 0.0, %v5069
        %v5071 = vpop.f32.mrb[0].mxu0
        %5072 = vmatprep.mubr.f32.mxu0 0.0
        %5073 = vmatmul.mubr.f32.gmra.mrb[0].mxu0 %v4949
        %v5074 = vpop.f32.mrb[0].mxu0
        %v5075 = vadd.f32 0.0, %v5074
        %v5076 = vpop.f32.mrb[0].mxu0
        %5077 = vmatprep.mubr.f32.mxu0 0.0
        %5078 = vmatmul.mubr.f32.gmra.mrb[0].mxu0 %v4950
        %v5079 = vpop.f32.mrb[0].mxu0
        %v5080 = vadd.f32 0.0, %v5079
        %v5081 = vpop.f32.mrb[0].mxu0
        %5082 = vmatprep.mubr.f32.mxu0 0.0
        %5083 = vmatmul.mubr.f32.gmra.mrb[0].mxu0 %v4951
        %v5084 = vpop.f32.mrb[0].mxu0
        %v5085 = vadd.f32 0.0, %v5084
        %v5086 = vpop.f32.mrb[0].mxu0
        %5087 = vmatprep.mubr.f32.mxu0 0.0
        %5088 = vmatmul.mubr.f32.gmra.mrb[0].mxu0 %v4952
        %v5089 = vpop.f32.mrb[0].mxu0
        %v5090 = vadd.f32 0.0, %v5089
        %v5091 = vpop.f32.mrb[0].mxu0
        %5092 = vmatprep.mubr.f32.mxu0 0.0
        %5093 = vmatmul.mubr.f32.gmra.mrb[0].mxu0 %v4953
        %v5094 = vpop.f32.mrb[0].mxu0
        %v5095 = vadd.f32 0.0, %v5094
        %v5096 = vpop.f32.mrb[0].mxu0
        %5097 = vmatprep.mubr.f32.mxu0 0.0
        %5098 = vmatmul.mubr.f32.gmra.mrb[0].mxu0 %v4954
        %v5099 = vpop.f32.mrb[0].mxu0
        %v5100 = vadd.f32 0.0, %v5099
        %v5101 = vpop.f32.mrb[0].mxu0
        %5102 = vmatprep.mubr.f32.mxu0 0.0
        %5103 = vmatmul.mubr.f32.gmra.mrb[0].mxu0 %v4955
        %v5104 = vpop.f32.mrb[0].mxu0
        %v5105 = vadd.f32 0.0, %v5104
        %v5106 = vpop.f32.mrb[0].mxu0
        %5107 = vmatprep.mubr.f32.mxu0 0.0
        %5108 = vmatmul.mubr.f32.gmra.mrb[0].mxu0 %v4956
        %v5109 = vpop.f32.mrb[0].mxu0
        %v5110 = vadd.f32 0.0, %v5109
        %v5111 = vpop.f32.mrb[0].mxu0
        %5112 = vmatprep.mubr.f32.mxu0 0.0
        %5113 = vmatmul.mubr.f32.gmra.mrb[0].mxu0 %v4957
        %v5114 = vpop.f32.mrb[0].mxu0
        %v5115 = vadd.f32 0.0, %v5114
        %v5116 = vpop.f32.mrb[0].mxu0
        %5117 = vmatprep.mubr.f32.mxu0 0.0
        %5118 = vmatmul.mubr.f32.gmra.mrb[0].mxu0 %v4958
        %v5119 = vpop.f32.mrb[0].mxu0
        %v5120 = vadd.f32 0.0, %v5119
        %v5121 = vpop.f32.mrb[0].mxu0
        %5122 = vmatprep.mubr.f32.mxu0 0.0
        %5123 = vmatmul.mubr.f32.gmra.mrb[0].mxu0 %v4959
        %v5124 = vpop.f32.mrb[0].mxu0
        %v5125 = vadd.f32 0.0, %v5124
        %v5126 = vpop.f32.mrb[0].mxu0
        %5127 = vmatprep.mubr.f32.mxu0 0.0
        %5128 = vmatmul.mubr.f32.gmra.mrb[0].mxu0 %v4960
        %v5129 = vpop.f32.mrb[0].mxu0
        %v5130 = vadd.f32 0.0, %v5129
        %v5131 = vpop.f32.mrb[0].mxu0
        %5132 = vdwg.mxu0
        %v5133 = vadd.f32 %v4925, %v5045
        %v5134 = vadd.f32 %v4926, %v5050
        %v5135 = vadd.f32 %v4927, %v5055
        %v5136 = vadd.f32 %v4928, %v5060
        %v5137 = vadd.f32 %v4929, %v5065
        %v5138 = vadd.f32 %v4930, %v5070
        %v5139 = vadd.f32 %v4931, %v5075
        %v5140 = vadd.f32 %v4932, %v5080
        %v5141 = vadd.f32 %v4933, %v5085
        %v5142 = vadd.f32 %v4934, %v5090
        %v5143 = vadd.f32 %v4935, %v5095
        %v5144 = vadd.f32 %v4936, %v5100
        %v5145 = vadd.f32 %v4937, %v5105
        %v5146 = vadd.f32 %v4938, %v5110
        %v5147 = vadd.f32 %v4939, %v5115
        %v5148 = vadd.f32 %v4940, %v5120
        %v5149 = vadd.f32 %v4941, %v5125
        %v5150 = vadd.f32 %v4942, %v5130
        %v5151 = vld [vmem:[#allocation2 + $0x4a] sm:$0xff]
        %v5152 = vld [vmem:[#allocation2 + $0x52] sm:$0xff]
        %v5153 = vld [vmem:[#allocation2 + $0x5a] sm:$0xff]
        %v5154 = vld [vmem:[#allocation2 + $0x62] sm:$0xff]
        %v5155 = vld [vmem:[#allocation2 + $0x6a] sm:$0xff]
        %v5156 = vld [vmem:[#allocation2 + $0x72] sm:$0xff]
        %v5157 = vld [vmem:[#allocation2 + $0x7a] sm:$0xff]
        %v5158 = vld [vmem:[#allocation2 + $0x82] sm:$0xff]
        %v5159 = vld [vmem:[#allocation2 + $0x8a] sm:$0xff]
        %v5160 = vld [vmem:[#allocation2 + $0x92] sm:$0xff]
        %v5161 = vld [vmem:[#allocation2 + $0x9a] sm:$0xff]
        %v5162 = vld [vmem:[#allocation2 + $0xa2] sm:$0xff]
        %v5163 = vld [vmem:[#allocation2 + $0xaa] sm:$0xff]
        %v5164 = vld [vmem:[#allocation2 + $0xb2] sm:$0xff]
        %v5165 = vld [vmem:[#allocation2 + $0xba] sm:$0xff]
        %v5166 = vld [vmem:[#allocation2 + $0xc2] sm:$0xff]
        %v5167 = vld [vmem:[#allocation2 + $0xca] sm:$0xff]
        %v5168 = vld [vmem:[#allocation2 + $0xd2] sm:$0xff]
        %s5169 = scalar_lea.vmem [#allocation7], 2560
        %v5170 = vld [vmem:[%s5169] sm:$0xff]
        %v5171 = vld [vmem:[%s5169 + $0x8] sm:$0xff]
        %v5172 = vld [vmem:[%s5169 + $0x10] sm:$0xff]
        %v5173 = vld [vmem:[%s5169 + $0x18] sm:$0xff]
        %v5174 = vld [vmem:[%s5169 + $0x20] sm:$0xff]
        %v5175 = vld [vmem:[%s5169 + $0x28] sm:$0xff]
        %v5176 = vld [vmem:[%s5169 + $0x30] sm:$0xff]
        %v5177 = vld [vmem:[%s5169 + $0x38] sm:$0xff]
        %v5178 = vld [vmem:[%s5169 + $0x40] sm:$0xff]
        %v5179 = vld [vmem:[%s5169 + $0x48] sm:$0xff]
        %v5180 = vld [vmem:[%s5169 + $0x50] sm:$0xff]
        %v5181 = vld [vmem:[%s5169 + $0x58] sm:$0xff]
        %v5182 = vld [vmem:[%s5169 + $0x60] sm:$0xff]
        %v5183 = vld [vmem:[%s5169 + $0x68] sm:$0xff]
        %v5184 = vld [vmem:[%s5169 + $0x70] sm:$0xff]
        %v5185 = vld [vmem:[%s5169 + $0x78] sm:$0xff]
        %5186 = vmatprep.subr.mxu0 0.0
        %5187 = vmatpush1.msra.mxu0 %v5170
        %5188 = vmatprep.subr.mxu0 0.0
        %5189 = vmatpush1.msra.mxu0 %v5171
        %5190 = vmatprep.subr.mxu0 0.0
        %5191 = vmatpush1.msra.mxu0 %v5172
        %5192 = vmatprep.subr.mxu0 0.0
        %5193 = vmatpush1.msra.mxu0 %v5173
        %5194 = vmatprep.subr.mxu0 0.0
        %5195 = vmatpush1.msra.mxu0 %v5174
        %5196 = vmatprep.subr.mxu0 0.0
        %5197 = vmatpush1.msra.mxu0 %v5175
        %5198 = vmatprep.subr.mxu0 0.0
        %5199 = vmatpush1.msra.mxu0 %v5176
        %5200 = vmatprep.subr.mxu0 0.0
        %5201 = vmatpush1.msra.mxu0 %v5177
        %5202 = vmatprep.subr.mxu0 0.0
        %5203 = vmatpush1.msra.mxu0 %v5178
        %5204 = vmatprep.subr.mxu0 0.0
        %5205 = vmatpush1.msra.mxu0 %v5179
        %5206 = vmatprep.subr.mxu0 0.0
        %5207 = vmatpush1.msra.mxu0 %v5180
        %5208 = vmatprep.subr.mxu0 0.0
        %5209 = vmatpush1.msra.mxu0 %v5181
        %5210 = vmatprep.subr.mxu0 0.0
        %5211 = vmatpush1.msra.mxu0 %v5182
        %5212 = vmatprep.subr.mxu0 0.0
        %5213 = vmatpush1.msra.mxu0 %v5183
        %5214 = vmatprep.subr.mxu0 0.0
        %5215 = vmatpush1.msra.mxu0 %v5184
        %5216 = vmatprep.subr.mxu0 0.0
        %5217 = vmatpush1.msra.mxu0 %v5185
        %5218 = vmatprep.subr.mxu0 0.0
        %5219 = vmatpush1.msra.mxu0 0.0
        %5220 = vmatprep.subr.mxu0 0.0
        %5221 = vmatpush1.msra.mxu0 0.0
        %5222 = vmatprep.subr.mxu0 0.0
        %5223 = vmatpush1.msra.mxu0 0.0
        %5224 = vmatprep.subr.mxu0 0.0
        %5225 = vmatpush1.msra.mxu0 0.0
        %5226 = vmatprep.subr.mxu0 0.0
        %5227 = vmatpush1.msra.mxu0 0.0
        %5228 = vmatprep.subr.mxu0 0.0
        %5229 = vmatpush1.msra.mxu0 0.0
        %5230 = vmatprep.subr.mxu0 0.0
        %5231 = vmatpush1.msra.mxu0 0.0
        %5232 = vmatprep.subr.mxu0 0.0
        %5233 = vmatpush1.msra.mxu0 0.0
        %5234 = vmatprep.subr.mxu0 0.0
        %5235 = vmatpush1.msra.mxu0 0.0
        %5236 = vmatprep.subr.mxu0 0.0
        %5237 = vmatpush1.msra.mxu0 0.0
        %5238 = vmatprep.subr.mxu0 0.0
        %5239 = vmatpush1.msra.mxu0 0.0
        %5240 = vmatprep.subr.mxu0 0.0
        %5241 = vmatpush1.msra.mxu0 0.0
        %5242 = vmatprep.subr.mxu0 0.0
        %5243 = vmatpush1.msra.mxu0 0.0
        %5244 = vmatprep.subr.mxu0 0.0
        %5245 = vmatpush1.msra.mxu0 0.0
        %5246 = vmatprep.subr.mxu0 0.0
        %5247 = vmatpush1.msra.mxu0 0.0
        %5248 = vmatprep.subr.mxu0 0.0
        %5249 = vmatpush1.msra.mxu0 0.0
        %5250 = vmatprep.mubr.f32.mxu0 0.0
        %5251 = vmatmul.mubr.f32.gmra.mrb[0].mxu0 %v5151
        %v5252 = vpop.f32.mrb[0].mxu0
        %v5253 = vadd.f32 0.0, %v5252
        %v5254 = vpop.f32.mrb[0].mxu0
        %5255 = vmatprep.mubr.f32.mxu0 0.0
        %5256 = vmatmul.mubr.f32.gmra.mrb[0].mxu0 %v5152
        %v5257 = vpop.f32.mrb[0].mxu0
        %v5258 = vadd.f32 0.0, %v5257
        %v5259 = vpop.f32.mrb[0].mxu0
        %5260 = vmatprep.mubr.f32.mxu0 0.0
        %5261 = vmatmul.mubr.f32.gmra.mrb[0].mxu0 %v5153
        %v5262 = vpop.f32.mrb[0].mxu0
        %v5263 = vadd.f32 0.0, %v5262
        %v5264 = vpop.f32.mrb[0].mxu0
        %5265 = vmatprep.mubr.f32.mxu0 0.0
        %5266 = vmatmul.mubr.f32.gmra.mrb[0].mxu0 %v5154
        %v5267 = vpop.f32.mrb[0].mxu0
        %v5268 = vadd.f32 0.0, %v5267
        %v5269 = vpop.f32.mrb[0].mxu0
        %5270 = vmatprep.mubr.f32.mxu0 0.0
        %5271 = vmatmul.mubr.f32.gmra.mrb[0].mxu0 %v5155
        %v5272 = vpop.f32.mrb[0].mxu0
        %v5273 = vadd.f32 0.0, %v5272
        %v5274 = vpop.f32.mrb[0].mxu0
        %5275 = vmatprep.mubr.f32.mxu0 0.0
        %5276 = vmatmul.mubr.f32.gmra.mrb[0].mxu0 %v5156
        %v5277 = vpop.f32.mrb[0].mxu0
        %v5278 = vadd.f32 0.0, %v5277
        %v5279 = vpop.f32.mrb[0].mxu0
        %5280 = vmatprep.mubr.f32.mxu0 0.0
        %5281 = vmatmul.mubr.f32.gmra.mrb[0].mxu0 %v5157
        %v5282 = vpop.f32.mrb[0].mxu0
        %v5283 = vadd.f32 0.0, %v5282
        %v5284 = vpop.f32.mrb[0].mxu0
        %5285 = vmatprep.mubr.f32.mxu0 0.0
        %5286 = vmatmul.mubr.f32.gmra.mrb[0].mxu0 %v5158
        %v5287 = vpop.f32.mrb[0].mxu0
        %v5288 = vadd.f32 0.0, %v5287
        %v5289 = vpop.f32.mrb[0].mxu0
        %5290 = vmatprep.mubr.f32.mxu0 0.0
        %5291 = vmatmul.mubr.f32.gmra.mrb[0].mxu0 %v5159
        %v5292 = vpop.f32.mrb[0].mxu0
        %v5293 = vadd.f32 0.0, %v5292
        %v5294 = vpop.f32.mrb[0].mxu0
        %5295 = vmatprep.mubr.f32.mxu0 0.0
        %5296 = vmatmul.mubr.f32.gmra.mrb[0].mxu0 %v5160
        %v5297 = vpop.f32.mrb[0].mxu0
        %v5298 = vadd.f32 0.0, %v5297
        %v5299 = vpop.f32.mrb[0].mxu0
        %5300 = vmatprep.mubr.f32.mxu0 0.0
        %5301 = vmatmul.mubr.f32.gmra.mrb[0].mxu0 %v5161
        %v5302 = vpop.f32.mrb[0].mxu0
        %v5303 = vadd.f32 0.0, %v5302
        %v5304 = vpop.f32.mrb[0].mxu0
        %5305 = vmatprep.mubr.f32.mxu0 0.0
        %5306 = vmatmul.mubr.f32.gmra.mrb[0].mxu0 %v5162
        %v5307 = vpop.f32.mrb[0].mxu0
        %v5308 = vadd.f32 0.0, %v5307
        %v5309 = vpop.f32.mrb[0].mxu0
        %5310 = vmatprep.mubr.f32.mxu0 0.0
        %5311 = vmatmul.mubr.f32.gmra.mrb[0].mxu0 %v5163
        %v5312 = vpop.f32.mrb[0].mxu0
        %v5313 = vadd.f32 0.0, %v5312
        %v5314 = vpop.f32.mrb[0].mxu0
        %5315 = vmatprep.mubr.f32.mxu0 0.0
        %5316 = vmatmul.mubr.f32.gmra.mrb[0].mxu0 %v5164
        %v5317 = vpop.f32.mrb[0].mxu0
        %v5318 = vadd.f32 0.0, %v5317
        %v5319 = vpop.f32.mrb[0].mxu0
        %5320 = vmatprep.mubr.f32.mxu0 0.0
        %5321 = vmatmul.mubr.f32.gmra.mrb[0].mxu0 %v5165
        %v5322 = vpop.f32.mrb[0].mxu0
        %v5323 = vadd.f32 0.0, %v5322
        %v5324 = vpop.f32.mrb[0].mxu0
        %5325 = vmatprep.mubr.f32.mxu0 0.0
        %5326 = vmatmul.mubr.f32.gmra.mrb[0].mxu0 %v5166
        %v5327 = vpop.f32.mrb[0].mxu0
        %v5328 = vadd.f32 0.0, %v5327
        %v5329 = vpop.f32.mrb[0].mxu0
        %5330 = vmatprep.mubr.f32.mxu0 0.0
        %5331 = vmatmul.mubr.f32.gmra.mrb[0].mxu0 %v5167
        %v5332 = vpop.f32.mrb[0].mxu0
        %v5333 = vadd.f32 0.0, %v5332
        %v5334 = vpop.f32.mrb[0].mxu0
        %5335 = vmatprep.mubr.f32.mxu0 0.0
        %5336 = vmatmul.mubr.f32.gmra.mrb[0].mxu0 %v5168
        %v5337 = vpop.f32.mrb[0].mxu0
        %v5338 = vadd.f32 0.0, %v5337
        %v5339 = vpop.f32.mrb[0].mxu0
        %5340 = vdwg.mxu0
        %v5341 = vadd.f32 %v5133, %v5253
        %v5342 = vadd.f32 %v5134, %v5258
        %v5343 = vadd.f32 %v5135, %v5263
        %v5344 = vadd.f32 %v5136, %v5268
        %v5345 = vadd.f32 %v5137, %v5273
        %v5346 = vadd.f32 %v5138, %v5278
        %v5347 = vadd.f32 %v5139, %v5283
        %v5348 = vadd.f32 %v5140, %v5288
        %v5349 = vadd.f32 %v5141, %v5293
        %v5350 = vadd.f32 %v5142, %v5298
        %v5351 = vadd.f32 %v5143, %v5303
        %v5352 = vadd.f32 %v5144, %v5308
        %v5353 = vadd.f32 %v5145, %v5313
        %v5354 = vadd.f32 %v5146, %v5318
        %v5355 = vadd.f32 %v5147, %v5323
        %v5356 = vadd.f32 %v5148, %v5328
        %v5357 = vadd.f32 %v5149, %v5333
        %v5358 = vadd.f32 %v5150, %v5338
        %v5359 = vld [vmem:[#allocation2 + $0x4e] sm:$0xff]
        %v5360 = vld [vmem:[#allocation2 + $0x56] sm:$0xff]
        %v5361 = vld [vmem:[#allocation2 + $0x5e] sm:$0xff]
        %v5362 = vld [vmem:[#allocation2 + $0x66] sm:$0xff]
        %v5363 = vld [vmem:[#allocation2 + $0x6e] sm:$0xff]
        %v5364 = vld [vmem:[#allocation2 + $0x76] sm:$0xff]
        %v5365 = vld [vmem:[#allocation2 + $0x7e] sm:$0xff]
        %v5366 = vld [vmem:[#allocation2 + $0x86] sm:$0xff]
        %v5367 = vld [vmem:[#allocation2 + $0x8e] sm:$0xff]
        %v5368 = vld [vmem:[#allocation2 + $0x96] sm:$0xff]
        %v5369 = vld [vmem:[#allocation2 + $0x9e] sm:$0xff]
        %v5370 = vld [vmem:[#allocation2 + $0xa6] sm:$0xff]
        %v5371 = vld [vmem:[#allocation2 + $0xae] sm:$0xff]
        %v5372 = vld [vmem:[#allocation2 + $0xb6] sm:$0xff]
        %v5373 = vld [vmem:[#allocation2 + $0xbe] sm:$0xff]
        %v5374 = vld [vmem:[#allocation2 + $0xc6] sm:$0xff]
        %v5375 = vld [vmem:[#allocation2 + $0xce] sm:$0xff]
        %v5376 = vld [vmem:[#allocation2 + $0xd6] sm:$0xff]
        %s5377 = scalar_lea.vmem [#allocation7], 2688
        %v5378 = vld [vmem:[%s5377] sm:$0xff]
        %v5379 = vld [vmem:[%s5377 + $0x8] sm:$0xff]
        %v5380 = vld [vmem:[%s5377 + $0x10] sm:$0xff]
        %v5381 = vld [vmem:[%s5377 + $0x18] sm:$0xff]
        %v5382 = vld [vmem:[%s5377 + $0x20] sm:$0xff]
        %v5383 = vld [vmem:[%s5377 + $0x28] sm:$0xff]
        %v5384 = vld [vmem:[%s5377 + $0x30] sm:$0xff]
        %v5385 = vld [vmem:[%s5377 + $0x38] sm:$0xff]
        %v5386 = vld [vmem:[%s5377 + $0x40] sm:$0xff]
        %v5387 = vld [vmem:[%s5377 + $0x48] sm:$0xff]
        %v5388 = vld [vmem:[%s5377 + $0x50] sm:$0xff]
        %v5389 = vld [vmem:[%s5377 + $0x58] sm:$0xff]
        %v5390 = vld [vmem:[%s5377 + $0x60] sm:$0xff]
        %v5391 = vld [vmem:[%s5377 + $0x68] sm:$0xff]
        %v5392 = vld [vmem:[%s5377 + $0x70] sm:$0xff]
        %v5393 = vld [vmem:[%s5377 + $0x78] sm:$0xff]
        %5394 = vmatprep.subr.mxu0 0.0
        %5395 = vmatpush1.msra.mxu0 %v5378
        %5396 = vmatprep.subr.mxu0 0.0
        %5397 = vmatpush1.msra.mxu0 %v5379
        %5398 = vmatprep.subr.mxu0 0.0
        %5399 = vmatpush1.msra.mxu0 %v5380
        %5400 = vmatprep.subr.mxu0 0.0
        %5401 = vmatpush1.msra.mxu0 %v5381
        %5402 = vmatprep.subr.mxu0 0.0
        %5403 = vmatpush1.msra.mxu0 %v5382
        %5404 = vmatprep.subr.mxu0 0.0
        %5405 = vmatpush1.msra.mxu0 %v5383
        %5406 = vmatprep.subr.mxu0 0.0
        %5407 = vmatpush1.msra.mxu0 %v5384
        %5408 = vmatprep.subr.mxu0 0.0
        %5409 = vmatpush1.msra.mxu0 %v5385
        %5410 = vmatprep.subr.mxu0 0.0
        %5411 = vmatpush1.msra.mxu0 %v5386
        %5412 = vmatprep.subr.mxu0 0.0
        %5413 = vmatpush1.msra.mxu0 %v5387
        %5414 = vmatprep.subr.mxu0 0.0
        %5415 = vmatpush1.msra.mxu0 %v5388
        %5416 = vmatprep.subr.mxu0 0.0
        %5417 = vmatpush1.msra.mxu0 %v5389
        %5418 = vmatprep.subr.mxu0 0.0
        %5419 = vmatpush1.msra.mxu0 %v5390
        %5420 = vmatprep.subr.mxu0 0.0
        %5421 = vmatpush1.msra.mxu0 %v5391
        %5422 = vmatprep.subr.mxu0 0.0
        %5423 = vmatpush1.msra.mxu0 %v5392
        %5424 = vmatprep.subr.mxu0 0.0
        %5425 = vmatpush1.msra.mxu0 %v5393
        %5426 = vmatprep.subr.mxu0 0.0
        %5427 = vmatpush1.msra.mxu0 0.0
        %5428 = vmatprep.subr.mxu0 0.0
        %5429 = vmatpush1.msra.mxu0 0.0
        %5430 = vmatprep.subr.mxu0 0.0
        %5431 = vmatpush1.msra.mxu0 0.0
        %5432 = vmatprep.subr.mxu0 0.0
        %5433 = vmatpush1.msra.mxu0 0.0
        %5434 = vmatprep.subr.mxu0 0.0
        %5435 = vmatpush1.msra.mxu0 0.0
        %5436 = vmatprep.subr.mxu0 0.0
        %5437 = vmatpush1.msra.mxu0 0.0
        %5438 = vmatprep.subr.mxu0 0.0
        %5439 = vmatpush1.msra.mxu0 0.0
        %5440 = vmatprep.subr.mxu0 0.0
        %5441 = vmatpush1.msra.mxu0 0.0
        %5442 = vmatprep.subr.mxu0 0.0
        %5443 = vmatpush1.msra.mxu0 0.0
        %5444 = vmatprep.subr.mxu0 0.0
        %5445 = vmatpush1.msra.mxu0 0.0
        %5446 = vmatprep.subr.mxu0 0.0
        %5447 = vmatpush1.msra.mxu0 0.0
        %5448 = vmatprep.subr.mxu0 0.0
        %5449 = vmatpush1.msra.mxu0 0.0
        %5450 = vmatprep.subr.mxu0 0.0
        %5451 = vmatpush1.msra.mxu0 0.0
        %5452 = vmatprep.subr.mxu0 0.0
        %5453 = vmatpush1.msra.mxu0 0.0
        %5454 = vmatprep.subr.mxu0 0.0
        %5455 = vmatpush1.msra.mxu0 0.0
        %5456 = vmatprep.subr.mxu0 0.0
        %5457 = vmatpush1.msra.mxu0 0.0
        %5458 = vmatprep.mubr.f32.mxu0 0.0
        %5459 = vmatmul.mubr.f32.gmra.mrb[0].mxu0 %v5359
        %v5460 = vpop.f32.mrb[0].mxu0
        %v5461 = vadd.f32 0.0, %v5460
        %v5462 = vpop.f32.mrb[0].mxu0
        %5463 = vmatprep.mubr.f32.mxu0 0.0
        %5464 = vmatmul.mubr.f32.gmra.mrb[0].mxu0 %v5360
        %v5465 = vpop.f32.mrb[0].mxu0
        %v5466 = vadd.f32 0.0, %v5465
        %v5467 = vpop.f32.mrb[0].mxu0
        %5468 = vmatprep.mubr.f32.mxu0 0.0
        %5469 = vmatmul.mubr.f32.gmra.mrb[0].mxu0 %v5361
        %v5470 = vpop.f32.mrb[0].mxu0
        %v5471 = vadd.f32 0.0, %v5470
        %v5472 = vpop.f32.mrb[0].mxu0
        %5473 = vmatprep.mubr.f32.mxu0 0.0
        %5474 = vmatmul.mubr.f32.gmra.mrb[0].mxu0 %v5362
        %v5475 = vpop.f32.mrb[0].mxu0
        %v5476 = vadd.f32 0.0, %v5475
        %v5477 = vpop.f32.mrb[0].mxu0
        %5478 = vmatprep.mubr.f32.mxu0 0.0
        %5479 = vmatmul.mubr.f32.gmra.mrb[0].mxu0 %v5363
        %v5480 = vpop.f32.mrb[0].mxu0
        %v5481 = vadd.f32 0.0, %v5480
        %v5482 = vpop.f32.mrb[0].mxu0
        %5483 = vmatprep.mubr.f32.mxu0 0.0
        %5484 = vmatmul.mubr.f32.gmra.mrb[0].mxu0 %v5364
        %v5485 = vpop.f32.mrb[0].mxu0
        %v5486 = vadd.f32 0.0, %v5485
        %v5487 = vpop.f32.mrb[0].mxu0
        %5488 = vmatprep.mubr.f32.mxu0 0.0
        %5489 = vmatmul.mubr.f32.gmra.mrb[0].mxu0 %v5365
        %v5490 = vpop.f32.mrb[0].mxu0
        %v5491 = vadd.f32 0.0, %v5490
        %v5492 = vpop.f32.mrb[0].mxu0
        %5493 = vmatprep.mubr.f32.mxu0 0.0
        %5494 = vmatmul.mubr.f32.gmra.mrb[0].mxu0 %v5366
        %v5495 = vpop.f32.mrb[0].mxu0
        %v5496 = vadd.f32 0.0, %v5495
        %v5497 = vpop.f32.mrb[0].mxu0
        %5498 = vmatprep.mubr.f32.mxu0 0.0
        %5499 = vmatmul.mubr.f32.gmra.mrb[0].mxu0 %v5367
        %v5500 = vpop.f32.mrb[0].mxu0
        %v5501 = vadd.f32 0.0, %v5500
        %v5502 = vpop.f32.mrb[0].mxu0
        %5503 = vmatprep.mubr.f32.mxu0 0.0
        %5504 = vmatmul.mubr.f32.gmra.mrb[0].mxu0 %v5368
        %v5505 = vpop.f32.mrb[0].mxu0
        %v5506 = vadd.f32 0.0, %v5505
        %v5507 = vpop.f32.mrb[0].mxu0
        %5508 = vmatprep.mubr.f32.mxu0 0.0
        %5509 = vmatmul.mubr.f32.gmra.mrb[0].mxu0 %v5369
        %v5510 = vpop.f32.mrb[0].mxu0
        %v5511 = vadd.f32 0.0, %v5510
        %v5512 = vpop.f32.mrb[0].mxu0
        %5513 = vmatprep.mubr.f32.mxu0 0.0
        %5514 = vmatmul.mubr.f32.gmra.mrb[0].mxu0 %v5370
        %v5515 = vpop.f32.mrb[0].mxu0
        %v5516 = vadd.f32 0.0, %v5515
        %v5517 = vpop.f32.mrb[0].mxu0
        %5518 = vmatprep.mubr.f32.mxu0 0.0
        %5519 = vmatmul.mubr.f32.gmra.mrb[0].mxu0 %v5371
        %v5520 = vpop.f32.mrb[0].mxu0
        %v5521 = vadd.f32 0.0, %v5520
        %v5522 = vpop.f32.mrb[0].mxu0
        %5523 = vmatprep.mubr.f32.mxu0 0.0
        %5524 = vmatmul.mubr.f32.gmra.mrb[0].mxu0 %v5372
        %v5525 = vpop.f32.mrb[0].mxu0
        %v5526 = vadd.f32 0.0, %v5525
        %v5527 = vpop.f32.mrb[0].mxu0
        %5528 = vmatprep.mubr.f32.mxu0 0.0
        %5529 = vmatmul.mubr.f32.gmra.mrb[0].mxu0 %v5373
        %v5530 = vpop.f32.mrb[0].mxu0
        %v5531 = vadd.f32 0.0, %v5530
        %v5532 = vpop.f32.mrb[0].mxu0
        %5533 = vmatprep.mubr.f32.mxu0 0.0
        %5534 = vmatmul.mubr.f32.gmra.mrb[0].mxu0 %v5374
        %v5535 = vpop.f32.mrb[0].mxu0
        %v5536 = vadd.f32 0.0, %v5535
        %v5537 = vpop.f32.mrb[0].mxu0
        %5538 = vmatprep.mubr.f32.mxu0 0.0
        %5539 = vmatmul.mubr.f32.gmra.mrb[0].mxu0 %v5375
        %v5540 = vpop.f32.mrb[0].mxu0
        %v5541 = vadd.f32 0.0, %v5540
        %v5542 = vpop.f32.mrb[0].mxu0
        %5543 = vmatprep.mubr.f32.mxu0 0.0
        %5544 = vmatmul.mubr.f32.gmra.mrb[0].mxu0 %v5376
        %v5545 = vpop.f32.mrb[0].mxu0
        %v5546 = vadd.f32 0.0, %v5545
        %v5547 = vpop.f32.mrb[0].mxu0
        %5548 = vdwg.mxu0
        %v5549 = vadd.f32 %v5341, %v5461
        %v5550 = vadd.f32 %v5342, %v5466
        %v5551 = vadd.f32 %v5343, %v5471
        %v5552 = vadd.f32 %v5344, %v5476
        %v5553 = vadd.f32 %v5345, %v5481
        %v5554 = vadd.f32 %v5346, %v5486
        %v5555 = vadd.f32 %v5347, %v5491
        %v5556 = vadd.f32 %v5348, %v5496
        %v5557 = vadd.f32 %v5349, %v5501
        %v5558 = vadd.f32 %v5350, %v5506
        %v5559 = vadd.f32 %v5351, %v5511
        %v5560 = vadd.f32 %v5352, %v5516
        %v5561 = vadd.f32 %v5353, %v5521
        %v5562 = vadd.f32 %v5354, %v5526
        %v5563 = vadd.f32 %v5355, %v5531
        %v5564 = vadd.f32 %v5356, %v5536
        %v5565 = vadd.f32 %v5357, %v5541
        %v5566 = vadd.f32 %v5358, %v5546
        %v5567 = vld [vmem:[#allocation2 + $0x4f] sm:$0xff]
        %v5568 = vld [vmem:[#allocation2 + $0x57] sm:$0xff]
        %v5569 = vld [vmem:[#allocation2 + $0x5f] sm:$0xff]
        %v5570 = vld [vmem:[#allocation2 + $0x67] sm:$0xff]
        %v5571 = vld [vmem:[#allocation2 + $0x6f] sm:$0xff]
        %v5572 = vld [vmem:[#allocation2 + $0x77] sm:$0xff]
        %v5573 = vld [vmem:[#allocation2 + $0x7f] sm:$0xff]
        %v5574 = vld [vmem:[#allocation2 + $0x87] sm:$0xff]
        %v5575 = vld [vmem:[#allocation2 + $0x8f] sm:$0xff]
        %v5576 = vld [vmem:[#allocation2 + $0x97] sm:$0xff]
        %v5577 = vld [vmem:[#allocation2 + $0x9f] sm:$0xff]
        %v5578 = vld [vmem:[#allocation2 + $0xa7] sm:$0xff]
        %v5579 = vld [vmem:[#allocation2 + $0xaf] sm:$0xff]
        %v5580 = vld [vmem:[#allocation2 + $0xb7] sm:$0xff]
        %v5581 = vld [vmem:[#allocation2 + $0xbf] sm:$0xff]
        %v5582 = vld [vmem:[#allocation2 + $0xc7] sm:$0xff]
        %v5583 = vld [vmem:[#allocation2 + $0xcf] sm:$0xff]
        %v5584 = vld [vmem:[#allocation2 + $0xd7] sm:$0xff]
        %s5585 = scalar_lea.vmem [#allocation7], 2816
        %v5586 = vld [vmem:[%s5585] sm:$0xff]
        %v5587 = vld [vmem:[%s5585 + $0x8] sm:$0xff]
        %v5588 = vld [vmem:[%s5585 + $0x10] sm:$0xff]
        %v5589 = vld [vmem:[%s5585 + $0x18] sm:$0xff]
        %v5590 = vld [vmem:[%s5585 + $0x20] sm:$0xff]
        %v5591 = vld [vmem:[%s5585 + $0x28] sm:$0xff]
        %v5592 = vld [vmem:[%s5585 + $0x30] sm:$0xff]
        %v5593 = vld [vmem:[%s5585 + $0x38] sm:$0xff]
        %v5594 = vld [vmem:[%s5585 + $0x40] sm:$0xff]
        %v5595 = vld [vmem:[%s5585 + $0x48] sm:$0xff]
        %v5596 = vld [vmem:[%s5585 + $0x50] sm:$0xff]
        %v5597 = vld [vmem:[%s5585 + $0x58] sm:$0xff]
        %v5598 = vld [vmem:[%s5585 + $0x60] sm:$0xff]
        %v5599 = vld [vmem:[%s5585 + $0x68] sm:$0xff]
        %v5600 = vld [vmem:[%s5585 + $0x70] sm:$0xff]
        %v5601 = vld [vmem:[%s5585 + $0x78] sm:$0xff]
        %5602 = vmatprep.subr.mxu0 0.0
        %5603 = vmatpush1.msra.mxu0 %v5586
        %5604 = vmatprep.subr.mxu0 0.0
        %5605 = vmatpush1.msra.mxu0 %v5587
        %5606 = vmatprep.subr.mxu0 0.0
        %5607 = vmatpush1.msra.mxu0 %v5588
        %5608 = vmatprep.subr.mxu0 0.0
        %5609 = vmatpush1.msra.mxu0 %v5589
        %5610 = vmatprep.subr.mxu0 0.0
        %5611 = vmatpush1.msra.mxu0 %v5590
        %5612 = vmatprep.subr.mxu0 0.0
        %5613 = vmatpush1.msra.mxu0 %v5591
        %5614 = vmatprep.subr.mxu0 0.0
        %5615 = vmatpush1.msra.mxu0 %v5592
        %5616 = vmatprep.subr.mxu0 0.0
        %5617 = vmatpush1.msra.mxu0 %v5593
        %5618 = vmatprep.subr.mxu0 0.0
        %5619 = vmatpush1.msra.mxu0 %v5594
        %5620 = vmatprep.subr.mxu0 0.0
        %5621 = vmatpush1.msra.mxu0 %v5595
        %5622 = vmatprep.subr.mxu0 0.0
        %5623 = vmatpush1.msra.mxu0 %v5596
        %5624 = vmatprep.subr.mxu0 0.0
        %5625 = vmatpush1.msra.mxu0 %v5597
        %5626 = vmatprep.subr.mxu0 0.0
        %5627 = vmatpush1.msra.mxu0 %v5598
        %5628 = vmatprep.subr.mxu0 0.0
        %5629 = vmatpush1.msra.mxu0 %v5599
        %5630 = vmatprep.subr.mxu0 0.0
        %5631 = vmatpush1.msra.mxu0 %v5600
        %5632 = vmatprep.subr.mxu0 0.0
        %5633 = vmatpush1.msra.mxu0 %v5601
        %5634 = vmatprep.subr.mxu0 0.0
        %5635 = vmatpush1.msra.mxu0 0.0
        %5636 = vmatprep.subr.mxu0 0.0
        %5637 = vmatpush1.msra.mxu0 0.0
        %5638 = vmatprep.subr.mxu0 0.0
        %5639 = vmatpush1.msra.mxu0 0.0
        %5640 = vmatprep.subr.mxu0 0.0
        %5641 = vmatpush1.msra.mxu0 0.0
        %5642 = vmatprep.subr.mxu0 0.0
        %5643 = vmatpush1.msra.mxu0 0.0
        %5644 = vmatprep.subr.mxu0 0.0
        %5645 = vmatpush1.msra.mxu0 0.0
        %5646 = vmatprep.subr.mxu0 0.0
        %5647 = vmatpush1.msra.mxu0 0.0
        %5648 = vmatprep.subr.mxu0 0.0
        %5649 = vmatpush1.msra.mxu0 0.0
        %5650 = vmatprep.subr.mxu0 0.0
        %5651 = vmatpush1.msra.mxu0 0.0
        %5652 = vmatprep.subr.mxu0 0.0
        %5653 = vmatpush1.msra.mxu0 0.0
        %5654 = vmatprep.subr.mxu0 0.0
        %5655 = vmatpush1.msra.mxu0 0.0
        %5656 = vmatprep.subr.mxu0 0.0
        %5657 = vmatpush1.msra.mxu0 0.0
        %5658 = vmatprep.subr.mxu0 0.0
        %5659 = vmatpush1.msra.mxu0 0.0
        %5660 = vmatprep.subr.mxu0 0.0
        %5661 = vmatpush1.msra.mxu0 0.0
        %5662 = vmatprep.subr.mxu0 0.0
        %5663 = vmatpush1.msra.mxu0 0.0
        %5664 = vmatprep.subr.mxu0 0.0
        %5665 = vmatpush1.msra.mxu0 0.0
        %5666 = vmatprep.mubr.f32.mxu0 0.0
        %5667 = vmatmul.mubr.f32.gmra.mrb[0].mxu0 %v5567
        %v5668 = vpop.f32.mrb[0].mxu0
        %v5669 = vadd.f32 0.0, %v5668
        %v5670 = vpop.f32.mrb[0].mxu0
        %5671 = vmatprep.mubr.f32.mxu0 0.0
        %5672 = vmatmul.mubr.f32.gmra.mrb[0].mxu0 %v5568
        %v5673 = vpop.f32.mrb[0].mxu0
        %v5674 = vadd.f32 0.0, %v5673
        %v5675 = vpop.f32.mrb[0].mxu0
        %5676 = vmatprep.mubr.f32.mxu0 0.0
        %5677 = vmatmul.mubr.f32.gmra.mrb[0].mxu0 %v5569
        %v5678 = vpop.f32.mrb[0].mxu0
        %v5679 = vadd.f32 0.0, %v5678
        %v5680 = vpop.f32.mrb[0].mxu0
        %5681 = vmatprep.mubr.f32.mxu0 0.0
        %5682 = vmatmul.mubr.f32.gmra.mrb[0].mxu0 %v5570
        %v5683 = vpop.f32.mrb[0].mxu0
        %v5684 = vadd.f32 0.0, %v5683
        %v5685 = vpop.f32.mrb[0].mxu0
        %5686 = vmatprep.mubr.f32.mxu0 0.0
        %5687 = vmatmul.mubr.f32.gmra.mrb[0].mxu0 %v5571
        %v5688 = vpop.f32.mrb[0].mxu0
        %v5689 = vadd.f32 0.0, %v5688
        %v5690 = vpop.f32.mrb[0].mxu0
        %5691 = vmatprep.mubr.f32.mxu0 0.0
        %5692 = vmatmul.mubr.f32.gmra.mrb[0].mxu0 %v5572
        %v5693 = vpop.f32.mrb[0].mxu0
        %v5694 = vadd.f32 0.0, %v5693
        %v5695 = vpop.f32.mrb[0].mxu0
        %5696 = vmatprep.mubr.f32.mxu0 0.0
        %5697 = vmatmul.mubr.f32.gmra.mrb[0].mxu0 %v5573
        %v5698 = vpop.f32.mrb[0].mxu0
        %v5699 = vadd.f32 0.0, %v5698
        %v5700 = vpop.f32.mrb[0].mxu0
        %5701 = vmatprep.mubr.f32.mxu0 0.0
        %5702 = vmatmul.mubr.f32.gmra.mrb[0].mxu0 %v5574
        %v5703 = vpop.f32.mrb[0].mxu0
        %v5704 = vadd.f32 0.0, %v5703
        %v5705 = vpop.f32.mrb[0].mxu0
        %5706 = vmatprep.mubr.f32.mxu0 0.0
        %5707 = vmatmul.mubr.f32.gmra.mrb[0].mxu0 %v5575
        %v5708 = vpop.f32.mrb[0].mxu0
        %v5709 = vadd.f32 0.0, %v5708
        %v5710 = vpop.f32.mrb[0].mxu0
        %5711 = vmatprep.mubr.f32.mxu0 0.0
        %5712 = vmatmul.mubr.f32.gmra.mrb[0].mxu0 %v5576
        %v5713 = vpop.f32.mrb[0].mxu0
        %v5714 = vadd.f32 0.0, %v5713
        %v5715 = vpop.f32.mrb[0].mxu0
        %5716 = vmatprep.mubr.f32.mxu0 0.0
        %5717 = vmatmul.mubr.f32.gmra.mrb[0].mxu0 %v5577
        %v5718 = vpop.f32.mrb[0].mxu0
        %v5719 = vadd.f32 0.0, %v5718
        %v5720 = vpop.f32.mrb[0].mxu0
        %5721 = vmatprep.mubr.f32.mxu0 0.0
        %5722 = vmatmul.mubr.f32.gmra.mrb[0].mxu0 %v5578
        %v5723 = vpop.f32.mrb[0].mxu0
        %v5724 = vadd.f32 0.0, %v5723
        %v5725 = vpop.f32.mrb[0].mxu0
        %5726 = vmatprep.mubr.f32.mxu0 0.0
        %5727 = vmatmul.mubr.f32.gmra.mrb[0].mxu0 %v5579
        %v5728 = vpop.f32.mrb[0].mxu0
        %v5729 = vadd.f32 0.0, %v5728
        %v5730 = vpop.f32.mrb[0].mxu0
        %5731 = vmatprep.mubr.f32.mxu0 0.0
        %5732 = vmatmul.mubr.f32.gmra.mrb[0].mxu0 %v5580
        %v5733 = vpop.f32.mrb[0].mxu0
        %v5734 = vadd.f32 0.0, %v5733
        %v5735 = vpop.f32.mrb[0].mxu0
        %5736 = vmatprep.mubr.f32.mxu0 0.0
        %5737 = vmatmul.mubr.f32.gmra.mrb[0].mxu0 %v5581
        %v5738 = vpop.f32.mrb[0].mxu0
        %v5739 = vadd.f32 0.0, %v5738
        %v5740 = vpop.f32.mrb[0].mxu0
        %5741 = vmatprep.mubr.f32.mxu0 0.0
        %5742 = vmatmul.mubr.f32.gmra.mrb[0].mxu0 %v5582
        %v5743 = vpop.f32.mrb[0].mxu0
        %v5744 = vadd.f32 0.0, %v5743
        %v5745 = vpop.f32.mrb[0].mxu0
        %5746 = vmatprep.mubr.f32.mxu0 0.0
        %5747 = vmatmul.mubr.f32.gmra.mrb[0].mxu0 %v5583
        %v5748 = vpop.f32.mrb[0].mxu0
        %v5749 = vadd.f32 0.0, %v5748
        %v5750 = vpop.f32.mrb[0].mxu0
        %5751 = vmatprep.mubr.f32.mxu0 0.0
        %5752 = vmatmul.mubr.f32.gmra.mrb[0].mxu0 %v5584
        %v5753 = vpop.f32.mrb[0].mxu0
        %v5754 = vadd.f32 0.0, %v5753
        %v5755 = vpop.f32.mrb[0].mxu0
        %5756 = vdwg.mxu0
        %v5757 = vadd.f32 %v5549, %v5669
        %v5758 = vadd.f32 %v5550, %v5674
        %v5759 = vadd.f32 %v5551, %v5679
        %v5760 = vadd.f32 %v5552, %v5684
        %v5761 = vadd.f32 %v5553, %v5689
        %v5762 = vadd.f32 %v5554, %v5694
        %v5763 = vadd.f32 %v5555, %v5699
        %v5764 = vadd.f32 %v5556, %v5704
        %v5765 = vadd.f32 %v5557, %v5709
        %v5766 = vadd.f32 %v5558, %v5714
        %v5767 = vadd.f32 %v5559, %v5719
        %v5768 = vadd.f32 %v5560, %v5724
        %v5769 = vadd.f32 %v5561, %v5729
        %v5770 = vadd.f32 %v5562, %v5734
        %v5771 = vadd.f32 %v5563, %v5739
        %v5772 = vadd.f32 %v5564, %v5744
        %v5773 = vadd.f32 %v5565, %v5749
        %v5774 = vadd.f32 %v5566, %v5754
        %v5775 = vld [vmem:[#allocation2 + $0x50] sm:$0xff]
        %v5776 = vld [vmem:[#allocation2 + $0x58] sm:$0xff]
        %v5777 = vld [vmem:[#allocation2 + $0x60] sm:$0xff]
        %v5778 = vld [vmem:[#allocation2 + $0x68] sm:$0xff]
        %v5779 = vld [vmem:[#allocation2 + $0x70] sm:$0xff]
        %v5780 = vld [vmem:[#allocation2 + $0x78] sm:$0xff]
        %v5781 = vld [vmem:[#allocation2 + $0x80] sm:$0xff]
        %v5782 = vld [vmem:[#allocation2 + $0x88] sm:$0xff]
        %v5783 = vld [vmem:[#allocation2 + $0x90] sm:$0xff]
        %v5784 = vld [vmem:[#allocation2 + $0x98] sm:$0xff]
        %v5785 = vld [vmem:[#allocation2 + $0xa0] sm:$0xff]
        %v5786 = vld [vmem:[#allocation2 + $0xa8] sm:$0xff]
        %v5787 = vld [vmem:[#allocation2 + $0xb0] sm:$0xff]
        %v5788 = vld [vmem:[#allocation2 + $0xb8] sm:$0xff]
        %v5789 = vld [vmem:[#allocation2 + $0xc0] sm:$0xff]
        %v5790 = vld [vmem:[#allocation2 + $0xc8] sm:$0xff]
        %v5791 = vld [vmem:[#allocation2 + $0xd0] sm:$0xff]
        %v5792 = vld [vmem:[#allocation2 + $0xd8] sm:$0xff]
        %s5793 = scalar_lea.vmem [#allocation7], 2944
        %v5794 = vld [vmem:[%s5793] sm:$0xff]
        %v5795 = vld [vmem:[%s5793 + $0x8] sm:$0xff]
        %v5796 = vld [vmem:[%s5793 + $0x10] sm:$0xff]
        %v5797 = vld [vmem:[%s5793 + $0x18] sm:$0xff]
        %v5798 = vld [vmem:[%s5793 + $0x20] sm:$0xff]
        %v5799 = vld [vmem:[%s5793 + $0x28] sm:$0xff]
        %v5800 = vld [vmem:[%s5793 + $0x30] sm:$0xff]
        %v5801 = vld [vmem:[%s5793 + $0x38] sm:$0xff]
        %v5802 = vld [vmem:[%s5793 + $0x40] sm:$0xff]
        %v5803 = vld [vmem:[%s5793 + $0x48] sm:$0xff]
        %v5804 = vld [vmem:[%s5793 + $0x50] sm:$0xff]
        %v5805 = vld [vmem:[%s5793 + $0x58] sm:$0xff]
        %v5806 = vld [vmem:[%s5793 + $0x60] sm:$0xff]
        %v5807 = vld [vmem:[%s5793 + $0x68] sm:$0xff]
        %v5808 = vld [vmem:[%s5793 + $0x70] sm:$0xff]
        %v5809 = vld [vmem:[%s5793 + $0x78] sm:$0xff]
        %5810 = vmatprep.subr.mxu0 0.0
        %5811 = vmatpush1.msra.mxu0 %v5794
        %5812 = vmatprep.subr.mxu0 0.0
        %5813 = vmatpush1.msra.mxu0 %v5795
        %5814 = vmatprep.subr.mxu0 0.0
        %5815 = vmatpush1.msra.mxu0 %v5796
        %5816 = vmatprep.subr.mxu0 0.0
        %5817 = vmatpush1.msra.mxu0 %v5797
        %5818 = vmatprep.subr.mxu0 0.0
        %5819 = vmatpush1.msra.mxu0 %v5798
        %5820 = vmatprep.subr.mxu0 0.0
        %5821 = vmatpush1.msra.mxu0 %v5799
        %5822 = vmatprep.subr.mxu0 0.0
        %5823 = vmatpush1.msra.mxu0 %v5800
        %5824 = vmatprep.subr.mxu0 0.0
        %5825 = vmatpush1.msra.mxu0 %v5801
        %5826 = vmatprep.subr.mxu0 0.0
        %5827 = vmatpush1.msra.mxu0 %v5802
        %5828 = vmatprep.subr.mxu0 0.0
        %5829 = vmatpush1.msra.mxu0 %v5803
        %5830 = vmatprep.subr.mxu0 0.0
        %5831 = vmatpush1.msra.mxu0 %v5804
        %5832 = vmatprep.subr.mxu0 0.0
        %5833 = vmatpush1.msra.mxu0 %v5805
        %5834 = vmatprep.subr.mxu0 0.0
        %5835 = vmatpush1.msra.mxu0 %v5806
        %5836 = vmatprep.subr.mxu0 0.0
        %5837 = vmatpush1.msra.mxu0 %v5807
        %5838 = vmatprep.subr.mxu0 0.0
        %5839 = vmatpush1.msra.mxu0 %v5808
        %5840 = vmatprep.subr.mxu0 0.0
        %5841 = vmatpush1.msra.mxu0 %v5809
        %5842 = vmatprep.subr.mxu0 0.0
        %5843 = vmatpush1.msra.mxu0 0.0
        %5844 = vmatprep.subr.mxu0 0.0
        %5845 = vmatpush1.msra.mxu0 0.0
        %5846 = vmatprep.subr.mxu0 0.0
        %5847 = vmatpush1.msra.mxu0 0.0
        %5848 = vmatprep.subr.mxu0 0.0
        %5849 = vmatpush1.msra.mxu0 0.0
        %5850 = vmatprep.subr.mxu0 0.0
        %5851 = vmatpush1.msra.mxu0 0.0
        %5852 = vmatprep.subr.mxu0 0.0
        %5853 = vmatpush1.msra.mxu0 0.0
        %5854 = vmatprep.subr.mxu0 0.0
        %5855 = vmatpush1.msra.mxu0 0.0
        %5856 = vmatprep.subr.mxu0 0.0
        %5857 = vmatpush1.msra.mxu0 0.0
        %5858 = vmatprep.subr.mxu0 0.0
        %5859 = vmatpush1.msra.mxu0 0.0
        %5860 = vmatprep.subr.mxu0 0.0
        %5861 = vmatpush1.msra.mxu0 0.0
        %5862 = vmatprep.subr.mxu0 0.0
        %5863 = vmatpush1.msra.mxu0 0.0
        %5864 = vmatprep.subr.mxu0 0.0
        %5865 = vmatpush1.msra.mxu0 0.0
        %5866 = vmatprep.subr.mxu0 0.0
        %5867 = vmatpush1.msra.mxu0 0.0
        %5868 = vmatprep.subr.mxu0 0.0
        %5869 = vmatpush1.msra.mxu0 0.0
        %5870 = vmatprep.subr.mxu0 0.0
        %5871 = vmatpush1.msra.mxu0 0.0
        %5872 = vmatprep.subr.mxu0 0.0
        %5873 = vmatpush1.msra.mxu0 0.0
        %5874 = vmatprep.mubr.f32.mxu0 0.0
        %5875 = vmatmul.mubr.f32.gmra.mrb[0].mxu0 %v5775
        %v5876 = vpop.f32.mrb[0].mxu0
        %v5877 = vadd.f32 0.0, %v5876
        %v5878 = vpop.f32.mrb[0].mxu0
        %5879 = vmatprep.mubr.f32.mxu0 0.0
        %5880 = vmatmul.mubr.f32.gmra.mrb[0].mxu0 %v5776
        %v5881 = vpop.f32.mrb[0].mxu0
        %v5882 = vadd.f32 0.0, %v5881
        %v5883 = vpop.f32.mrb[0].mxu0
        %5884 = vmatprep.mubr.f32.mxu0 0.0
        %5885 = vmatmul.mubr.f32.gmra.mrb[0].mxu0 %v5777
        %v5886 = vpop.f32.mrb[0].mxu0
        %v5887 = vadd.f32 0.0, %v5886
        %v5888 = vpop.f32.mrb[0].mxu0
        %5889 = vmatprep.mubr.f32.mxu0 0.0
        %5890 = vmatmul.mubr.f32.gmra.mrb[0].mxu0 %v5778
        %v5891 = vpop.f32.mrb[0].mxu0
        %v5892 = vadd.f32 0.0, %v5891
        %v5893 = vpop.f32.mrb[0].mxu0
        %5894 = vmatprep.mubr.f32.mxu0 0.0
        %5895 = vmatmul.mubr.f32.gmra.mrb[0].mxu0 %v5779
        %v5896 = vpop.f32.mrb[0].mxu0
        %v5897 = vadd.f32 0.0, %v5896
        %v5898 = vpop.f32.mrb[0].mxu0
        %5899 = vmatprep.mubr.f32.mxu0 0.0
        %5900 = vmatmul.mubr.f32.gmra.mrb[0].mxu0 %v5780
        %v5901 = vpop.f32.mrb[0].mxu0
        %v5902 = vadd.f32 0.0, %v5901
        %v5903 = vpop.f32.mrb[0].mxu0
        %5904 = vmatprep.mubr.f32.mxu0 0.0
        %5905 = vmatmul.mubr.f32.gmra.mrb[0].mxu0 %v5781
        %v5906 = vpop.f32.mrb[0].mxu0
        %v5907 = vadd.f32 0.0, %v5906
        %v5908 = vpop.f32.mrb[0].mxu0
        %5909 = vmatprep.mubr.f32.mxu0 0.0
        %5910 = vmatmul.mubr.f32.gmra.mrb[0].mxu0 %v5782
        %v5911 = vpop.f32.mrb[0].mxu0
        %v5912 = vadd.f32 0.0, %v5911
        %v5913 = vpop.f32.mrb[0].mxu0
        %5914 = vmatprep.mubr.f32.mxu0 0.0
        %5915 = vmatmul.mubr.f32.gmra.mrb[0].mxu0 %v5783
        %v5916 = vpop.f32.mrb[0].mxu0
        %v5917 = vadd.f32 0.0, %v5916
        %v5918 = vpop.f32.mrb[0].mxu0
        %5919 = vmatprep.mubr.f32.mxu0 0.0
        %5920 = vmatmul.mubr.f32.gmra.mrb[0].mxu0 %v5784
        %v5921 = vpop.f32.mrb[0].mxu0
        %v5922 = vadd.f32 0.0, %v5921
        %v5923 = vpop.f32.mrb[0].mxu0
        %5924 = vmatprep.mubr.f32.mxu0 0.0
        %5925 = vmatmul.mubr.f32.gmra.mrb[0].mxu0 %v5785
        %v5926 = vpop.f32.mrb[0].mxu0
        %v5927 = vadd.f32 0.0, %v5926
        %v5928 = vpop.f32.mrb[0].mxu0
        %5929 = vmatprep.mubr.f32.mxu0 0.0
        %5930 = vmatmul.mubr.f32.gmra.mrb[0].mxu0 %v5786
        %v5931 = vpop.f32.mrb[0].mxu0
        %v5932 = vadd.f32 0.0, %v5931
        %v5933 = vpop.f32.mrb[0].mxu0
        %5934 = vmatprep.mubr.f32.mxu0 0.0
        %5935 = vmatmul.mubr.f32.gmra.mrb[0].mxu0 %v5787
        %v5936 = vpop.f32.mrb[0].mxu0
        %v5937 = vadd.f32 0.0, %v5936
        %v5938 = vpop.f32.mrb[0].mxu0
        %5939 = vmatprep.mubr.f32.mxu0 0.0
        %5940 = vmatmul.mubr.f32.gmra.mrb[0].mxu0 %v5788
        %v5941 = vpop.f32.mrb[0].mxu0
        %v5942 = vadd.f32 0.0, %v5941
        %v5943 = vpop.f32.mrb[0].mxu0
        %5944 = vmatprep.mubr.f32.mxu0 0.0
        %5945 = vmatmul.mubr.f32.gmra.mrb[0].mxu0 %v5789
        %v5946 = vpop.f32.mrb[0].mxu0
        %v5947 = vadd.f32 0.0, %v5946
        %v5948 = vpop.f32.mrb[0].mxu0
        %5949 = vmatprep.mubr.f32.mxu0 0.0
        %5950 = vmatmul.mubr.f32.gmra.mrb[0].mxu0 %v5790
        %v5951 = vpop.f32.mrb[0].mxu0
        %v5952 = vadd.f32 0.0, %v5951
        %v5953 = vpop.f32.mrb[0].mxu0
        %5954 = vmatprep.mubr.f32.mxu0 0.0
        %5955 = vmatmul.mubr.f32.gmra.mrb[0].mxu0 %v5791
        %v5956 = vpop.f32.mrb[0].mxu0
        %v5957 = vadd.f32 0.0, %v5956
        %v5958 = vpop.f32.mrb[0].mxu0
        %5959 = vmatprep.mubr.f32.mxu0 0.0
        %5960 = vmatmul.mubr.f32.gmra.mrb[0].mxu0 %v5792
        %v5961 = vpop.f32.mrb[0].mxu0
        %v5962 = vadd.f32 0.0, %v5961
        %v5963 = vpop.f32.mrb[0].mxu0
        %5964 = vdwg.mxu0
        %v5965 = vadd.f32 %v5757, %v5877
        %v5966 = vadd.f32 %v5758, %v5882
        %v5967 = vadd.f32 %v5759, %v5887
        %v5968 = vadd.f32 %v5760, %v5892
        %v5969 = vadd.f32 %v5761, %v5897
        %v5970 = vadd.f32 %v5762, %v5902
        %v5971 = vadd.f32 %v5763, %v5907
        %v5972 = vadd.f32 %v5764, %v5912
        %v5973 = vadd.f32 %v5765, %v5917
        %v5974 = vadd.f32 %v5766, %v5922
        %v5975 = vadd.f32 %v5767, %v5927
        %v5976 = vadd.f32 %v5768, %v5932
        %v5977 = vadd.f32 %v5769, %v5937
        %v5978 = vadd.f32 %v5770, %v5942
        %v5979 = vadd.f32 %v5771, %v5947
        %v5980 = vadd.f32 %v5772, %v5952
        %v5981 = vadd.f32 %v5773, %v5957
        %v5982 = vadd.f32 %v5774, %v5962
        %v5983 = vld [vmem:[#allocation2 + $0x54] sm:$0xff]
        %v5984 = vld [vmem:[#allocation2 + $0x5c] sm:$0xff]
        %v5985 = vld [vmem:[#allocation2 + $0x64] sm:$0xff]
        %v5986 = vld [vmem:[#allocation2 + $0x6c] sm:$0xff]
        %v5987 = vld [vmem:[#allocation2 + $0x74] sm:$0xff]
        %v5988 = vld [vmem:[#allocation2 + $0x7c] sm:$0xff]
        %v5989 = vld [vmem:[#allocation2 + $0x84] sm:$0xff]
        %v5990 = vld [vmem:[#allocation2 + $0x8c] sm:$0xff]
        %v5991 = vld [vmem:[#allocation2 + $0x94] sm:$0xff]
        %v5992 = vld [vmem:[#allocation2 + $0x9c] sm:$0xff]
        %v5993 = vld [vmem:[#allocation2 + $0xa4] sm:$0xff]
        %v5994 = vld [vmem:[#allocation2 + $0xac] sm:$0xff]
        %v5995 = vld [vmem:[#allocation2 + $0xb4] sm:$0xff]
        %v5996 = vld [vmem:[#allocation2 + $0xbc] sm:$0xff]
        %v5997 = vld [vmem:[#allocation2 + $0xc4] sm:$0xff]
        %v5998 = vld [vmem:[#allocation2 + $0xcc] sm:$0xff]
        %v5999 = vld [vmem:[#allocation2 + $0xd4] sm:$0xff]
        %v6000 = vld [vmem:[#allocation2 + $0xdc] sm:$0xff]
        %s6001 = scalar_lea.vmem [#allocation7], 3072
        %v6002 = vld [vmem:[%s6001] sm:$0xff]
        %v6003 = vld [vmem:[%s6001 + $0x8] sm:$0xff]
        %v6004 = vld [vmem:[%s6001 + $0x10] sm:$0xff]
        %v6005 = vld [vmem:[%s6001 + $0x18] sm:$0xff]
        %v6006 = vld [vmem:[%s6001 + $0x20] sm:$0xff]
        %v6007 = vld [vmem:[%s6001 + $0x28] sm:$0xff]
        %v6008 = vld [vmem:[%s6001 + $0x30] sm:$0xff]
        %v6009 = vld [vmem:[%s6001 + $0x38] sm:$0xff]
        %v6010 = vld [vmem:[%s6001 + $0x40] sm:$0xff]
        %v6011 = vld [vmem:[%s6001 + $0x48] sm:$0xff]
        %v6012 = vld [vmem:[%s6001 + $0x50] sm:$0xff]
        %v6013 = vld [vmem:[%s6001 + $0x58] sm:$0xff]
        %v6014 = vld [vmem:[%s6001 + $0x60] sm:$0xff]
        %v6015 = vld [vmem:[%s6001 + $0x68] sm:$0xff]
        %v6016 = vld [vmem:[%s6001 + $0x70] sm:$0xff]
        %v6017 = vld [vmem:[%s6001 + $0x78] sm:$0xff]
        %6018 = vmatprep.subr.mxu0 0.0
        %6019 = vmatpush1.msra.mxu0 %v6002
        %6020 = vmatprep.subr.mxu0 0.0
        %6021 = vmatpush1.msra.mxu0 %v6003
        %6022 = vmatprep.subr.mxu0 0.0
        %6023 = vmatpush1.msra.mxu0 %v6004
        %6024 = vmatprep.subr.mxu0 0.0
        %6025 = vmatpush1.msra.mxu0 %v6005
        %6026 = vmatprep.subr.mxu0 0.0
        %6027 = vmatpush1.msra.mxu0 %v6006
        %6028 = vmatprep.subr.mxu0 0.0
        %6029 = vmatpush1.msra.mxu0 %v6007
        %6030 = vmatprep.subr.mxu0 0.0
        %6031 = vmatpush1.msra.mxu0 %v6008
        %6032 = vmatprep.subr.mxu0 0.0
        %6033 = vmatpush1.msra.mxu0 %v6009
        %6034 = vmatprep.subr.mxu0 0.0
        %6035 = vmatpush1.msra.mxu0 %v6010
        %6036 = vmatprep.subr.mxu0 0.0
        %6037 = vmatpush1.msra.mxu0 %v6011
        %6038 = vmatprep.subr.mxu0 0.0
        %6039 = vmatpush1.msra.mxu0 %v6012
        %6040 = vmatprep.subr.mxu0 0.0
        %6041 = vmatpush1.msra.mxu0 %v6013
        %6042 = vmatprep.subr.mxu0 0.0
        %6043 = vmatpush1.msra.mxu0 %v6014
        %6044 = vmatprep.subr.mxu0 0.0
        %6045 = vmatpush1.msra.mxu0 %v6015
        %6046 = vmatprep.subr.mxu0 0.0
        %6047 = vmatpush1.msra.mxu0 %v6016
        %6048 = vmatprep.subr.mxu0 0.0
        %6049 = vmatpush1.msra.mxu0 %v6017
        %6050 = vmatprep.subr.mxu0 0.0
        %6051 = vmatpush1.msra.mxu0 0.0
        %6052 = vmatprep.subr.mxu0 0.0
        %6053 = vmatpush1.msra.mxu0 0.0
        %6054 = vmatprep.subr.mxu0 0.0
        %6055 = vmatpush1.msra.mxu0 0.0
        %6056 = vmatprep.subr.mxu0 0.0
        %6057 = vmatpush1.msra.mxu0 0.0
        %6058 = vmatprep.subr.mxu0 0.0
        %6059 = vmatpush1.msra.mxu0 0.0
        %6060 = vmatprep.subr.mxu0 0.0
        %6061 = vmatpush1.msra.mxu0 0.0
        %6062 = vmatprep.subr.mxu0 0.0
        %6063 = vmatpush1.msra.mxu0 0.0
        %6064 = vmatprep.subr.mxu0 0.0
        %6065 = vmatpush1.msra.mxu0 0.0
        %6066 = vmatprep.subr.mxu0 0.0
        %6067 = vmatpush1.msra.mxu0 0.0
        %6068 = vmatprep.subr.mxu0 0.0
        %6069 = vmatpush1.msra.mxu0 0.0
        %6070 = vmatprep.subr.mxu0 0.0
        %6071 = vmatpush1.msra.mxu0 0.0
        %6072 = vmatprep.subr.mxu0 0.0
        %6073 = vmatpush1.msra.mxu0 0.0
        %6074 = vmatprep.subr.mxu0 0.0
        %6075 = vmatpush1.msra.mxu0 0.0
        %6076 = vmatprep.subr.mxu0 0.0
        %6077 = vmatpush1.msra.mxu0 0.0
        %6078 = vmatprep.subr.mxu0 0.0
        %6079 = vmatpush1.msra.mxu0 0.0
        %6080 = vmatprep.subr.mxu0 0.0
        %6081 = vmatpush1.msra.mxu0 0.0
        %6082 = vmatprep.mubr.f32.mxu0 0.0
        %6083 = vmatmul.mubr.f32.gmra.mrb[0].mxu0 %v5983
        %v6084 = vpop.f32.mrb[0].mxu0
        %v6085 = vadd.f32 0.0, %v6084
        %v6086 = vpop.f32.mrb[0].mxu0
        %6087 = vmatprep.mubr.f32.mxu0 0.0
        %6088 = vmatmul.mubr.f32.gmra.mrb[0].mxu0 %v5984
        %v6089 = vpop.f32.mrb[0].mxu0
        %v6090 = vadd.f32 0.0, %v6089
        %v6091 = vpop.f32.mrb[0].mxu0
        %6092 = vmatprep.mubr.f32.mxu0 0.0
        %6093 = vmatmul.mubr.f32.gmra.mrb[0].mxu0 %v5985
        %v6094 = vpop.f32.mrb[0].mxu0
        %v6095 = vadd.f32 0.0, %v6094
        %v6096 = vpop.f32.mrb[0].mxu0
        %6097 = vmatprep.mubr.f32.mxu0 0.0
        %6098 = vmatmul.mubr.f32.gmra.mrb[0].mxu0 %v5986
        %v6099 = vpop.f32.mrb[0].mxu0
        %v6100 = vadd.f32 0.0, %v6099
        %v6101 = vpop.f32.mrb[0].mxu0
        %6102 = vmatprep.mubr.f32.mxu0 0.0
        %6103 = vmatmul.mubr.f32.gmra.mrb[0].mxu0 %v5987
        %v6104 = vpop.f32.mrb[0].mxu0
        %v6105 = vadd.f32 0.0, %v6104
        %v6106 = vpop.f32.mrb[0].mxu0
        %6107 = vmatprep.mubr.f32.mxu0 0.0
        %6108 = vmatmul.mubr.f32.gmra.mrb[0].mxu0 %v5988
        %v6109 = vpop.f32.mrb[0].mxu0
        %v6110 = vadd.f32 0.0, %v6109
        %v6111 = vpop.f32.mrb[0].mxu0
        %6112 = vmatprep.mubr.f32.mxu0 0.0
        %6113 = vmatmul.mubr.f32.gmra.mrb[0].mxu0 %v5989
        %v6114 = vpop.f32.mrb[0].mxu0
        %v6115 = vadd.f32 0.0, %v6114
        %v6116 = vpop.f32.mrb[0].mxu0
        %6117 = vmatprep.mubr.f32.mxu0 0.0
        %6118 = vmatmul.mubr.f32.gmra.mrb[0].mxu0 %v5990
        %v6119 = vpop.f32.mrb[0].mxu0
        %v6120 = vadd.f32 0.0, %v6119
        %v6121 = vpop.f32.mrb[0].mxu0
        %6122 = vmatprep.mubr.f32.mxu0 0.0
        %6123 = vmatmul.mubr.f32.gmra.mrb[0].mxu0 %v5991
        %v6124 = vpop.f32.mrb[0].mxu0
        %v6125 = vadd.f32 0.0, %v6124
        %v6126 = vpop.f32.mrb[0].mxu0
        %6127 = vmatprep.mubr.f32.mxu0 0.0
        %6128 = vmatmul.mubr.f32.gmra.mrb[0].mxu0 %v5992
        %v6129 = vpop.f32.mrb[0].mxu0
        %v6130 = vadd.f32 0.0, %v6129
        %v6131 = vpop.f32.mrb[0].mxu0
        %6132 = vmatprep.mubr.f32.mxu0 0.0
        %6133 = vmatmul.mubr.f32.gmra.mrb[0].mxu0 %v5993
        %v6134 = vpop.f32.mrb[0].mxu0
        %v6135 = vadd.f32 0.0, %v6134
        %v6136 = vpop.f32.mrb[0].mxu0
        %6137 = vmatprep.mubr.f32.mxu0 0.0
        %6138 = vmatmul.mubr.f32.gmra.mrb[0].mxu0 %v5994
        %v6139 = vpop.f32.mrb[0].mxu0
        %v6140 = vadd.f32 0.0, %v6139
        %v6141 = vpop.f32.mrb[0].mxu0
        %6142 = vmatprep.mubr.f32.mxu0 0.0
        %6143 = vmatmul.mubr.f32.gmra.mrb[0].mxu0 %v5995
        %v6144 = vpop.f32.mrb[0].mxu0
        %v6145 = vadd.f32 0.0, %v6144
        %v6146 = vpop.f32.mrb[0].mxu0
        %6147 = vmatprep.mubr.f32.mxu0 0.0
        %6148 = vmatmul.mubr.f32.gmra.mrb[0].mxu0 %v5996
        %v6149 = vpop.f32.mrb[0].mxu0
        %v6150 = vadd.f32 0.0, %v6149
        %v6151 = vpop.f32.mrb[0].mxu0
        %6152 = vmatprep.mubr.f32.mxu0 0.0
        %6153 = vmatmul.mubr.f32.gmra.mrb[0].mxu0 %v5997
        %v6154 = vpop.f32.mrb[0].mxu0
        %v6155 = vadd.f32 0.0, %v6154
        %v6156 = vpop.f32.mrb[0].mxu0
        %6157 = vmatprep.mubr.f32.mxu0 0.0
        %6158 = vmatmul.mubr.f32.gmra.mrb[0].mxu0 %v5998
        %v6159 = vpop.f32.mrb[0].mxu0
        %v6160 = vadd.f32 0.0, %v6159
        %v6161 = vpop.f32.mrb[0].mxu0
        %6162 = vmatprep.mubr.f32.mxu0 0.0
        %6163 = vmatmul.mubr.f32.gmra.mrb[0].mxu0 %v5999
        %v6164 = vpop.f32.mrb[0].mxu0
        %v6165 = vadd.f32 0.0, %v6164
        %v6166 = vpop.f32.mrb[0].mxu0
        %6167 = vmatprep.mubr.f32.mxu0 0.0
        %6168 = vmatmul.mubr.f32.gmra.mrb[0].mxu0 %v6000
        %v6169 = vpop.f32.mrb[0].mxu0
        %v6170 = vadd.f32 0.0, %v6169
        %v6171 = vpop.f32.mrb[0].mxu0
        %6172 = vdwg.mxu0
        %v6173 = vadd.f32 %v5965, %v6085
        %v6174 = vadd.f32 %v5966, %v6090
        %v6175 = vadd.f32 %v5967, %v6095
        %v6176 = vadd.f32 %v5968, %v6100
        %v6177 = vadd.f32 %v5969, %v6105
        %v6178 = vadd.f32 %v5970, %v6110
        %v6179 = vadd.f32 %v5971, %v6115
        %v6180 = vadd.f32 %v5972, %v6120
        %v6181 = vadd.f32 %v5973, %v6125
        %v6182 = vadd.f32 %v5974, %v6130
        %v6183 = vadd.f32 %v5975, %v6135
        %v6184 = vadd.f32 %v5976, %v6140
        %v6185 = vadd.f32 %v5977, %v6145
        %v6186 = vadd.f32 %v5978, %v6150
        %v6187 = vadd.f32 %v5979, %v6155
        %v6188 = vadd.f32 %v5980, %v6160
        %v6189 = vadd.f32 %v5981, %v6165
        %v6190 = vadd.f32 %v5982, %v6170
        %v6191 = vld [vmem:[#allocation2 + $0x55] sm:$0xff]
        %v6192 = vld [vmem:[#allocation2 + $0x5d] sm:$0xff]
        %v6193 = vld [vmem:[#allocation2 + $0x65] sm:$0xff]
        %v6194 = vld [vmem:[#allocation2 + $0x6d] sm:$0xff]
        %v6195 = vld [vmem:[#allocation2 + $0x75] sm:$0xff]
        %v6196 = vld [vmem:[#allocation2 + $0x7d] sm:$0xff]
        %v6197 = vld [vmem:[#allocation2 + $0x85] sm:$0xff]
        %v6198 = vld [vmem:[#allocation2 + $0x8d] sm:$0xff]
        %v6199 = vld [vmem:[#allocation2 + $0x95] sm:$0xff]
        %v6200 = vld [vmem:[#allocation2 + $0x9d] sm:$0xff]
        %v6201 = vld [vmem:[#allocation2 + $0xa5] sm:$0xff]
        %v6202 = vld [vmem:[#allocation2 + $0xad] sm:$0xff]
        %v6203 = vld [vmem:[#allocation2 + $0xb5] sm:$0xff]
        %v6204 = vld [vmem:[#allocation2 + $0xbd] sm:$0xff]
        %v6205 = vld [vmem:[#allocation2 + $0xc5] sm:$0xff]
        %v6206 = vld [vmem:[#allocation2 + $0xcd] sm:$0xff]
        %v6207 = vld [vmem:[#allocation2 + $0xd5] sm:$0xff]
        %v6208 = vld [vmem:[#allocation2 + $0xdd] sm:$0xff]
        %s6209 = scalar_lea.vmem [#allocation7], 3200
        %v6210 = vld [vmem:[%s6209] sm:$0xff]
        %v6211 = vld [vmem:[%s6209 + $0x8] sm:$0xff]
        %v6212 = vld [vmem:[%s6209 + $0x10] sm:$0xff]
        %v6213 = vld [vmem:[%s6209 + $0x18] sm:$0xff]
        %v6214 = vld [vmem:[%s6209 + $0x20] sm:$0xff]
        %v6215 = vld [vmem:[%s6209 + $0x28] sm:$0xff]
        %v6216 = vld [vmem:[%s6209 + $0x30] sm:$0xff]
        %v6217 = vld [vmem:[%s6209 + $0x38] sm:$0xff]
        %v6218 = vld [vmem:[%s6209 + $0x40] sm:$0xff]
        %v6219 = vld [vmem:[%s6209 + $0x48] sm:$0xff]
        %v6220 = vld [vmem:[%s6209 + $0x50] sm:$0xff]
        %v6221 = vld [vmem:[%s6209 + $0x58] sm:$0xff]
        %v6222 = vld [vmem:[%s6209 + $0x60] sm:$0xff]
        %v6223 = vld [vmem:[%s6209 + $0x68] sm:$0xff]
        %v6224 = vld [vmem:[%s6209 + $0x70] sm:$0xff]
        %v6225 = vld [vmem:[%s6209 + $0x78] sm:$0xff]
        %6226 = vmatprep.subr.mxu0 0.0
        %6227 = vmatpush1.msra.mxu0 %v6210
        %6228 = vmatprep.subr.mxu0 0.0
        %6229 = vmatpush1.msra.mxu0 %v6211
        %6230 = vmatprep.subr.mxu0 0.0
        %6231 = vmatpush1.msra.mxu0 %v6212
        %6232 = vmatprep.subr.mxu0 0.0
        %6233 = vmatpush1.msra.mxu0 %v6213
        %6234 = vmatprep.subr.mxu0 0.0
        %6235 = vmatpush1.msra.mxu0 %v6214
        %6236 = vmatprep.subr.mxu0 0.0
        %6237 = vmatpush1.msra.mxu0 %v6215
        %6238 = vmatprep.subr.mxu0 0.0
        %6239 = vmatpush1.msra.mxu0 %v6216
        %6240 = vmatprep.subr.mxu0 0.0
        %6241 = vmatpush1.msra.mxu0 %v6217
        %6242 = vmatprep.subr.mxu0 0.0
        %6243 = vmatpush1.msra.mxu0 %v6218
        %6244 = vmatprep.subr.mxu0 0.0
        %6245 = vmatpush1.msra.mxu0 %v6219
        %6246 = vmatprep.subr.mxu0 0.0
        %6247 = vmatpush1.msra.mxu0 %v6220
        %6248 = vmatprep.subr.mxu0 0.0
        %6249 = vmatpush1.msra.mxu0 %v6221
        %6250 = vmatprep.subr.mxu0 0.0
        %6251 = vmatpush1.msra.mxu0 %v6222
        %6252 = vmatprep.subr.mxu0 0.0
        %6253 = vmatpush1.msra.mxu0 %v6223
        %6254 = vmatprep.subr.mxu0 0.0
        %6255 = vmatpush1.msra.mxu0 %v6224
        %6256 = vmatprep.subr.mxu0 0.0
        %6257 = vmatpush1.msra.mxu0 %v6225
        %6258 = vmatprep.subr.mxu0 0.0
        %6259 = vmatpush1.msra.mxu0 0.0
        %6260 = vmatprep.subr.mxu0 0.0
        %6261 = vmatpush1.msra.mxu0 0.0
        %6262 = vmatprep.subr.mxu0 0.0
        %6263 = vmatpush1.msra.mxu0 0.0
        %6264 = vmatprep.subr.mxu0 0.0
        %6265 = vmatpush1.msra.mxu0 0.0
        %6266 = vmatprep.subr.mxu0 0.0
        %6267 = vmatpush1.msra.mxu0 0.0
        %6268 = vmatprep.subr.mxu0 0.0
        %6269 = vmatpush1.msra.mxu0 0.0
        %6270 = vmatprep.subr.mxu0 0.0
        %6271 = vmatpush1.msra.mxu0 0.0
        %6272 = vmatprep.subr.mxu0 0.0
        %6273 = vmatpush1.msra.mxu0 0.0
        %6274 = vmatprep.subr.mxu0 0.0
        %6275 = vmatpush1.msra.mxu0 0.0
        %6276 = vmatprep.subr.mxu0 0.0
        %6277 = vmatpush1.msra.mxu0 0.0
        %6278 = vmatprep.subr.mxu0 0.0
        %6279 = vmatpush1.msra.mxu0 0.0
        %6280 = vmatprep.subr.mxu0 0.0
        %6281 = vmatpush1.msra.mxu0 0.0
        %6282 = vmatprep.subr.mxu0 0.0
        %6283 = vmatpush1.msra.mxu0 0.0
        %6284 = vmatprep.subr.mxu0 0.0
        %6285 = vmatpush1.msra.mxu0 0.0
        %6286 = vmatprep.subr.mxu0 0.0
        %6287 = vmatpush1.msra.mxu0 0.0
        %6288 = vmatprep.subr.mxu0 0.0
        %6289 = vmatpush1.msra.mxu0 0.0
        %6290 = vmatprep.mubr.f32.mxu0 0.0
        %6291 = vmatmul.mubr.f32.gmra.mrb[0].mxu0 %v6191
        %v6292 = vpop.f32.mrb[0].mxu0
        %v6293 = vadd.f32 0.0, %v6292
        %v6294 = vpop.f32.mrb[0].mxu0
        %6295 = vmatprep.mubr.f32.mxu0 0.0
        %6296 = vmatmul.mubr.f32.gmra.mrb[0].mxu0 %v6192
        %v6297 = vpop.f32.mrb[0].mxu0
        %v6298 = vadd.f32 0.0, %v6297
        %v6299 = vpop.f32.mrb[0].mxu0
        %6300 = vmatprep.mubr.f32.mxu0 0.0
        %6301 = vmatmul.mubr.f32.gmra.mrb[0].mxu0 %v6193
        %v6302 = vpop.f32.mrb[0].mxu0
        %v6303 = vadd.f32 0.0, %v6302
        %v6304 = vpop.f32.mrb[0].mxu0
        %6305 = vmatprep.mubr.f32.mxu0 0.0
        %6306 = vmatmul.mubr.f32.gmra.mrb[0].mxu0 %v6194
        %v6307 = vpop.f32.mrb[0].mxu0
        %v6308 = vadd.f32 0.0, %v6307
        %v6309 = vpop.f32.mrb[0].mxu0
        %6310 = vmatprep.mubr.f32.mxu0 0.0
        %6311 = vmatmul.mubr.f32.gmra.mrb[0].mxu0 %v6195
        %v6312 = vpop.f32.mrb[0].mxu0
        %v6313 = vadd.f32 0.0, %v6312
        %v6314 = vpop.f32.mrb[0].mxu0
        %6315 = vmatprep.mubr.f32.mxu0 0.0
        %6316 = vmatmul.mubr.f32.gmra.mrb[0].mxu0 %v6196
        %v6317 = vpop.f32.mrb[0].mxu0
        %v6318 = vadd.f32 0.0, %v6317
        %v6319 = vpop.f32.mrb[0].mxu0
        %6320 = vmatprep.mubr.f32.mxu0 0.0
        %6321 = vmatmul.mubr.f32.gmra.mrb[0].mxu0 %v6197
        %v6322 = vpop.f32.mrb[0].mxu0
        %v6323 = vadd.f32 0.0, %v6322
        %v6324 = vpop.f32.mrb[0].mxu0
        %6325 = vmatprep.mubr.f32.mxu0 0.0
        %6326 = vmatmul.mubr.f32.gmra.mrb[0].mxu0 %v6198
        %v6327 = vpop.f32.mrb[0].mxu0
        %v6328 = vadd.f32 0.0, %v6327
        %v6329 = vpop.f32.mrb[0].mxu0
        %6330 = vmatprep.mubr.f32.mxu0 0.0
        %6331 = vmatmul.mubr.f32.gmra.mrb[0].mxu0 %v6199
        %v6332 = vpop.f32.mrb[0].mxu0
        %v6333 = vadd.f32 0.0, %v6332
        %v6334 = vpop.f32.mrb[0].mxu0
        %6335 = vmatprep.mubr.f32.mxu0 0.0
        %6336 = vmatmul.mubr.f32.gmra.mrb[0].mxu0 %v6200
        %v6337 = vpop.f32.mrb[0].mxu0
        %v6338 = vadd.f32 0.0, %v6337
        %v6339 = vpop.f32.mrb[0].mxu0
        %6340 = vmatprep.mubr.f32.mxu0 0.0
        %6341 = vmatmul.mubr.f32.gmra.mrb[0].mxu0 %v6201
        %v6342 = vpop.f32.mrb[0].mxu0
        %v6343 = vadd.f32 0.0, %v6342
        %v6344 = vpop.f32.mrb[0].mxu0
        %6345 = vmatprep.mubr.f32.mxu0 0.0
        %6346 = vmatmul.mubr.f32.gmra.mrb[0].mxu0 %v6202
        %v6347 = vpop.f32.mrb[0].mxu0
        %v6348 = vadd.f32 0.0, %v6347
        %v6349 = vpop.f32.mrb[0].mxu0
        %6350 = vmatprep.mubr.f32.mxu0 0.0
        %6351 = vmatmul.mubr.f32.gmra.mrb[0].mxu0 %v6203
        %v6352 = vpop.f32.mrb[0].mxu0
        %v6353 = vadd.f32 0.0, %v6352
        %v6354 = vpop.f32.mrb[0].mxu0
        %6355 = vmatprep.mubr.f32.mxu0 0.0
        %6356 = vmatmul.mubr.f32.gmra.mrb[0].mxu0 %v6204
        %v6357 = vpop.f32.mrb[0].mxu0
        %v6358 = vadd.f32 0.0, %v6357
        %v6359 = vpop.f32.mrb[0].mxu0
        %6360 = vmatprep.mubr.f32.mxu0 0.0
        %6361 = vmatmul.mubr.f32.gmra.mrb[0].mxu0 %v6205
        %v6362 = vpop.f32.mrb[0].mxu0
        %v6363 = vadd.f32 0.0, %v6362
        %v6364 = vpop.f32.mrb[0].mxu0
        %6365 = vmatprep.mubr.f32.mxu0 0.0
        %6366 = vmatmul.mubr.f32.gmra.mrb[0].mxu0 %v6206
        %v6367 = vpop.f32.mrb[0].mxu0
        %v6368 = vadd.f32 0.0, %v6367
        %v6369 = vpop.f32.mrb[0].mxu0
        %6370 = vmatprep.mubr.f32.mxu0 0.0
        %6371 = vmatmul.mubr.f32.gmra.mrb[0].mxu0 %v6207
        %v6372 = vpop.f32.mrb[0].mxu0
        %v6373 = vadd.f32 0.0, %v6372
        %v6374 = vpop.f32.mrb[0].mxu0
        %6375 = vmatprep.mubr.f32.mxu0 0.0
        %6376 = vmatmul.mubr.f32.gmra.mrb[0].mxu0 %v6208
        %v6377 = vpop.f32.mrb[0].mxu0
        %v6378 = vadd.f32 0.0, %v6377
        %v6379 = vpop.f32.mrb[0].mxu0
        %6380 = vdwg.mxu0
        %v6381 = vadd.f32 %v6173, %v6293
        %v6382 = vadd.f32 %v6174, %v6298
        %v6383 = vadd.f32 %v6175, %v6303
        %v6384 = vadd.f32 %v6176, %v6308
        %v6385 = vadd.f32 %v6177, %v6313
        %v6386 = vadd.f32 %v6178, %v6318
        %v6387 = vadd.f32 %v6179, %v6323
        %v6388 = vadd.f32 %v6180, %v6328
        %v6389 = vadd.f32 %v6181, %v6333
        %v6390 = vadd.f32 %v6182, %v6338
        %v6391 = vadd.f32 %v6183, %v6343
        %v6392 = vadd.f32 %v6184, %v6348
        %v6393 = vadd.f32 %v6185, %v6353
        %v6394 = vadd.f32 %v6186, %v6358
        %v6395 = vadd.f32 %v6187, %v6363
        %v6396 = vadd.f32 %v6188, %v6368
        %v6397 = vadd.f32 %v6189, %v6373
        %v6398 = vadd.f32 %v6190, %v6378
        %v6399 = vld [vmem:[#allocation2 + $0x56] sm:$0xff]
        %v6400 = vld [vmem:[#allocation2 + $0x5e] sm:$0xff]
        %v6401 = vld [vmem:[#allocation2 + $0x66] sm:$0xff]
        %v6402 = vld [vmem:[#allocation2 + $0x6e] sm:$0xff]
        %v6403 = vld [vmem:[#allocation2 + $0x76] sm:$0xff]
        %v6404 = vld [vmem:[#allocation2 + $0x7e] sm:$0xff]
        %v6405 = vld [vmem:[#allocation2 + $0x86] sm:$0xff]
        %v6406 = vld [vmem:[#allocation2 + $0x8e] sm:$0xff]
        %v6407 = vld [vmem:[#allocation2 + $0x96] sm:$0xff]
        %v6408 = vld [vmem:[#allocation2 + $0x9e] sm:$0xff]
        %v6409 = vld [vmem:[#allocation2 + $0xa6] sm:$0xff]
        %v6410 = vld [vmem:[#allocation2 + $0xae] sm:$0xff]
        %v6411 = vld [vmem:[#allocation2 + $0xb6] sm:$0xff]
        %v6412 = vld [vmem:[#allocation2 + $0xbe] sm:$0xff]
        %v6413 = vld [vmem:[#allocation2 + $0xc6] sm:$0xff]
        %v6414 = vld [vmem:[#allocation2 + $0xce] sm:$0xff]
        %v6415 = vld [vmem:[#allocation2 + $0xd6] sm:$0xff]
        %v6416 = vld [vmem:[#allocation2 + $0xde] sm:$0xff]
        %s6417 = scalar_lea.vmem [#allocation7], 3328
        %v6418 = vld [vmem:[%s6417] sm:$0xff]
        %v6419 = vld [vmem:[%s6417 + $0x8] sm:$0xff]
        %v6420 = vld [vmem:[%s6417 + $0x10] sm:$0xff]
        %v6421 = vld [vmem:[%s6417 + $0x18] sm:$0xff]
        %v6422 = vld [vmem:[%s6417 + $0x20] sm:$0xff]
        %v6423 = vld [vmem:[%s6417 + $0x28] sm:$0xff]
        %v6424 = vld [vmem:[%s6417 + $0x30] sm:$0xff]
        %v6425 = vld [vmem:[%s6417 + $0x38] sm:$0xff]
        %v6426 = vld [vmem:[%s6417 + $0x40] sm:$0xff]
        %v6427 = vld [vmem:[%s6417 + $0x48] sm:$0xff]
        %v6428 = vld [vmem:[%s6417 + $0x50] sm:$0xff]
        %v6429 = vld [vmem:[%s6417 + $0x58] sm:$0xff]
        %v6430 = vld [vmem:[%s6417 + $0x60] sm:$0xff]
        %v6431 = vld [vmem:[%s6417 + $0x68] sm:$0xff]
        %v6432 = vld [vmem:[%s6417 + $0x70] sm:$0xff]
        %v6433 = vld [vmem:[%s6417 + $0x78] sm:$0xff]
        %6434 = vmatprep.subr.mxu0 0.0
        %6435 = vmatpush1.msra.mxu0 %v6418
        %6436 = vmatprep.subr.mxu0 0.0
        %6437 = vmatpush1.msra.mxu0 %v6419
        %6438 = vmatprep.subr.mxu0 0.0
        %6439 = vmatpush1.msra.mxu0 %v6420
        %6440 = vmatprep.subr.mxu0 0.0
        %6441 = vmatpush1.msra.mxu0 %v6421
        %6442 = vmatprep.subr.mxu0 0.0
        %6443 = vmatpush1.msra.mxu0 %v6422
        %6444 = vmatprep.subr.mxu0 0.0
        %6445 = vmatpush1.msra.mxu0 %v6423
        %6446 = vmatprep.subr.mxu0 0.0
        %6447 = vmatpush1.msra.mxu0 %v6424
        %6448 = vmatprep.subr.mxu0 0.0
        %6449 = vmatpush1.msra.mxu0 %v6425
        %6450 = vmatprep.subr.mxu0 0.0
        %6451 = vmatpush1.msra.mxu0 %v6426
        %6452 = vmatprep.subr.mxu0 0.0
        %6453 = vmatpush1.msra.mxu0 %v6427
        %6454 = vmatprep.subr.mxu0 0.0
        %6455 = vmatpush1.msra.mxu0 %v6428
        %6456 = vmatprep.subr.mxu0 0.0
        %6457 = vmatpush1.msra.mxu0 %v6429
        %6458 = vmatprep.subr.mxu0 0.0
        %6459 = vmatpush1.msra.mxu0 %v6430
        %6460 = vmatprep.subr.mxu0 0.0
        %6461 = vmatpush1.msra.mxu0 %v6431
        %6462 = vmatprep.subr.mxu0 0.0
        %6463 = vmatpush1.msra.mxu0 %v6432
        %6464 = vmatprep.subr.mxu0 0.0
        %6465 = vmatpush1.msra.mxu0 %v6433
        %6466 = vmatprep.subr.mxu0 0.0
        %6467 = vmatpush1.msra.mxu0 0.0
        %6468 = vmatprep.subr.mxu0 0.0
        %6469 = vmatpush1.msra.mxu0 0.0
        %6470 = vmatprep.subr.mxu0 0.0
        %6471 = vmatpush1.msra.mxu0 0.0
        %6472 = vmatprep.subr.mxu0 0.0
        %6473 = vmatpush1.msra.mxu0 0.0
        %6474 = vmatprep.subr.mxu0 0.0
        %6475 = vmatpush1.msra.mxu0 0.0
        %6476 = vmatprep.subr.mxu0 0.0
        %6477 = vmatpush1.msra.mxu0 0.0
        %6478 = vmatprep.subr.mxu0 0.0
        %6479 = vmatpush1.msra.mxu0 0.0
        %6480 = vmatprep.subr.mxu0 0.0
        %6481 = vmatpush1.msra.mxu0 0.0
        %6482 = vmatprep.subr.mxu0 0.0
        %6483 = vmatpush1.msra.mxu0 0.0
        %6484 = vmatprep.subr.mxu0 0.0
        %6485 = vmatpush1.msra.mxu0 0.0
        %6486 = vmatprep.subr.mxu0 0.0
        %6487 = vmatpush1.msra.mxu0 0.0
        %6488 = vmatprep.subr.mxu0 0.0
        %6489 = vmatpush1.msra.mxu0 0.0
        %6490 = vmatprep.subr.mxu0 0.0
        %6491 = vmatpush1.msra.mxu0 0.0
        %6492 = vmatprep.subr.mxu0 0.0
        %6493 = vmatpush1.msra.mxu0 0.0
        %6494 = vmatprep.subr.mxu0 0.0
        %6495 = vmatpush1.msra.mxu0 0.0
        %6496 = vmatprep.subr.mxu0 0.0
        %6497 = vmatpush1.msra.mxu0 0.0
        %6498 = vmatprep.mubr.f32.mxu0 0.0
        %6499 = vmatmul.mubr.f32.gmra.mrb[0].mxu0 %v6399
        %v6500 = vpop.f32.mrb[0].mxu0
        %v6501 = vadd.f32 0.0, %v6500
        %v6502 = vpop.f32.mrb[0].mxu0
        %6503 = vmatprep.mubr.f32.mxu0 0.0
        %6504 = vmatmul.mubr.f32.gmra.mrb[0].mxu0 %v6400
        %v6505 = vpop.f32.mrb[0].mxu0
        %v6506 = vadd.f32 0.0, %v6505
        %v6507 = vpop.f32.mrb[0].mxu0
        %6508 = vmatprep.mubr.f32.mxu0 0.0
        %6509 = vmatmul.mubr.f32.gmra.mrb[0].mxu0 %v6401
        %v6510 = vpop.f32.mrb[0].mxu0
        %v6511 = vadd.f32 0.0, %v6510
        %v6512 = vpop.f32.mrb[0].mxu0
        %6513 = vmatprep.mubr.f32.mxu0 0.0
        %6514 = vmatmul.mubr.f32.gmra.mrb[0].mxu0 %v6402
        %v6515 = vpop.f32.mrb[0].mxu0
        %v6516 = vadd.f32 0.0, %v6515
        %v6517 = vpop.f32.mrb[0].mxu0
        %6518 = vmatprep.mubr.f32.mxu0 0.0
        %6519 = vmatmul.mubr.f32.gmra.mrb[0].mxu0 %v6403
        %v6520 = vpop.f32.mrb[0].mxu0
        %v6521 = vadd.f32 0.0, %v6520
        %v6522 = vpop.f32.mrb[0].mxu0
        %6523 = vmatprep.mubr.f32.mxu0 0.0
        %6524 = vmatmul.mubr.f32.gmra.mrb[0].mxu0 %v6404
        %v6525 = vpop.f32.mrb[0].mxu0
        %v6526 = vadd.f32 0.0, %v6525
        %v6527 = vpop.f32.mrb[0].mxu0
        %6528 = vmatprep.mubr.f32.mxu0 0.0
        %6529 = vmatmul.mubr.f32.gmra.mrb[0].mxu0 %v6405
        %v6530 = vpop.f32.mrb[0].mxu0
        %v6531 = vadd.f32 0.0, %v6530
        %v6532 = vpop.f32.mrb[0].mxu0
        %6533 = vmatprep.mubr.f32.mxu0 0.0
        %6534 = vmatmul.mubr.f32.gmra.mrb[0].mxu0 %v6406
        %v6535 = vpop.f32.mrb[0].mxu0
        %v6536 = vadd.f32 0.0, %v6535
        %v6537 = vpop.f32.mrb[0].mxu0
        %6538 = vmatprep.mubr.f32.mxu0 0.0
        %6539 = vmatmul.mubr.f32.gmra.mrb[0].mxu0 %v6407
        %v6540 = vpop.f32.mrb[0].mxu0
        %v6541 = vadd.f32 0.0, %v6540
        %v6542 = vpop.f32.mrb[0].mxu0
        %6543 = vmatprep.mubr.f32.mxu0 0.0
        %6544 = vmatmul.mubr.f32.gmra.mrb[0].mxu0 %v6408
        %v6545 = vpop.f32.mrb[0].mxu0
        %v6546 = vadd.f32 0.0, %v6545
        %v6547 = vpop.f32.mrb[0].mxu0
        %6548 = vmatprep.mubr.f32.mxu0 0.0
        %6549 = vmatmul.mubr.f32.gmra.mrb[0].mxu0 %v6409
        %v6550 = vpop.f32.mrb[0].mxu0
        %v6551 = vadd.f32 0.0, %v6550
        %v6552 = vpop.f32.mrb[0].mxu0
        %6553 = vmatprep.mubr.f32.mxu0 0.0
        %6554 = vmatmul.mubr.f32.gmra.mrb[0].mxu0 %v6410
        %v6555 = vpop.f32.mrb[0].mxu0
        %v6556 = vadd.f32 0.0, %v6555
        %v6557 = vpop.f32.mrb[0].mxu0
        %6558 = vmatprep.mubr.f32.mxu0 0.0
        %6559 = vmatmul.mubr.f32.gmra.mrb[0].mxu0 %v6411
        %v6560 = vpop.f32.mrb[0].mxu0
        %v6561 = vadd.f32 0.0, %v6560
        %v6562 = vpop.f32.mrb[0].mxu0
        %6563 = vmatprep.mubr.f32.mxu0 0.0
        %6564 = vmatmul.mubr.f32.gmra.mrb[0].mxu0 %v6412
        %v6565 = vpop.f32.mrb[0].mxu0
        %v6566 = vadd.f32 0.0, %v6565
        %v6567 = vpop.f32.mrb[0].mxu0
        %6568 = vmatprep.mubr.f32.mxu0 0.0
        %6569 = vmatmul.mubr.f32.gmra.mrb[0].mxu0 %v6413
        %v6570 = vpop.f32.mrb[0].mxu0
        %v6571 = vadd.f32 0.0, %v6570
        %v6572 = vpop.f32.mrb[0].mxu0
        %6573 = vmatprep.mubr.f32.mxu0 0.0
        %6574 = vmatmul.mubr.f32.gmra.mrb[0].mxu0 %v6414
        %v6575 = vpop.f32.mrb[0].mxu0
        %v6576 = vadd.f32 0.0, %v6575
        %v6577 = vpop.f32.mrb[0].mxu0
        %6578 = vmatprep.mubr.f32.mxu0 0.0
        %6579 = vmatmul.mubr.f32.gmra.mrb[0].mxu0 %v6415
        %v6580 = vpop.f32.mrb[0].mxu0
        %v6581 = vadd.f32 0.0, %v6580
        %v6582 = vpop.f32.mrb[0].mxu0
        %6583 = vmatprep.mubr.f32.mxu0 0.0
        %6584 = vmatmul.mubr.f32.gmra.mrb[0].mxu0 %v6416
        %v6585 = vpop.f32.mrb[0].mxu0
        %v6586 = vadd.f32 0.0, %v6585
        %v6587 = vpop.f32.mrb[0].mxu0
        %6588 = vdwg.mxu0
        %v6589 = vadd.f32 %v6381, %v6501
        %v6590 = vadd.f32 %v6382, %v6506
        %v6591 = vadd.f32 %v6383, %v6511
        %v6592 = vadd.f32 %v6384, %v6516
        %v6593 = vadd.f32 %v6385, %v6521
        %v6594 = vadd.f32 %v6386, %v6526
        %v6595 = vadd.f32 %v6387, %v6531
        %v6596 = vadd.f32 %v6388, %v6536
        %v6597 = vadd.f32 %v6389, %v6541
        %v6598 = vadd.f32 %v6390, %v6546
        %v6599 = vadd.f32 %v6391, %v6551
        %v6600 = vadd.f32 %v6392, %v6556
        %v6601 = vadd.f32 %v6393, %v6561
        %v6602 = vadd.f32 %v6394, %v6566
        %v6603 = vadd.f32 %v6395, %v6571
        %v6604 = vadd.f32 %v6396, %v6576
        %v6605 = vadd.f32 %v6397, %v6581
        %v6606 = vadd.f32 %v6398, %v6586
        %v6607 = vld [vmem:[#allocation8] sm:$0x1]
        %v6609 = vlaneseq
        %v6610 = vshrl.u32 %v6609, 7
        %v6611 = vsub.s32 0, %v6610
        %v6612 = vrot.slane %v6607, %v6611
        %v6614 = vadd.f32 %v6589, %v6612
        %v6615 = vadd.f32 %v6590, %v6612
        %v6616 = vadd.f32 %v6591, %v6612
        %v6617 = vadd.f32 %v6592, %v6612
        %v6618 = vadd.f32 %v6593, %v6612
        %v6619 = vadd.f32 %v6594, %v6612
        %v6620 = vadd.f32 %v6595, %v6612
        %v6621 = vadd.f32 %v6596, %v6612
        %v6622 = vadd.f32 %v6597, %v6612
        %v6623 = vadd.f32 %v6598, %v6612
        %v6624 = vadd.f32 %v6599, %v6612
        %v6625 = vadd.f32 %v6600, %v6612
        %v6626 = vadd.f32 %v6601, %v6612
        %v6627 = vadd.f32 %v6602, %v6612
        %v6628 = vadd.f32 %v6603, %v6612
        %v6629 = vadd.f32 %v6604, %v6612
        %v6630 = vadd.f32 %v6605, %v6612
        %v6631 = vadd.f32 %v6606, %v6612
        %vm6632 = vcmp.ge.f32.partialorder %v6614, 0.0
        %vm6633 = vcmp.ge.f32.partialorder %v6615, 0.0
        %vm6634 = vcmp.ge.f32.partialorder %v6616, 0.0
        %vm6635 = vcmp.ge.f32.partialorder %v6617, 0.0
        %vm6636 = vcmp.ge.f32.partialorder %v6618, 0.0
        %vm6637 = vcmp.ge.f32.partialorder %v6619, 0.0
        %vm6638 = vcmp.ge.f32.partialorder %v6620, 0.0
        %vm6639 = vcmp.ge.f32.partialorder %v6621, 0.0
        %vm6640 = vcmp.ge.f32.partialorder %v6622, 0.0
        %vm6641 = vcmp.ge.f32.partialorder %v6623, 0.0
        %vm6642 = vcmp.ge.f32.partialorder %v6624, 0.0
        %vm6643 = vcmp.ge.f32.partialorder %v6625, 0.0
        %vm6644 = vcmp.ge.f32.partialorder %v6626, 0.0
        %vm6645 = vcmp.ge.f32.partialorder %v6627, 0.0
        %vm6646 = vcmp.ge.f32.partialorder %v6628, 0.0
        %vm6647 = vcmp.ge.f32.partialorder %v6629, 0.0
        %vm6648 = vcmp.ge.f32.partialorder %v6630, 0.0
        %vm6649 = vcmp.ge.f32.partialorder %v6631, 0.0
        %v6650 = vmul.f32 %v6614, 0.1
        %v6651 = vmul.f32 %v6615, 0.1
        %v6652 = vmul.f32 %v6616, 0.1
        %v6653 = vmul.f32 %v6617, 0.1
        %v6654 = vmul.f32 %v6618, 0.1
        %v6655 = vmul.f32 %v6619, 0.1
        %v6656 = vmul.f32 %v6620, 0.1
        %v6657 = vmul.f32 %v6621, 0.1
        %v6658 = vmul.f32 %v6622, 0.1
        %v6659 = vmul.f32 %v6623, 0.1
        %v6660 = vmul.f32 %v6624, 0.1
        %v6661 = vmul.f32 %v6625, 0.1
        %v6662 = vmul.f32 %v6626, 0.1
        %v6663 = vmul.f32 %v6627, 0.1
        %v6664 = vmul.f32 %v6628, 0.1
        %v6665 = vmul.f32 %v6629, 0.1
        %v6666 = vmul.f32 %v6630, 0.1
        %v6667 = vmul.f32 %v6631, 0.1
        %v6668 = vsel %vm6632, %v6614, %v6650
        %v6669 = vsel %vm6633, %v6615, %v6651
        %v6670 = vsel %vm6634, %v6616, %v6652
        %v6671 = vsel %vm6635, %v6617, %v6653
        %v6672 = vsel %vm6636, %v6618, %v6654
        %v6673 = vsel %vm6637, %v6619, %v6655
        %v6674 = vsel %vm6638, %v6620, %v6656
        %v6675 = vsel %vm6639, %v6621, %v6657
        %v6676 = vsel %vm6640, %v6622, %v6658
        %v6677 = vsel %vm6641, %v6623, %v6659
        %v6678 = vsel %vm6642, %v6624, %v6660
        %v6679 = vsel %vm6643, %v6625, %v6661
        %v6680 = vsel %vm6644, %v6626, %v6662
        %v6681 = vsel %vm6645, %v6627, %v6663
        %v6682 = vsel %vm6646, %v6628, %v6664
        %v6683 = vsel %vm6647, %v6629, %v6665
        %v6684 = vsel %vm6648, %v6630, %v6666
        %v6685 = vsel %vm6649, %v6631, %v6667
        %v6686 = vld [vmem:[%s6] sm:$0xff]
        %v6687 = vld [vmem:[%s6 + $0x8] sm:$0xff]
        %v6688 = vld [vmem:[%s6 + $0x10] sm:$0xff]
        %v6689 = vld [vmem:[%s6 + $0x18] sm:$0xff]
        %v6690 = vld [vmem:[%s6 + $0x20] sm:$0xff]
        %v6691 = vld [vmem:[%s6 + $0x28] sm:$0xff]
        %v6692 = vld [vmem:[%s6 + $0x30] sm:$0xff]
        %v6693 = vld [vmem:[%s6 + $0x38] sm:$0xff]
        %v6694 = vld [vmem:[%s6 + $0x40] sm:$0xff]
        %v6695 = vld [vmem:[%s6 + $0x48] sm:$0xff]
        %v6696 = vld [vmem:[%s6 + $0x50] sm:$0xff]
        %v6697 = vld [vmem:[%s6 + $0x58] sm:$0xff]
        %v6698 = vld [vmem:[%s6 + $0x60] sm:$0xff]
        %v6699 = vld [vmem:[%s6 + $0x68] sm:$0xff]
        %v6700 = vld [vmem:[%s6 + $0x70] sm:$0xff]
        %v6701 = vld [vmem:[%s6 + $0x78] sm:$0xff]
        %v6702 = vld [vmem:[%s367 + $0x2b] sm:$0xff]
        %v6703 = vld [vmem:[%s367 + $0x33] sm:$0xff]
        %v6704 = vld [vmem:[%s367 + $0x3b] sm:$0xff]
        %v6705 = vld [vmem:[%s367 + $0x43] sm:$0xff]
        %v6706 = vld [vmem:[%s367 + $0x4b] sm:$0xff]
        %v6707 = vld [vmem:[%s367 + $0x53] sm:$0xff]
        %v6708 = vld [vmem:[%s367 + $0x5b] sm:$0xff]
        %v6709 = vld [vmem:[%s367 + $0x63] sm:$0xff]
        %v6710 = vld [vmem:[%s367 + $0x6b] sm:$0xff]
        %v6711 = vld [vmem:[%s367 + $0x73] sm:$0xff]
        %v6712 = vld [vmem:[%s367 + $0x7b] sm:$0xff]
        %v6713 = vld [vmem:[%s367 + $0x83] sm:$0xff]
        %v6714 = vld [vmem:[%s367 + $0x8b] sm:$0xff]
        %v6715 = vld [vmem:[%s367 + $0x93] sm:$0xff]
        %v6716 = vld [vmem:[%s367 + $0x9b] sm:$0xff]
        %v6717 = vld [vmem:[%s367 + $0xa3] sm:$0xff]
        %v6718 = vld [vmem:[%s367 + $0xab] sm:$0xff]
        %v6719 = vld [vmem:[%s367 + $0xb3] sm:$0xff]
        %v6720 = vld [vmem:[#allocation10] sm:$0x1]
        %v6722 = vlaneseq
        %v6723 = vshrl.u32 %v6722, 7
        %v6724 = vsub.s32 0, %v6723
        %v6725 = vrot.slane %v6720, %v6724
        %6727 = vmatprep.subr.mxu0 0.0
        %6728 = vmatpush1.msra.mxu0 %v6686
        %6729 = vmatprep.subr.mxu0 0.0
        %6730 = vmatpush1.msra.mxu0 %v6687
        %6731 = vmatprep.subr.mxu0 0.0
        %6732 = vmatpush1.msra.mxu0 %v6688
        %6733 = vmatprep.subr.mxu0 0.0
        %6734 = vmatpush1.msra.mxu0 %v6689
        %6735 = vmatprep.subr.mxu0 0.0
        %6736 = vmatpush1.msra.mxu0 %v6690
        %6737 = vmatprep.subr.mxu0 0.0
        %6738 = vmatpush1.msra.mxu0 %v6691
        %6739 = vmatprep.subr.mxu0 0.0
        %6740 = vmatpush1.msra.mxu0 %v6692
        %6741 = vmatprep.subr.mxu0 0.0
        %6742 = vmatpush1.msra.mxu0 %v6693
        %6743 = vmatprep.subr.mxu0 0.0
        %6744 = vmatpush1.msra.mxu0 %v6694
        %6745 = vmatprep.subr.mxu0 0.0
        %6746 = vmatpush1.msra.mxu0 %v6695
        %6747 = vmatprep.subr.mxu0 0.0
        %6748 = vmatpush1.msra.mxu0 %v6696
        %6749 = vmatprep.subr.mxu0 0.0
        %6750 = vmatpush1.msra.mxu0 %v6697
        %6751 = vmatprep.subr.mxu0 0.0
        %6752 = vmatpush1.msra.mxu0 %v6698
        %6753 = vmatprep.subr.mxu0 0.0
        %6754 = vmatpush1.msra.mxu0 %v6699
        %6755 = vmatprep.subr.mxu0 0.0
        %6756 = vmatpush1.msra.mxu0 %v6700
        %6757 = vmatprep.subr.mxu0 0.0
        %6758 = vmatpush1.msra.mxu0 %v6701
        %6759 = vmatprep.subr.mxu0 0.0
        %6760 = vmatpush1.msra.mxu0 0.0
        %6761 = vmatprep.subr.mxu0 0.0
        %6762 = vmatpush1.msra.mxu0 0.0
        %6763 = vmatprep.subr.mxu0 0.0
        %6764 = vmatpush1.msra.mxu0 0.0
        %6765 = vmatprep.subr.mxu0 0.0
        %6766 = vmatpush1.msra.mxu0 0.0
        %6767 = vmatprep.subr.mxu0 0.0
        %6768 = vmatpush1.msra.mxu0 0.0
        %6769 = vmatprep.subr.mxu0 0.0
        %6770 = vmatpush1.msra.mxu0 0.0
        %6771 = vmatprep.subr.mxu0 0.0
        %6772 = vmatpush1.msra.mxu0 0.0
        %6773 = vmatprep.subr.mxu0 0.0
        %6774 = vmatpush1.msra.mxu0 0.0
        %6775 = vmatprep.subr.mxu0 0.0
        %6776 = vmatpush1.msra.mxu0 0.0
        %6777 = vmatprep.subr.mxu0 0.0
        %6778 = vmatpush1.msra.mxu0 0.0
        %6779 = vmatprep.subr.mxu0 0.0
        %6780 = vmatpush1.msra.mxu0 0.0
        %6781 = vmatprep.subr.mxu0 0.0
        %6782 = vmatpush1.msra.mxu0 0.0
        %6783 = vmatprep.subr.mxu0 0.0
        %6784 = vmatpush1.msra.mxu0 0.0
        %6785 = vmatprep.subr.mxu0 0.0
        %6786 = vmatpush1.msra.mxu0 0.0
        %6787 = vmatprep.subr.mxu0 0.0
        %6788 = vmatpush1.msra.mxu0 0.0
        %6789 = vmatprep.subr.mxu0 0.0
        %6790 = vmatpush1.msra.mxu0 0.0
        %6791 = vmatprep.mubr.f32.mxu0 0.0
        %6792 = vmatmul.mubr.f32.gmra.mrb[0].mxu0 %v6668
        %v6793 = vpop.f32.mrb[0].mxu0
        %v6794 = vadd.f32 %v6725, %v6793
        %v6795 = vpop.f32.mrb[0].mxu0
        %6796 = vmatprep.mubr.f32.mxu0 0.0
        %6797 = vmatmul.mubr.f32.gmra.mrb[0].mxu0 %v6669
        %v6798 = vpop.f32.mrb[0].mxu0
        %v6799 = vadd.f32 %v6725, %v6798
        %v6800 = vpop.f32.mrb[0].mxu0
        %6801 = vmatprep.mubr.f32.mxu0 0.0
        %6802 = vmatmul.mubr.f32.gmra.mrb[0].mxu0 %v6670
        %v6803 = vpop.f32.mrb[0].mxu0
        %v6804 = vadd.f32 %v6725, %v6803
        %v6805 = vpop.f32.mrb[0].mxu0
        %6806 = vmatprep.mubr.f32.mxu0 0.0
        %6807 = vmatmul.mubr.f32.gmra.mrb[0].mxu0 %v6671
        %v6808 = vpop.f32.mrb[0].mxu0
        %v6809 = vadd.f32 %v6725, %v6808
        %v6810 = vpop.f32.mrb[0].mxu0
        %6811 = vmatprep.mubr.f32.mxu0 0.0
        %6812 = vmatmul.mubr.f32.gmra.mrb[0].mxu0 %v6672
        %v6813 = vpop.f32.mrb[0].mxu0
        %v6814 = vadd.f32 %v6725, %v6813
        %v6815 = vpop.f32.mrb[0].mxu0
        %6816 = vmatprep.mubr.f32.mxu0 0.0
        %6817 = vmatmul.mubr.f32.gmra.mrb[0].mxu0 %v6673
        %v6818 = vpop.f32.mrb[0].mxu0
        %v6819 = vadd.f32 %v6725, %v6818
        %v6820 = vpop.f32.mrb[0].mxu0
        %6821 = vmatprep.mubr.f32.mxu0 0.0
        %6822 = vmatmul.mubr.f32.gmra.mrb[0].mxu0 %v6674
        %v6823 = vpop.f32.mrb[0].mxu0
        %v6824 = vadd.f32 %v6725, %v6823
        %v6825 = vpop.f32.mrb[0].mxu0
        %6826 = vmatprep.mubr.f32.mxu0 0.0
        %6827 = vmatmul.mubr.f32.gmra.mrb[0].mxu0 %v6675
        %v6828 = vpop.f32.mrb[0].mxu0
        %v6829 = vadd.f32 %v6725, %v6828
        %v6830 = vpop.f32.mrb[0].mxu0
        %6831 = vmatprep.mubr.f32.mxu0 0.0
        %6832 = vmatmul.mubr.f32.gmra.mrb[0].mxu0 %v6676
        %v6833 = vpop.f32.mrb[0].mxu0
        %v6834 = vadd.f32 %v6725, %v6833
        %v6835 = vpop.f32.mrb[0].mxu0
        %6836 = vmatprep.mubr.f32.mxu0 0.0
        %6837 = vmatmul.mubr.f32.gmra.mrb[0].mxu0 %v6677
        %v6838 = vpop.f32.mrb[0].mxu0
        %v6839 = vadd.f32 %v6725, %v6838
        %v6840 = vpop.f32.mrb[0].mxu0
        %6841 = vmatprep.mubr.f32.mxu0 0.0
        %6842 = vmatmul.mubr.f32.gmra.mrb[0].mxu0 %v6678
        %v6843 = vpop.f32.mrb[0].mxu0
        %v6844 = vadd.f32 %v6725, %v6843
        %v6845 = vpop.f32.mrb[0].mxu0
        %6846 = vmatprep.mubr.f32.mxu0 0.0
        %6847 = vmatmul.mubr.f32.gmra.mrb[0].mxu0 %v6679
        %v6848 = vpop.f32.mrb[0].mxu0
        %v6849 = vadd.f32 %v6725, %v6848
        %v6850 = vpop.f32.mrb[0].mxu0
        %6851 = vmatprep.mubr.f32.mxu0 0.0
        %6852 = vmatmul.mubr.f32.gmra.mrb[0].mxu0 %v6680
        %v6853 = vpop.f32.mrb[0].mxu0
        %v6854 = vadd.f32 %v6725, %v6853
        %v6855 = vpop.f32.mrb[0].mxu0
        %6856 = vmatprep.mubr.f32.mxu0 0.0
        %6857 = vmatmul.mubr.f32.gmra.mrb[0].mxu0 %v6681
        %v6858 = vpop.f32.mrb[0].mxu0
        %v6859 = vadd.f32 %v6725, %v6858
        %v6860 = vpop.f32.mrb[0].mxu0
        %6861 = vmatprep.mubr.f32.mxu0 0.0
        %6862 = vmatmul.mubr.f32.gmra.mrb[0].mxu0 %v6682
        %v6863 = vpop.f32.mrb[0].mxu0
        %v6864 = vadd.f32 %v6725, %v6863
        %v6865 = vpop.f32.mrb[0].mxu0
        %6866 = vmatprep.mubr.f32.mxu0 0.0
        %6867 = vmatmul.mubr.f32.gmra.mrb[0].mxu0 %v6683
        %v6868 = vpop.f32.mrb[0].mxu0
        %v6869 = vadd.f32 %v6725, %v6868
        %v6870 = vpop.f32.mrb[0].mxu0
        %6871 = vmatprep.mubr.f32.mxu0 0.0
        %6872 = vmatmul.mubr.f32.gmra.mrb[0].mxu0 %v6684
        %v6873 = vpop.f32.mrb[0].mxu0
        %v6874 = vadd.f32 %v6725, %v6873
        %v6875 = vpop.f32.mrb[0].mxu0
        %6876 = vmatprep.mubr.f32.mxu0 0.0
        %6877 = vmatmul.mubr.f32.gmra.mrb[0].mxu0 %v6685
        %v6878 = vpop.f32.mrb[0].mxu0
        %v6879 = vadd.f32 %v6725, %v6878
        %v6880 = vpop.f32.mrb[0].mxu0
        %6881 = vdwg.mxu0
        %v6882 = vadd.f32 %v6794, %v6702
        %v6883 = vadd.f32 %v6799, %v6703
        %v6884 = vadd.f32 %v6804, %v6704
        %v6885 = vadd.f32 %v6809, %v6705
        %v6886 = vadd.f32 %v6814, %v6706
        %v6887 = vadd.f32 %v6819, %v6707
        %v6888 = vadd.f32 %v6824, %v6708
        %v6889 = vadd.f32 %v6829, %v6709
        %v6890 = vadd.f32 %v6834, %v6710
        %v6891 = vadd.f32 %v6839, %v6711
        %v6892 = vadd.f32 %v6844, %v6712
        %v6893 = vadd.f32 %v6849, %v6713
        %v6894 = vadd.f32 %v6854, %v6714
        %v6895 = vadd.f32 %v6859, %v6715
        %v6896 = vadd.f32 %v6864, %v6716
        %v6897 = vadd.f32 %v6869, %v6717
        %v6898 = vadd.f32 %v6874, %v6718
        %v6899 = vadd.f32 %v6879, %v6719
        %vm6900 = vcmp.ge.f32.partialorder %v6882, 0.0
        %vm6901 = vcmp.ge.f32.partialorder %v6883, 0.0
        %vm6902 = vcmp.ge.f32.partialorder %v6884, 0.0
        %vm6903 = vcmp.ge.f32.partialorder %v6885, 0.0
        %vm6904 = vcmp.ge.f32.partialorder %v6886, 0.0
        %vm6905 = vcmp.ge.f32.partialorder %v6887, 0.0
        %vm6906 = vcmp.ge.f32.partialorder %v6888, 0.0
        %vm6907 = vcmp.ge.f32.partialorder %v6889, 0.0
        %vm6908 = vcmp.ge.f32.partialorder %v6890, 0.0
        %vm6909 = vcmp.ge.f32.partialorder %v6891, 0.0
        %vm6910 = vcmp.ge.f32.partialorder %v6892, 0.0
        %vm6911 = vcmp.ge.f32.partialorder %v6893, 0.0
        %vm6912 = vcmp.ge.f32.partialorder %v6894, 0.0
        %vm6913 = vcmp.ge.f32.partialorder %v6895, 0.0
        %vm6914 = vcmp.ge.f32.partialorder %v6896, 0.0
        %vm6915 = vcmp.ge.f32.partialorder %v6897, 0.0
        %vm6916 = vcmp.ge.f32.partialorder %v6898, 0.0
        %vm6917 = vcmp.ge.f32.partialorder %v6899, 0.0
        %v6918 = vmul.f32 %v6882, 0.1
        %v6919 = vmul.f32 %v6883, 0.1
        %v6920 = vmul.f32 %v6884, 0.1
        %v6921 = vmul.f32 %v6885, 0.1
        %v6922 = vmul.f32 %v6886, 0.1
        %v6923 = vmul.f32 %v6887, 0.1
        %v6924 = vmul.f32 %v6888, 0.1
        %v6925 = vmul.f32 %v6889, 0.1
        %v6926 = vmul.f32 %v6890, 0.1
        %v6927 = vmul.f32 %v6891, 0.1
        %v6928 = vmul.f32 %v6892, 0.1
        %v6929 = vmul.f32 %v6893, 0.1
        %v6930 = vmul.f32 %v6894, 0.1
        %v6931 = vmul.f32 %v6895, 0.1
        %v6932 = vmul.f32 %v6896, 0.1
        %v6933 = vmul.f32 %v6897, 0.1
        %v6934 = vmul.f32 %v6898, 0.1
        %v6935 = vmul.f32 %v6899, 0.1
        %v6936 = vsel %vm6900, %v6882, %v6918
        %v6937 = vsel %vm6901, %v6883, %v6919
        %v6938 = vsel %vm6902, %v6884, %v6920
        %v6939 = vsel %vm6903, %v6885, %v6921
        %v6940 = vsel %vm6904, %v6886, %v6922
        %v6941 = vsel %vm6905, %v6887, %v6923
        %v6942 = vsel %vm6906, %v6888, %v6924
        %v6943 = vsel %vm6907, %v6889, %v6925
        %v6944 = vsel %vm6908, %v6890, %v6926
        %v6945 = vsel %vm6909, %v6891, %v6927
        %v6946 = vsel %vm6910, %v6892, %v6928
        %v6947 = vsel %vm6911, %v6893, %v6929
        %v6948 = vsel %vm6912, %v6894, %v6930
        %v6949 = vsel %vm6913, %v6895, %v6931
        %v6950 = vsel %vm6914, %v6896, %v6932
        %v6951 = vsel %vm6915, %v6897, %v6933
        %v6952 = vsel %vm6916, %v6898, %v6934
        %v6953 = vsel %vm6917, %v6899, %v6935
        %6954 = vst.msk [vmem:[%s372] sm:$0xff] %vm411, %v6936
        %6955 = vst.msk [vmem:[%s372 + $0x8] sm:$0xff] %vm411, %v6937
        %6956 = vst.msk [vmem:[%s372 + $0x10] sm:$0xff] %vm411, %v6938
        %6957 = vst.msk [vmem:[%s372 + $0x18] sm:$0xff] %vm411, %v6939
        %6958 = vst.msk [vmem:[%s372 + $0x20] sm:$0xff] %vm411, %v6940
        %6959 = vst.msk [vmem:[%s372 + $0x28] sm:$0xff] %vm411, %v6941
        %6960 = vst.msk [vmem:[%s372 + $0x30] sm:$0xff] %vm411, %v6942
        %6961 = vst.msk [vmem:[%s372 + $0x38] sm:$0xff] %vm411, %v6943
        %6962 = vst.msk [vmem:[%s372 + $0x40] sm:$0xff] %vm411, %v6944
        %6963 = vst.msk [vmem:[%s372 + $0x48] sm:$0xff] %vm411, %v6945
        %6964 = vst.msk [vmem:[%s372 + $0x50] sm:$0xff] %vm411, %v6946
        %6965 = vst.msk [vmem:[%s372 + $0x58] sm:$0xff] %vm411, %v6947
        %6966 = vst.msk [vmem:[%s372 + $0x60] sm:$0xff] %vm411, %v6948
        %6967 = vst.msk [vmem:[%s372 + $0x68] sm:$0xff] %vm411, %v6949
        %6968 = vst.msk [vmem:[%s372 + $0x70] sm:$0xff] %vm411, %v6950
        %6969 = vst.msk [vmem:[%s372 + $0x78] sm:$0xff] %vm411, %v6951
        %6970 = vst.msk [vmem:[%s372 + $0x80] sm:$0xff] %vm411, %v6952
        %6971 = vst.msk [vmem:[%s372 + $0x88] sm:$0xff] %vm411, %v6953
        %p6972 = scmp.lt.s32.totalorder %s22, 1
        %s6973 = scalar_select %p6972, %s22, 1
        %s6974 = smul.addr %s6973, 18
        %s6975 = smul.addr %s6974, 8
        %s6976 = scalar_lea.vmem %s8, %s6975
        // Predicated region
        $region73: #{tpu_custom_call.1} parent=51 // pred_check
          %p6977 = pneg %p213
        $region74: #{tpu_custom_call.1} parent=51 // pred_check_branch
          %6979 = sbr.rel (%p6977) target = $region76
        $region75: #{tpu_custom_call.1} parent=51 // pred_region
          _
        $region76: #{tpu_custom_call.1} parent=51 // pred_fallthru
          _
      $region52: #{tpu_custom_call.1} parent=5 // pred_fallthru
        _
      %p6980 = scmp.le.s32.totalorder 2, %s17
      // Predicated region
      $region77: #{tpu_custom_call.1} parent=5 // pred_check
        %p6981 = pneg %p6980
      $region78: #{tpu_custom_call.1} parent=5 // pred_check_branch
        %6983 = sbr.rel (%p6981) target = $region80
      $region79: #{tpu_custom_call.1} parent=5 // pred_region
        %s6984 = ssub.s32 %s17, 2
        // Predicated region
        $region81: #{tpu_custom_call.1} parent=79 // pred_check
          %p6985 = pneg %p219
        $region82: #{tpu_custom_call.1} parent=79 // pred_check_branch
          %6987 = sbr.rel (%p6985) target = $region84
        $region83: #{tpu_custom_call.1} parent=79 // pred_region
          %p6988 = scmp.lt.s32.totalorder %s23, 1
          %s6989 = scalar_select %p6988, %s23, 1
          %s6990 = smul.addr %s6989, 18
          %s6991 = smul.addr %s6990, 8
          %s6992 = scalar_lea.vmem %s8, %s6991
        $region84: #{tpu_custom_call.1} parent=79 // pred_fallthru
          _
      $region80: #{tpu_custom_call.1} parent=5 // pred_fallthru
        _
    $region6: #{tpu_custom_call.1} parent=1 // loop_footer
      %s21 = sadd.s32 1, %s17
    $region7: #{tpu_custom_call.1} parent=1 // loop_footer_branch
      %16 = sbr.rel target = $region3
    $region8: #{tpu_custom_call.1} parent=1 // loop_exit
      _
    %6993 = vsyncpa [#allocation4], 1
    %s6994 = scalar_lea.sflag [#allocation4], 1
    %6995 = vsyncpa %s6994, 1
    %6996 = vsyncpa [#allocation6], 1
    %6997 = vsyncpa [#allocation9], 1

</llo_original>
